<compile_context>
chip_gen: v7x
topology: tpu7x:2x2x1
jax: 0.10.0
libtpu: 0.0.40
codegen_flags: <defaults>
</compile_context>

<pallas_src>
import functools
import math

import jax
import jax.numpy as jnp
from jax.experimental import pallas as pl
from jax.experimental.pallas import tpu as pltpu

G_GRIDS = 8
NUM_BASIS = G_GRIDS + 1               # SiLU base + 8 gaussian RBF splines
GRID_MIN, GRID_MAX = -2.0, 2.0
DENOM = (GRID_MAX - GRID_MIN) / (G_GRIDS - 1)
LN_EPS = 1e-5
BN_EPS = 1e-5


def _round_up(a, b):
    return (a + b - 1) // b * b


def _device_kind():
    try:
        return jax.devices()[0].device_kind.lower()
    except Exception:
        return ""


# ----------------------------------------------------------------------------
# Pallas kernel: streamed FastKAN conv + folded BatchNorm + ReLU
# grid = (Cout blocks, M blocks, basis)   -- basis axis is the reduction ("arbitrary")
# ----------------------------------------------------------------------------
def _kan_conv_bn_relu_kernel(x_ref, ln_g_ref, ln_b_ref, w_ref, ws_ref, b_ref,
                             o_ref, t_ref, acc_ref, *, k_true):
    g = pl.program_id(2)

    # int8 weight chunk -> bf16 (exact for |q| <= 127); per-(basis, channel) dequant scale
    # is applied to the f32 partial result so padded K rows / Cout lanes stay exactly zero.
    w = w_ref[...].astype(jnp.float32).astype(jnp.bfloat16)        # (K_pad, TN)
    scale = ws_ref[0]                                              # (1, TN) f32

    @pl.when(g == 0)
    def _():
        # Base step: LayerNorm statistics (centered form, padding-masked), cache
        # t = LN(x)/denom for the spline steps, accumulate the SiLU base-path dot.
        x = x_ref[...].astype(jnp.float32)                         # (TM, K_pad)
        col = jax.lax.broadcasted_iota(jnp.int32, x.shape, 1)
        valid = col < k_true
        inv_k = 1.0 / float(k_true)
        mean = jnp.sum(x, axis=-1, keepdims=True) * inv_k          # padded cols are zero
        xc = jnp.where(valid, x - mean, 0.0)
        var = jnp.sum(xc * xc, axis=-1, keepdims=True) * inv_k
        xn = xc * jax.lax.rsqrt(var + LN_EPS)
        xn = xn * ln_g_ref[...] + ln_b_ref[...]
        t_ref[...] = xn * (1.0 / DENOM)

        base = (x * jax.nn.sigmoid(x)).astype(jnp.bfloat16)        # SiLU, f32 math (v5e EUP)
        acc_ref[...] = jnp.dot(base, w, preferred_element_type=jnp.float32) * scale

    @pl.when(g > 0)
    def _():
        # Spline step g-1: gaussian RBF of the cached normalized patches.
        c = GRID_MIN / DENOM + (g - 1).astype(jnp.float32)         # center_g / denom
        rbf = jnp.exp(-jnp.square(t_ref[...] - c)).astype(jnp.bfloat16)
        acc_ref[...] += jnp.dot(rbf, w, preferred_element_type=jnp.float32) * scale

    @pl.when(g == pl.num_programs(2) - 1)
    def _():
        # Folded eval-mode BatchNorm bias + ReLU epilogue, lane-dense bf16 store.
        o_ref[...] = jnp.maximum(acc_ref[...] + b_ref[...], 0.0).astype(o_ref.dtype)


def kan_conv_bn_relu(patches, bp):
    """patches: (M, K_pad) bf16 -> (M, Cout_pad) bf16 (post BN+ReLU, lane-dense)."""
    M, K_pad = patches.shape
    Cout_pad = bp["c_out_pad"]
    kind = _device_kind()

    # Output-lane tile: fill v6e's 256-wide MXU with a single weight stream; 128-wide
    # blocks elsewhere (v5e MXU width; on v7x the Cout split shares work across both TCs).
    if Cout_pad <= 128:
        TN = Cout_pad
    elif "v6" in kind and Cout_pad % 256 == 0:
        TN = 256
    else:
        TN = 128
    grid_n = Cout_pad // TN

    # Row tile: one block normally (per-step overhead dominates at these sizes); on v7x
    # split M when Cout is not split so both TensorCores get a program.
    if "v7" in kind and grid_n == 1 and M % 16 == 0:
        TM, grid_m = M // 2, 2
    elif M <= 1024 or M % 8 != 0:
        TM, grid_m = M, 1
    else:
        TM = next(t for t in (1024, 512, 256, 128, 64, 32, 16, 8) if M % t == 0)
        grid_m = M // TM

    kernel = functools.partial(_kan_conv_bn_relu_kernel, k_true=bp["k_true"])

    in_specs = [
        pl.BlockSpec((TM, K_pad), lambda j, i, g: (i, 0)),     # patches (bf16)
        pl.BlockSpec((1, K_pad), lambda j, i, g: (0, 0)),      # LN gamma
        pl.BlockSpec((1, K_pad), lambda j, i, g: (0, 0)),      # LN beta
        pl.BlockSpec((K_pad, TN), lambda j, i, g: (g, j)),     # int8 weight chunk, basis g
        pl.BlockSpec((1, 1, TN), lambda j, i, g: (g, 0, j)),   # per-(basis, channel) scale
        pl.BlockSpec((1, TN), lambda j, i, g: (0, j)),         # fused bias (BN folded)
    ]
    out_spec = pl.BlockSpec((TM, TN), lambda j, i, g: (i, j))

    return pl.pallas_call(
        kernel,
        out_shape=jax.ShapeDtypeStruct((M, Cout_pad), jnp.bfloat16),
        grid_spec=pltpu.PrefetchScalarGridSpec(
            num_scalar_prefetch=0,
            grid=(grid_n, grid_m, NUM_BASIS),
            in_specs=in_specs,
            out_specs=out_spec,
            scratch_shapes=[
                pltpu.VMEM((TM, K_pad), jnp.float32),          # cached t = LN(x)/denom
                pltpu.VMEM((TM, TN), jnp.float32),             # f32 accumulator
            ],
        ),
        compiler_params=pltpu.CompilerParams(
            dimension_semantics=("parallel", "parallel", "arbitrary"),
            vmem_limit_bytes=48 * 1024 * 1024,                 # < v7x 64 MiB physical VMEM
        ),
    )(patches, bp["ln_g"], bp["ln_b"], bp["w"], bp["ws"], bp["b"])


# ----------------------------------------------------------------------------
# Plain-JAX glue (NHWC end-to-end): im2col (+K padding), 2x2 max-pool
# ----------------------------------------------------------------------------
def im2col_3x3_nhwc(x, k_pad):
    """x: (N, H, W, C) -> (N*H*W, k_pad) bf16, (kh, kw, c) column ordering, zero lane pad."""
    N, H, W, C = x.shape
    xp = jnp.pad(x, ((0, 0), (1, 1), (1, 1), (0, 0)))
    cols = [xp[:, kh:kh + H, kw:kw + W, :] for kh in range(3) for kw in range(3)]
    p = jnp.concatenate(cols, axis=-1).reshape(N * H * W, 9 * C)
    if k_pad > 9 * C:
        p = jnp.pad(p, ((0, 0), (0, k_pad - 9 * C)))
    return p.astype(jnp.bfloat16)


def maxpool_2x2_nhwc(x):
    N, H, W, C = x.shape
    return jnp.max(x.reshape(N, H // 2, 2, W // 2, 2, C), axis=(2, 4))


def kkan_block(x, bp):
    """One KConv2 layer on NHWC activations: ConvKAN(3x3,pad1) -> BN(eval) -> ReLU -> MaxPool."""
    N, H, W, _ = x.shape
    patches = im2col_3x3_nhwc(x, bp["k_pad"])            # (N*H*W, K_pad) bf16
    y = kan_conv_bn_relu(patches, bp)                    # (N*H*W, Cout_pad) bf16
    y = y[:, :bp["c_out"]].reshape(N, H, W, bp["c_out"])
    return maxpool_2x2_nhwc(y)


# ----------------------------------------------------------------------------
# Deterministic parameter init + one-time fusion/folding/padding/int8 prep
# ----------------------------------------------------------------------------
def init_raw_block_params(key, c_in, c_out):
    K = c_in * 9
    k1, k2 = jax.random.split(key, 2)
    return {
        "ln_g": jnp.ones((K,), jnp.float32),
        "ln_b": jnp.zeros((K,), jnp.float32),
        "base_w": jax.random.normal(k1, (K, c_out), jnp.float32) * (1.0 / math.sqrt(K)),
        "base_b": jnp.zeros((c_out,), jnp.float32),
        "spl_w": (jax.random.normal(k2, (G_GRIDS, K, c_out), jnp.float32)
                  * (0.1 / math.sqrt(K * G_GRIDS))),
        # BatchNorm2d eval mode with __init__ state: weight=1, bias=0, mean=0, var=1
        "bn_gamma": jnp.ones((c_out,), jnp.float32),
        "bn_beta": jnp.zeros((c_out,), jnp.float32),
        "bn_mean": jnp.zeros((c_out,), jnp.float32),
        "bn_var": jnp.ones((c_out,), jnp.float32),
    }


def prepare_block_params(raw, c_in, c_out):
    """Fold eval-mode BN into weights, stack [base; spline_0..7], pad, int8-quantize."""
    K = c_in * 9
    K_pad = _round_up(K, 128)
    Cout_pad = _round_up(c_out, 128)

    bn_scale = raw["bn_gamma"] / jnp.sqrt(raw["bn_var"] + BN_EPS)          # (Cout,)
    bn_shift = raw["bn_beta"] - raw["bn_mean"] * bn_scale

    base_w = raw["base_w"] * bn_scale                                       # (K, Cout)
    spl_w = raw["spl_w"] * bn_scale                                         # (G, K, Cout)
    bias = raw["base_b"] * bn_scale + bn_shift                              # (Cout,)

    w_stack = jnp.concatenate([base_w[None], spl_w], axis=0)                # (G+1, K, Cout)
    w_stack = jnp.pad(w_stack, ((0, 0), (0, K_pad - K), (0, Cout_pad - c_out)))

    # Symmetric per-(basis, out-channel) int8 quantization (zero-point free -> padded
    # K rows / Cout lanes stay exactly zero).  Dequant scale applied in-kernel.
    absmax = jnp.max(jnp.abs(w_stack), axis=1)                              # (G+1, Cout_pad)
    scale = jnp.where(absmax > 0, absmax, 1.0) / 127.0
    w_q = jnp.clip(jnp.round(w_stack / scale[:, None, :]), -127, 127).astype(jnp.int8)

    return {
        "w": w_q.reshape(NUM_BASIS * K_pad, Cout_pad),                      # int8 fused weight
        "ws": scale.reshape(NUM_BASIS, 1, Cout_pad).astype(jnp.float32),    # dequant scales
        "b": jnp.pad(bias, (0, Cout_pad - c_out)).reshape(1, Cout_pad),
        "ln_g": jnp.pad(raw["ln_g"], (0, K_pad - K),
                        constant_values=1.0).reshape(1, K_pad),
        "ln_b": jnp.pad(raw["ln_b"], (0, K_pad - K)).reshape(1, K_pad),
        "k_true": K,          # static ints: close over params when jitting
        "k_pad": K_pad,
        "c_out": c_out,
        "c_out_pad": Cout_pad,
    }


def kconv2_forward(x, params, flatten=True):
    """x: NCHW f32 (PyTorch layout).  Activations are NHWC/bf16 between layers."""
    h = jnp.transpose(x, (0, 2, 3, 1))                   # NCHW -> NHWC once
    h = kkan_block(h, params["layer1"])
    h = kkan_block(h, params["layer2"])
    h = kkan_block(h, params["layer3"])
    h = jnp.transpose(h, (0, 3, 1, 2)).astype(jnp.float32)   # back to NCHW for parity
    if flatten:
        h = h.reshape(h.shape[0], -1)
    return h


# ----------------------------------------------------------------------------
if __name__ == "__main__":
    key = jax.random.PRNGKey(0)
    kx, k1, k2, k3 = jax.random.split(key, 4)

    input_channels = 4
    N, H, W = 2, 16, 16
    x = jax.random.normal(kx, (N, input_channels, H, W), jnp.float32)

    params = {
        "layer1": prepare_block_params(init_raw_block_params(k1, input_channels, 64),
                                       input_channels, 64),
        "layer2": prepare_block_params(init_raw_block_params(k2, 64, 128), 64, 128),
        "layer3": prepare_block_params(init_raw_block_params(k3, 128, 256), 128, 256),
    }

    # Close over params so the static tiling metadata (ints) stays Python-static under jit.
    fwd = jax.jit(lambda inp: kconv2_forward(inp, params))
    out = jax.block_until_ready(fwd(x))
    assert out.shape == (N, 256 * (H // 8) * (W // 8)), out.shape
    assert bool(jnp.all(jnp.isfinite(out)))
    print("KERNEL_OK")
</pallas_src>

<mosaic_0001>
module attributes {stable_mosaic.version = 11 : i64} {
  func.func @_kan_conv_bn_relu_kernel(%arg0: i32, %arg1: i32, %arg2: i32, %arg3: memref<512x128xbf16, #tpu.memory_space<vmem>>, %arg4: memref<1x128xf32, #tpu.memory_space<vmem>>, %arg5: memref<1x128xf32, #tpu.memory_space<vmem>>, %arg6: memref<128x128xi8, #tpu.memory_space<vmem>>, %arg7: memref<1x1x128xf32, #tpu.memory_space<vmem>>, %arg8: memref<1x128xf32, #tpu.memory_space<vmem>>, %arg9: memref<512x128xbf16, #tpu.memory_space<vmem>>, %arg10: memref<512x128xf32, #tpu.memory_space<vmem>>, %arg11: memref<512x128xf32, #tpu.memory_space<vmem>>) attributes {dimension_semantics = [#tpu.dimension_semantics<parallel>, #tpu.dimension_semantics<parallel>, #tpu.dimension_semantics<arbitrary>], iteration_bounds = array<i64: 1, 1, 9>, scalar_prefetch = 0 : i64, scratch_operands = 2 : i64, tpu.core_type = #tpu.core_type<tc>, window_params = [{transform_indices = @transform_0, window_bounds = array<i64: 512, 128>}, {pipeline_mode = #tpu.pipeline_mode<synchronous>, transform_indices = @transform_1, window_bounds = array<i64: 1, 128>}, {pipeline_mode = #tpu.pipeline_mode<synchronous>, transform_indices = @transform_2, window_bounds = array<i64: 1, 128>}, {transform_indices = @transform_3, window_bounds = array<i64: 128, 128>}, {transform_indices = @transform_4, window_bounds = array<i64: 1, 1, 128>}, {transform_indices = @transform_5, window_bounds = array<i64: 1, 128>}, {transform_indices = @transform_6, window_bounds = array<i64: 512, 128>}]} {
    %c0 = arith.constant 0 : index
    %c0_0 = arith.constant 0 : index
    %0 = vector.load %arg6[%c0, %c0_0] : memref<128x128xi8, #tpu.memory_space<vmem>>, vector<128x128xi8>
    %1 = arith.sitofp %0 : vector<128x128xi8> to vector<128x128xf32>
    %2 = arith.truncf %1 : vector<128x128xf32> to vector<128x128xbf16>
    %c0_1 = arith.constant 0 : index
    %c0_2 = arith.constant 0 : index
    %c0_3 = arith.constant 0 : index
    %3 = vector.load %arg7[%c0_1, %c0_2, %c0_3] : memref<1x1x128xf32, #tpu.memory_space<vmem>>, vector<1x1x128xf32>
    %4 = vector.shape_cast %3 : vector<1x1x128xf32> to vector<1x128xf32>
    %c0_i32 = arith.constant 0 : i32
    %5 = arith.cmpi eq, %arg2, %c0_i32 : i32
    %6 = arith.extui %5 : i1 to i32
    %c0_i32_4 = arith.constant 0 : i32
    %7 = arith.cmpi ne, %6, %c0_i32_4 : i32
    scf.if %7 {
      %c0_8 = arith.constant 0 : index
      %c0_9 = arith.constant 0 : index
      %14 = vector.load %arg3[%c0_8, %c0_9] : memref<512x128xbf16, #tpu.memory_space<vmem>>, vector<512x128xbf16>
      %15 = arith.extf %14 : vector<512x128xbf16> to vector<512x128xf32>
      %16 = tpu.iota {dimensions = array<i32: 1>} : vector<512x128xi32>
      %c36_i32 = arith.constant 36 : i32
      %17 = vector.broadcast %c36_i32 : i32 to vector<512x128xi32>
      %18 = arith.cmpi slt, %16, %17 : vector<512x128xi32>
      %cst = arith.constant dense<0.000000e+00> : vector<512xf32>
      %19 = vector.multi_reduction <add>, %15, %cst [1] : vector<512x128xf32> to vector<512xf32>
      %20 = vector.shape_cast %19 : vector<512xf32> to vector<512x1xf32>
      %cst_10 = arith.constant 0.027777778 : f32
      %21 = vector.broadcast %cst_10 : f32 to vector<512x1xf32>
      %22 = arith.mulf %20, %21 : vector<512x1xf32>
      %23 = vector.broadcast %22 : vector<512x1xf32> to vector<512x128xf32>
      %24 = arith.subf %15, %23 : vector<512x128xf32>
      %cst_11 = arith.constant 0.000000e+00 : f32
      %25 = vector.broadcast %cst_11 : f32 to vector<512x128xf32>
      %26 = arith.select %18, %24, %25 : vector<512x128xi1>, vector<512x128xf32>
      %27 = arith.mulf %26, %26 : vector<512x128xf32>
      %cst_12 = arith.constant dense<0.000000e+00> : vector<512xf32>
      %28 = vector.multi_reduction <add>, %27, %cst_12 [1] : vector<512x128xf32> to vector<512xf32>
      %29 = vector.shape_cast %28 : vector<512xf32> to vector<512x1xf32>
      %cst_13 = arith.constant 0.027777778 : f32
      %30 = vector.broadcast %cst_13 : f32 to vector<512x1xf32>
      %31 = arith.mulf %29, %30 : vector<512x1xf32>
      %cst_14 = arith.constant 9.99999974E-6 : f32
      %32 = vector.broadcast %cst_14 : f32 to vector<512x1xf32>
      %33 = arith.addf %31, %32 : vector<512x1xf32>
      %34 = math.rsqrt %33 : vector<512x1xf32>
      %35 = vector.broadcast %34 : vector<512x1xf32> to vector<512x128xf32>
      %36 = arith.mulf %26, %35 : vector<512x128xf32>
      %c0_15 = arith.constant 0 : index
      %c0_16 = arith.constant 0 : index
      %37 = vector.load %arg4[%c0_15, %c0_16] : memref<1x128xf32, #tpu.memory_space<vmem>>, vector<1x128xf32>
      %38 = vector.broadcast %37 : vector<1x128xf32> to vector<512x128xf32>
      %39 = arith.mulf %36, %38 : vector<512x128xf32>
      %c0_17 = arith.constant 0 : index
      %c0_18 = arith.constant 0 : index
      %40 = vector.load %arg5[%c0_17, %c0_18] : memref<1x128xf32, #tpu.memory_space<vmem>>, vector<1x128xf32>
      %41 = vector.broadcast %40 : vector<1x128xf32> to vector<512x128xf32>
      %42 = arith.addf %39, %41 : vector<512x128xf32>
      %cst_19 = arith.constant 1.750000e+00 : f32
      %43 = vector.broadcast %cst_19 : f32 to vector<512x128xf32>
      %44 = arith.mulf %42, %43 : vector<512x128xf32>
      %c0_20 = arith.constant 0 : index
      %c0_21 = arith.constant 0 : index
      %45 = vector.load %arg10[%c0_20, %c0_21] : memref<512x128xf32, #tpu.memory_space<vmem>>, vector<512x128xf32>
      tpu.vector_store %arg10[%c0_20, %c0_21], %44 {strides = array<i32>} : memref<512x128xf32, #tpu.memory_space<vmem>>, vector<512x128xf32>,
      %46 = arith.negf %15 : vector<512x128xf32>
      %47 = math.exp %46 : vector<512x128xf32>
      %cst_22 = arith.constant 1.000000e+00 : f32
      %48 = vector.broadcast %cst_22 : f32 to vector<512x128xf32>
      %49 = arith.addf %48, %47 : vector<512x128xf32>
      %50 = arith.divf %48, %49 : vector<512x128xf32>
      %51 = arith.mulf %15, %50 : vector<512x128xf32>
      %52 = arith.truncf %51 : vector<512x128xf32> to vector<512x128xbf16>
      %cst_23 = arith.constant dense<0.000000e+00> : vector<512x128xf32>
      %53 = tpu.matmul %52, %2, %cst_23 {dimension_numbers = #tpu.dot_dimension_numbers<[1], [0], [0], [1], [0, 0, 1, 1], [], []>} : vector<512x128xbf16>, vector<128x128xbf16>, vector<512x128xf32> -> vector<512x128xf32>
      %54 = vector.broadcast %4 : vector<1x128xf32> to vector<512x128xf32>
      %55 = arith.mulf %53, %54 : vector<512x128xf32>
      %c0_24 = arith.constant 0 : index
      %c0_25 = arith.constant 0 : index
      %56 = vector.load %arg11[%c0_24, %c0_25] : memref<512x128xf32, #tpu.memory_space<vmem>>, vector<512x128xf32>
      tpu.vector_store %arg11[%c0_24, %c0_25], %55 {strides = array<i32>} : memref<512x128xf32, #tpu.memory_space<vmem>>, vector<512x128xf32>,
    } else {
    }
    %c0_i32_5 = arith.constant 0 : i32
    %8 = arith.cmpi sgt, %arg2, %c0_i32_5 : i32
    %9 = arith.extui %8 : i1 to i32
    %c0_i32_6 = arith.constant 0 : i32
    %10 = arith.cmpi ne, %9, %c0_i32_6 : i32
    scf.if %10 {
      %c1_i32 = arith.constant 1 : i32
      %14 = arith.subi %arg2, %c1_i32 : i32
      %15 = arith.sitofp %14 : i32 to f32
      %cst = arith.constant -3.500000e+00 : f32
      %16 = arith.addf %cst, %15 : f32
      %c0_8 = arith.constant 0 : index
      %c0_9 = arith.constant 0 : index
      %17 = vector.load %arg10[%c0_8, %c0_9] : memref<512x128xf32, #tpu.memory_space<vmem>>, vector<512x128xf32>
      %18 = vector.broadcast %16 : f32 to vector<512x128xf32>
      %19 = arith.subf %17, %18 : vector<512x128xf32>
      %20 = arith.mulf %19, %19 : vector<512x128xf32>
      %cst_10 = arith.constant 0.000000e+00 : f32
      %21 = vector.broadcast %cst_10 : f32 to vector<512x128xf32>
      %22 = arith.subf %21, %20 : vector<512x128xf32>
      %23 = math.exp %22 : vector<512x128xf32>
      %24 = arith.truncf %23 : vector<512x128xf32> to vector<512x128xbf16>
      %c0_11 = arith.constant 0 : index
      %c0_12 = arith.constant 0 : index
      %25 = vector.load %arg11[%c0_11, %c0_12] : memref<512x128xf32, #tpu.memory_space<vmem>>, vector<512x128xf32>
      %cst_13 = arith.constant dense<0.000000e+00> : vector<512x128xf32>
      %26 = tpu.matmul %24, %2, %cst_13 {dimension_numbers = #tpu.dot_dimension_numbers<[1], [0], [0], [1], [0, 0, 1, 1], [], []>} : vector<512x128xbf16>, vector<128x128xbf16>, vector<512x128xf32> -> vector<512x128xf32>
      %27 = vector.broadcast %4 : vector<1x128xf32> to vector<512x128xf32>
      %28 = arith.mulf %26, %27 : vector<512x128xf32>
      %29 = arith.addf %25, %28 : vector<512x128xf32>
      %c0_14 = arith.constant 0 : index
      %c0_15 = arith.constant 0 : index
      %30 = vector.load %arg11[%c0_14, %c0_15] : memref<512x128xf32, #tpu.memory_space<vmem>>, vector<512x128xf32>
      tpu.vector_store %arg11[%c0_14, %c0_15], %29 {strides = array<i32>} : memref<512x128xf32, #tpu.memory_space<vmem>>, vector<512x128xf32>,
    } else {
    }
    %c8_i32 = arith.constant 8 : i32
    %11 = arith.cmpi eq, %arg2, %c8_i32 : i32
    %12 = arith.extui %11 : i1 to i32
    %c0_i32_7 = arith.constant 0 : i32
    %13 = arith.cmpi ne, %12, %c0_i32_7 : i32
    scf.if %13 {
      %c0_8 = arith.constant 0 : index
      %c0_9 = arith.constant 0 : index
      %14 = vector.load %arg11[%c0_8, %c0_9] : memref<512x128xf32, #tpu.memory_space<vmem>>, vector<512x128xf32>
      %c0_10 = arith.constant 0 : index
      %c0_11 = arith.constant 0 : index
      %15 = vector.load %arg8[%c0_10, %c0_11] : memref<1x128xf32, #tpu.memory_space<vmem>>, vector<1x128xf32>
      %16 = vector.broadcast %15 : vector<1x128xf32> to vector<512x128xf32>
      %17 = arith.addf %14, %16 : vector<512x128xf32>
      %cst = arith.constant 0.000000e+00 : f32
      %18 = vector.broadcast %cst : f32 to vector<512x128xf32>
      %19 = arith.maximumf %17, %18 : vector<512x128xf32>
      %20 = arith.truncf %19 : vector<512x128xf32> to vector<512x128xbf16>
      %c0_12 = arith.constant 0 : index
      %c0_13 = arith.constant 0 : index
      %21 = vector.load %arg9[%c0_12, %c0_13] : memref<512x128xbf16, #tpu.memory_space<vmem>>, vector<512x128xbf16>
      tpu.vector_store %arg9[%c0_12, %c0_13], %20 {strides = array<i32>} : memref<512x128xbf16, #tpu.memory_space<vmem>>, vector<512x128xbf16>,
    } else {
    }
    return
  }
  func.func @transform_0(%arg0: i32, %arg1: i32, %arg2: i32) -> (i32, i32) {
    %c0_i32 = arith.constant 0 : i32
    %c0_i32_0 = arith.constant 0 : i32
    return %arg1, %c0_i32 : i32, i32
  }
  func.func @transform_1(%arg0: i32, %arg1: i32, %arg2: i32) -> (i32, i32) {
    %c0_i32 = arith.constant 0 : i32
    %c0_i32_0 = arith.constant 0 : i32
    %c0_i32_1 = arith.constant 0 : i32
    return %c0_i32, %c0_i32_0 : i32, i32
  }
  func.func @transform_2(%arg0: i32, %arg1: i32, %arg2: i32) -> (i32, i32) {
    %c0_i32 = arith.constant 0 : i32
    %c0_i32_0 = arith.constant 0 : i32
    %c0_i32_1 = arith.constant 0 : i32
    return %c0_i32, %c0_i32_0 : i32, i32
  }
  func.func @transform_3(%arg0: i32, %arg1: i32, %arg2: i32) -> (i32, i32) {
    %c0_i32 = arith.constant 0 : i32
    return %arg2, %arg0 : i32, i32
  }
  func.func @transform_4(%arg0: i32, %arg1: i32, %arg2: i32) -> (i32, i32, i32) {
    %c0_i32 = arith.constant 0 : i32
    %c0_i32_0 = arith.constant 0 : i32
    return %arg2, %c0_i32, %arg0 : i32, i32, i32
  }
  func.func @transform_5(%arg0: i32, %arg1: i32, %arg2: i32) -> (i32, i32) {
    %c0_i32 = arith.constant 0 : i32
    %c0_i32_0 = arith.constant 0 : i32
    return %c0_i32, %arg0 : i32, i32
  }
  func.func @transform_6(%arg0: i32, %arg1: i32, %arg2: i32) -> (i32, i32) {
    %c0_i32 = arith.constant 0 : i32
    return %arg1, %arg0 : i32, i32
  }
}

module attributes {stable_mosaic.version = 11 : i64} {
  func.func @_kan_conv_bn_relu_kernel(%arg0: i32, %arg1: i32, %arg2: i32, %arg3: memref<128x640xbf16, #tpu.memory_space<vmem>>, %arg4: memref<1x640xf32, #tpu.memory_space<vmem>>, %arg5: memref<1x640xf32, #tpu.memory_space<vmem>>, %arg6: memref<640x128xi8, #tpu.memory_space<vmem>>, %arg7: memref<1x1x128xf32, #tpu.memory_space<vmem>>, %arg8: memref<1x128xf32, #tpu.memory_space<vmem>>, %arg9: memref<128x128xbf16, #tpu.memory_space<vmem>>, %arg10: memref<128x640xf32, #tpu.memory_space<vmem>>, %arg11: memref<128x128xf32, #tpu.memory_space<vmem>>) attributes {dimension_semantics = [#tpu.dimension_semantics<parallel>, #tpu.dimension_semantics<parallel>, #tpu.dimension_semantics<arbitrary>], iteration_bounds = array<i64: 1, 1, 9>, scalar_prefetch = 0 : i64, scratch_operands = 2 : i64, tpu.core_type = #tpu.core_type<tc>, window_params = [{transform_indices = @transform_0, window_bounds = array<i64: 128, 640>}, {pipeline_mode = #tpu.pipeline_mode<synchronous>, transform_indices = @transform_1, window_bounds = array<i64: 1, 640>}, {pipeline_mode = #tpu.pipeline_mode<synchronous>, transform_indices = @transform_2, window_bounds = array<i64: 1, 640>}, {transform_indices = @transform_3, window_bounds = array<i64: 640, 128>}, {transform_indices = @transform_4, window_bounds = array<i64: 1, 1, 128>}, {transform_indices = @transform_5, window_bounds = array<i64: 1, 128>}, {transform_indices = @transform_6, window_bounds = array<i64: 128, 128>}]} {
    %c0 = arith.constant 0 : index
    %c0_0 = arith.constant 0 : index
    %0 = vector.load %arg6[%c0, %c0_0] : memref<640x128xi8, #tpu.memory_space<vmem>>, vector<640x128xi8>
    %1 = arith.sitofp %0 : vector<640x128xi8> to vector<640x128xf32>
    %2 = arith.truncf %1 : vector<640x128xf32> to vector<640x128xbf16>
    %c0_1 = arith.constant 0 : index
    %c0_2 = arith.constant 0 : index
    %c0_3 = arith.constant 0 : index
    %3 = vector.load %arg7[%c0_1, %c0_2, %c0_3] : memref<1x1x128xf32, #tpu.memory_space<vmem>>, vector<1x1x128xf32>
    %4 = vector.shape_cast %3 : vector<1x1x128xf32> to vector<1x128xf32>
    %c0_i32 = arith.constant 0 : i32
    %5 = arith.cmpi eq, %arg2, %c0_i32 : i32
    %6 = arith.extui %5 : i1 to i32
    %c0_i32_4 = arith.constant 0 : i32
    %7 = arith.cmpi ne, %6, %c0_i32_4 : i32
    scf.if %7 {
      %c0_8 = arith.constant 0 : index
      %c0_9 = arith.constant 0 : index
      %14 = vector.load %arg3[%c0_8, %c0_9] : memref<128x640xbf16, #tpu.memory_space<vmem>>, vector<128x640xbf16>
      %15 = arith.extf %14 : vector<128x640xbf16> to vector<128x640xf32>
      %16 = tpu.iota {dimensions = array<i32: 1>} : vector<128x640xi32>
      %c576_i32 = arith.constant 576 : i32
      %17 = vector.broadcast %c576_i32 : i32 to vector<128x640xi32>
      %18 = arith.cmpi slt, %16, %17 : vector<128x640xi32>
      %cst = arith.constant dense<0.000000e+00> : vector<128xf32>
      %19 = vector.multi_reduction <add>, %15, %cst [1] : vector<128x640xf32> to vector<128xf32>
      %20 = vector.shape_cast %19 : vector<128xf32> to vector<128x1xf32>
      %cst_10 = arith.constant 0.00173611112 : f32
      %21 = vector.broadcast %cst_10 : f32 to vector<128x1xf32>
      %22 = arith.mulf %20, %21 : vector<128x1xf32>
      %23 = vector.broadcast %22 : vector<128x1xf32> to vector<128x640xf32>
      %24 = arith.subf %15, %23 : vector<128x640xf32>
      %cst_11 = arith.constant 0.000000e+00 : f32
      %25 = vector.broadcast %cst_11 : f32 to vector<128x640xf32>
      %26 = arith.select %18, %24, %25 : vector<128x640xi1>, vector<128x640xf32>
      %27 = arith.mulf %26, %26 : vector<128x640xf32>
      %cst_12 = arith.constant dense<0.000000e+00> : vector<128xf32>
      %28 = vector.multi_reduction <add>, %27, %cst_12 [1] : vector<128x640xf32> to vector<128xf32>
      %29 = vector.shape_cast %28 : vector<128xf32> to vector<128x1xf32>
      %cst_13 = arith.constant 0.00173611112 : f32
      %30 = vector.broadcast %cst_13 : f32 to vector<128x1xf32>
      %31 = arith.mulf %29, %30 : vector<128x1xf32>
      %cst_14 = arith.constant 9.99999974E-6 : f32
      %32 = vector.broadcast %cst_14 : f32 to vector<128x1xf32>
      %33 = arith.addf %31, %32 : vector<128x1xf32>
      %34 = math.rsqrt %33 : vector<128x1xf32>
      %35 = vector.broadcast %34 : vector<128x1xf32> to vector<128x640xf32>
      %36 = arith.mulf %26, %35 : vector<128x640xf32>
      %c0_15 = arith.constant 0 : index
      %c0_16 = arith.constant 0 : index
      %37 = vector.load %arg4[%c0_15, %c0_16] : memref<1x640xf32, #tpu.memory_space<vmem>>, vector<1x640xf32>
      %38 = vector.broadcast %37 : vector<1x640xf32> to vector<128x640xf32>
      %39 = arith.mulf %36, %38 : vector<128x640xf32>
      %c0_17 = arith.constant 0 : index
      %c0_18 = arith.constant 0 : index
      %40 = vector.load %arg5[%c0_17, %c0_18] : memref<1x640xf32, #tpu.memory_space<vmem>>, vector<1x640xf32>
      %41 = vector.broadcast %40 : vector<1x640xf32> to vector<128x640xf32>
      %42 = arith.addf %39, %41 : vector<128x640xf32>
      %cst_19 = arith.constant 1.750000e+00 : f32
      %43 = vector.broadcast %cst_19 : f32 to vector<128x640xf32>
      %44 = arith.mulf %42, %43 : vector<128x640xf32>
      %c0_20 = arith.constant 0 : index
      %c0_21 = arith.constant 0 : index
      %45 = vector.load %arg10[%c0_20, %c0_21] : memref<128x640xf32, #tpu.memory_space<vmem>>, vector<128x640xf32>
      tpu.vector_store %arg10[%c0_20, %c0_21], %44 {strides = array<i32>} : memref<128x640xf32, #tpu.memory_space<vmem>>, vector<128x640xf32>,
      %46 = arith.negf %15 : vector<128x640xf32>
      %47 = math.exp %46 : vector<128x640xf32>
      %cst_22 = arith.constant 1.000000e+00 : f32
      %48 = vector.broadcast %cst_22 : f32 to vector<128x640xf32>
      %49 = arith.addf %48, %47 : vector<128x640xf32>
      %50 = arith.divf %48, %49 : vector<128x640xf32>
      %51 = arith.mulf %15, %50 : vector<128x640xf32>
      %52 = arith.truncf %51 : vector<128x640xf32> to vector<128x640xbf16>
      %cst_23 = arith.constant dense<0.000000e+00> : vector<128x128xf32>
      %53 = tpu.matmul %52, %2, %cst_23 {dimension_numbers = #tpu.dot_dimension_numbers<[1], [0], [0], [1], [0, 0, 1, 1], [], []>} : vector<128x640xbf16>, vector<640x128xbf16>, vector<128x128xf32> -> vector<128x128xf32>
      %54 = vector.broadcast %4 : vector<1x128xf32> to vector<128x128xf32>
      %55 = arith.mulf %53, %54 : vector<128x128xf32>
      %c0_24 = arith.constant 0 : index
      %c0_25 = arith.constant 0 : index
      %56 = vector.load %arg11[%c0_24, %c0_25] : memref<128x128xf32, #tpu.memory_space<vmem>>, vector<128x128xf32>
      tpu.vector_store %arg11[%c0_24, %c0_25], %55 {strides = array<i32>} : memref<128x128xf32, #tpu.memory_space<vmem>>, vector<128x128xf32>,
    } else {
    }
    %c0_i32_5 = arith.constant 0 : i32
    %8 = arith.cmpi sgt, %arg2, %c0_i32_5 : i32
    %9 = arith.extui %8 : i1 to i32
    %c0_i32_6 = arith.constant 0 : i32
    %10 = arith.cmpi ne, %9, %c0_i32_6 : i32
    scf.if %10 {
      %c1_i32 = arith.constant 1 : i32
      %14 = arith.subi %arg2, %c1_i32 : i32
      %15 = arith.sitofp %14 : i32 to f32
      %cst = arith.constant -3.500000e+00 : f32
      %16 = arith.addf %cst, %15 : f32
      %c0_8 = arith.constant 0 : index
      %c0_9 = arith.constant 0 : index
      %17 = vector.load %arg10[%c0_8, %c0_9] : memref<128x640xf32, #tpu.memory_space<vmem>>, vector<128x640xf32>
      %18 = vector.broadcast %16 : f32 to vector<128x640xf32>
      %19 = arith.subf %17, %18 : vector<128x640xf32>
      %20 = arith.mulf %19, %19 : vector<128x640xf32>
      %cst_10 = arith.constant 0.000000e+00 : f32
      %21 = vector.broadcast %cst_10 : f32 to vector<128x640xf32>
      %22 = arith.subf %21, %20 : vector<128x640xf32>
      %23 = math.exp %22 : vector<128x640xf32>
      %24 = arith.truncf %23 : vector<128x640xf32> to vector<128x640xbf16>
      %c0_11 = arith.constant 0 : index
      %c0_12 = arith.constant 0 : index
      %25 = vector.load %arg11[%c0_11, %c0_12] : memref<128x128xf32, #tpu.memory_space<vmem>>, vector<128x128xf32>
      %cst_13 = arith.constant dense<0.000000e+00> : vector<128x128xf32>
      %26 = tpu.matmul %24, %2, %cst_13 {dimension_numbers = #tpu.dot_dimension_numbers<[1], [0], [0], [1], [0, 0, 1, 1], [], []>} : vector<128x640xbf16>, vector<640x128xbf16>, vector<128x128xf32> -> vector<128x128xf32>
      %27 = vector.broadcast %4 : vector<1x128xf32> to vector<128x128xf32>
      %28 = arith.mulf %26, %27 : vector<128x128xf32>
      %29 = arith.addf %25, %28 : vector<128x128xf32>
      %c0_14 = arith.constant 0 : index
      %c0_15 = arith.constant 0 : index
      %30 = vector.load %arg11[%c0_14, %c0_15] : memref<128x128xf32, #tpu.memory_space<vmem>>, vector<128x128xf32>
      tpu.vector_store %arg11[%c0_14, %c0_15], %29 {strides = array<i32>} : memref<128x128xf32, #tpu.memory_space<vmem>>, vector<128x128xf32>,
    } else {
    }
    %c8_i32 = arith.constant 8 : i32
    %11 = arith.cmpi eq, %arg2, %c8_i32 : i32
    %12 = arith.extui %11 : i1 to i32
    %c0_i32_7 = arith.constant 0 : i32
    %13 = arith.cmpi ne, %12, %c0_i32_7 : i32
    scf.if %13 {
      %c0_8 = arith.constant 0 : index
      %c0_9 = arith.constant 0 : index
      %14 = vector.load %arg11[%c0_8, %c0_9] : memref<128x128xf32, #tpu.memory_space<vmem>>, vector<128x128xf32>
      %c0_10 = arith.constant 0 : index
      %c0_11 = arith.constant 0 : index
      %15 = vector.load %arg8[%c0_10, %c0_11] : memref<1x128xf32, #tpu.memory_space<vmem>>, vector<1x128xf32>
      %16 = vector.broadcast %15 : vector<1x128xf32> to vector<128x128xf32>
      %17 = arith.addf %14, %16 : vector<128x128xf32>
      %cst = arith.constant 0.000000e+00 : f32
      %18 = vector.broadcast %cst : f32 to vector<128x128xf32>
      %19 = arith.maximumf %17, %18 : vector<128x128xf32>
      %20 = arith.truncf %19 : vector<128x128xf32> to vector<128x128xbf16>
      %c0_12 = arith.constant 0 : index
      %c0_13 = arith.constant 0 : index
      %21 = vector.load %arg9[%c0_12, %c0_13] : memref<128x128xbf16, #tpu.memory_space<vmem>>, vector<128x128xbf16>
      tpu.vector_store %arg9[%c0_12, %c0_13], %20 {strides = array<i32>} : memref<128x128xbf16, #tpu.memory_space<vmem>>, vector<128x128xbf16>,
    } else {
    }
    return
  }
  func.func @transform_0(%arg0: i32, %arg1: i32, %arg2: i32) -> (i32, i32) {
    %c0_i32 = arith.constant 0 : i32
    %c0_i32_0 = arith.constant 0 : i32
    return %arg1, %c0_i32 : i32, i32
  }
  func.func @transform_1(%arg0: i32, %arg1: i32, %arg2: i32) -> (i32, i32) {
    %c0_i32 = arith.constant 0 : i32
    %c0_i32_0 = arith.constant 0 : i32
    %c0_i32_1 = arith.constant 0 : i32
    return %c0_i32, %c0_i32_0 : i32, i32
  }
  func.func @transform_2(%arg0: i32, %arg1: i32, %arg2: i32) -> (i32, i32) {
    %c0_i32 = arith.constant 0 : i32
    %c0_i32_0 = arith.constant 0 : i32
    %c0_i32_1 = arith.constant 0 : i32
    return %c0_i32, %c0_i32_0 : i32, i32
  }
  func.func @transform_3(%arg0: i32, %arg1: i32, %arg2: i32) -> (i32, i32) {
    %c0_i32 = arith.constant 0 : i32
    return %arg2, %arg0 : i32, i32
  }
  func.func @transform_4(%arg0: i32, %arg1: i32, %arg2: i32) -> (i32, i32, i32) {
    %c0_i32 = arith.constant 0 : i32
    %c0_i32_0 = arith.constant 0 : i32
    return %arg2, %c0_i32, %arg0 : i32, i32, i32
  }
  func.func @transform_5(%arg0: i32, %arg1: i32, %arg2: i32) -> (i32, i32) {
    %c0_i32 = arith.constant 0 : i32
    %c0_i32_0 = arith.constant 0 : i32
    return %c0_i32, %arg0 : i32, i32
  }
  func.func @transform_6(%arg0: i32, %arg1: i32, %arg2: i32) -> (i32, i32) {
    %c0_i32 = arith.constant 0 : i32
    return %arg1, %arg0 : i32, i32
  }
}

module attributes {stable_mosaic.version = 11 : i64} {
  func.func @_kan_conv_bn_relu_kernel(%arg0: i32, %arg1: i32, %arg2: i32, %arg3: memref<32x1152xbf16, #tpu.memory_space<vmem>>, %arg4: memref<1x1152xf32, #tpu.memory_space<vmem>>, %arg5: memref<1x1152xf32, #tpu.memory_space<vmem>>, %arg6: memref<1152x128xi8, #tpu.memory_space<vmem>>, %arg7: memref<1x1x128xf32, #tpu.memory_space<vmem>>, %arg8: memref<1x128xf32, #tpu.memory_space<vmem>>, %arg9: memref<32x128xbf16, #tpu.memory_space<vmem>>, %arg10: memref<32x1152xf32, #tpu.memory_space<vmem>>, %arg11: memref<32x128xf32, #tpu.memory_space<vmem>>) attributes {dimension_semantics = [#tpu.dimension_semantics<parallel>, #tpu.dimension_semantics<parallel>, #tpu.dimension_semantics<arbitrary>], iteration_bounds = array<i64: 2, 1, 9>, scalar_prefetch = 0 : i64, scratch_operands = 2 : i64, tpu.core_type = #tpu.core_type<tc>, window_params = [{transform_indices = @transform_0, window_bounds = array<i64: 32, 1152>}, {pipeline_mode = #tpu.pipeline_mode<synchronous>, transform_indices = @transform_1, window_bounds = array<i64: 1, 1152>}, {pipeline_mode = #tpu.pipeline_mode<synchronous>, transform_indices = @transform_2, window_bounds = array<i64: 1, 1152>}, {transform_indices = @transform_3, window_bounds = array<i64: 1152, 128>}, {transform_indices = @transform_4, window_bounds = array<i64: 1, 1, 128>}, {transform_indices = @transform_5, window_bounds = array<i64: 1, 128>}, {transform_indices = @transform_6, window_bounds = array<i64: 32, 128>}]} {
    %c0 = arith.constant 0 : index
    %c0_0 = arith.constant 0 : index
    %0 = vector.load %arg6[%c0, %c0_0] : memref<1152x128xi8, #tpu.memory_space<vmem>>, vector<1152x128xi8>
    %1 = arith.sitofp %0 : vector<1152x128xi8> to vector<1152x128xf32>
    %2 = arith.truncf %1 : vector<1152x128xf32> to vector<1152x128xbf16>
    %c0_1 = arith.constant 0 : index
    %c0_2 = arith.constant 0 : index
    %c0_3 = arith.constant 0 : index
    %3 = vector.load %arg7[%c0_1, %c0_2, %c0_3] : memref<1x1x128xf32, #tpu.memory_space<vmem>>, vector<1x1x128xf32>
    %4 = vector.shape_cast %3 : vector<1x1x128xf32> to vector<1x128xf32>
    %c0_i32 = arith.constant 0 : i32
    %5 = arith.cmpi eq, %arg2, %c0_i32 : i32
    %6 = arith.extui %5 : i1 to i32
    %c0_i32_4 = arith.constant 0 : i32
    %7 = arith.cmpi ne, %6, %c0_i32_4 : i32
    scf.if %7 {
      %c0_8 = arith.constant 0 : index
      %c0_9 = arith.constant 0 : index
      %14 = vector.load %arg3[%c0_8, %c0_9] : memref<32x1152xbf16, #tpu.memory_space<vmem>>, vector<32x1152xbf16>
      %15 = arith.extf %14 : vector<32x1152xbf16> to vector<32x1152xf32>
      %16 = tpu.iota {dimensions = array<i32: 1>} : vector<32x1152xi32>
      %c1152_i32 = arith.constant 1152 : i32
      %17 = vector.broadcast %c1152_i32 : i32 to vector<32x1152xi32>
      %18 = arith.cmpi slt, %16, %17 : vector<32x1152xi32>
      %cst = arith.constant dense<0.000000e+00> : vector<32xf32>
      %19 = vector.multi_reduction <add>, %15, %cst [1] : vector<32x1152xf32> to vector<32xf32>
      %20 = vector.shape_cast %19 : vector<32xf32> to vector<32x1xf32>
      %cst_10 = arith.constant 8.68055562E-4 : f32
      %21 = vector.broadcast %cst_10 : f32 to vector<32x1xf32>
      %22 = arith.mulf %20, %21 : vector<32x1xf32>
      %23 = vector.broadcast %22 : vector<32x1xf32> to vector<32x1152xf32>
      %24 = arith.subf %15, %23 : vector<32x1152xf32>
      %cst_11 = arith.constant 0.000000e+00 : f32
      %25 = vector.broadcast %cst_11 : f32 to vector<32x1152xf32>
      %26 = arith.select %18, %24, %25 : vector<32x1152xi1>, vector<32x1152xf32>
      %27 = arith.mulf %26, %26 : vector<32x1152xf32>
      %cst_12 = arith.constant dense<0.000000e+00> : vector<32xf32>
      %28 = vector.multi_reduction <add>, %27, %cst_12 [1] : vector<32x1152xf32> to vector<32xf32>
      %29 = vector.shape_cast %28 : vector<32xf32> to vector<32x1xf32>
      %cst_13 = arith.constant 8.68055562E-4 : f32
      %30 = vector.broadcast %cst_13 : f32 to vector<32x1xf32>
      %31 = arith.mulf %29, %30 : vector<32x1xf32>
      %cst_14 = arith.constant 9.99999974E-6 : f32
      %32 = vector.broadcast %cst_14 : f32 to vector<32x1xf32>
      %33 = arith.addf %31, %32 : vector<32x1xf32>
      %34 = math.rsqrt %33 : vector<32x1xf32>
      %35 = vector.broadcast %34 : vector<32x1xf32> to vector<32x1152xf32>
      %36 = arith.mulf %26, %35 : vector<32x1152xf32>
      %c0_15 = arith.constant 0 : index
      %c0_16 = arith.constant 0 : index
      %37 = vector.load %arg4[%c0_15, %c0_16] : memref<1x1152xf32, #tpu.memory_space<vmem>>, vector<1x1152xf32>
      %38 = vector.broadcast %37 : vector<1x1152xf32> to vector<32x1152xf32>
      %39 = arith.mulf %36, %38 : vector<32x1152xf32>
      %c0_17 = arith.constant 0 : index
      %c0_18 = arith.constant 0 : index
      %40 = vector.load %arg5[%c0_17, %c0_18] : memref<1x1152xf32, #tpu.memory_space<vmem>>, vector<1x1152xf32>
      %41 = vector.broadcast %40 : vector<1x1152xf32> to vector<32x1152xf32>
      %42 = arith.addf %39, %41 : vector<32x1152xf32>
      %cst_19 = arith.constant 1.750000e+00 : f32
      %43 = vector.broadcast %cst_19 : f32 to vector<32x1152xf32>
      %44 = arith.mulf %42, %43 : vector<32x1152xf32>
      %c0_20 = arith.constant 0 : index
      %c0_21 = arith.constant 0 : index
      %45 = vector.load %arg10[%c0_20, %c0_21] : memref<32x1152xf32, #tpu.memory_space<vmem>>, vector<32x1152xf32>
      tpu.vector_store %arg10[%c0_20, %c0_21], %44 {strides = array<i32>} : memref<32x1152xf32, #tpu.memory_space<vmem>>, vector<32x1152xf32>,
      %46 = arith.negf %15 : vector<32x1152xf32>
      %47 = math.exp %46 : vector<32x1152xf32>
      %cst_22 = arith.constant 1.000000e+00 : f32
      %48 = vector.broadcast %cst_22 : f32 to vector<32x1152xf32>
      %49 = arith.addf %48, %47 : vector<32x1152xf32>
      %50 = arith.divf %48, %49 : vector<32x1152xf32>
      %51 = arith.mulf %15, %50 : vector<32x1152xf32>
      %52 = arith.truncf %51 : vector<32x1152xf32> to vector<32x1152xbf16>
      %cst_23 = arith.constant dense<0.000000e+00> : vector<32x128xf32>
      %53 = tpu.matmul %52, %2, %cst_23 {dimension_numbers = #tpu.dot_dimension_numbers<[1], [0], [0], [1], [0, 0, 1, 1], [], []>} : vector<32x1152xbf16>, vector<1152x128xbf16>, vector<32x128xf32> -> vector<32x128xf32>
      %54 = vector.broadcast %4 : vector<1x128xf32> to vector<32x128xf32>
      %55 = arith.mulf %53, %54 : vector<32x128xf32>
      %c0_24 = arith.constant 0 : index
      %c0_25 = arith.constant 0 : index
      %56 = vector.load %arg11[%c0_24, %c0_25] : memref<32x128xf32, #tpu.memory_space<vmem>>, vector<32x128xf32>
      tpu.vector_store %arg11[%c0_24, %c0_25], %55 {strides = array<i32>} : memref<32x128xf32, #tpu.memory_space<vmem>>, vector<32x128xf32>,
    } else {
    }
    %c0_i32_5 = arith.constant 0 : i32
    %8 = arith.cmpi sgt, %arg2, %c0_i32_5 : i32
    %9 = arith.extui %8 : i1 to i32
    %c0_i32_6 = arith.constant 0 : i32
    %10 = arith.cmpi ne, %9, %c0_i32_6 : i32
    scf.if %10 {
      %c1_i32 = arith.constant 1 : i32
      %14 = arith.subi %arg2, %c1_i32 : i32
      %15 = arith.sitofp %14 : i32 to f32
      %cst = arith.constant -3.500000e+00 : f32
      %16 = arith.addf %cst, %15 : f32
      %c0_8 = arith.constant 0 : index
      %c0_9 = arith.constant 0 : index
      %17 = vector.load %arg10[%c0_8, %c0_9] : memref<32x1152xf32, #tpu.memory_space<vmem>>, vector<32x1152xf32>
      %18 = vector.broadcast %16 : f32 to vector<32x1152xf32>
      %19 = arith.subf %17, %18 : vector<32x1152xf32>
      %20 = arith.mulf %19, %19 : vector<32x1152xf32>
      %cst_10 = arith.constant 0.000000e+00 : f32
      %21 = vector.broadcast %cst_10 : f32 to vector<32x1152xf32>
      %22 = arith.subf %21, %20 : vector<32x1152xf32>
      %23 = math.exp %22 : vector<32x1152xf32>
      %24 = arith.truncf %23 : vector<32x1152xf32> to vector<32x1152xbf16>
      %c0_11 = arith.constant 0 : index
      %c0_12 = arith.constant 0 : index
      %25 = vector.load %arg11[%c0_11, %c0_12] : memref<32x128xf32, #tpu.memory_space<vmem>>, vector<32x128xf32>
      %cst_13 = arith.constant dense<0.000000e+00> : vector<32x128xf32>
      %26 = tpu.matmul %24, %2, %cst_13 {dimension_numbers = #tpu.dot_dimension_numbers<[1], [0], [0], [1], [0, 0, 1, 1], [], []>} : vector<32x1152xbf16>, vector<1152x128xbf16>, vector<32x128xf32> -> vector<32x128xf32>
      %27 = vector.broadcast %4 : vector<1x128xf32> to vector<32x128xf32>
      %28 = arith.mulf %26, %27 : vector<32x128xf32>
      %29 = arith.addf %25, %28 : vector<32x128xf32>
      %c0_14 = arith.constant 0 : index
      %c0_15 = arith.constant 0 : index
      %30 = vector.load %arg11[%c0_14, %c0_15] : memref<32x128xf32, #tpu.memory_space<vmem>>, vector<32x128xf32>
      tpu.vector_store %arg11[%c0_14, %c0_15], %29 {strides = array<i32>} : memref<32x128xf32, #tpu.memory_space<vmem>>, vector<32x128xf32>,
    } else {
    }
    %c8_i32 = arith.constant 8 : i32
    %11 = arith.cmpi eq, %arg2, %c8_i32 : i32
    %12 = arith.extui %11 : i1 to i32
    %c0_i32_7 = arith.constant 0 : i32
    %13 = arith.cmpi ne, %12, %c0_i32_7 : i32
    scf.if %13 {
      %c0_8 = arith.constant 0 : index
      %c0_9 = arith.constant 0 : index
      %14 = vector.load %arg11[%c0_8, %c0_9] : memref<32x128xf32, #tpu.memory_space<vmem>>, vector<32x128xf32>
      %c0_10 = arith.constant 0 : index
      %c0_11 = arith.constant 0 : index
      %15 = vector.load %arg8[%c0_10, %c0_11] : memref<1x128xf32, #tpu.memory_space<vmem>>, vector<1x128xf32>
      %16 = vector.broadcast %15 : vector<1x128xf32> to vector<32x128xf32>
      %17 = arith.addf %14, %16 : vector<32x128xf32>
      %cst = arith.constant 0.000000e+00 : f32
      %18 = vector.broadcast %cst : f32 to vector<32x128xf32>
      %19 = arith.maximumf %17, %18 : vector<32x128xf32>
      %20 = arith.truncf %19 : vector<32x128xf32> to vector<32x128xbf16>
      %c0_12 = arith.constant 0 : index
      %c0_13 = arith.constant 0 : index
      %21 = vector.load %arg9[%c0_12, %c0_13] : memref<32x128xbf16, #tpu.memory_space<vmem>>, vector<32x128xbf16>
      tpu.vector_store %arg9[%c0_12, %c0_13], %20 {strides = array<i32>} : memref<32x128xbf16, #tpu.memory_space<vmem>>, vector<32x128xbf16>,
    } else {
    }
    return
  }
  func.func @transform_0(%arg0: i32, %arg1: i32, %arg2: i32) -> (i32, i32) {
    %c0_i32 = arith.constant 0 : i32
    %c0_i32_0 = arith.constant 0 : i32
    return %arg1, %c0_i32 : i32, i32
  }
  func.func @transform_1(%arg0: i32, %arg1: i32, %arg2: i32) -> (i32, i32) {
    %c0_i32 = arith.constant 0 : i32
    %c0_i32_0 = arith.constant 0 : i32
    %c0_i32_1 = arith.constant 0 : i32
    return %c0_i32, %c0_i32_0 : i32, i32
  }
  func.func @transform_2(%arg0: i32, %arg1: i32, %arg2: i32) -> (i32, i32) {
    %c0_i32 = arith.constant 0 : i32
    %c0_i32_0 = arith.constant 0 : i32
    %c0_i32_1 = arith.constant 0 : i32
    return %c0_i32, %c0_i32_0 : i32, i32
  }
  func.func @transform_3(%arg0: i32, %arg1: i32, %arg2: i32) -> (i32, i32) {
    %c0_i32 = arith.constant 0 : i32
    return %arg2, %arg0 : i32, i32
  }
  func.func @transform_4(%arg0: i32, %arg1: i32, %arg2: i32) -> (i32, i32, i32) {
    %c0_i32 = arith.constant 0 : i32
    %c0_i32_0 = arith.constant 0 : i32
    return %arg2, %c0_i32, %arg0 : i32, i32, i32
  }
  func.func @transform_5(%arg0: i32, %arg1: i32, %arg2: i32) -> (i32, i32) {
    %c0_i32 = arith.constant 0 : i32
    %c0_i32_0 = arith.constant 0 : i32
    return %c0_i32, %arg0 : i32, i32
  }
  func.func @transform_6(%arg0: i32, %arg1: i32, %arg2: i32) -> (i32, i32) {
    %c0_i32 = arith.constant 0 : i32
    return %arg1, %arg0 : i32, i32
  }
}

</mosaic_0001>

<llo_original>
// kernel: _lambda_.3
$region0: #{_lambda_.3}
  #allocation0 [shape = 'u32[]', space=smem, size = 0x4, offset = 0x4, fixed_abs, tag = 'smem constant byte address 0x4 - core index']
  #allocation1 [shape = 'u32[144,128]{1,0:T(1,128)}', space=vmem, size = 0x12000, scoped, tag = 'internal scratch']
  #allocation2 [shape = 'f32[512,128]{1,0:T(8,128)}', space=vmem, size = 0x40000, scoped, tag = 'scratch operand']
  #allocation3 [shape = 'f32[512,128]{1,0:T(8,128)}', space=vmem, size = 0x40000, scoped, tag = 'scratch operand']
  %s0 = inlined_call_operand.vmem [shape: bf16[512,128], index: 0, kind: input, shape index: {}]
  %s1 = inlined_call_operand.vmem [shape: f32[1,128], index: 1, kind: input, shape index: {}]
  %s2 = inlined_call_operand.vmem [shape: f32[1,128], index: 2, kind: input, shape index: {}, may-alias: {2,5}]
  %s3 = inlined_call_operand.vmem [shape: s8[1152,128], index: 3, kind: input, shape index: {}]
  %s4 = inlined_call_operand.vmem [shape: f32[9,1,128], index: 4, kind: input, shape index: {}]
  %s5 = inlined_call_operand.vmem [shape: f32[1,128], index: 5, kind: input, shape index: {}, may-alias: {2,5}]
  %s6 = inlined_call_operand.vmem [shape: bf16[512,128], index: 6, kind: output, shape index: {}]
  %s7 = sld [smem:[#allocation0]]
  $region69: #{_lambda_.3} parent=0
    _
  %s9 = ssub.s32 1, %s7
  %s10 = scalar_select 0, %s9, %s7
  loop: start=0, step=1, limit=11
  $region2: #{_lambda_.3} parent=0 // loop_pre_header
    _
  $region3: #{_lambda_.3} parent=0 // loop_header
    %s12 = sphi 0, %s16
    %p13 = scmp.ge.s32.totalorder %s12, 11
    %s19 = sphi 0, %s38
    %s20 = sphi 0, %s34
    %s21 = sphi 0, %s30
    %s22 = sphi 0, %s19
    %s23 = sphi 0, %s20
    %s24 = sphi 0, %s21
    %s25 = sphi 0, %s22
    %s26 = sphi 0, %s23
    %s27 = sphi 0, %s24
    %s41 = sphi 0, %s43
    %s44 = sphi 0, %s41
    %s45 = sphi 0, %s44
    %s61 = sphi 0, %s45
    %s65 = sphi 0, %s65
    %s67 = sphi 0, %s65
    %s68 = sphi 0, %s67
    %s82 = sphi 0, %s68
    %s86 = sphi 0, %s86
    %s88 = sphi 0, %s86
    %s89 = sphi 0, %s88
    %s103 = sphi 0, %s89
    %s111 = sphi 0, %s113
    %s114 = sphi 0, %s111
    %s115 = sphi 0, %s114
    %s131 = sphi 0, %s115
    %s139 = sphi 0, %s141
    %s142 = sphi 0, %s139
    %s143 = sphi 0, %s142
    %s159 = sphi 0, %s143
    %s165 = sphi 0, %s167
    %s168 = sphi 0, %s165
    %s169 = sphi 0, %s168
    %s185 = sphi 0, %s169
    %s193 = sphi 0, %s195
    %s196 = sphi 0, %s193
    %s197 = sphi 0, %s196
    %s213 = sphi 0, %s197
  $region4: #{_lambda_.3} parent=0 // loop_header_branch
    %15 = sbr.rel (%p13) target = $region8
  $region5: #{_lambda_.3} parent=0 // loop_body
    %s17 = ssub.s32 %s12, 1
    %s18 = ssub.s32 %s12, 2
    %s28 = sadd.s32 1, %s21
    %p29 = scmp.ge.s32.totalorder %s28, 9
    %s30 = scalar_select %p29, 0, %s28
    %s31 = sadd.s32 1, %s20
    %s32 = scalar_select %p29, %s31, %s20
    %p33 = scmp.ge.s32.totalorder %s32, 1
    %s34 = scalar_select %p33, 0, %s32
    %s35 = sadd.s32 1, %s19
    %s36 = scalar_select %p33, %s35, %s19
    %p37 = scmp.ge.s32.totalorder %s36, 1
    %s38 = scalar_select %p37, 0, %s36
    %s39 = ssub.s32 %s20, %s34
    %p40 = scmp.eq.s32.totalorder %s39, 0
    %s42 = sadd.s32 %s41, 1
    %s43 = scalar_select %p40, %s41, %s42
    %p46 = pneg %p40
    %p47 = scmp.eq.s32.totalorder %s12, 8
    %p48 = por %p46, %p47
    %p49 = scmp.ne.s32.totalorder %s41, %s44
    %p50 = scmp.eq.s32.totalorder %s12, 0
    %p51 = por %p49, %p50
    %p52 = scmp.ne.s32.totalorder %s41, %s44
    %p53 = scmp.eq.s32.totalorder %s17, 8
    %p54 = por %p52, %p53
    %p55 = scmp.ne.s32.totalorder %s44, %s45
    %p56 = scmp.eq.s32.totalorder %s17, 0
    %p57 = por %p55, %p56
    %p58 = scmp.ne.s32.totalorder %s44, %s45
    %p59 = scmp.eq.s32.totalorder %s18, 8
    %p60 = por %p58, %p59
    %p62 = scmp.ne.s32.totalorder %s45, %s61
    %p63 = scmp.eq.s32.totalorder %s18, 0
    %p64 = por %p62, %p63
    %s66 = sadd.s32 %s65, 1
    %p69 = scmp.eq.s32.totalorder %s12, 8
    %p70 = scmp.ne.s32.totalorder %s65, %s67
    %p71 = scmp.eq.s32.totalorder %s12, 0
    %p72 = por %p70, %p71
    %p73 = scmp.ne.s32.totalorder %s65, %s67
    %p74 = scmp.eq.s32.totalorder %s17, 8
    %p75 = por %p73, %p74
    %p76 = scmp.ne.s32.totalorder %s67, %s68
    %p77 = scmp.eq.s32.totalorder %s17, 0
    %p78 = por %p76, %p77
    %p79 = scmp.ne.s32.totalorder %s67, %s68
    %p80 = scmp.eq.s32.totalorder %s18, 8
    %p81 = por %p79, %p80
    %p83 = scmp.ne.s32.totalorder %s68, %s82
    %p84 = scmp.eq.s32.totalorder %s18, 0
    %p85 = por %p83, %p84
    %s87 = sadd.s32 %s86, 1
    %p90 = scmp.eq.s32.totalorder %s12, 8
    %p91 = scmp.ne.s32.totalorder %s86, %s88
    %p92 = scmp.eq.s32.totalorder %s12, 0
    %p93 = por %p91, %p92
    %p94 = scmp.ne.s32.totalorder %s86, %s88
    %p95 = scmp.eq.s32.totalorder %s17, 8
    %p96 = por %p94, %p95
    %p97 = scmp.ne.s32.totalorder %s88, %s89
    %p98 = scmp.eq.s32.totalorder %s17, 0
    %p99 = por %p97, %p98
    %p100 = scmp.ne.s32.totalorder %s88, %s89
    %p101 = scmp.eq.s32.totalorder %s18, 8
    %p102 = por %p100, %p101
    %p104 = scmp.ne.s32.totalorder %s89, %s103
    %p105 = scmp.eq.s32.totalorder %s18, 0
    %p106 = por %p104, %p105
    %s107 = ssub.s32 %s21, %s30
    %s108 = ssub.s32 %s19, %s38
    %s109 = sor.u32 %s107, %s108
    %p110 = scmp.eq.s32.totalorder %s109, 0
    %s112 = sadd.s32 %s111, 1
    %s113 = scalar_select %p110, %s111, %s112
    %p116 = pneg %p110
    %p117 = scmp.eq.s32.totalorder %s12, 8
    %p118 = por %p116, %p117
    %p119 = scmp.ne.s32.totalorder %s111, %s114
    %p120 = scmp.eq.s32.totalorder %s12, 0
    %p121 = por %p119, %p120
    %p122 = scmp.ne.s32.totalorder %s111, %s114
    %p123 = scmp.eq.s32.totalorder %s17, 8
    %p124 = por %p122, %p123
    %p125 = scmp.ne.s32.totalorder %s114, %s115
    %p126 = scmp.eq.s32.totalorder %s17, 0
    %p127 = por %p125, %p126
    %p128 = scmp.ne.s32.totalorder %s114, %s115
    %p129 = scmp.eq.s32.totalorder %s18, 8
    %p130 = por %p128, %p129
    %p132 = scmp.ne.s32.totalorder %s115, %s131
    %p133 = scmp.eq.s32.totalorder %s18, 0
    %p134 = por %p132, %p133
    %s135 = ssub.s32 %s21, %s30
    %s136 = ssub.s32 %s19, %s38
    %s137 = sor.u32 %s135, %s136
    %p138 = scmp.eq.s32.totalorder %s137, 0
    %s140 = sadd.s32 %s139, 1
    %s141 = scalar_select %p138, %s139, %s140
    %p144 = pneg %p138
    %p145 = scmp.eq.s32.totalorder %s12, 8
    %p146 = por %p144, %p145
    %p147 = scmp.ne.s32.totalorder %s139, %s142
    %p148 = scmp.eq.s32.totalorder %s12, 0
    %p149 = por %p147, %p148
    %p150 = scmp.ne.s32.totalorder %s139, %s142
    %p151 = scmp.eq.s32.totalorder %s17, 8
    %p152 = por %p150, %p151
    %p153 = scmp.ne.s32.totalorder %s142, %s143
    %p154 = scmp.eq.s32.totalorder %s17, 0
    %p155 = por %p153, %p154
    %p156 = scmp.ne.s32.totalorder %s142, %s143
    %p157 = scmp.eq.s32.totalorder %s18, 8
    %p158 = por %p156, %p157
    %p160 = scmp.ne.s32.totalorder %s143, %s159
    %p161 = scmp.eq.s32.totalorder %s18, 0
    %p162 = por %p160, %p161
    %s163 = ssub.s32 %s19, %s38
    %p164 = scmp.eq.s32.totalorder %s163, 0
    %s166 = sadd.s32 %s165, 1
    %s167 = scalar_select %p164, %s165, %s166
    %p170 = pneg %p164
    %p171 = scmp.eq.s32.totalorder %s12, 8
    %p172 = por %p170, %p171
    %p173 = scmp.ne.s32.totalorder %s165, %s168
    %p174 = scmp.eq.s32.totalorder %s12, 0
    %p175 = por %p173, %p174
    %p176 = scmp.ne.s32.totalorder %s165, %s168
    %p177 = scmp.eq.s32.totalorder %s17, 8
    %p178 = por %p176, %p177
    %p179 = scmp.ne.s32.totalorder %s168, %s169
    %p180 = scmp.eq.s32.totalorder %s17, 0
    %p181 = por %p179, %p180
    %p182 = scmp.ne.s32.totalorder %s168, %s169
    %p183 = scmp.eq.s32.totalorder %s18, 8
    %p184 = por %p182, %p183
    %p186 = scmp.ne.s32.totalorder %s169, %s185
    %p187 = scmp.eq.s32.totalorder %s18, 0
    %p188 = por %p186, %p187
    %s189 = ssub.s32 %s20, %s34
    %s190 = ssub.s32 %s19, %s38
    %s191 = sor.u32 %s189, %s190
    %p192 = scmp.eq.s32.totalorder %s191, 0
    %s194 = sadd.s32 %s193, 1
    %s195 = scalar_select %p192, %s193, %s194
    %p198 = pneg %p192
    %p199 = scmp.eq.s32.totalorder %s12, 8
    %p200 = por %p198, %p199
    %p201 = scmp.ne.s32.totalorder %s193, %s196
    %p202 = scmp.eq.s32.totalorder %s12, 0
    %p203 = por %p201, %p202
    %p204 = scmp.ne.s32.totalorder %s193, %s196
    %p205 = scmp.eq.s32.totalorder %s17, 8
    %p206 = por %p204, %p205
    %p207 = scmp.ne.s32.totalorder %s196, %s197
    %p208 = scmp.eq.s32.totalorder %s17, 0
    %p209 = por %p207, %p208
    %p210 = scmp.ne.s32.totalorder %s196, %s197
    %p211 = scmp.eq.s32.totalorder %s18, 8
    %p212 = por %p210, %p211
    %p214 = scmp.ne.s32.totalorder %s197, %s213
    %p215 = scmp.eq.s32.totalorder %s18, 0
    %p216 = por %p214, %p215
    %p217 = scmp.le.s32.totalorder 1, %s12
    %p218 = scmp.lt.s32.totalorder %s12, 10
    %p219 = pnand %p217, %p218
    %p220 = pneg %p219
    // Predicated region
    $region9: #{_lambda_.3} parent=5 // pred_check
      _
    $region10: #{_lambda_.3} parent=5 // pred_check_branch
      %222 = sbr.rel (%p219) target = $region12
    $region11: #{_lambda_.3} parent=5 // pred_region
      %s223 = ssub.s32 %s12, 1
      // Predicated region
      $region13: #{_lambda_.3} parent=11 // pred_check
        %p224 = pneg %p57
      $region14: #{_lambda_.3} parent=11 // pred_check_branch
        %226 = sbr.rel (%p224) target = $region16
      $region15: #{_lambda_.3} parent=11 // pred_region
        %s227 = smul.u32 64, %s23
        %p228 = scmp.lt.s32.totalorder %s227, 63
        %s229 = scalar_select %p228, %s227, 63
        %s230 = smul.addr %s229, 4
        %s231 = scalar_lea.vmem %s0, %s230
        %s232 = smul.u32 64, %s23
      $region16: #{_lambda_.3} parent=11 // pred_fallthru
        _
      // Predicated region
      $region17: #{_lambda_.3} parent=11 // pred_check
        %p233 = pneg %p78
      $region18: #{_lambda_.3} parent=11 // pred_check_branch
        %235 = sbr.rel (%p233) target = $region20
      $region19: #{_lambda_.3} parent=11 // pred_region
        _
      $region20: #{_lambda_.3} parent=11 // pred_fallthru
        _
      // Predicated region
      $region21: #{_lambda_.3} parent=11 // pred_check
        %p236 = pneg %p99
      $region22: #{_lambda_.3} parent=11 // pred_check_branch
        %238 = sbr.rel (%p236) target = $region24
      $region23: #{_lambda_.3} parent=11 // pred_region
        _
      $region24: #{_lambda_.3} parent=11 // pred_fallthru
        _
      // Predicated region
      $region25: #{_lambda_.3} parent=11 // pred_check
        %p239 = pneg %p181
      $region26: #{_lambda_.3} parent=11 // pred_check_branch
        %241 = sbr.rel (%p239) target = $region28
      $region27: #{_lambda_.3} parent=11 // pred_region
        %p242 = scmp.lt.s32.totalorder %s22, 0
        %s243 = scalar_select %p242, %s22, 0
        %s244 = scalar_lea.vmem %s5, %s243
      $region28: #{_lambda_.3} parent=11 // pred_fallthru
        _
    $region12: #{_lambda_.3} parent=5 // pred_fallthru
      _
    %p245 = scmp.lt.s32.totalorder %s12, 9
    // Predicated region
    $region29: #{_lambda_.3} parent=5 // pred_check
      %p246 = pneg %p245
    $region30: #{_lambda_.3} parent=5 // pred_check_branch
      %248 = sbr.rel (%p246) target = $region32
    $region31: #{_lambda_.3} parent=5 // pred_region
      // Predicated region
      $region33: #{_lambda_.3} parent=31 // pred_check
        %p249 = pneg %p121
      $region34: #{_lambda_.3} parent=31 // pred_check_branch
        %251 = sbr.rel (%p249) target = $region36
      $region35: #{_lambda_.3} parent=31 // pred_region
        %s252 = smul.u32 4, %s21
        %p253 = scmp.lt.s32.totalorder %s252, 35
        %s254 = scalar_select %p253, %s252, 35
        %p255 = scmp.lt.s32.totalorder %s19, 0
        %s256 = scalar_select %p255, %s19, 0
        %s257 = sadd.s32 %s256, %s254
        %s258 = smul.addr %s257, 8
        %s259 = scalar_lea.vmem %s3, %s258
        %s260 = smul.u32 4, %s21
      $region36: #{_lambda_.3} parent=31 // pred_fallthru
        _
      // Predicated region
      $region37: #{_lambda_.3} parent=31 // pred_check
        %p261 = pneg %p149
      $region38: #{_lambda_.3} parent=31 // pred_check_branch
        %263 = sbr.rel (%p261) target = $region40
      $region39: #{_lambda_.3} parent=31 // pred_region
        %p264 = scmp.lt.s32.totalorder %s21, 8
        %s265 = scalar_select %p264, %s21, 8
        %p266 = scmp.lt.s32.totalorder %s19, 0
        %s267 = scalar_select %p266, %s19, 0
        %s268 = sadd.s32 %s267, %s265
        %s269 = scalar_lea.vmem %s4, %s268
      $region40: #{_lambda_.3} parent=31 // pred_fallthru
        _
    $region32: #{_lambda_.3} parent=5 // pred_fallthru
      _
    %p270 = scmp.le.s32.totalorder 1, %s12
    %p271 = scmp.lt.s32.totalorder %s12, 10
    %p272 = pnand %p270, %p271
    %p273 = pneg %p272
    // Predicated region
    $region41: #{_lambda_.3} parent=5 // pred_check
      _
    $region42: #{_lambda_.3} parent=5 // pred_check_branch
      %275 = sbr.rel (%p272) target = $region44
    $region43: #{_lambda_.3} parent=5 // pred_region
      %s276 = ssub.s32 %s12, 1
      %s277 = smul.u32 64, %s23
      %p278 = scmp.lt.s32.totalorder %s277, 63
      %s279 = scalar_select %p278, %s277, 63
      %s280 = smul.addr %s279, 4
      %s281 = scalar_lea.vmem %s0, %s280
      %p282 = pneg %p57
      %p283 = pneg %p54
      %p284 = pneg %p78
      %p285 = pneg %p75
      %p286 = pneg %p99
      %p287 = pneg %p96
      %s288 = smul.u32 4, %s24
      %p289 = scmp.lt.s32.totalorder %s288, 35
      %s290 = scalar_select %p289, %s288, 35
      %p291 = scmp.lt.s32.totalorder %s22, 0
      %s292 = scalar_select %p291, %s22, 0
      %s293 = sadd.s32 %s292, %s290
      %s294 = smul.addr %s293, 8
      %s295 = scalar_lea.vmem %s3, %s294
      %p296 = pneg %p127
      %p297 = pneg %p124
      %p298 = scmp.lt.s32.totalorder %s24, 8
      %s299 = scalar_select %p298, %s24, 8
      %p300 = scmp.lt.s32.totalorder %s22, 0
      %s301 = scalar_select %p300, %s22, 0
      %s302 = sadd.s32 %s301, %s299
      %s303 = scalar_lea.vmem %s4, %s302
      %p304 = pneg %p155
      %p305 = pneg %p152
      %p306 = scmp.lt.s32.totalorder %s22, 0
      %s307 = scalar_select %p306, %s22, 0
      %s308 = scalar_lea.vmem %s5, %s307
      %p309 = pneg %p181
      %p310 = pneg %p178
      %p311 = pneg %p209
      %p312 = pneg %p206
      %s313 = smul.u32 64, %s23
      %p314 = scmp.lt.s32.totalorder %s313, 63
      %s315 = scalar_select %p314, %s313, 63
      %p316 = scmp.lt.s32.totalorder %s22, 0
      %s317 = scalar_select %p316, %s22, 0
      %s318 = sadd.s32 %s317, %s315
      %s319 = smul.addr %s318, 4
      %s320 = scalar_lea.vmem %s6, %s319
      %s321 = smul.u32 64, %s23
      %p322 = scmp.lt.s32.totalorder %s321, 63
      %s323 = scalar_select %p322, %s321, 63
      %s324 = smul.addr %s323, 4
      %s325 = scalar_lea.vmem %s0, %s324
      %s326 = smul.u32 64, %s23
      %s327 = smul.u32 4, %s24
      %p328 = scmp.lt.s32.totalorder %s327, 35
      %s329 = scalar_select %p328, %s327, 35
      %p330 = scmp.lt.s32.totalorder %s22, 0
      %s331 = scalar_select %p330, %s22, 0
      %s332 = sadd.s32 %s331, %s329
      %s333 = smul.addr %s332, 8
      %s334 = scalar_lea.vmem %s3, %s333
      %s335 = smul.u32 4, %s24
      %p336 = scmp.lt.s32.totalorder %s24, 8
      %s337 = scalar_select %p336, %s24, 8
      %p338 = scmp.lt.s32.totalorder %s22, 0
      %s339 = scalar_select %p338, %s22, 0
      %s340 = sadd.s32 %s339, %s337
      %s341 = scalar_lea.vmem %s4, %s340
      %p342 = scmp.lt.s32.totalorder %s22, 0
      %s343 = scalar_select %p342, %s22, 0
      %s344 = scalar_lea.vmem %s5, %s343
      %s345 = smul.u32 64, %s23
      %p346 = scmp.lt.s32.totalorder %s345, 63
      %s347 = scalar_select %p346, %s345, 63
      %p348 = scmp.lt.s32.totalorder %s22, 0
      %s349 = scalar_select %p348, %s22, 0
      %s350 = sadd.s32 %s349, %s347
      %s351 = smul.addr %s350, 4
      %s352 = scalar_lea.vmem %s6, %s351
      %s353 = smul.u32 64, %s23
      %v355 = vld [vmem:[%s334] sm:$0xff]
      %v356 = vld [vmem:[%s334 + $0x8] sm:$0xff]
      %v357 = vld [vmem:[%s334 + $0x10] sm:$0xff]
      %v358 = vld [vmem:[%s334 + $0x18] sm:$0xff]
      %v359 = vunpack.c.l.s8.bf16 %v355
      %v360 = vunpack.c.h.s8.bf16 %v355
      %v361 = vunpack.c.l.s8.bf16 %v356
      %v362 = vunpack.c.h.s8.bf16 %v356
      %v363 = vunpack.c.l.s8.bf16 %v357
      %v364 = vunpack.c.h.s8.bf16 %v357
      %v365 = vunpack.c.l.s8.bf16 %v358
      %v366 = vunpack.c.h.s8.bf16 %v358
      %v367 = vld [vmem:[%s341] sm:$0x1]
      %p368 = scmp.eq.s32.totalorder %s24, 0
      // Predicated region
      $region45: #{_lambda_.3} parent=43 // pred_check
        %p369 = pneg %p368
      $region46: #{_lambda_.3} parent=43 // pred_check_branch
        %371 = sbr.rel (%p369) target = $region48
      $region47: #{_lambda_.3} parent=43 // pred_region
        %v372 = vld [vmem:[%s325] sm:$0xf]
        %v373 = vld [vmem:[%s325 + $0x4] sm:$0xf]
        %v374 = vld [vmem:[%s325 + $0x8] sm:$0xf]
        %v375 = vld [vmem:[%s325 + $0xc] sm:$0xf]
        %v376 = vld [vmem:[%s325 + $0x10] sm:$0xf]
        %v377 = vld [vmem:[%s325 + $0x14] sm:$0xf]
        %v378 = vld [vmem:[%s325 + $0x18] sm:$0xf]
        %v379 = vld [vmem:[%s325 + $0x1c] sm:$0xf]
        %v380 = vld [vmem:[%s325 + $0x20] sm:$0xf]
        %v381 = vld [vmem:[%s325 + $0x24] sm:$0xf]
        %v382 = vld [vmem:[%s325 + $0x28] sm:$0xf]
        %v383 = vld [vmem:[%s325 + $0x2c] sm:$0xf]
        %v384 = vld [vmem:[%s325 + $0x30] sm:$0xf]
        %v385 = vld [vmem:[%s325 + $0x34] sm:$0xf]
        %v386 = vld [vmem:[%s325 + $0x38] sm:$0xf]
        %v387 = vld [vmem:[%s325 + $0x3c] sm:$0xf]
        %v388 = vld [vmem:[%s325 + $0x40] sm:$0xf]
        %v389 = vld [vmem:[%s325 + $0x44] sm:$0xf]
        %v390 = vld [vmem:[%s325 + $0x48] sm:$0xf]
        %v391 = vld [vmem:[%s325 + $0x4c] sm:$0xf]
        %v392 = vld [vmem:[%s325 + $0x50] sm:$0xf]
        %v393 = vld [vmem:[%s325 + $0x54] sm:$0xf]
        %v394 = vld [vmem:[%s325 + $0x58] sm:$0xf]
        %v395 = vld [vmem:[%s325 + $0x5c] sm:$0xf]
        %v396 = vld [vmem:[%s325 + $0x60] sm:$0xf]
        %v397 = vld [vmem:[%s325 + $0x64] sm:$0xf]
        %v398 = vld [vmem:[%s325 + $0x68] sm:$0xf]
        %v399 = vld [vmem:[%s325 + $0x6c] sm:$0xf]
        %v400 = vld [vmem:[%s325 + $0x70] sm:$0xf]
        %v401 = vld [vmem:[%s325 + $0x74] sm:$0xf]
        %v402 = vld [vmem:[%s325 + $0x78] sm:$0xf]
        %v403 = vld [vmem:[%s325 + $0x7c] sm:$0xf]
        %v404 = vld [vmem:[%s325 + $0x80] sm:$0xf]
        %v405 = vld [vmem:[%s325 + $0x84] sm:$0xf]
        %v406 = vld [vmem:[%s325 + $0x88] sm:$0xf]
        %v407 = vld [vmem:[%s325 + $0x8c] sm:$0xf]
        %v408 = vld [vmem:[%s325 + $0x90] sm:$0xf]
        %v409 = vld [vmem:[%s325 + $0x94] sm:$0xf]
        %v410 = vld [vmem:[%s325 + $0x98] sm:$0xf]
        %v411 = vld [vmem:[%s325 + $0x9c] sm:$0xf]
        %v412 = vld [vmem:[%s325 + $0xa0] sm:$0xf]
        %v413 = vld [vmem:[%s325 + $0xa4] sm:$0xf]
        %v414 = vld [vmem:[%s325 + $0xa8] sm:$0xf]
        %v415 = vld [vmem:[%s325 + $0xac] sm:$0xf]
        %v416 = vld [vmem:[%s325 + $0xb0] sm:$0xf]
        %v417 = vld [vmem:[%s325 + $0xb4] sm:$0xf]
        %v418 = vld [vmem:[%s325 + $0xb8] sm:$0xf]
        %v419 = vld [vmem:[%s325 + $0xbc] sm:$0xf]
        %v420 = vld [vmem:[%s325 + $0xc0] sm:$0xf]
        %v421 = vld [vmem:[%s325 + $0xc4] sm:$0xf]
        %v422 = vld [vmem:[%s325 + $0xc8] sm:$0xf]
        %v423 = vld [vmem:[%s325 + $0xcc] sm:$0xf]
        %v424 = vld [vmem:[%s325 + $0xd0] sm:$0xf]
        %v425 = vld [vmem:[%s325 + $0xd4] sm:$0xf]
        %v426 = vld [vmem:[%s325 + $0xd8] sm:$0xf]
        %v427 = vld [vmem:[%s325 + $0xdc] sm:$0xf]
        %v428 = vld [vmem:[%s325 + $0xe0] sm:$0xf]
        %v429 = vld [vmem:[%s325 + $0xe4] sm:$0xf]
        %v430 = vld [vmem:[%s325 + $0xe8] sm:$0xf]
        %v431 = vld [vmem:[%s325 + $0xec] sm:$0xf]
        %v432 = vld [vmem:[%s325 + $0xf0] sm:$0xf]
        %v433 = vld [vmem:[%s325 + $0xf4] sm:$0xf]
        %v434 = vld [vmem:[%s325 + $0xf8] sm:$0xf]
        %v435 = vld [vmem:[%s325 + $0xfc] sm:$0xf]
        %v436 = vunpack.c.l.bf16 %v372
        %v437 = vunpack.c.l.bf16 %v373
        %v438 = vunpack.c.l.bf16 %v374
        %v439 = vunpack.c.l.bf16 %v375
        %v440 = vunpack.c.l.bf16 %v376
        %v441 = vunpack.c.l.bf16 %v377
        %v442 = vunpack.c.l.bf16 %v378
        %v443 = vunpack.c.l.bf16 %v379
        %v444 = vunpack.c.l.bf16 %v380
        %v445 = vunpack.c.l.bf16 %v381
        %v446 = vunpack.c.l.bf16 %v382
        %v447 = vunpack.c.l.bf16 %v383
        %v448 = vunpack.c.l.bf16 %v384
        %v449 = vunpack.c.l.bf16 %v385
        %v450 = vunpack.c.l.bf16 %v386
        %v451 = vunpack.c.l.bf16 %v387
        %v452 = vunpack.c.l.bf16 %v388
        %v453 = vunpack.c.l.bf16 %v389
        %v454 = vunpack.c.l.bf16 %v390
        %v455 = vunpack.c.l.bf16 %v391
        %v456 = vunpack.c.l.bf16 %v392
        %v457 = vunpack.c.l.bf16 %v393
        %v458 = vunpack.c.l.bf16 %v394
        %v459 = vunpack.c.l.bf16 %v395
        %v460 = vunpack.c.l.bf16 %v396
        %v461 = vunpack.c.l.bf16 %v397
        %v462 = vunpack.c.l.bf16 %v398
        %v463 = vunpack.c.l.bf16 %v399
        %v464 = vunpack.c.l.bf16 %v400
        %v465 = vunpack.c.l.bf16 %v401
        %v466 = vunpack.c.l.bf16 %v402
        %v467 = vunpack.c.l.bf16 %v403
        %v468 = vunpack.c.l.bf16 %v404
        %v469 = vunpack.c.l.bf16 %v405
        %v470 = vunpack.c.l.bf16 %v406
        %v471 = vunpack.c.l.bf16 %v407
        %v472 = vunpack.c.l.bf16 %v408
        %v473 = vunpack.c.l.bf16 %v409
        %v474 = vunpack.c.l.bf16 %v410
        %v475 = vunpack.c.l.bf16 %v411
        %v476 = vunpack.c.l.bf16 %v412
        %v477 = vunpack.c.l.bf16 %v413
        %v478 = vunpack.c.l.bf16 %v414
        %v479 = vunpack.c.l.bf16 %v415
        %v480 = vunpack.c.l.bf16 %v416
        %v481 = vunpack.c.l.bf16 %v417
        %v482 = vunpack.c.l.bf16 %v418
        %v483 = vunpack.c.l.bf16 %v419
        %v484 = vunpack.c.l.bf16 %v420
        %v485 = vunpack.c.l.bf16 %v421
        %v486 = vunpack.c.l.bf16 %v422
        %v487 = vunpack.c.l.bf16 %v423
        %v488 = vunpack.c.l.bf16 %v424
        %v489 = vunpack.c.l.bf16 %v425
        %v490 = vunpack.c.l.bf16 %v426
        %v491 = vunpack.c.l.bf16 %v427
        %v492 = vunpack.c.l.bf16 %v428
        %v493 = vunpack.c.l.bf16 %v429
        %v494 = vunpack.c.l.bf16 %v430
        %v495 = vunpack.c.l.bf16 %v431
        %v496 = vunpack.c.l.bf16 %v432
        %v497 = vunpack.c.l.bf16 %v433
        %v498 = vunpack.c.l.bf16 %v434
        %v499 = vunpack.c.l.bf16 %v435
        %v500 = vlaneseq
        %v501 = vand.u32 %v500, 127
        %vm502 = vcmp.lt.s32.totalorder %v501, 36
        %503 = vadd.xlane.f32.xlu0 %v436
        %v504 = vpop.xlane.xlu0 %503
        %505 = vadd.xlane.f32.xlu0 %v437
        %v506 = vpop.xlane.xlu0 %505
        %507 = vadd.xlane.f32.xlu0 %v438
        %v508 = vpop.xlane.xlu0 %507
        %509 = vadd.xlane.f32.xlu0 %v439
        %v510 = vpop.xlane.xlu0 %509
        %511 = vadd.xlane.f32.xlu0 %v440
        %v512 = vpop.xlane.xlu0 %511
        %513 = vadd.xlane.f32.xlu0 %v441
        %v514 = vpop.xlane.xlu0 %513
        %515 = vadd.xlane.f32.xlu0 %v442
        %v516 = vpop.xlane.xlu0 %515
        %517 = vadd.xlane.f32.xlu0 %v443
        %v518 = vpop.xlane.xlu0 %517
        %519 = vadd.xlane.f32.xlu0 %v444
        %v520 = vpop.xlane.xlu0 %519
        %521 = vadd.xlane.f32.xlu0 %v445
        %v522 = vpop.xlane.xlu0 %521
        %523 = vadd.xlane.f32.xlu0 %v446
        %v524 = vpop.xlane.xlu0 %523
        %525 = vadd.xlane.f32.xlu0 %v447
        %v526 = vpop.xlane.xlu0 %525
        %527 = vadd.xlane.f32.xlu0 %v448
        %v528 = vpop.xlane.xlu0 %527
        %529 = vadd.xlane.f32.xlu0 %v449
        %v530 = vpop.xlane.xlu0 %529
        %531 = vadd.xlane.f32.xlu0 %v450
        %v532 = vpop.xlane.xlu0 %531
        %533 = vadd.xlane.f32.xlu0 %v451
        %v534 = vpop.xlane.xlu0 %533
        %535 = vadd.xlane.f32.xlu0 %v452
        %v536 = vpop.xlane.xlu0 %535
        %537 = vadd.xlane.f32.xlu0 %v453
        %v538 = vpop.xlane.xlu0 %537
        %539 = vadd.xlane.f32.xlu0 %v454
        %v540 = vpop.xlane.xlu0 %539
        %541 = vadd.xlane.f32.xlu0 %v455
        %v542 = vpop.xlane.xlu0 %541
        %543 = vadd.xlane.f32.xlu0 %v456
        %v544 = vpop.xlane.xlu0 %543
        %545 = vadd.xlane.f32.xlu0 %v457
        %v546 = vpop.xlane.xlu0 %545
        %547 = vadd.xlane.f32.xlu0 %v458
        %v548 = vpop.xlane.xlu0 %547
        %549 = vadd.xlane.f32.xlu0 %v459
        %v550 = vpop.xlane.xlu0 %549
        %551 = vadd.xlane.f32.xlu0 %v460
        %v552 = vpop.xlane.xlu0 %551
        %553 = vadd.xlane.f32.xlu0 %v461
        %v554 = vpop.xlane.xlu0 %553
        %555 = vadd.xlane.f32.xlu0 %v462
        %v556 = vpop.xlane.xlu0 %555
        %557 = vadd.xlane.f32.xlu0 %v463
        %v558 = vpop.xlane.xlu0 %557
        %559 = vadd.xlane.f32.xlu0 %v464
        %v560 = vpop.xlane.xlu0 %559
        %561 = vadd.xlane.f32.xlu0 %v465
        %v562 = vpop.xlane.xlu0 %561
        %563 = vadd.xlane.f32.xlu0 %v466
        %v564 = vpop.xlane.xlu0 %563
        %565 = vadd.xlane.f32.xlu0 %v467
        %v566 = vpop.xlane.xlu0 %565
        %567 = vadd.xlane.f32.xlu0 %v468
        %v568 = vpop.xlane.xlu0 %567
        %569 = vadd.xlane.f32.xlu0 %v469
        %v570 = vpop.xlane.xlu0 %569
        %571 = vadd.xlane.f32.xlu0 %v470
        %v572 = vpop.xlane.xlu0 %571
        %573 = vadd.xlane.f32.xlu0 %v471
        %v574 = vpop.xlane.xlu0 %573
        %575 = vadd.xlane.f32.xlu0 %v472
        %v576 = vpop.xlane.xlu0 %575
        %577 = vadd.xlane.f32.xlu0 %v473
        %v578 = vpop.xlane.xlu0 %577
        %579 = vadd.xlane.f32.xlu0 %v474
        %v580 = vpop.xlane.xlu0 %579
        %581 = vadd.xlane.f32.xlu0 %v475
        %v582 = vpop.xlane.xlu0 %581
        %583 = vadd.xlane.f32.xlu0 %v476
        %v584 = vpop.xlane.xlu0 %583
        %585 = vadd.xlane.f32.xlu0 %v477
        %v586 = vpop.xlane.xlu0 %585
        %587 = vadd.xlane.f32.xlu0 %v478
        %v588 = vpop.xlane.xlu0 %587
        %589 = vadd.xlane.f32.xlu0 %v479
        %v590 = vpop.xlane.xlu0 %589
        %591 = vadd.xlane.f32.xlu0 %v480
        %v592 = vpop.xlane.xlu0 %591
        %593 = vadd.xlane.f32.xlu0 %v481
        %v594 = vpop.xlane.xlu0 %593
        %595 = vadd.xlane.f32.xlu0 %v482
        %v596 = vpop.xlane.xlu0 %595
        %597 = vadd.xlane.f32.xlu0 %v483
        %v598 = vpop.xlane.xlu0 %597
        %599 = vadd.xlane.f32.xlu0 %v484
        %v600 = vpop.xlane.xlu0 %599
        %601 = vadd.xlane.f32.xlu0 %v485
        %v602 = vpop.xlane.xlu0 %601
        %603 = vadd.xlane.f32.xlu0 %v486
        %v604 = vpop.xlane.xlu0 %603
        %605 = vadd.xlane.f32.xlu0 %v487
        %v606 = vpop.xlane.xlu0 %605
        %607 = vadd.xlane.f32.xlu0 %v488
        %v608 = vpop.xlane.xlu0 %607
        %609 = vadd.xlane.f32.xlu0 %v489
        %v610 = vpop.xlane.xlu0 %609
        %611 = vadd.xlane.f32.xlu0 %v490
        %v612 = vpop.xlane.xlu0 %611
        %613 = vadd.xlane.f32.xlu0 %v491
        %v614 = vpop.xlane.xlu0 %613
        %615 = vadd.xlane.f32.xlu0 %v492
        %v616 = vpop.xlane.xlu0 %615
        %617 = vadd.xlane.f32.xlu0 %v493
        %v618 = vpop.xlane.xlu0 %617
        %619 = vadd.xlane.f32.xlu0 %v494
        %v620 = vpop.xlane.xlu0 %619
        %621 = vadd.xlane.f32.xlu0 %v495
        %v622 = vpop.xlane.xlu0 %621
        %623 = vadd.xlane.f32.xlu0 %v496
        %v624 = vpop.xlane.xlu0 %623
        %625 = vadd.xlane.f32.xlu0 %v497
        %v626 = vpop.xlane.xlu0 %625
        %627 = vadd.xlane.f32.xlu0 %v498
        %v628 = vpop.xlane.xlu0 %627
        %629 = vadd.xlane.f32.xlu0 %v499
        %v630 = vpop.xlane.xlu0 %629
        %v631 = vmul.f32 %v504, 0.027777778
        %v632 = vmul.f32 %v506, 0.027777778
        %v633 = vmul.f32 %v508, 0.027777778
        %v634 = vmul.f32 %v510, 0.027777778
        %v635 = vmul.f32 %v512, 0.027777778
        %v636 = vmul.f32 %v514, 0.027777778
        %v637 = vmul.f32 %v516, 0.027777778
        %v638 = vmul.f32 %v518, 0.027777778
        %v639 = vmul.f32 %v520, 0.027777778
        %v640 = vmul.f32 %v522, 0.027777778
        %v641 = vmul.f32 %v524, 0.027777778
        %v642 = vmul.f32 %v526, 0.027777778
        %v643 = vmul.f32 %v528, 0.027777778
        %v644 = vmul.f32 %v530, 0.027777778
        %v645 = vmul.f32 %v532, 0.027777778
        %v646 = vmul.f32 %v534, 0.027777778
        %v647 = vmul.f32 %v536, 0.027777778
        %v648 = vmul.f32 %v538, 0.027777778
        %v649 = vmul.f32 %v540, 0.027777778
        %v650 = vmul.f32 %v542, 0.027777778
        %v651 = vmul.f32 %v544, 0.027777778
        %v652 = vmul.f32 %v546, 0.027777778
        %v653 = vmul.f32 %v548, 0.027777778
        %v654 = vmul.f32 %v550, 0.027777778
        %v655 = vmul.f32 %v552, 0.027777778
        %v656 = vmul.f32 %v554, 0.027777778
        %v657 = vmul.f32 %v556, 0.027777778
        %v658 = vmul.f32 %v558, 0.027777778
        %v659 = vmul.f32 %v560, 0.027777778
        %v660 = vmul.f32 %v562, 0.027777778
        %v661 = vmul.f32 %v564, 0.027777778
        %v662 = vmul.f32 %v566, 0.027777778
        %v663 = vmul.f32 %v568, 0.027777778
        %v664 = vmul.f32 %v570, 0.027777778
        %v665 = vmul.f32 %v572, 0.027777778
        %v666 = vmul.f32 %v574, 0.027777778
        %v667 = vmul.f32 %v576, 0.027777778
        %v668 = vmul.f32 %v578, 0.027777778
        %v669 = vmul.f32 %v580, 0.027777778
        %v670 = vmul.f32 %v582, 0.027777778
        %v671 = vmul.f32 %v584, 0.027777778
        %v672 = vmul.f32 %v586, 0.027777778
        %v673 = vmul.f32 %v588, 0.027777778
        %v674 = vmul.f32 %v590, 0.027777778
        %v675 = vmul.f32 %v592, 0.027777778
        %v676 = vmul.f32 %v594, 0.027777778
        %v677 = vmul.f32 %v596, 0.027777778
        %v678 = vmul.f32 %v598, 0.027777778
        %v679 = vmul.f32 %v600, 0.027777778
        %v680 = vmul.f32 %v602, 0.027777778
        %v681 = vmul.f32 %v604, 0.027777778
        %v682 = vmul.f32 %v606, 0.027777778
        %v683 = vmul.f32 %v608, 0.027777778
        %v684 = vmul.f32 %v610, 0.027777778
        %v685 = vmul.f32 %v612, 0.027777778
        %v686 = vmul.f32 %v614, 0.027777778
        %v687 = vmul.f32 %v616, 0.027777778
        %v688 = vmul.f32 %v618, 0.027777778
        %v689 = vmul.f32 %v620, 0.027777778
        %v690 = vmul.f32 %v622, 0.027777778
        %v691 = vmul.f32 %v624, 0.027777778
        %v692 = vmul.f32 %v626, 0.027777778
        %v693 = vmul.f32 %v628, 0.027777778
        %v694 = vmul.f32 %v630, 0.027777778
        %v695 = vsub.f32 %v436, %v631
        %v696 = vsub.f32 %v437, %v632
        %v697 = vsub.f32 %v438, %v633
        %v698 = vsub.f32 %v439, %v634
        %v699 = vsub.f32 %v440, %v635
        %v700 = vsub.f32 %v441, %v636
        %v701 = vsub.f32 %v442, %v637
        %v702 = vsub.f32 %v443, %v638
        %v703 = vsub.f32 %v444, %v639
        %v704 = vsub.f32 %v445, %v640
        %v705 = vsub.f32 %v446, %v641
        %v706 = vsub.f32 %v447, %v642
        %v707 = vsub.f32 %v448, %v643
        %v708 = vsub.f32 %v449, %v644
        %v709 = vsub.f32 %v450, %v645
        %v710 = vsub.f32 %v451, %v646
        %v711 = vsub.f32 %v452, %v647
        %v712 = vsub.f32 %v453, %v648
        %v713 = vsub.f32 %v454, %v649
        %v714 = vsub.f32 %v455, %v650
        %v715 = vsub.f32 %v456, %v651
        %v716 = vsub.f32 %v457, %v652
        %v717 = vsub.f32 %v458, %v653
        %v718 = vsub.f32 %v459, %v654
        %v719 = vsub.f32 %v460, %v655
        %v720 = vsub.f32 %v461, %v656
        %v721 = vsub.f32 %v462, %v657
        %v722 = vsub.f32 %v463, %v658
        %v723 = vsub.f32 %v464, %v659
        %v724 = vsub.f32 %v465, %v660
        %v725 = vsub.f32 %v466, %v661
        %v726 = vsub.f32 %v467, %v662
        %v727 = vsub.f32 %v468, %v663
        %v728 = vsub.f32 %v469, %v664
        %v729 = vsub.f32 %v470, %v665
        %v730 = vsub.f32 %v471, %v666
        %v731 = vsub.f32 %v472, %v667
        %v732 = vsub.f32 %v473, %v668
        %v733 = vsub.f32 %v474, %v669
        %v734 = vsub.f32 %v475, %v670
        %v735 = vsub.f32 %v476, %v671
        %v736 = vsub.f32 %v477, %v672
        %v737 = vsub.f32 %v478, %v673
        %v738 = vsub.f32 %v479, %v674
        %v739 = vsub.f32 %v480, %v675
        %v740 = vsub.f32 %v481, %v676
        %v741 = vsub.f32 %v482, %v677
        %v742 = vsub.f32 %v483, %v678
        %v743 = vsub.f32 %v484, %v679
        %v744 = vsub.f32 %v485, %v680
        %v745 = vsub.f32 %v486, %v681
        %v746 = vsub.f32 %v487, %v682
        %v747 = vsub.f32 %v488, %v683
        %v748 = vsub.f32 %v489, %v684
        %v749 = vsub.f32 %v490, %v685
        %v750 = vsub.f32 %v491, %v686
        %v751 = vsub.f32 %v492, %v687
        %v752 = vsub.f32 %v493, %v688
        %v753 = vsub.f32 %v494, %v689
        %v754 = vsub.f32 %v495, %v690
        %v755 = vsub.f32 %v496, %v691
        %v756 = vsub.f32 %v497, %v692
        %v757 = vsub.f32 %v498, %v693
        %v758 = vsub.f32 %v499, %v694
        %v759 = vsel %vm502, %v695, 0.0
        %v760 = vsel %vm502, %v696, 0.0
        %v761 = vsel %vm502, %v697, 0.0
        %v762 = vsel %vm502, %v698, 0.0
        %v763 = vsel %vm502, %v699, 0.0
        %v764 = vsel %vm502, %v700, 0.0
        %v765 = vsel %vm502, %v701, 0.0
        %v766 = vsel %vm502, %v702, 0.0
        %v767 = vsel %vm502, %v703, 0.0
        %v768 = vsel %vm502, %v704, 0.0
        %v769 = vsel %vm502, %v705, 0.0
        %v770 = vsel %vm502, %v706, 0.0
        %v771 = vsel %vm502, %v707, 0.0
        %v772 = vsel %vm502, %v708, 0.0
        %v773 = vsel %vm502, %v709, 0.0
        %v774 = vsel %vm502, %v710, 0.0
        %v775 = vsel %vm502, %v711, 0.0
        %v776 = vsel %vm502, %v712, 0.0
        %v777 = vsel %vm502, %v713, 0.0
        %v778 = vsel %vm502, %v714, 0.0
        %v779 = vsel %vm502, %v715, 0.0
        %v780 = vsel %vm502, %v716, 0.0
        %v781 = vsel %vm502, %v717, 0.0
        %v782 = vsel %vm502, %v718, 0.0
        %v783 = vsel %vm502, %v719, 0.0
        %v784 = vsel %vm502, %v720, 0.0
        %v785 = vsel %vm502, %v721, 0.0
        %v786 = vsel %vm502, %v722, 0.0
        %v787 = vsel %vm502, %v723, 0.0
        %v788 = vsel %vm502, %v724, 0.0
        %v789 = vsel %vm502, %v725, 0.0
        %v790 = vsel %vm502, %v726, 0.0
        %v791 = vsel %vm502, %v727, 0.0
        %v792 = vsel %vm502, %v728, 0.0
        %v793 = vsel %vm502, %v729, 0.0
        %v794 = vsel %vm502, %v730, 0.0
        %v795 = vsel %vm502, %v731, 0.0
        %v796 = vsel %vm502, %v732, 0.0
        %v797 = vsel %vm502, %v733, 0.0
        %v798 = vsel %vm502, %v734, 0.0
        %v799 = vsel %vm502, %v735, 0.0
        %v800 = vsel %vm502, %v736, 0.0
        %v801 = vsel %vm502, %v737, 0.0
        %v802 = vsel %vm502, %v738, 0.0
        %v803 = vsel %vm502, %v739, 0.0
        %v804 = vsel %vm502, %v740, 0.0
        %v805 = vsel %vm502, %v741, 0.0
        %v806 = vsel %vm502, %v742, 0.0
        %v807 = vsel %vm502, %v743, 0.0
        %v808 = vsel %vm502, %v744, 0.0
        %v809 = vsel %vm502, %v745, 0.0
        %v810 = vsel %vm502, %v746, 0.0
        %v811 = vsel %vm502, %v747, 0.0
        %v812 = vsel %vm502, %v748, 0.0
        %v813 = vsel %vm502, %v749, 0.0
        %v814 = vsel %vm502, %v750, 0.0
        %v815 = vsel %vm502, %v751, 0.0
        %v816 = vsel %vm502, %v752, 0.0
        %v817 = vsel %vm502, %v753, 0.0
        %v818 = vsel %vm502, %v754, 0.0
        %v819 = vsel %vm502, %v755, 0.0
        %v820 = vsel %vm502, %v756, 0.0
        %v821 = vsel %vm502, %v757, 0.0
        %v822 = vsel %vm502, %v758, 0.0
        %v823 = vmul.f32 %v759, %v759
        %v824 = vmul.f32 %v760, %v760
        %v825 = vmul.f32 %v761, %v761
        %v826 = vmul.f32 %v762, %v762
        %v827 = vmul.f32 %v763, %v763
        %v828 = vmul.f32 %v764, %v764
        %v829 = vmul.f32 %v765, %v765
        %v830 = vmul.f32 %v766, %v766
        %v831 = vmul.f32 %v767, %v767
        %v832 = vmul.f32 %v768, %v768
        %v833 = vmul.f32 %v769, %v769
        %v834 = vmul.f32 %v770, %v770
        %v835 = vmul.f32 %v771, %v771
        %v836 = vmul.f32 %v772, %v772
        %v837 = vmul.f32 %v773, %v773
        %v838 = vmul.f32 %v774, %v774
        %v839 = vmul.f32 %v775, %v775
        %v840 = vmul.f32 %v776, %v776
        %v841 = vmul.f32 %v777, %v777
        %v842 = vmul.f32 %v778, %v778
        %v843 = vmul.f32 %v779, %v779
        %v844 = vmul.f32 %v780, %v780
        %v845 = vmul.f32 %v781, %v781
        %v846 = vmul.f32 %v782, %v782
        %v847 = vmul.f32 %v783, %v783
        %v848 = vmul.f32 %v784, %v784
        %v849 = vmul.f32 %v785, %v785
        %v850 = vmul.f32 %v786, %v786
        %v851 = vmul.f32 %v787, %v787
        %v852 = vmul.f32 %v788, %v788
        %v853 = vmul.f32 %v789, %v789
        %v854 = vmul.f32 %v790, %v790
        %v855 = vmul.f32 %v791, %v791
        %v856 = vmul.f32 %v792, %v792
        %v857 = vmul.f32 %v793, %v793
        %v858 = vmul.f32 %v794, %v794
        %v859 = vmul.f32 %v795, %v795
        %v860 = vmul.f32 %v796, %v796
        %v861 = vmul.f32 %v797, %v797
        %v862 = vmul.f32 %v798, %v798
        %v863 = vmul.f32 %v799, %v799
        %v864 = vmul.f32 %v800, %v800
        %v865 = vmul.f32 %v801, %v801
        %v866 = vmul.f32 %v802, %v802
        %v867 = vmul.f32 %v803, %v803
        %v868 = vmul.f32 %v804, %v804
        %v869 = vmul.f32 %v805, %v805
        %v870 = vmul.f32 %v806, %v806
        %v871 = vmul.f32 %v807, %v807
        %v872 = vmul.f32 %v808, %v808
        %v873 = vmul.f32 %v809, %v809
        %v874 = vmul.f32 %v810, %v810
        %v875 = vmul.f32 %v811, %v811
        %v876 = vmul.f32 %v812, %v812
        %v877 = vmul.f32 %v813, %v813
        %v878 = vmul.f32 %v814, %v814
        %v879 = vmul.f32 %v815, %v815
        %v880 = vmul.f32 %v816, %v816
        %v881 = vmul.f32 %v817, %v817
        %v882 = vmul.f32 %v818, %v818
        %v883 = vmul.f32 %v819, %v819
        %v884 = vmul.f32 %v820, %v820
        %v885 = vmul.f32 %v821, %v821
        %v886 = vmul.f32 %v822, %v822
        %887 = vadd.xlane.f32.xlu0 %v823
        %v888 = vpop.xlane.xlu0 %887
        %889 = vadd.xlane.f32.xlu0 %v824
        %v890 = vpop.xlane.xlu0 %889
        %891 = vadd.xlane.f32.xlu0 %v825
        %v892 = vpop.xlane.xlu0 %891
        %893 = vadd.xlane.f32.xlu0 %v826
        %v894 = vpop.xlane.xlu0 %893
        %895 = vadd.xlane.f32.xlu0 %v827
        %v896 = vpop.xlane.xlu0 %895
        %897 = vadd.xlane.f32.xlu0 %v828
        %v898 = vpop.xlane.xlu0 %897
        %899 = vadd.xlane.f32.xlu0 %v829
        %v900 = vpop.xlane.xlu0 %899
        %901 = vadd.xlane.f32.xlu0 %v830
        %v902 = vpop.xlane.xlu0 %901
        %903 = vadd.xlane.f32.xlu0 %v831
        %v904 = vpop.xlane.xlu0 %903
        %905 = vadd.xlane.f32.xlu0 %v832
        %v906 = vpop.xlane.xlu0 %905
        %907 = vadd.xlane.f32.xlu0 %v833
        %v908 = vpop.xlane.xlu0 %907
        %909 = vadd.xlane.f32.xlu0 %v834
        %v910 = vpop.xlane.xlu0 %909
        %911 = vadd.xlane.f32.xlu0 %v835
        %v912 = vpop.xlane.xlu0 %911
        %913 = vadd.xlane.f32.xlu0 %v836
        %v914 = vpop.xlane.xlu0 %913
        %915 = vadd.xlane.f32.xlu0 %v837
        %v916 = vpop.xlane.xlu0 %915
        %917 = vadd.xlane.f32.xlu0 %v838
        %v918 = vpop.xlane.xlu0 %917
        %919 = vadd.xlane.f32.xlu0 %v839
        %v920 = vpop.xlane.xlu0 %919
        %921 = vadd.xlane.f32.xlu0 %v840
        %v922 = vpop.xlane.xlu0 %921
        %923 = vadd.xlane.f32.xlu0 %v841
        %v924 = vpop.xlane.xlu0 %923
        %925 = vadd.xlane.f32.xlu0 %v842
        %v926 = vpop.xlane.xlu0 %925
        %927 = vadd.xlane.f32.xlu0 %v843
        %v928 = vpop.xlane.xlu0 %927
        %929 = vadd.xlane.f32.xlu0 %v844
        %v930 = vpop.xlane.xlu0 %929
        %931 = vadd.xlane.f32.xlu0 %v845
        %v932 = vpop.xlane.xlu0 %931
        %933 = vadd.xlane.f32.xlu0 %v846
        %v934 = vpop.xlane.xlu0 %933
        %935 = vadd.xlane.f32.xlu0 %v847
        %v936 = vpop.xlane.xlu0 %935
        %937 = vadd.xlane.f32.xlu0 %v848
        %v938 = vpop.xlane.xlu0 %937
        %939 = vadd.xlane.f32.xlu0 %v849
        %v940 = vpop.xlane.xlu0 %939
        %941 = vadd.xlane.f32.xlu0 %v850
        %v942 = vpop.xlane.xlu0 %941
        %943 = vadd.xlane.f32.xlu0 %v851
        %v944 = vpop.xlane.xlu0 %943
        %945 = vadd.xlane.f32.xlu0 %v852
        %v946 = vpop.xlane.xlu0 %945
        %947 = vadd.xlane.f32.xlu0 %v853
        %v948 = vpop.xlane.xlu0 %947
        %949 = vadd.xlane.f32.xlu0 %v854
        %v950 = vpop.xlane.xlu0 %949
        %951 = vadd.xlane.f32.xlu0 %v855
        %v952 = vpop.xlane.xlu0 %951
        %953 = vadd.xlane.f32.xlu0 %v856
        %v954 = vpop.xlane.xlu0 %953
        %955 = vadd.xlane.f32.xlu0 %v857
        %v956 = vpop.xlane.xlu0 %955
        %957 = vadd.xlane.f32.xlu0 %v858
        %v958 = vpop.xlane.xlu0 %957
        %959 = vadd.xlane.f32.xlu0 %v859
        %v960 = vpop.xlane.xlu0 %959
        %961 = vadd.xlane.f32.xlu0 %v860
        %v962 = vpop.xlane.xlu0 %961
        %963 = vadd.xlane.f32.xlu0 %v861
        %v964 = vpop.xlane.xlu0 %963
        %965 = vadd.xlane.f32.xlu0 %v862
        %v966 = vpop.xlane.xlu0 %965
        %967 = vadd.xlane.f32.xlu0 %v863
        %v968 = vpop.xlane.xlu0 %967
        %969 = vadd.xlane.f32.xlu0 %v864
        %v970 = vpop.xlane.xlu0 %969
        %971 = vadd.xlane.f32.xlu0 %v865
        %v972 = vpop.xlane.xlu0 %971
        %973 = vadd.xlane.f32.xlu0 %v866
        %v974 = vpop.xlane.xlu0 %973
        %975 = vadd.xlane.f32.xlu0 %v867
        %v976 = vpop.xlane.xlu0 %975
        %977 = vadd.xlane.f32.xlu0 %v868
        %v978 = vpop.xlane.xlu0 %977
        %979 = vadd.xlane.f32.xlu0 %v869
        %v980 = vpop.xlane.xlu0 %979
        %981 = vadd.xlane.f32.xlu0 %v870
        %v982 = vpop.xlane.xlu0 %981
        %983 = vadd.xlane.f32.xlu0 %v871
        %v984 = vpop.xlane.xlu0 %983
        %985 = vadd.xlane.f32.xlu0 %v872
        %v986 = vpop.xlane.xlu0 %985
        %987 = vadd.xlane.f32.xlu0 %v873
        %v988 = vpop.xlane.xlu0 %987
        %989 = vadd.xlane.f32.xlu0 %v874
        %v990 = vpop.xlane.xlu0 %989
        %991 = vadd.xlane.f32.xlu0 %v875
        %v992 = vpop.xlane.xlu0 %991
        %993 = vadd.xlane.f32.xlu0 %v876
        %v994 = vpop.xlane.xlu0 %993
        %995 = vadd.xlane.f32.xlu0 %v877
        %v996 = vpop.xlane.xlu0 %995
        %997 = vadd.xlane.f32.xlu0 %v878
        %v998 = vpop.xlane.xlu0 %997
        %999 = vadd.xlane.f32.xlu0 %v879
        %v1000 = vpop.xlane.xlu0 %999
        %1001 = vadd.xlane.f32.xlu0 %v880
        %v1002 = vpop.xlane.xlu0 %1001
        %1003 = vadd.xlane.f32.xlu0 %v881
        %v1004 = vpop.xlane.xlu0 %1003
        %1005 = vadd.xlane.f32.xlu0 %v882
        %v1006 = vpop.xlane.xlu0 %1005
        %1007 = vadd.xlane.f32.xlu0 %v883
        %v1008 = vpop.xlane.xlu0 %1007
        %1009 = vadd.xlane.f32.xlu0 %v884
        %v1010 = vpop.xlane.xlu0 %1009
        %1011 = vadd.xlane.f32.xlu0 %v885
        %v1012 = vpop.xlane.xlu0 %1011
        %1013 = vadd.xlane.f32.xlu0 %v886
        %v1014 = vpop.xlane.xlu0 %1013
        %v1015 = vmul.f32 %v888, 0.027777778
        %v1016 = vmul.f32 %v890, 0.027777778
        %v1017 = vmul.f32 %v892, 0.027777778
        %v1018 = vmul.f32 %v894, 0.027777778
        %v1019 = vmul.f32 %v896, 0.027777778
        %v1020 = vmul.f32 %v898, 0.027777778
        %v1021 = vmul.f32 %v900, 0.027777778
        %v1022 = vmul.f32 %v902, 0.027777778
        %v1023 = vmul.f32 %v904, 0.027777778
        %v1024 = vmul.f32 %v906, 0.027777778
        %v1025 = vmul.f32 %v908, 0.027777778
        %v1026 = vmul.f32 %v910, 0.027777778
        %v1027 = vmul.f32 %v912, 0.027777778
        %v1028 = vmul.f32 %v914, 0.027777778
        %v1029 = vmul.f32 %v916, 0.027777778
        %v1030 = vmul.f32 %v918, 0.027777778
        %v1031 = vmul.f32 %v920, 0.027777778
        %v1032 = vmul.f32 %v922, 0.027777778
        %v1033 = vmul.f32 %v924, 0.027777778
        %v1034 = vmul.f32 %v926, 0.027777778
        %v1035 = vmul.f32 %v928, 0.027777778
        %v1036 = vmul.f32 %v930, 0.027777778
        %v1037 = vmul.f32 %v932, 0.027777778
        %v1038 = vmul.f32 %v934, 0.027777778
        %v1039 = vmul.f32 %v936, 0.027777778
        %v1040 = vmul.f32 %v938, 0.027777778
        %v1041 = vmul.f32 %v940, 0.027777778
        %v1042 = vmul.f32 %v942, 0.027777778
        %v1043 = vmul.f32 %v944, 0.027777778
        %v1044 = vmul.f32 %v946, 0.027777778
        %v1045 = vmul.f32 %v948, 0.027777778
        %v1046 = vmul.f32 %v950, 0.027777778
        %v1047 = vmul.f32 %v952, 0.027777778
        %v1048 = vmul.f32 %v954, 0.027777778
        %v1049 = vmul.f32 %v956, 0.027777778
        %v1050 = vmul.f32 %v958, 0.027777778
        %v1051 = vmul.f32 %v960, 0.027777778
        %v1052 = vmul.f32 %v962, 0.027777778
        %v1053 = vmul.f32 %v964, 0.027777778
        %v1054 = vmul.f32 %v966, 0.027777778
        %v1055 = vmul.f32 %v968, 0.027777778
        %v1056 = vmul.f32 %v970, 0.027777778
        %v1057 = vmul.f32 %v972, 0.027777778
        %v1058 = vmul.f32 %v974, 0.027777778
        %v1059 = vmul.f32 %v976, 0.027777778
        %v1060 = vmul.f32 %v978, 0.027777778
        %v1061 = vmul.f32 %v980, 0.027777778
        %v1062 = vmul.f32 %v982, 0.027777778
        %v1063 = vmul.f32 %v984, 0.027777778
        %v1064 = vmul.f32 %v986, 0.027777778
        %v1065 = vmul.f32 %v988, 0.027777778
        %v1066 = vmul.f32 %v990, 0.027777778
        %v1067 = vmul.f32 %v992, 0.027777778
        %v1068 = vmul.f32 %v994, 0.027777778
        %v1069 = vmul.f32 %v996, 0.027777778
        %v1070 = vmul.f32 %v998, 0.027777778
        %v1071 = vmul.f32 %v1000, 0.027777778
        %v1072 = vmul.f32 %v1002, 0.027777778
        %v1073 = vmul.f32 %v1004, 0.027777778
        %v1074 = vmul.f32 %v1006, 0.027777778
        %v1075 = vmul.f32 %v1008, 0.027777778
        %v1076 = vmul.f32 %v1010, 0.027777778
        %v1077 = vmul.f32 %v1012, 0.027777778
        %v1078 = vmul.f32 %v1014, 0.027777778
        %v1079 = vadd.f32 %v1015, 1e-05
        %v1080 = vadd.f32 %v1016, 1e-05
        %v1081 = vadd.f32 %v1017, 1e-05
        %v1082 = vadd.f32 %v1018, 1e-05
        %v1083 = vadd.f32 %v1019, 1e-05
        %v1084 = vadd.f32 %v1020, 1e-05
        %v1085 = vadd.f32 %v1021, 1e-05
        %v1086 = vadd.f32 %v1022, 1e-05
        %v1087 = vadd.f32 %v1023, 1e-05
        %v1088 = vadd.f32 %v1024, 1e-05
        %v1089 = vadd.f32 %v1025, 1e-05
        %v1090 = vadd.f32 %v1026, 1e-05
        %v1091 = vadd.f32 %v1027, 1e-05
        %v1092 = vadd.f32 %v1028, 1e-05
        %v1093 = vadd.f32 %v1029, 1e-05
        %v1094 = vadd.f32 %v1030, 1e-05
        %v1095 = vadd.f32 %v1031, 1e-05
        %v1096 = vadd.f32 %v1032, 1e-05
        %v1097 = vadd.f32 %v1033, 1e-05
        %v1098 = vadd.f32 %v1034, 1e-05
        %v1099 = vadd.f32 %v1035, 1e-05
        %v1100 = vadd.f32 %v1036, 1e-05
        %v1101 = vadd.f32 %v1037, 1e-05
        %v1102 = vadd.f32 %v1038, 1e-05
        %v1103 = vadd.f32 %v1039, 1e-05
        %v1104 = vadd.f32 %v1040, 1e-05
        %v1105 = vadd.f32 %v1041, 1e-05
        %v1106 = vadd.f32 %v1042, 1e-05
        %v1107 = vadd.f32 %v1043, 1e-05
        %v1108 = vadd.f32 %v1044, 1e-05
        %v1109 = vadd.f32 %v1045, 1e-05
        %v1110 = vadd.f32 %v1046, 1e-05
        %v1111 = vadd.f32 %v1047, 1e-05
        %v1112 = vadd.f32 %v1048, 1e-05
        %v1113 = vadd.f32 %v1049, 1e-05
        %v1114 = vadd.f32 %v1050, 1e-05
        %v1115 = vadd.f32 %v1051, 1e-05
        %v1116 = vadd.f32 %v1052, 1e-05
        %v1117 = vadd.f32 %v1053, 1e-05
        %v1118 = vadd.f32 %v1054, 1e-05
        %v1119 = vadd.f32 %v1055, 1e-05
        %v1120 = vadd.f32 %v1056, 1e-05
        %v1121 = vadd.f32 %v1057, 1e-05
        %v1122 = vadd.f32 %v1058, 1e-05
        %v1123 = vadd.f32 %v1059, 1e-05
        %v1124 = vadd.f32 %v1060, 1e-05
        %v1125 = vadd.f32 %v1061, 1e-05
        %v1126 = vadd.f32 %v1062, 1e-05
        %v1127 = vadd.f32 %v1063, 1e-05
        %v1128 = vadd.f32 %v1064, 1e-05
        %v1129 = vadd.f32 %v1065, 1e-05
        %v1130 = vadd.f32 %v1066, 1e-05
        %v1131 = vadd.f32 %v1067, 1e-05
        %v1132 = vadd.f32 %v1068, 1e-05
        %v1133 = vadd.f32 %v1069, 1e-05
        %v1134 = vadd.f32 %v1070, 1e-05
        %v1135 = vadd.f32 %v1071, 1e-05
        %v1136 = vadd.f32 %v1072, 1e-05
        %v1137 = vadd.f32 %v1073, 1e-05
        %v1138 = vadd.f32 %v1074, 1e-05
        %v1139 = vadd.f32 %v1075, 1e-05
        %v1140 = vadd.f32 %v1076, 1e-05
        %v1141 = vadd.f32 %v1077, 1e-05
        %v1142 = vadd.f32 %v1078, 1e-05
        %v1143 = vrsqrt.pop %v1079
        %v1144 = vrsqrt.pop %v1080
        %v1145 = vrsqrt.pop %v1081
        %v1146 = vrsqrt.pop %v1082
        %v1147 = vrsqrt.pop %v1083
        %v1148 = vrsqrt.pop %v1084
        %v1149 = vrsqrt.pop %v1085
        %v1150 = vrsqrt.pop %v1086
        %v1151 = vrsqrt.pop %v1087
        %v1152 = vrsqrt.pop %v1088
        %v1153 = vrsqrt.pop %v1089
        %v1154 = vrsqrt.pop %v1090
        %v1155 = vrsqrt.pop %v1091
        %v1156 = vrsqrt.pop %v1092
        %v1157 = vrsqrt.pop %v1093
        %v1158 = vrsqrt.pop %v1094
        %v1159 = vrsqrt.pop %v1095
        %v1160 = vrsqrt.pop %v1096
        %v1161 = vrsqrt.pop %v1097
        %v1162 = vrsqrt.pop %v1098
        %v1163 = vrsqrt.pop %v1099
        %v1164 = vrsqrt.pop %v1100
        %v1165 = vrsqrt.pop %v1101
        %v1166 = vrsqrt.pop %v1102
        %v1167 = vrsqrt.pop %v1103
        %v1168 = vrsqrt.pop %v1104
        %v1169 = vrsqrt.pop %v1105
        %v1170 = vrsqrt.pop %v1106
        %v1171 = vrsqrt.pop %v1107
        %v1172 = vrsqrt.pop %v1108
        %v1173 = vrsqrt.pop %v1109
        %v1174 = vrsqrt.pop %v1110
        %v1175 = vrsqrt.pop %v1111
        %v1176 = vrsqrt.pop %v1112
        %v1177 = vrsqrt.pop %v1113
        %v1178 = vrsqrt.pop %v1114
        %v1179 = vrsqrt.pop %v1115
        %v1180 = vrsqrt.pop %v1116
        %v1181 = vrsqrt.pop %v1117
        %v1182 = vrsqrt.pop %v1118
        %v1183 = vrsqrt.pop %v1119
        %v1184 = vrsqrt.pop %v1120
        %v1185 = vrsqrt.pop %v1121
        %v1186 = vrsqrt.pop %v1122
        %v1187 = vrsqrt.pop %v1123
        %v1188 = vrsqrt.pop %v1124
        %v1189 = vrsqrt.pop %v1125
        %v1190 = vrsqrt.pop %v1126
        %v1191 = vrsqrt.pop %v1127
        %v1192 = vrsqrt.pop %v1128
        %v1193 = vrsqrt.pop %v1129
        %v1194 = vrsqrt.pop %v1130
        %v1195 = vrsqrt.pop %v1131
        %v1196 = vrsqrt.pop %v1132
        %v1197 = vrsqrt.pop %v1133
        %v1198 = vrsqrt.pop %v1134
        %v1199 = vrsqrt.pop %v1135
        %v1200 = vrsqrt.pop %v1136
        %v1201 = vrsqrt.pop %v1137
        %v1202 = vrsqrt.pop %v1138
        %v1203 = vrsqrt.pop %v1139
        %v1204 = vrsqrt.pop %v1140
        %v1205 = vrsqrt.pop %v1141
        %v1206 = vrsqrt.pop %v1142
        %v1207 = vmul.f32 %v759, %v1143
        %v1208 = vmul.f32 %v760, %v1144
        %v1209 = vmul.f32 %v761, %v1145
        %v1210 = vmul.f32 %v762, %v1146
        %v1211 = vmul.f32 %v763, %v1147
        %v1212 = vmul.f32 %v764, %v1148
        %v1213 = vmul.f32 %v765, %v1149
        %v1214 = vmul.f32 %v766, %v1150
        %v1215 = vmul.f32 %v767, %v1151
        %v1216 = vmul.f32 %v768, %v1152
        %v1217 = vmul.f32 %v769, %v1153
        %v1218 = vmul.f32 %v770, %v1154
        %v1219 = vmul.f32 %v771, %v1155
        %v1220 = vmul.f32 %v772, %v1156
        %v1221 = vmul.f32 %v773, %v1157
        %v1222 = vmul.f32 %v774, %v1158
        %v1223 = vmul.f32 %v775, %v1159
        %v1224 = vmul.f32 %v776, %v1160
        %v1225 = vmul.f32 %v777, %v1161
        %v1226 = vmul.f32 %v778, %v1162
        %v1227 = vmul.f32 %v779, %v1163
        %v1228 = vmul.f32 %v780, %v1164
        %v1229 = vmul.f32 %v781, %v1165
        %v1230 = vmul.f32 %v782, %v1166
        %v1231 = vmul.f32 %v783, %v1167
        %v1232 = vmul.f32 %v784, %v1168
        %v1233 = vmul.f32 %v785, %v1169
        %v1234 = vmul.f32 %v786, %v1170
        %v1235 = vmul.f32 %v787, %v1171
        %v1236 = vmul.f32 %v788, %v1172
        %v1237 = vmul.f32 %v789, %v1173
        %v1238 = vmul.f32 %v790, %v1174
        %v1239 = vmul.f32 %v791, %v1175
        %v1240 = vmul.f32 %v792, %v1176
        %v1241 = vmul.f32 %v793, %v1177
        %v1242 = vmul.f32 %v794, %v1178
        %v1243 = vmul.f32 %v795, %v1179
        %v1244 = vmul.f32 %v796, %v1180
        %v1245 = vmul.f32 %v797, %v1181
        %v1246 = vmul.f32 %v798, %v1182
        %v1247 = vmul.f32 %v799, %v1183
        %v1248 = vmul.f32 %v800, %v1184
        %v1249 = vmul.f32 %v801, %v1185
        %v1250 = vmul.f32 %v802, %v1186
        %v1251 = vmul.f32 %v803, %v1187
        %v1252 = vmul.f32 %v804, %v1188
        %v1253 = vmul.f32 %v805, %v1189
        %v1254 = vmul.f32 %v806, %v1190
        %v1255 = vmul.f32 %v807, %v1191
        %v1256 = vmul.f32 %v808, %v1192
        %v1257 = vmul.f32 %v809, %v1193
        %v1258 = vmul.f32 %v810, %v1194
        %v1259 = vmul.f32 %v811, %v1195
        %v1260 = vmul.f32 %v812, %v1196
        %v1261 = vmul.f32 %v813, %v1197
        %v1262 = vmul.f32 %v814, %v1198
        %v1263 = vmul.f32 %v815, %v1199
        %v1264 = vmul.f32 %v816, %v1200
        %v1265 = vmul.f32 %v817, %v1201
        %v1266 = vmul.f32 %v818, %v1202
        %v1267 = vmul.f32 %v819, %v1203
        %v1268 = vmul.f32 %v820, %v1204
        %v1269 = vmul.f32 %v821, %v1205
        %v1270 = vmul.f32 %v822, %v1206
        %v1271 = vld [vmem:[%s1] sm:$0x1]
        %v1273 = vlaneseq
        %v1274 = vshrl.u32 %v1273, 7
        %v1275 = vsub.s32 0, %v1274
        %v1276 = vrot.slane %v1271, %v1275
        %v1278 = vmul.f32 %v1207, %v1276
        %v1279 = vmul.f32 %v1208, %v1276
        %v1280 = vmul.f32 %v1209, %v1276
        %v1281 = vmul.f32 %v1210, %v1276
        %v1282 = vmul.f32 %v1211, %v1276
        %v1283 = vmul.f32 %v1212, %v1276
        %v1284 = vmul.f32 %v1213, %v1276
        %v1285 = vmul.f32 %v1214, %v1276
        %v1286 = vmul.f32 %v1215, %v1276
        %v1287 = vmul.f32 %v1216, %v1276
        %v1288 = vmul.f32 %v1217, %v1276
        %v1289 = vmul.f32 %v1218, %v1276
        %v1290 = vmul.f32 %v1219, %v1276
        %v1291 = vmul.f32 %v1220, %v1276
        %v1292 = vmul.f32 %v1221, %v1276
        %v1293 = vmul.f32 %v1222, %v1276
        %v1294 = vmul.f32 %v1223, %v1276
        %v1295 = vmul.f32 %v1224, %v1276
        %v1296 = vmul.f32 %v1225, %v1276
        %v1297 = vmul.f32 %v1226, %v1276
        %v1298 = vmul.f32 %v1227, %v1276
        %v1299 = vmul.f32 %v1228, %v1276
        %v1300 = vmul.f32 %v1229, %v1276
        %v1301 = vmul.f32 %v1230, %v1276
        %v1302 = vmul.f32 %v1231, %v1276
        %v1303 = vmul.f32 %v1232, %v1276
        %v1304 = vmul.f32 %v1233, %v1276
        %v1305 = vmul.f32 %v1234, %v1276
        %v1306 = vmul.f32 %v1235, %v1276
        %v1307 = vmul.f32 %v1236, %v1276
        %v1308 = vmul.f32 %v1237, %v1276
        %v1309 = vmul.f32 %v1238, %v1276
        %v1310 = vmul.f32 %v1239, %v1276
        %v1311 = vmul.f32 %v1240, %v1276
        %v1312 = vmul.f32 %v1241, %v1276
        %v1313 = vmul.f32 %v1242, %v1276
        %v1314 = vmul.f32 %v1243, %v1276
        %v1315 = vmul.f32 %v1244, %v1276
        %v1316 = vmul.f32 %v1245, %v1276
        %v1317 = vmul.f32 %v1246, %v1276
        %v1318 = vmul.f32 %v1247, %v1276
        %v1319 = vmul.f32 %v1248, %v1276
        %v1320 = vmul.f32 %v1249, %v1276
        %v1321 = vmul.f32 %v1250, %v1276
        %v1322 = vmul.f32 %v1251, %v1276
        %v1323 = vmul.f32 %v1252, %v1276
        %v1324 = vmul.f32 %v1253, %v1276
        %v1325 = vmul.f32 %v1254, %v1276
        %v1326 = vmul.f32 %v1255, %v1276
        %v1327 = vmul.f32 %v1256, %v1276
        %v1328 = vmul.f32 %v1257, %v1276
        %v1329 = vmul.f32 %v1258, %v1276
        %v1330 = vmul.f32 %v1259, %v1276
        %v1331 = vmul.f32 %v1260, %v1276
        %v1332 = vmul.f32 %v1261, %v1276
        %v1333 = vmul.f32 %v1262, %v1276
        %v1334 = vmul.f32 %v1263, %v1276
        %v1335 = vmul.f32 %v1264, %v1276
        %v1336 = vmul.f32 %v1265, %v1276
        %v1337 = vmul.f32 %v1266, %v1276
        %v1338 = vmul.f32 %v1267, %v1276
        %v1339 = vmul.f32 %v1268, %v1276
        %v1340 = vmul.f32 %v1269, %v1276
        %v1341 = vmul.f32 %v1270, %v1276
        %v1342 = vld [vmem:[%s2] sm:$0x1]
        %v1344 = vlaneseq
        %v1345 = vshrl.u32 %v1344, 7
        %v1346 = vsub.s32 0, %v1345
        %v1347 = vrot.slane %v1342, %v1346
        %v1349 = vadd.f32 %v1278, %v1347
        %v1350 = vadd.f32 %v1279, %v1347
        %v1351 = vadd.f32 %v1280, %v1347
        %v1352 = vadd.f32 %v1281, %v1347
        %v1353 = vadd.f32 %v1282, %v1347
        %v1354 = vadd.f32 %v1283, %v1347
        %v1355 = vadd.f32 %v1284, %v1347
        %v1356 = vadd.f32 %v1285, %v1347
        %v1357 = vadd.f32 %v1286, %v1347
        %v1358 = vadd.f32 %v1287, %v1347
        %v1359 = vadd.f32 %v1288, %v1347
        %v1360 = vadd.f32 %v1289, %v1347
        %v1361 = vadd.f32 %v1290, %v1347
        %v1362 = vadd.f32 %v1291, %v1347
        %v1363 = vadd.f32 %v1292, %v1347
        %v1364 = vadd.f32 %v1293, %v1347
        %v1365 = vadd.f32 %v1294, %v1347
        %v1366 = vadd.f32 %v1295, %v1347
        %v1367 = vadd.f32 %v1296, %v1347
        %v1368 = vadd.f32 %v1297, %v1347
        %v1369 = vadd.f32 %v1298, %v1347
        %v1370 = vadd.f32 %v1299, %v1347
        %v1371 = vadd.f32 %v1300, %v1347
        %v1372 = vadd.f32 %v1301, %v1347
        %v1373 = vadd.f32 %v1302, %v1347
        %v1374 = vadd.f32 %v1303, %v1347
        %v1375 = vadd.f32 %v1304, %v1347
        %v1376 = vadd.f32 %v1305, %v1347
        %v1377 = vadd.f32 %v1306, %v1347
        %v1378 = vadd.f32 %v1307, %v1347
        %v1379 = vadd.f32 %v1308, %v1347
        %v1380 = vadd.f32 %v1309, %v1347
        %v1381 = vadd.f32 %v1310, %v1347
        %v1382 = vadd.f32 %v1311, %v1347
        %v1383 = vadd.f32 %v1312, %v1347
        %v1384 = vadd.f32 %v1313, %v1347
        %v1385 = vadd.f32 %v1314, %v1347
        %v1386 = vadd.f32 %v1315, %v1347
        %v1387 = vadd.f32 %v1316, %v1347
        %v1388 = vadd.f32 %v1317, %v1347
        %v1389 = vadd.f32 %v1318, %v1347
        %v1390 = vadd.f32 %v1319, %v1347
        %v1391 = vadd.f32 %v1320, %v1347
        %v1392 = vadd.f32 %v1321, %v1347
        %v1393 = vadd.f32 %v1322, %v1347
        %v1394 = vadd.f32 %v1323, %v1347
        %v1395 = vadd.f32 %v1324, %v1347
        %v1396 = vadd.f32 %v1325, %v1347
        %v1397 = vadd.f32 %v1326, %v1347
        %v1398 = vadd.f32 %v1327, %v1347
        %v1399 = vadd.f32 %v1328, %v1347
        %v1400 = vadd.f32 %v1329, %v1347
        %v1401 = vadd.f32 %v1330, %v1347
        %v1402 = vadd.f32 %v1331, %v1347
        %v1403 = vadd.f32 %v1332, %v1347
        %v1404 = vadd.f32 %v1333, %v1347
        %v1405 = vadd.f32 %v1334, %v1347
        %v1406 = vadd.f32 %v1335, %v1347
        %v1407 = vadd.f32 %v1336, %v1347
        %v1408 = vadd.f32 %v1337, %v1347
        %v1409 = vadd.f32 %v1338, %v1347
        %v1410 = vadd.f32 %v1339, %v1347
        %v1411 = vadd.f32 %v1340, %v1347
        %v1412 = vadd.f32 %v1341, %v1347
        %v1413 = vmul.f32 %v1349, 1.75
        %v1414 = vmul.f32 %v1350, 1.75
        %v1415 = vmul.f32 %v1351, 1.75
        %v1416 = vmul.f32 %v1352, 1.75
        %v1417 = vmul.f32 %v1353, 1.75
        %v1418 = vmul.f32 %v1354, 1.75
        %v1419 = vmul.f32 %v1355, 1.75
        %v1420 = vmul.f32 %v1356, 1.75
        %v1421 = vmul.f32 %v1357, 1.75
        %v1422 = vmul.f32 %v1358, 1.75
        %v1423 = vmul.f32 %v1359, 1.75
        %v1424 = vmul.f32 %v1360, 1.75
        %v1425 = vmul.f32 %v1361, 1.75
        %v1426 = vmul.f32 %v1362, 1.75
        %v1427 = vmul.f32 %v1363, 1.75
        %v1428 = vmul.f32 %v1364, 1.75
        %v1429 = vmul.f32 %v1365, 1.75
        %v1430 = vmul.f32 %v1366, 1.75
        %v1431 = vmul.f32 %v1367, 1.75
        %v1432 = vmul.f32 %v1368, 1.75
        %v1433 = vmul.f32 %v1369, 1.75
        %v1434 = vmul.f32 %v1370, 1.75
        %v1435 = vmul.f32 %v1371, 1.75
        %v1436 = vmul.f32 %v1372, 1.75
        %v1437 = vmul.f32 %v1373, 1.75
        %v1438 = vmul.f32 %v1374, 1.75
        %v1439 = vmul.f32 %v1375, 1.75
        %v1440 = vmul.f32 %v1376, 1.75
        %v1441 = vmul.f32 %v1377, 1.75
        %v1442 = vmul.f32 %v1378, 1.75
        %v1443 = vmul.f32 %v1379, 1.75
        %v1444 = vmul.f32 %v1380, 1.75
        %v1445 = vmul.f32 %v1381, 1.75
        %v1446 = vmul.f32 %v1382, 1.75
        %v1447 = vmul.f32 %v1383, 1.75
        %v1448 = vmul.f32 %v1384, 1.75
        %v1449 = vmul.f32 %v1385, 1.75
        %v1450 = vmul.f32 %v1386, 1.75
        %v1451 = vmul.f32 %v1387, 1.75
        %v1452 = vmul.f32 %v1388, 1.75
        %v1453 = vmul.f32 %v1389, 1.75
        %v1454 = vmul.f32 %v1390, 1.75
        %v1455 = vmul.f32 %v1391, 1.75
        %v1456 = vmul.f32 %v1392, 1.75
        %v1457 = vmul.f32 %v1393, 1.75
        %v1458 = vmul.f32 %v1394, 1.75
        %v1459 = vmul.f32 %v1395, 1.75
        %v1460 = vmul.f32 %v1396, 1.75
        %v1461 = vmul.f32 %v1397, 1.75
        %v1462 = vmul.f32 %v1398, 1.75
        %v1463 = vmul.f32 %v1399, 1.75
        %v1464 = vmul.f32 %v1400, 1.75
        %v1465 = vmul.f32 %v1401, 1.75
        %v1466 = vmul.f32 %v1402, 1.75
        %v1467 = vmul.f32 %v1403, 1.75
        %v1468 = vmul.f32 %v1404, 1.75
        %v1469 = vmul.f32 %v1405, 1.75
        %v1470 = vmul.f32 %v1406, 1.75
        %v1471 = vmul.f32 %v1407, 1.75
        %v1472 = vmul.f32 %v1408, 1.75
        %v1473 = vmul.f32 %v1409, 1.75
        %v1474 = vmul.f32 %v1410, 1.75
        %v1475 = vmul.f32 %v1411, 1.75
        %v1476 = vmul.f32 %v1412, 1.75
        %1477 = vst [vmem:[#allocation2] sm:$0xff] %v1413
        %1478 = vst [vmem:[#allocation2 + $0x8] sm:$0xff] %v1414
        %1479 = vst [vmem:[#allocation2 + $0x10] sm:$0xff] %v1415
        %1480 = vst [vmem:[#allocation2 + $0x18] sm:$0xff] %v1416
        %1481 = vst [vmem:[#allocation2 + $0x20] sm:$0xff] %v1417
        %1482 = vst [vmem:[#allocation2 + $0x28] sm:$0xff] %v1418
        %1483 = vst [vmem:[#allocation2 + $0x30] sm:$0xff] %v1419
        %1484 = vst [vmem:[#allocation2 + $0x38] sm:$0xff] %v1420
        %1485 = vst [vmem:[#allocation2 + $0x40] sm:$0xff] %v1421
        %1486 = vst [vmem:[#allocation2 + $0x48] sm:$0xff] %v1422
        %1487 = vst [vmem:[#allocation2 + $0x50] sm:$0xff] %v1423
        %1488 = vst [vmem:[#allocation2 + $0x58] sm:$0xff] %v1424
        %1489 = vst [vmem:[#allocation2 + $0x60] sm:$0xff] %v1425
        %1490 = vst [vmem:[#allocation2 + $0x68] sm:$0xff] %v1426
        %1491 = vst [vmem:[#allocation2 + $0x70] sm:$0xff] %v1427
        %1492 = vst [vmem:[#allocation2 + $0x78] sm:$0xff] %v1428
        %1493 = vst [vmem:[#allocation2 + $0x80] sm:$0xff] %v1429
        %1494 = vst [vmem:[#allocation2 + $0x88] sm:$0xff] %v1430
        %1495 = vst [vmem:[#allocation2 + $0x90] sm:$0xff] %v1431
        %1496 = vst [vmem:[#allocation2 + $0x98] sm:$0xff] %v1432
        %1497 = vst [vmem:[#allocation2 + $0xa0] sm:$0xff] %v1433
        %1498 = vst [vmem:[#allocation2 + $0xa8] sm:$0xff] %v1434
        %1499 = vst [vmem:[#allocation2 + $0xb0] sm:$0xff] %v1435
        %1500 = vst [vmem:[#allocation2 + $0xb8] sm:$0xff] %v1436
        %1501 = vst [vmem:[#allocation2 + $0xc0] sm:$0xff] %v1437
        %1502 = vst [vmem:[#allocation2 + $0xc8] sm:$0xff] %v1438
        %1503 = vst [vmem:[#allocation2 + $0xd0] sm:$0xff] %v1439
        %1504 = vst [vmem:[#allocation2 + $0xd8] sm:$0xff] %v1440
        %1505 = vst [vmem:[#allocation2 + $0xe0] sm:$0xff] %v1441
        %1506 = vst [vmem:[#allocation2 + $0xe8] sm:$0xff] %v1442
        %1507 = vst [vmem:[#allocation2 + $0xf0] sm:$0xff] %v1443
        %1508 = vst [vmem:[#allocation2 + $0xf8] sm:$0xff] %v1444
        %1509 = vst [vmem:[#allocation2 + $0x100] sm:$0xff] %v1445
        %1510 = vst [vmem:[#allocation2 + $0x108] sm:$0xff] %v1446
        %1511 = vst [vmem:[#allocation2 + $0x110] sm:$0xff] %v1447
        %1512 = vst [vmem:[#allocation2 + $0x118] sm:$0xff] %v1448
        %1513 = vst [vmem:[#allocation2 + $0x120] sm:$0xff] %v1449
        %1514 = vst [vmem:[#allocation2 + $0x128] sm:$0xff] %v1450
        %1515 = vst [vmem:[#allocation2 + $0x130] sm:$0xff] %v1451
        %1516 = vst [vmem:[#allocation2 + $0x138] sm:$0xff] %v1452
        %1517 = vst [vmem:[#allocation2 + $0x140] sm:$0xff] %v1453
        %1518 = vst [vmem:[#allocation2 + $0x148] sm:$0xff] %v1454
        %1519 = vst [vmem:[#allocation2 + $0x150] sm:$0xff] %v1455
        %1520 = vst [vmem:[#allocation2 + $0x158] sm:$0xff] %v1456
        %1521 = vst [vmem:[#allocation2 + $0x160] sm:$0xff] %v1457
        %1522 = vst [vmem:[#allocation2 + $0x168] sm:$0xff] %v1458
        %1523 = vst [vmem:[#allocation2 + $0x170] sm:$0xff] %v1459
        %1524 = vst [vmem:[#allocation2 + $0x178] sm:$0xff] %v1460
        %1525 = vst [vmem:[#allocation2 + $0x180] sm:$0xff] %v1461
        %1526 = vst [vmem:[#allocation2 + $0x188] sm:$0xff] %v1462
        %1527 = vst [vmem:[#allocation2 + $0x190] sm:$0xff] %v1463
        %1528 = vst [vmem:[#allocation2 + $0x198] sm:$0xff] %v1464
        %1529 = vst [vmem:[#allocation2 + $0x1a0] sm:$0xff] %v1465
        %1530 = vst [vmem:[#allocation2 + $0x1a8] sm:$0xff] %v1466
        %1531 = vst [vmem:[#allocation2 + $0x1b0] sm:$0xff] %v1467
        %1532 = vst [vmem:[#allocation2 + $0x1b8] sm:$0xff] %v1468
        %1533 = vst [vmem:[#allocation2 + $0x1c0] sm:$0xff] %v1469
        %1534 = vst [vmem:[#allocation2 + $0x1c8] sm:$0xff] %v1470
        %1535 = vst [vmem:[#allocation2 + $0x1d0] sm:$0xff] %v1471
        %1536 = vst [vmem:[#allocation2 + $0x1d8] sm:$0xff] %v1472
        %1537 = vst [vmem:[#allocation2 + $0x1e0] sm:$0xff] %v1473
        %1538 = vst [vmem:[#allocation2 + $0x1e8] sm:$0xff] %v1474
        %1539 = vst [vmem:[#allocation2 + $0x1f0] sm:$0xff] %v1475
        %1540 = vst [vmem:[#allocation2 + $0x1f8] sm:$0xff] %v1476
        %v1541 = vxor.u32 %v436, 2147483648
        %v1542 = vxor.u32 %v437, 2147483648
        %v1543 = vxor.u32 %v438, 2147483648
        %v1544 = vxor.u32 %v439, 2147483648
        %v1545 = vxor.u32 %v440, 2147483648
        %v1546 = vxor.u32 %v441, 2147483648
        %v1547 = vxor.u32 %v442, 2147483648
        %v1548 = vxor.u32 %v443, 2147483648
        %v1549 = vxor.u32 %v444, 2147483648
        %v1550 = vxor.u32 %v445, 2147483648
        %v1551 = vxor.u32 %v446, 2147483648
        %v1552 = vxor.u32 %v447, 2147483648
        %v1553 = vxor.u32 %v448, 2147483648
        %v1554 = vxor.u32 %v449, 2147483648
        %v1555 = vxor.u32 %v450, 2147483648
        %v1556 = vxor.u32 %v451, 2147483648
        %v1557 = vxor.u32 %v452, 2147483648
        %v1558 = vxor.u32 %v453, 2147483648
        %v1559 = vxor.u32 %v454, 2147483648
        %v1560 = vxor.u32 %v455, 2147483648
        %v1561 = vxor.u32 %v456, 2147483648
        %v1562 = vxor.u32 %v457, 2147483648
        %v1563 = vxor.u32 %v458, 2147483648
        %v1564 = vxor.u32 %v459, 2147483648
        %v1565 = vxor.u32 %v460, 2147483648
        %v1566 = vxor.u32 %v461, 2147483648
        %v1567 = vxor.u32 %v462, 2147483648
        %v1568 = vxor.u32 %v463, 2147483648
        %v1569 = vxor.u32 %v464, 2147483648
        %v1570 = vxor.u32 %v465, 2147483648
        %v1571 = vxor.u32 %v466, 2147483648
        %v1572 = vxor.u32 %v467, 2147483648
        %v1573 = vxor.u32 %v468, 2147483648
        %v1574 = vxor.u32 %v469, 2147483648
        %v1575 = vxor.u32 %v470, 2147483648
        %v1576 = vxor.u32 %v471, 2147483648
        %v1577 = vxor.u32 %v472, 2147483648
        %v1578 = vxor.u32 %v473, 2147483648
        %v1579 = vxor.u32 %v474, 2147483648
        %v1580 = vxor.u32 %v475, 2147483648
        %v1581 = vxor.u32 %v476, 2147483648
        %v1582 = vxor.u32 %v477, 2147483648
        %v1583 = vxor.u32 %v478, 2147483648
        %v1584 = vxor.u32 %v479, 2147483648
        %v1585 = vxor.u32 %v480, 2147483648
        %v1586 = vxor.u32 %v481, 2147483648
        %v1587 = vxor.u32 %v482, 2147483648
        %v1588 = vxor.u32 %v483, 2147483648
        %v1589 = vxor.u32 %v484, 2147483648
        %v1590 = vxor.u32 %v485, 2147483648
        %v1591 = vxor.u32 %v486, 2147483648
        %v1592 = vxor.u32 %v487, 2147483648
        %v1593 = vxor.u32 %v488, 2147483648
        %v1594 = vxor.u32 %v489, 2147483648
        %v1595 = vxor.u32 %v490, 2147483648
        %v1596 = vxor.u32 %v491, 2147483648
        %v1597 = vxor.u32 %v492, 2147483648
        %v1598 = vxor.u32 %v493, 2147483648
        %v1599 = vxor.u32 %v494, 2147483648
        %v1600 = vxor.u32 %v495, 2147483648
        %v1601 = vxor.u32 %v496, 2147483648
        %v1602 = vxor.u32 %v497, 2147483648
        %v1603 = vxor.u32 %v498, 2147483648
        %v1604 = vxor.u32 %v499, 2147483648
        %v1605 = vmul.f32 %v1541, 1.442695
        %v1606 = vpow.pop %v1605
        %v1607 = vmul.f32 %v1542, 1.442695
        %v1608 = vpow.pop %v1607
        %v1609 = vmul.f32 %v1543, 1.442695
        %v1610 = vpow.pop %v1609
        %v1611 = vmul.f32 %v1544, 1.442695
        %v1612 = vpow.pop %v1611
        %v1613 = vmul.f32 %v1545, 1.442695
        %v1614 = vpow.pop %v1613
        %v1615 = vmul.f32 %v1546, 1.442695
        %v1616 = vpow.pop %v1615
        %v1617 = vmul.f32 %v1547, 1.442695
        %v1618 = vpow.pop %v1617
        %v1619 = vmul.f32 %v1548, 1.442695
        %v1620 = vpow.pop %v1619
        %v1621 = vmul.f32 %v1549, 1.442695
        %v1622 = vpow.pop %v1621
        %v1623 = vmul.f32 %v1550, 1.442695
        %v1624 = vpow.pop %v1623
        %v1625 = vmul.f32 %v1551, 1.442695
        %v1626 = vpow.pop %v1625
        %v1627 = vmul.f32 %v1552, 1.442695
        %v1628 = vpow.pop %v1627
        %v1629 = vmul.f32 %v1553, 1.442695
        %v1630 = vpow.pop %v1629
        %v1631 = vmul.f32 %v1554, 1.442695
        %v1632 = vpow.pop %v1631
        %v1633 = vmul.f32 %v1555, 1.442695
        %v1634 = vpow.pop %v1633
        %v1635 = vmul.f32 %v1556, 1.442695
        %v1636 = vpow.pop %v1635
        %v1637 = vmul.f32 %v1557, 1.442695
        %v1638 = vpow.pop %v1637
        %v1639 = vmul.f32 %v1558, 1.442695
        %v1640 = vpow.pop %v1639
        %v1641 = vmul.f32 %v1559, 1.442695
        %v1642 = vpow.pop %v1641
        %v1643 = vmul.f32 %v1560, 1.442695
        %v1644 = vpow.pop %v1643
        %v1645 = vmul.f32 %v1561, 1.442695
        %v1646 = vpow.pop %v1645
        %v1647 = vmul.f32 %v1562, 1.442695
        %v1648 = vpow.pop %v1647
        %v1649 = vmul.f32 %v1563, 1.442695
        %v1650 = vpow.pop %v1649
        %v1651 = vmul.f32 %v1564, 1.442695
        %v1652 = vpow.pop %v1651
        %v1653 = vmul.f32 %v1565, 1.442695
        %v1654 = vpow.pop %v1653
        %v1655 = vmul.f32 %v1566, 1.442695
        %v1656 = vpow.pop %v1655
        %v1657 = vmul.f32 %v1567, 1.442695
        %v1658 = vpow.pop %v1657
        %v1659 = vmul.f32 %v1568, 1.442695
        %v1660 = vpow.pop %v1659
        %v1661 = vmul.f32 %v1569, 1.442695
        %v1662 = vpow.pop %v1661
        %v1663 = vmul.f32 %v1570, 1.442695
        %v1664 = vpow.pop %v1663
        %v1665 = vmul.f32 %v1571, 1.442695
        %v1666 = vpow.pop %v1665
        %v1667 = vmul.f32 %v1572, 1.442695
        %v1668 = vpow.pop %v1667
        %v1669 = vmul.f32 %v1573, 1.442695
        %v1670 = vpow.pop %v1669
        %v1671 = vmul.f32 %v1574, 1.442695
        %v1672 = vpow.pop %v1671
        %v1673 = vmul.f32 %v1575, 1.442695
        %v1674 = vpow.pop %v1673
        %v1675 = vmul.f32 %v1576, 1.442695
        %v1676 = vpow.pop %v1675
        %v1677 = vmul.f32 %v1577, 1.442695
        %v1678 = vpow.pop %v1677
        %v1679 = vmul.f32 %v1578, 1.442695
        %v1680 = vpow.pop %v1679
        %v1681 = vmul.f32 %v1579, 1.442695
        %v1682 = vpow.pop %v1681
        %v1683 = vmul.f32 %v1580, 1.442695
        %v1684 = vpow.pop %v1683
        %v1685 = vmul.f32 %v1581, 1.442695
        %v1686 = vpow.pop %v1685
        %v1687 = vmul.f32 %v1582, 1.442695
        %v1688 = vpow.pop %v1687
        %v1689 = vmul.f32 %v1583, 1.442695
        %v1690 = vpow.pop %v1689
        %v1691 = vmul.f32 %v1584, 1.442695
        %v1692 = vpow.pop %v1691
        %v1693 = vmul.f32 %v1585, 1.442695
        %v1694 = vpow.pop %v1693
        %v1695 = vmul.f32 %v1586, 1.442695
        %v1696 = vpow.pop %v1695
        %v1697 = vmul.f32 %v1587, 1.442695
        %v1698 = vpow.pop %v1697
        %v1699 = vmul.f32 %v1588, 1.442695
        %v1700 = vpow.pop %v1699
        %v1701 = vmul.f32 %v1589, 1.442695
        %v1702 = vpow.pop %v1701
        %v1703 = vmul.f32 %v1590, 1.442695
        %v1704 = vpow.pop %v1703
        %v1705 = vmul.f32 %v1591, 1.442695
        %v1706 = vpow.pop %v1705
        %v1707 = vmul.f32 %v1592, 1.442695
        %v1708 = vpow.pop %v1707
        %v1709 = vmul.f32 %v1593, 1.442695
        %v1710 = vpow.pop %v1709
        %v1711 = vmul.f32 %v1594, 1.442695
        %v1712 = vpow.pop %v1711
        %v1713 = vmul.f32 %v1595, 1.442695
        %v1714 = vpow.pop %v1713
        %v1715 = vmul.f32 %v1596, 1.442695
        %v1716 = vpow.pop %v1715
        %v1717 = vmul.f32 %v1597, 1.442695
        %v1718 = vpow.pop %v1717
        %v1719 = vmul.f32 %v1598, 1.442695
        %v1720 = vpow.pop %v1719
        %v1721 = vmul.f32 %v1599, 1.442695
        %v1722 = vpow.pop %v1721
        %v1723 = vmul.f32 %v1600, 1.442695
        %v1724 = vpow.pop %v1723
        %v1725 = vmul.f32 %v1601, 1.442695
        %v1726 = vpow.pop %v1725
        %v1727 = vmul.f32 %v1602, 1.442695
        %v1728 = vpow.pop %v1727
        %v1729 = vmul.f32 %v1603, 1.442695
        %v1730 = vpow.pop %v1729
        %v1731 = vmul.f32 %v1604, 1.442695
        %v1732 = vpow.pop %v1731
        %v1733 = vadd.f32 %v1606, 1.0
        %v1734 = vadd.f32 %v1608, 1.0
        %v1735 = vadd.f32 %v1610, 1.0
        %v1736 = vadd.f32 %v1612, 1.0
        %v1737 = vadd.f32 %v1614, 1.0
        %v1738 = vadd.f32 %v1616, 1.0
        %v1739 = vadd.f32 %v1618, 1.0
        %v1740 = vadd.f32 %v1620, 1.0
        %v1741 = vadd.f32 %v1622, 1.0
        %v1742 = vadd.f32 %v1624, 1.0
        %v1743 = vadd.f32 %v1626, 1.0
        %v1744 = vadd.f32 %v1628, 1.0
        %v1745 = vadd.f32 %v1630, 1.0
        %v1746 = vadd.f32 %v1632, 1.0
        %v1747 = vadd.f32 %v1634, 1.0
        %v1748 = vadd.f32 %v1636, 1.0
        %v1749 = vadd.f32 %v1638, 1.0
        %v1750 = vadd.f32 %v1640, 1.0
        %v1751 = vadd.f32 %v1642, 1.0
        %v1752 = vadd.f32 %v1644, 1.0
        %v1753 = vadd.f32 %v1646, 1.0
        %v1754 = vadd.f32 %v1648, 1.0
        %v1755 = vadd.f32 %v1650, 1.0
        %v1756 = vadd.f32 %v1652, 1.0
        %v1757 = vadd.f32 %v1654, 1.0
        %v1758 = vadd.f32 %v1656, 1.0
        %v1759 = vadd.f32 %v1658, 1.0
        %v1760 = vadd.f32 %v1660, 1.0
        %v1761 = vadd.f32 %v1662, 1.0
        %v1762 = vadd.f32 %v1664, 1.0
        %v1763 = vadd.f32 %v1666, 1.0
        %v1764 = vadd.f32 %v1668, 1.0
        %v1765 = vadd.f32 %v1670, 1.0
        %v1766 = vadd.f32 %v1672, 1.0
        %v1767 = vadd.f32 %v1674, 1.0
        %v1768 = vadd.f32 %v1676, 1.0
        %v1769 = vadd.f32 %v1678, 1.0
        %v1770 = vadd.f32 %v1680, 1.0
        %v1771 = vadd.f32 %v1682, 1.0
        %v1772 = vadd.f32 %v1684, 1.0
        %v1773 = vadd.f32 %v1686, 1.0
        %v1774 = vadd.f32 %v1688, 1.0
        %v1775 = vadd.f32 %v1690, 1.0
        %v1776 = vadd.f32 %v1692, 1.0
        %v1777 = vadd.f32 %v1694, 1.0
        %v1778 = vadd.f32 %v1696, 1.0
        %v1779 = vadd.f32 %v1698, 1.0
        %v1780 = vadd.f32 %v1700, 1.0
        %v1781 = vadd.f32 %v1702, 1.0
        %v1782 = vadd.f32 %v1704, 1.0
        %v1783 = vadd.f32 %v1706, 1.0
        %v1784 = vadd.f32 %v1708, 1.0
        %v1785 = vadd.f32 %v1710, 1.0
        %v1786 = vadd.f32 %v1712, 1.0
        %v1787 = vadd.f32 %v1714, 1.0
        %v1788 = vadd.f32 %v1716, 1.0
        %v1789 = vadd.f32 %v1718, 1.0
        %v1790 = vadd.f32 %v1720, 1.0
        %v1791 = vadd.f32 %v1722, 1.0
        %v1792 = vadd.f32 %v1724, 1.0
        %v1793 = vadd.f32 %v1726, 1.0
        %v1794 = vadd.f32 %v1728, 1.0
        %v1795 = vadd.f32 %v1730, 1.0
        %v1796 = vadd.f32 %v1732, 1.0
        %v1797 = vrcp.pop %v1733
        %v1798 = vmul.f32 1.0, %v1797
        %v1799 = vrcp.pop %v1734
        %v1800 = vmul.f32 1.0, %v1799
        %v1801 = vrcp.pop %v1735
        %v1802 = vmul.f32 1.0, %v1801
        %v1803 = vrcp.pop %v1736
        %v1804 = vmul.f32 1.0, %v1803
        %v1805 = vrcp.pop %v1737
        %v1806 = vmul.f32 1.0, %v1805
        %v1807 = vrcp.pop %v1738
        %v1808 = vmul.f32 1.0, %v1807
        %v1809 = vrcp.pop %v1739
        %v1810 = vmul.f32 1.0, %v1809
        %v1811 = vrcp.pop %v1740
        %v1812 = vmul.f32 1.0, %v1811
        %v1813 = vrcp.pop %v1741
        %v1814 = vmul.f32 1.0, %v1813
        %v1815 = vrcp.pop %v1742
        %v1816 = vmul.f32 1.0, %v1815
        %v1817 = vrcp.pop %v1743
        %v1818 = vmul.f32 1.0, %v1817
        %v1819 = vrcp.pop %v1744
        %v1820 = vmul.f32 1.0, %v1819
        %v1821 = vrcp.pop %v1745
        %v1822 = vmul.f32 1.0, %v1821
        %v1823 = vrcp.pop %v1746
        %v1824 = vmul.f32 1.0, %v1823
        %v1825 = vrcp.pop %v1747
        %v1826 = vmul.f32 1.0, %v1825
        %v1827 = vrcp.pop %v1748
        %v1828 = vmul.f32 1.0, %v1827
        %v1829 = vrcp.pop %v1749
        %v1830 = vmul.f32 1.0, %v1829
        %v1831 = vrcp.pop %v1750
        %v1832 = vmul.f32 1.0, %v1831
        %v1833 = vrcp.pop %v1751
        %v1834 = vmul.f32 1.0, %v1833
        %v1835 = vrcp.pop %v1752
        %v1836 = vmul.f32 1.0, %v1835
        %v1837 = vrcp.pop %v1753
        %v1838 = vmul.f32 1.0, %v1837
        %v1839 = vrcp.pop %v1754
        %v1840 = vmul.f32 1.0, %v1839
        %v1841 = vrcp.pop %v1755
        %v1842 = vmul.f32 1.0, %v1841
        %v1843 = vrcp.pop %v1756
        %v1844 = vmul.f32 1.0, %v1843
        %v1845 = vrcp.pop %v1757
        %v1846 = vmul.f32 1.0, %v1845
        %v1847 = vrcp.pop %v1758
        %v1848 = vmul.f32 1.0, %v1847
        %v1849 = vrcp.pop %v1759
        %v1850 = vmul.f32 1.0, %v1849
        %v1851 = vrcp.pop %v1760
        %v1852 = vmul.f32 1.0, %v1851
        %v1853 = vrcp.pop %v1761
        %v1854 = vmul.f32 1.0, %v1853
        %v1855 = vrcp.pop %v1762
        %v1856 = vmul.f32 1.0, %v1855
        %v1857 = vrcp.pop %v1763
        %v1858 = vmul.f32 1.0, %v1857
        %v1859 = vrcp.pop %v1764
        %v1860 = vmul.f32 1.0, %v1859
        %v1861 = vrcp.pop %v1765
        %v1862 = vmul.f32 1.0, %v1861
        %v1863 = vrcp.pop %v1766
        %v1864 = vmul.f32 1.0, %v1863
        %v1865 = vrcp.pop %v1767
        %v1866 = vmul.f32 1.0, %v1865
        %v1867 = vrcp.pop %v1768
        %v1868 = vmul.f32 1.0, %v1867
        %v1869 = vrcp.pop %v1769
        %v1870 = vmul.f32 1.0, %v1869
        %v1871 = vrcp.pop %v1770
        %v1872 = vmul.f32 1.0, %v1871
        %v1873 = vrcp.pop %v1771
        %v1874 = vmul.f32 1.0, %v1873
        %v1875 = vrcp.pop %v1772
        %v1876 = vmul.f32 1.0, %v1875
        %v1877 = vrcp.pop %v1773
        %v1878 = vmul.f32 1.0, %v1877
        %v1879 = vrcp.pop %v1774
        %v1880 = vmul.f32 1.0, %v1879
        %v1881 = vrcp.pop %v1775
        %v1882 = vmul.f32 1.0, %v1881
        %v1883 = vrcp.pop %v1776
        %v1884 = vmul.f32 1.0, %v1883
        %v1885 = vrcp.pop %v1777
        %v1886 = vmul.f32 1.0, %v1885
        %v1887 = vrcp.pop %v1778
        %v1888 = vmul.f32 1.0, %v1887
        %v1889 = vrcp.pop %v1779
        %v1890 = vmul.f32 1.0, %v1889
        %v1891 = vrcp.pop %v1780
        %v1892 = vmul.f32 1.0, %v1891
        %v1893 = vrcp.pop %v1781
        %v1894 = vmul.f32 1.0, %v1893
        %v1895 = vrcp.pop %v1782
        %v1896 = vmul.f32 1.0, %v1895
        %v1897 = vrcp.pop %v1783
        %v1898 = vmul.f32 1.0, %v1897
        %v1899 = vrcp.pop %v1784
        %v1900 = vmul.f32 1.0, %v1899
        %v1901 = vrcp.pop %v1785
        %v1902 = vmul.f32 1.0, %v1901
        %v1903 = vrcp.pop %v1786
        %v1904 = vmul.f32 1.0, %v1903
        %v1905 = vrcp.pop %v1787
        %v1906 = vmul.f32 1.0, %v1905
        %v1907 = vrcp.pop %v1788
        %v1908 = vmul.f32 1.0, %v1907
        %v1909 = vrcp.pop %v1789
        %v1910 = vmul.f32 1.0, %v1909
        %v1911 = vrcp.pop %v1790
        %v1912 = vmul.f32 1.0, %v1911
        %v1913 = vrcp.pop %v1791
        %v1914 = vmul.f32 1.0, %v1913
        %v1915 = vrcp.pop %v1792
        %v1916 = vmul.f32 1.0, %v1915
        %v1917 = vrcp.pop %v1793
        %v1918 = vmul.f32 1.0, %v1917
        %v1919 = vrcp.pop %v1794
        %v1920 = vmul.f32 1.0, %v1919
        %v1921 = vrcp.pop %v1795
        %v1922 = vmul.f32 1.0, %v1921
        %v1923 = vrcp.pop %v1796
        %v1924 = vmul.f32 1.0, %v1923
        %v1925 = vmul.f32 %v436, %v1798
        %v1926 = vmul.f32 %v437, %v1800
        %v1927 = vmul.f32 %v438, %v1802
        %v1928 = vmul.f32 %v439, %v1804
        %v1929 = vmul.f32 %v440, %v1806
        %v1930 = vmul.f32 %v441, %v1808
        %v1931 = vmul.f32 %v442, %v1810
        %v1932 = vmul.f32 %v443, %v1812
        %v1933 = vmul.f32 %v444, %v1814
        %v1934 = vmul.f32 %v445, %v1816
        %v1935 = vmul.f32 %v446, %v1818
        %v1936 = vmul.f32 %v447, %v1820
        %v1937 = vmul.f32 %v448, %v1822
        %v1938 = vmul.f32 %v449, %v1824
        %v1939 = vmul.f32 %v450, %v1826
        %v1940 = vmul.f32 %v451, %v1828
        %v1941 = vmul.f32 %v452, %v1830
        %v1942 = vmul.f32 %v453, %v1832
        %v1943 = vmul.f32 %v454, %v1834
        %v1944 = vmul.f32 %v455, %v1836
        %v1945 = vmul.f32 %v456, %v1838
        %v1946 = vmul.f32 %v457, %v1840
        %v1947 = vmul.f32 %v458, %v1842
        %v1948 = vmul.f32 %v459, %v1844
        %v1949 = vmul.f32 %v460, %v1846
        %v1950 = vmul.f32 %v461, %v1848
        %v1951 = vmul.f32 %v462, %v1850
        %v1952 = vmul.f32 %v463, %v1852
        %v1953 = vmul.f32 %v464, %v1854
        %v1954 = vmul.f32 %v465, %v1856
        %v1955 = vmul.f32 %v466, %v1858
        %v1956 = vmul.f32 %v467, %v1860
        %v1957 = vmul.f32 %v468, %v1862
        %v1958 = vmul.f32 %v469, %v1864
        %v1959 = vmul.f32 %v470, %v1866
        %v1960 = vmul.f32 %v471, %v1868
        %v1961 = vmul.f32 %v472, %v1870
        %v1962 = vmul.f32 %v473, %v1872
        %v1963 = vmul.f32 %v474, %v1874
        %v1964 = vmul.f32 %v475, %v1876
        %v1965 = vmul.f32 %v476, %v1878
        %v1966 = vmul.f32 %v477, %v1880
        %v1967 = vmul.f32 %v478, %v1882
        %v1968 = vmul.f32 %v479, %v1884
        %v1969 = vmul.f32 %v480, %v1886
        %v1970 = vmul.f32 %v481, %v1888
        %v1971 = vmul.f32 %v482, %v1890
        %v1972 = vmul.f32 %v483, %v1892
        %v1973 = vmul.f32 %v484, %v1894
        %v1974 = vmul.f32 %v485, %v1896
        %v1975 = vmul.f32 %v486, %v1898
        %v1976 = vmul.f32 %v487, %v1900
        %v1977 = vmul.f32 %v488, %v1902
        %v1978 = vmul.f32 %v489, %v1904
        %v1979 = vmul.f32 %v490, %v1906
        %v1980 = vmul.f32 %v491, %v1908
        %v1981 = vmul.f32 %v492, %v1910
        %v1982 = vmul.f32 %v493, %v1912
        %v1983 = vmul.f32 %v494, %v1914
        %v1984 = vmul.f32 %v495, %v1916
        %v1985 = vmul.f32 %v496, %v1918
        %v1986 = vmul.f32 %v497, %v1920
        %v1987 = vmul.f32 %v498, %v1922
        %v1988 = vmul.f32 %v499, %v1924
        %v1989 = vpack.c.bf16 %v1926, %v1925
        %v1990 = vpack.c.bf16 %v1928, %v1927
        %v1991 = vpack.c.bf16 %v1930, %v1929
        %v1992 = vpack.c.bf16 %v1932, %v1931
        %v1993 = vpack.c.bf16 %v1934, %v1933
        %v1994 = vpack.c.bf16 %v1936, %v1935
        %v1995 = vpack.c.bf16 %v1938, %v1937
        %v1996 = vpack.c.bf16 %v1940, %v1939
        %v1997 = vpack.c.bf16 %v1942, %v1941
        %v1998 = vpack.c.bf16 %v1944, %v1943
        %v1999 = vpack.c.bf16 %v1946, %v1945
        %v2000 = vpack.c.bf16 %v1948, %v1947
        %v2001 = vpack.c.bf16 %v1950, %v1949
        %v2002 = vpack.c.bf16 %v1952, %v1951
        %v2003 = vpack.c.bf16 %v1954, %v1953
        %v2004 = vpack.c.bf16 %v1956, %v1955
        %v2005 = vpack.c.bf16 %v1958, %v1957
        %v2006 = vpack.c.bf16 %v1960, %v1959
        %v2007 = vpack.c.bf16 %v1962, %v1961
        %v2008 = vpack.c.bf16 %v1964, %v1963
        %v2009 = vpack.c.bf16 %v1966, %v1965
        %v2010 = vpack.c.bf16 %v1968, %v1967
        %v2011 = vpack.c.bf16 %v1970, %v1969
        %v2012 = vpack.c.bf16 %v1972, %v1971
        %v2013 = vpack.c.bf16 %v1974, %v1973
        %v2014 = vpack.c.bf16 %v1976, %v1975
        %v2015 = vpack.c.bf16 %v1978, %v1977
        %v2016 = vpack.c.bf16 %v1980, %v1979
        %v2017 = vpack.c.bf16 %v1982, %v1981
        %v2018 = vpack.c.bf16 %v1984, %v1983
        %v2019 = vpack.c.bf16 %v1986, %v1985
        %v2020 = vpack.c.bf16 %v1988, %v1987
        %2021 = vmatprep.subr.bf16.mxu0 0
        %2022 = vmatpush1.bf16.msra.mxu0 %v359
        %2023 = vmatprep.subr.bf16.mxu0 0
        %2024 = vmatpush1.bf16.msra.mxu0 %v360
        %2025 = vmatprep.subr.bf16.mxu0 0
        %2026 = vmatpush1.bf16.msra.mxu0 %v361
        %2027 = vmatprep.subr.bf16.mxu0 0
        %2028 = vmatpush1.bf16.msra.mxu0 %v362
        %2029 = vmatprep.subr.bf16.mxu0 0
        %2030 = vmatpush1.bf16.msra.mxu0 %v363
        %2031 = vmatprep.subr.bf16.mxu0 0
        %2032 = vmatpush1.bf16.msra.mxu0 %v364
        %2033 = vmatprep.subr.bf16.mxu0 0
        %2034 = vmatpush1.bf16.msra.mxu0 %v365
        %2035 = vmatprep.subr.bf16.mxu0 0
        %2036 = vmatpush1.bf16.msra.mxu0 %v366
        %2037 = vmatprep.subr.bf16.mxu0 0
        %2038 = vmatpush1.bf16.msra.mxu0 0
        %2039 = vmatprep.subr.bf16.mxu0 0
        %2040 = vmatpush1.bf16.msra.mxu0 0
        %2041 = vmatprep.subr.bf16.mxu0 0
        %2042 = vmatpush1.bf16.msra.mxu0 0
        %2043 = vmatprep.subr.bf16.mxu0 0
        %2044 = vmatpush1.bf16.msra.mxu0 0
        %2045 = vmatprep.subr.bf16.mxu0 0
        %2046 = vmatpush1.bf16.msra.mxu0 0
        %2047 = vmatprep.subr.bf16.mxu0 0
        %2048 = vmatpush1.bf16.msra.mxu0 0
        %2049 = vmatprep.subr.bf16.mxu0 0
        %2050 = vmatpush1.bf16.msra.mxu0 0
        %2051 = vmatprep.subr.bf16.mxu0 0
        %2052 = vmatpush1.bf16.msra.mxu0 0
        %2053 = vmatprep.mubr.bf16.mxu0 0
        %2054 = vmatmul.mubr.bf16.gmra.mrb[0].mxu0 %v1989
        %v2055 = vpop.f32.mrb[0].mxu0
        %v2056 = vadd.f32 0.0, %v2055
        %v2057 = vpop.f32.mrb[0].mxu0
        %v2058 = vpop.f32.mrb[0].mxu0
        %v2059 = vadd.f32 0.0, %v2058
        %v2060 = vpop.f32.mrb[0].mxu0
        %2061 = vmatprep.mubr.bf16.mxu0 0
        %2062 = vmatmul.mubr.bf16.gmra.mrb[0].mxu0 %v1990
        %v2063 = vpop.f32.mrb[0].mxu0
        %v2064 = vadd.f32 0.0, %v2063
        %v2065 = vpop.f32.mrb[0].mxu0
        %v2066 = vpop.f32.mrb[0].mxu0
        %v2067 = vadd.f32 0.0, %v2066
        %v2068 = vpop.f32.mrb[0].mxu0
        %2069 = vmatprep.mubr.bf16.mxu0 0
        %2070 = vmatmul.mubr.bf16.gmra.mrb[0].mxu0 %v1991
        %v2071 = vpop.f32.mrb[0].mxu0
        %v2072 = vadd.f32 0.0, %v2071
        %v2073 = vpop.f32.mrb[0].mxu0
        %v2074 = vpop.f32.mrb[0].mxu0
        %v2075 = vadd.f32 0.0, %v2074
        %v2076 = vpop.f32.mrb[0].mxu0
        %2077 = vmatprep.mubr.bf16.mxu0 0
        %2078 = vmatmul.mubr.bf16.gmra.mrb[0].mxu0 %v1992
        %v2079 = vpop.f32.mrb[0].mxu0
        %v2080 = vadd.f32 0.0, %v2079
        %v2081 = vpop.f32.mrb[0].mxu0
        %v2082 = vpop.f32.mrb[0].mxu0
        %v2083 = vadd.f32 0.0, %v2082
        %v2084 = vpop.f32.mrb[0].mxu0
        %2085 = vmatprep.mubr.bf16.mxu0 0
        %2086 = vmatmul.mubr.bf16.gmra.mrb[0].mxu0 %v1993
        %v2087 = vpop.f32.mrb[0].mxu0
        %v2088 = vadd.f32 0.0, %v2087
        %v2089 = vpop.f32.mrb[0].mxu0
        %v2090 = vpop.f32.mrb[0].mxu0
        %v2091 = vadd.f32 0.0, %v2090
        %v2092 = vpop.f32.mrb[0].mxu0
        %2093 = vmatprep.mubr.bf16.mxu0 0
        %2094 = vmatmul.mubr.bf16.gmra.mrb[0].mxu0 %v1994
        %v2095 = vpop.f32.mrb[0].mxu0
        %v2096 = vadd.f32 0.0, %v2095
        %v2097 = vpop.f32.mrb[0].mxu0
        %v2098 = vpop.f32.mrb[0].mxu0
        %v2099 = vadd.f32 0.0, %v2098
        %v2100 = vpop.f32.mrb[0].mxu0
        %2101 = vmatprep.mubr.bf16.mxu0 0
        %2102 = vmatmul.mubr.bf16.gmra.mrb[0].mxu0 %v1995
        %v2103 = vpop.f32.mrb[0].mxu0
        %v2104 = vadd.f32 0.0, %v2103
        %v2105 = vpop.f32.mrb[0].mxu0
        %v2106 = vpop.f32.mrb[0].mxu0
        %v2107 = vadd.f32 0.0, %v2106
        %v2108 = vpop.f32.mrb[0].mxu0
        %2109 = vmatprep.mubr.bf16.mxu0 0
        %2110 = vmatmul.mubr.bf16.gmra.mrb[0].mxu0 %v1996
        %v2111 = vpop.f32.mrb[0].mxu0
        %v2112 = vadd.f32 0.0, %v2111
        %v2113 = vpop.f32.mrb[0].mxu0
        %v2114 = vpop.f32.mrb[0].mxu0
        %v2115 = vadd.f32 0.0, %v2114
        %v2116 = vpop.f32.mrb[0].mxu0
        %2117 = vmatprep.mubr.bf16.mxu0 0
        %2118 = vmatmul.mubr.bf16.gmra.mrb[0].mxu0 %v1997
        %v2119 = vpop.f32.mrb[0].mxu0
        %v2120 = vadd.f32 0.0, %v2119
        %v2121 = vpop.f32.mrb[0].mxu0
        %v2122 = vpop.f32.mrb[0].mxu0
        %v2123 = vadd.f32 0.0, %v2122
        %v2124 = vpop.f32.mrb[0].mxu0
        %2125 = vmatprep.mubr.bf16.mxu0 0
        %2126 = vmatmul.mubr.bf16.gmra.mrb[0].mxu0 %v1998
        %v2127 = vpop.f32.mrb[0].mxu0
        %v2128 = vadd.f32 0.0, %v2127
        %v2129 = vpop.f32.mrb[0].mxu0
        %v2130 = vpop.f32.mrb[0].mxu0
        %v2131 = vadd.f32 0.0, %v2130
        %v2132 = vpop.f32.mrb[0].mxu0
        %2133 = vmatprep.mubr.bf16.mxu0 0
        %2134 = vmatmul.mubr.bf16.gmra.mrb[0].mxu0 %v1999
        %v2135 = vpop.f32.mrb[0].mxu0
        %v2136 = vadd.f32 0.0, %v2135
        %v2137 = vpop.f32.mrb[0].mxu0
        %v2138 = vpop.f32.mrb[0].mxu0
        %v2139 = vadd.f32 0.0, %v2138
        %v2140 = vpop.f32.mrb[0].mxu0
        %2141 = vmatprep.mubr.bf16.mxu0 0
        %2142 = vmatmul.mubr.bf16.gmra.mrb[0].mxu0 %v2000
        %v2143 = vpop.f32.mrb[0].mxu0
        %v2144 = vadd.f32 0.0, %v2143
        %v2145 = vpop.f32.mrb[0].mxu0
        %v2146 = vpop.f32.mrb[0].mxu0
        %v2147 = vadd.f32 0.0, %v2146
        %v2148 = vpop.f32.mrb[0].mxu0
        %2149 = vmatprep.mubr.bf16.mxu0 0
        %2150 = vmatmul.mubr.bf16.gmra.mrb[0].mxu0 %v2001
        %v2151 = vpop.f32.mrb[0].mxu0
        %v2152 = vadd.f32 0.0, %v2151
        %v2153 = vpop.f32.mrb[0].mxu0
        %v2154 = vpop.f32.mrb[0].mxu0
        %v2155 = vadd.f32 0.0, %v2154
        %v2156 = vpop.f32.mrb[0].mxu0
        %2157 = vmatprep.mubr.bf16.mxu0 0
        %2158 = vmatmul.mubr.bf16.gmra.mrb[0].mxu0 %v2002
        %v2159 = vpop.f32.mrb[0].mxu0
        %v2160 = vadd.f32 0.0, %v2159
        %v2161 = vpop.f32.mrb[0].mxu0
        %v2162 = vpop.f32.mrb[0].mxu0
        %v2163 = vadd.f32 0.0, %v2162
        %v2164 = vpop.f32.mrb[0].mxu0
        %2165 = vmatprep.mubr.bf16.mxu0 0
        %2166 = vmatmul.mubr.bf16.gmra.mrb[0].mxu0 %v2003
        %v2167 = vpop.f32.mrb[0].mxu0
        %v2168 = vadd.f32 0.0, %v2167
        %v2169 = vpop.f32.mrb[0].mxu0
        %v2170 = vpop.f32.mrb[0].mxu0
        %v2171 = vadd.f32 0.0, %v2170
        %v2172 = vpop.f32.mrb[0].mxu0
        %2173 = vmatprep.mubr.bf16.mxu0 0
        %2174 = vmatmul.mubr.bf16.gmra.mrb[0].mxu0 %v2004
        %v2175 = vpop.f32.mrb[0].mxu0
        %v2176 = vadd.f32 0.0, %v2175
        %v2177 = vpop.f32.mrb[0].mxu0
        %v2178 = vpop.f32.mrb[0].mxu0
        %v2179 = vadd.f32 0.0, %v2178
        %v2180 = vpop.f32.mrb[0].mxu0
        %2181 = vmatprep.mubr.bf16.mxu0 0
        %2182 = vmatmul.mubr.bf16.gmra.mrb[0].mxu0 %v2005
        %v2183 = vpop.f32.mrb[0].mxu0
        %v2184 = vadd.f32 0.0, %v2183
        %v2185 = vpop.f32.mrb[0].mxu0
        %v2186 = vpop.f32.mrb[0].mxu0
        %v2187 = vadd.f32 0.0, %v2186
        %v2188 = vpop.f32.mrb[0].mxu0
        %2189 = vmatprep.mubr.bf16.mxu0 0
        %2190 = vmatmul.mubr.bf16.gmra.mrb[0].mxu0 %v2006
        %v2191 = vpop.f32.mrb[0].mxu0
        %v2192 = vadd.f32 0.0, %v2191
        %v2193 = vpop.f32.mrb[0].mxu0
        %v2194 = vpop.f32.mrb[0].mxu0
        %v2195 = vadd.f32 0.0, %v2194
        %v2196 = vpop.f32.mrb[0].mxu0
        %2197 = vmatprep.mubr.bf16.mxu0 0
        %2198 = vmatmul.mubr.bf16.gmra.mrb[0].mxu0 %v2007
        %v2199 = vpop.f32.mrb[0].mxu0
        %v2200 = vadd.f32 0.0, %v2199
        %v2201 = vpop.f32.mrb[0].mxu0
        %v2202 = vpop.f32.mrb[0].mxu0
        %v2203 = vadd.f32 0.0, %v2202
        %v2204 = vpop.f32.mrb[0].mxu0
        %2205 = vmatprep.mubr.bf16.mxu0 0
        %2206 = vmatmul.mubr.bf16.gmra.mrb[0].mxu0 %v2008
        %v2207 = vpop.f32.mrb[0].mxu0
        %v2208 = vadd.f32 0.0, %v2207
        %v2209 = vpop.f32.mrb[0].mxu0
        %v2210 = vpop.f32.mrb[0].mxu0
        %v2211 = vadd.f32 0.0, %v2210
        %v2212 = vpop.f32.mrb[0].mxu0
        %2213 = vmatprep.mubr.bf16.mxu0 0
        %2214 = vmatmul.mubr.bf16.gmra.mrb[0].mxu0 %v2009
        %v2215 = vpop.f32.mrb[0].mxu0
        %v2216 = vadd.f32 0.0, %v2215
        %v2217 = vpop.f32.mrb[0].mxu0
        %v2218 = vpop.f32.mrb[0].mxu0
        %v2219 = vadd.f32 0.0, %v2218
        %v2220 = vpop.f32.mrb[0].mxu0
        %2221 = vmatprep.mubr.bf16.mxu0 0
        %2222 = vmatmul.mubr.bf16.gmra.mrb[0].mxu0 %v2010
        %v2223 = vpop.f32.mrb[0].mxu0
        %v2224 = vadd.f32 0.0, %v2223
        %v2225 = vpop.f32.mrb[0].mxu0
        %v2226 = vpop.f32.mrb[0].mxu0
        %v2227 = vadd.f32 0.0, %v2226
        %v2228 = vpop.f32.mrb[0].mxu0
        %2229 = vmatprep.mubr.bf16.mxu0 0
        %2230 = vmatmul.mubr.bf16.gmra.mrb[0].mxu0 %v2011
        %v2231 = vpop.f32.mrb[0].mxu0
        %v2232 = vadd.f32 0.0, %v2231
        %v2233 = vpop.f32.mrb[0].mxu0
        %v2234 = vpop.f32.mrb[0].mxu0
        %v2235 = vadd.f32 0.0, %v2234
        %v2236 = vpop.f32.mrb[0].mxu0
        %2237 = vmatprep.mubr.bf16.mxu0 0
        %2238 = vmatmul.mubr.bf16.gmra.mrb[0].mxu0 %v2012
        %v2239 = vpop.f32.mrb[0].mxu0
        %v2240 = vadd.f32 0.0, %v2239
        %v2241 = vpop.f32.mrb[0].mxu0
        %v2242 = vpop.f32.mrb[0].mxu0
        %v2243 = vadd.f32 0.0, %v2242
        %v2244 = vpop.f32.mrb[0].mxu0
        %2245 = vmatprep.mubr.bf16.mxu0 0
        %2246 = vmatmul.mubr.bf16.gmra.mrb[0].mxu0 %v2013
        %v2247 = vpop.f32.mrb[0].mxu0
        %v2248 = vadd.f32 0.0, %v2247
        %v2249 = vpop.f32.mrb[0].mxu0
        %v2250 = vpop.f32.mrb[0].mxu0
        %v2251 = vadd.f32 0.0, %v2250
        %v2252 = vpop.f32.mrb[0].mxu0
        %2253 = vmatprep.mubr.bf16.mxu0 0
        %2254 = vmatmul.mubr.bf16.gmra.mrb[0].mxu0 %v2014
        %v2255 = vpop.f32.mrb[0].mxu0
        %v2256 = vadd.f32 0.0, %v2255
        %v2257 = vpop.f32.mrb[0].mxu0
        %v2258 = vpop.f32.mrb[0].mxu0
        %v2259 = vadd.f32 0.0, %v2258
        %v2260 = vpop.f32.mrb[0].mxu0
        %2261 = vmatprep.mubr.bf16.mxu0 0
        %2262 = vmatmul.mubr.bf16.gmra.mrb[0].mxu0 %v2015
        %v2263 = vpop.f32.mrb[0].mxu0
        %v2264 = vadd.f32 0.0, %v2263
        %v2265 = vpop.f32.mrb[0].mxu0
        %v2266 = vpop.f32.mrb[0].mxu0
        %v2267 = vadd.f32 0.0, %v2266
        %v2268 = vpop.f32.mrb[0].mxu0
        %2269 = vmatprep.mubr.bf16.mxu0 0
        %2270 = vmatmul.mubr.bf16.gmra.mrb[0].mxu0 %v2016
        %v2271 = vpop.f32.mrb[0].mxu0
        %v2272 = vadd.f32 0.0, %v2271
        %v2273 = vpop.f32.mrb[0].mxu0
        %v2274 = vpop.f32.mrb[0].mxu0
        %v2275 = vadd.f32 0.0, %v2274
        %v2276 = vpop.f32.mrb[0].mxu0
        %2277 = vmatprep.mubr.bf16.mxu0 0
        %2278 = vmatmul.mubr.bf16.gmra.mrb[0].mxu0 %v2017
        %v2279 = vpop.f32.mrb[0].mxu0
        %v2280 = vadd.f32 0.0, %v2279
        %v2281 = vpop.f32.mrb[0].mxu0
        %v2282 = vpop.f32.mrb[0].mxu0
        %v2283 = vadd.f32 0.0, %v2282
        %v2284 = vpop.f32.mrb[0].mxu0
        %2285 = vmatprep.mubr.bf16.mxu0 0
        %2286 = vmatmul.mubr.bf16.gmra.mrb[0].mxu0 %v2018
        %v2287 = vpop.f32.mrb[0].mxu0
        %v2288 = vadd.f32 0.0, %v2287
        %v2289 = vpop.f32.mrb[0].mxu0
        %v2290 = vpop.f32.mrb[0].mxu0
        %v2291 = vadd.f32 0.0, %v2290
        %v2292 = vpop.f32.mrb[0].mxu0
        %2293 = vmatprep.mubr.bf16.mxu0 0
        %2294 = vmatmul.mubr.bf16.gmra.mrb[0].mxu0 %v2019
        %v2295 = vpop.f32.mrb[0].mxu0
        %v2296 = vadd.f32 0.0, %v2295
        %v2297 = vpop.f32.mrb[0].mxu0
        %v2298 = vpop.f32.mrb[0].mxu0
        %v2299 = vadd.f32 0.0, %v2298
        %v2300 = vpop.f32.mrb[0].mxu0
        %2301 = vmatprep.mubr.bf16.mxu0 0
        %2302 = vmatmul.mubr.bf16.gmra.mrb[0].mxu0 %v2020
        %v2303 = vpop.f32.mrb[0].mxu0
        %v2304 = vadd.f32 0.0, %v2303
        %v2305 = vpop.f32.mrb[0].mxu0
        %v2306 = vpop.f32.mrb[0].mxu0
        %v2307 = vadd.f32 0.0, %v2306
        %v2308 = vpop.f32.mrb[0].mxu0
        %2309 = vdwg.mxu0
        %v2311 = vlaneseq
        %v2312 = vshrl.u32 %v2311, 7
        %v2313 = vsub.s32 0, %v2312
        %v2314 = vrot.slane %v367, %v2313
        %v2316 = vmul.f32 %v2056, %v2314
        %v2317 = vmul.f32 %v2059, %v2314
        %v2318 = vmul.f32 %v2064, %v2314
        %v2319 = vmul.f32 %v2067, %v2314
        %v2320 = vmul.f32 %v2072, %v2314
        %v2321 = vmul.f32 %v2075, %v2314
        %v2322 = vmul.f32 %v2080, %v2314
        %v2323 = vmul.f32 %v2083, %v2314
        %v2324 = vmul.f32 %v2088, %v2314
        %v2325 = vmul.f32 %v2091, %v2314
        %v2326 = vmul.f32 %v2096, %v2314
        %v2327 = vmul.f32 %v2099, %v2314
        %v2328 = vmul.f32 %v2104, %v2314
        %v2329 = vmul.f32 %v2107, %v2314
        %v2330 = vmul.f32 %v2112, %v2314
        %v2331 = vmul.f32 %v2115, %v2314
        %v2332 = vmul.f32 %v2120, %v2314
        %v2333 = vmul.f32 %v2123, %v2314
        %v2334 = vmul.f32 %v2128, %v2314
        %v2335 = vmul.f32 %v2131, %v2314
        %v2336 = vmul.f32 %v2136, %v2314
        %v2337 = vmul.f32 %v2139, %v2314
        %v2338 = vmul.f32 %v2144, %v2314
        %v2339 = vmul.f32 %v2147, %v2314
        %v2340 = vmul.f32 %v2152, %v2314
        %v2341 = vmul.f32 %v2155, %v2314
        %v2342 = vmul.f32 %v2160, %v2314
        %v2343 = vmul.f32 %v2163, %v2314
        %v2344 = vmul.f32 %v2168, %v2314
        %v2345 = vmul.f32 %v2171, %v2314
        %v2346 = vmul.f32 %v2176, %v2314
        %v2347 = vmul.f32 %v2179, %v2314
        %v2348 = vmul.f32 %v2184, %v2314
        %v2349 = vmul.f32 %v2187, %v2314
        %v2350 = vmul.f32 %v2192, %v2314
        %v2351 = vmul.f32 %v2195, %v2314
        %v2352 = vmul.f32 %v2200, %v2314
        %v2353 = vmul.f32 %v2203, %v2314
        %v2354 = vmul.f32 %v2208, %v2314
        %v2355 = vmul.f32 %v2211, %v2314
        %v2356 = vmul.f32 %v2216, %v2314
        %v2357 = vmul.f32 %v2219, %v2314
        %v2358 = vmul.f32 %v2224, %v2314
        %v2359 = vmul.f32 %v2227, %v2314
        %v2360 = vmul.f32 %v2232, %v2314
        %v2361 = vmul.f32 %v2235, %v2314
        %v2362 = vmul.f32 %v2240, %v2314
        %v2363 = vmul.f32 %v2243, %v2314
        %v2364 = vmul.f32 %v2248, %v2314
        %v2365 = vmul.f32 %v2251, %v2314
        %v2366 = vmul.f32 %v2256, %v2314
        %v2367 = vmul.f32 %v2259, %v2314
        %v2368 = vmul.f32 %v2264, %v2314
        %v2369 = vmul.f32 %v2267, %v2314
        %v2370 = vmul.f32 %v2272, %v2314
        %v2371 = vmul.f32 %v2275, %v2314
        %v2372 = vmul.f32 %v2280, %v2314
        %v2373 = vmul.f32 %v2283, %v2314
        %v2374 = vmul.f32 %v2288, %v2314
        %v2375 = vmul.f32 %v2291, %v2314
        %v2376 = vmul.f32 %v2296, %v2314
        %v2377 = vmul.f32 %v2299, %v2314
        %v2378 = vmul.f32 %v2304, %v2314
        %v2379 = vmul.f32 %v2307, %v2314
        %2380 = vst [vmem:[#allocation3] sm:$0xff] %v2316
        %2381 = vst [vmem:[#allocation3 + $0x8] sm:$0xff] %v2317
        %2382 = vst [vmem:[#allocation3 + $0x10] sm:$0xff] %v2318
        %2383 = vst [vmem:[#allocation3 + $0x18] sm:$0xff] %v2319
        %2384 = vst [vmem:[#allocation3 + $0x20] sm:$0xff] %v2320
        %2385 = vst [vmem:[#allocation3 + $0x28] sm:$0xff] %v2321
        %2386 = vst [vmem:[#allocation3 + $0x30] sm:$0xff] %v2322
        %2387 = vst [vmem:[#allocation3 + $0x38] sm:$0xff] %v2323
        %2388 = vst [vmem:[#allocation3 + $0x40] sm:$0xff] %v2324
        %2389 = vst [vmem:[#allocation3 + $0x48] sm:$0xff] %v2325
        %2390 = vst [vmem:[#allocation3 + $0x50] sm:$0xff] %v2326
        %2391 = vst [vmem:[#allocation3 + $0x58] sm:$0xff] %v2327
        %2392 = vst [vmem:[#allocation3 + $0x60] sm:$0xff] %v2328
        %2393 = vst [vmem:[#allocation3 + $0x68] sm:$0xff] %v2329
        %2394 = vst [vmem:[#allocation3 + $0x70] sm:$0xff] %v2330
        %2395 = vst [vmem:[#allocation3 + $0x78] sm:$0xff] %v2331
        %2396 = vst [vmem:[#allocation3 + $0x80] sm:$0xff] %v2332
        %2397 = vst [vmem:[#allocation3 + $0x88] sm:$0xff] %v2333
        %2398 = vst [vmem:[#allocation3 + $0x90] sm:$0xff] %v2334
        %2399 = vst [vmem:[#allocation3 + $0x98] sm:$0xff] %v2335
        %2400 = vst [vmem:[#allocation3 + $0xa0] sm:$0xff] %v2336
        %2401 = vst [vmem:[#allocation3 + $0xa8] sm:$0xff] %v2337
        %2402 = vst [vmem:[#allocation3 + $0xb0] sm:$0xff] %v2338
        %2403 = vst [vmem:[#allocation3 + $0xb8] sm:$0xff] %v2339
        %2404 = vst [vmem:[#allocation3 + $0xc0] sm:$0xff] %v2340
        %2405 = vst [vmem:[#allocation3 + $0xc8] sm:$0xff] %v2341
        %2406 = vst [vmem:[#allocation3 + $0xd0] sm:$0xff] %v2342
        %2407 = vst [vmem:[#allocation3 + $0xd8] sm:$0xff] %v2343
        %2408 = vst [vmem:[#allocation3 + $0xe0] sm:$0xff] %v2344
        %2409 = vst [vmem:[#allocation3 + $0xe8] sm:$0xff] %v2345
        %2410 = vst [vmem:[#allocation3 + $0xf0] sm:$0xff] %v2346
        %2411 = vst [vmem:[#allocation3 + $0xf8] sm:$0xff] %v2347
        %2412 = vst [vmem:[#allocation3 + $0x100] sm:$0xff] %v2348
        %2413 = vst [vmem:[#allocation3 + $0x108] sm:$0xff] %v2349
        %2414 = vst [vmem:[#allocation3 + $0x110] sm:$0xff] %v2350
        %2415 = vst [vmem:[#allocation3 + $0x118] sm:$0xff] %v2351
        %2416 = vst [vmem:[#allocation3 + $0x120] sm:$0xff] %v2352
        %2417 = vst [vmem:[#allocation3 + $0x128] sm:$0xff] %v2353
        %2418 = vst [vmem:[#allocation3 + $0x130] sm:$0xff] %v2354
        %2419 = vst [vmem:[#allocation3 + $0x138] sm:$0xff] %v2355
        %2420 = vst [vmem:[#allocation3 + $0x140] sm:$0xff] %v2356
        %2421 = vst [vmem:[#allocation3 + $0x148] sm:$0xff] %v2357
        %2422 = vst [vmem:[#allocation3 + $0x150] sm:$0xff] %v2358
        %2423 = vst [vmem:[#allocation3 + $0x158] sm:$0xff] %v2359
        %2424 = vst [vmem:[#allocation3 + $0x160] sm:$0xff] %v2360
        %2425 = vst [vmem:[#allocation3 + $0x168] sm:$0xff] %v2361
        %2426 = vst [vmem:[#allocation3 + $0x170] sm:$0xff] %v2362
        %2427 = vst [vmem:[#allocation3 + $0x178] sm:$0xff] %v2363
        %2428 = vst [vmem:[#allocation3 + $0x180] sm:$0xff] %v2364
        %2429 = vst [vmem:[#allocation3 + $0x188] sm:$0xff] %v2365
        %2430 = vst [vmem:[#allocation3 + $0x190] sm:$0xff] %v2366
        %2431 = vst [vmem:[#allocation3 + $0x198] sm:$0xff] %v2367
        %2432 = vst [vmem:[#allocation3 + $0x1a0] sm:$0xff] %v2368
        %2433 = vst [vmem:[#allocation3 + $0x1a8] sm:$0xff] %v2369
        %2434 = vst [vmem:[#allocation3 + $0x1b0] sm:$0xff] %v2370
        %2435 = vst [vmem:[#allocation3 + $0x1b8] sm:$0xff] %v2371
        %2436 = vst [vmem:[#allocation3 + $0x1c0] sm:$0xff] %v2372
        %2437 = vst [vmem:[#allocation3 + $0x1c8] sm:$0xff] %v2373
        %2438 = vst [vmem:[#allocation3 + $0x1d0] sm:$0xff] %v2374
        %2439 = vst [vmem:[#allocation3 + $0x1d8] sm:$0xff] %v2375
        %2440 = vst [vmem:[#allocation3 + $0x1e0] sm:$0xff] %v2376
        %2441 = vst [vmem:[#allocation3 + $0x1e8] sm:$0xff] %v2377
        %2442 = vst [vmem:[#allocation3 + $0x1f0] sm:$0xff] %v2378
        %2443 = vst [vmem:[#allocation3 + $0x1f8] sm:$0xff] %v2379
      $region48: #{_lambda_.3} parent=43 // pred_fallthru
        _
      %p2444 = scmp.gt.s32.totalorder %s24, 0
      // Predicated region
      $region49: #{_lambda_.3} parent=43 // pred_check
        %p2445 = pneg %p2444
      $region50: #{_lambda_.3} parent=43 // pred_check_branch
        %2447 = sbr.rel (%p2445) target = $region52
      $region51: #{_lambda_.3} parent=43 // pred_region
        %s2448 = ssub.s32 %s24, 1
        %s2449 = scvt.s32.f32 %s2448
        %s2450 = sadd.f32 %s2449, -3.5
        %v2451 = vld [vmem:[#allocation2] sm:$0xff]
        %v2452 = vld [vmem:[#allocation2 + $0x8] sm:$0xff]
        %v2453 = vld [vmem:[#allocation2 + $0x10] sm:$0xff]
        %v2454 = vld [vmem:[#allocation2 + $0x18] sm:$0xff]
        %v2455 = vld [vmem:[#allocation2 + $0x20] sm:$0xff]
        %v2456 = vld [vmem:[#allocation2 + $0x28] sm:$0xff]
        %v2457 = vld [vmem:[#allocation2 + $0x30] sm:$0xff]
        %v2458 = vld [vmem:[#allocation2 + $0x38] sm:$0xff]
        %v2459 = vld [vmem:[#allocation2 + $0x40] sm:$0xff]
        %v2460 = vld [vmem:[#allocation2 + $0x48] sm:$0xff]
        %v2461 = vld [vmem:[#allocation2 + $0x50] sm:$0xff]
        %v2462 = vld [vmem:[#allocation2 + $0x58] sm:$0xff]
        %v2463 = vld [vmem:[#allocation2 + $0x60] sm:$0xff]
        %v2464 = vld [vmem:[#allocation2 + $0x68] sm:$0xff]
        %v2465 = vld [vmem:[#allocation2 + $0x70] sm:$0xff]
        %v2466 = vld [vmem:[#allocation2 + $0x78] sm:$0xff]
        %v2467 = vld [vmem:[#allocation2 + $0x80] sm:$0xff]
        %v2468 = vld [vmem:[#allocation2 + $0x88] sm:$0xff]
        %v2469 = vld [vmem:[#allocation2 + $0x90] sm:$0xff]
        %v2470 = vld [vmem:[#allocation2 + $0x98] sm:$0xff]
        %v2471 = vld [vmem:[#allocation2 + $0xa0] sm:$0xff]
        %v2472 = vld [vmem:[#allocation2 + $0xa8] sm:$0xff]
        %v2473 = vld [vmem:[#allocation2 + $0xb0] sm:$0xff]
        %v2474 = vld [vmem:[#allocation2 + $0xb8] sm:$0xff]
        %v2475 = vld [vmem:[#allocation2 + $0xc0] sm:$0xff]
        %v2476 = vld [vmem:[#allocation2 + $0xc8] sm:$0xff]
        %v2477 = vld [vmem:[#allocation2 + $0xd0] sm:$0xff]
        %v2478 = vld [vmem:[#allocation2 + $0xd8] sm:$0xff]
        %v2479 = vld [vmem:[#allocation2 + $0xe0] sm:$0xff]
        %v2480 = vld [vmem:[#allocation2 + $0xe8] sm:$0xff]
        %v2481 = vld [vmem:[#allocation2 + $0xf0] sm:$0xff]
        %v2482 = vld [vmem:[#allocation2 + $0xf8] sm:$0xff]
        %v2483 = vld [vmem:[#allocation2 + $0x100] sm:$0xff]
        %v2484 = vld [vmem:[#allocation2 + $0x108] sm:$0xff]
        %v2485 = vld [vmem:[#allocation2 + $0x110] sm:$0xff]
        %v2486 = vld [vmem:[#allocation2 + $0x118] sm:$0xff]
        %v2487 = vld [vmem:[#allocation2 + $0x120] sm:$0xff]
        %v2488 = vld [vmem:[#allocation2 + $0x128] sm:$0xff]
        %v2489 = vld [vmem:[#allocation2 + $0x130] sm:$0xff]
        %v2490 = vld [vmem:[#allocation2 + $0x138] sm:$0xff]
        %v2491 = vld [vmem:[#allocation2 + $0x140] sm:$0xff]
        %v2492 = vld [vmem:[#allocation2 + $0x148] sm:$0xff]
        %v2493 = vld [vmem:[#allocation2 + $0x150] sm:$0xff]
        %v2494 = vld [vmem:[#allocation2 + $0x158] sm:$0xff]
        %v2495 = vld [vmem:[#allocation2 + $0x160] sm:$0xff]
        %v2496 = vld [vmem:[#allocation2 + $0x168] sm:$0xff]
        %v2497 = vld [vmem:[#allocation2 + $0x170] sm:$0xff]
        %v2498 = vld [vmem:[#allocation2 + $0x178] sm:$0xff]
        %v2499 = vld [vmem:[#allocation2 + $0x180] sm:$0xff]
        %v2500 = vld [vmem:[#allocation2 + $0x188] sm:$0xff]
        %v2501 = vld [vmem:[#allocation2 + $0x190] sm:$0xff]
        %v2502 = vld [vmem:[#allocation2 + $0x198] sm:$0xff]
        %v2503 = vld [vmem:[#allocation2 + $0x1a0] sm:$0xff]
        %v2504 = vld [vmem:[#allocation2 + $0x1a8] sm:$0xff]
        %v2505 = vld [vmem:[#allocation2 + $0x1b0] sm:$0xff]
        %v2506 = vld [vmem:[#allocation2 + $0x1b8] sm:$0xff]
        %v2507 = vld [vmem:[#allocation2 + $0x1c0] sm:$0xff]
        %v2508 = vld [vmem:[#allocation2 + $0x1c8] sm:$0xff]
        %v2509 = vld [vmem:[#allocation2 + $0x1d0] sm:$0xff]
        %v2510 = vld [vmem:[#allocation2 + $0x1d8] sm:$0xff]
        %v2511 = vld [vmem:[#allocation2 + $0x1e0] sm:$0xff]
        %v2512 = vld [vmem:[#allocation2 + $0x1e8] sm:$0xff]
        %v2513 = vld [vmem:[#allocation2 + $0x1f0] sm:$0xff]
        %v2514 = vld [vmem:[#allocation2 + $0x1f8] sm:$0xff]
        %v2515 = vstv %s2450
        %v2516 = vsub.f32 %v2451, %v2515
        %v2517 = vsub.f32 %v2452, %v2515
        %v2518 = vsub.f32 %v2453, %v2515
        %v2519 = vsub.f32 %v2454, %v2515
        %v2520 = vsub.f32 %v2455, %v2515
        %v2521 = vsub.f32 %v2456, %v2515
        %v2522 = vsub.f32 %v2457, %v2515
        %v2523 = vsub.f32 %v2458, %v2515
        %v2524 = vsub.f32 %v2459, %v2515
        %v2525 = vsub.f32 %v2460, %v2515
        %v2526 = vsub.f32 %v2461, %v2515
        %v2527 = vsub.f32 %v2462, %v2515
        %v2528 = vsub.f32 %v2463, %v2515
        %v2529 = vsub.f32 %v2464, %v2515
        %v2530 = vsub.f32 %v2465, %v2515
        %v2531 = vsub.f32 %v2466, %v2515
        %v2532 = vsub.f32 %v2467, %v2515
        %v2533 = vsub.f32 %v2468, %v2515
        %v2534 = vsub.f32 %v2469, %v2515
        %v2535 = vsub.f32 %v2470, %v2515
        %v2536 = vsub.f32 %v2471, %v2515
        %v2537 = vsub.f32 %v2472, %v2515
        %v2538 = vsub.f32 %v2473, %v2515
        %v2539 = vsub.f32 %v2474, %v2515
        %v2540 = vsub.f32 %v2475, %v2515
        %v2541 = vsub.f32 %v2476, %v2515
        %v2542 = vsub.f32 %v2477, %v2515
        %v2543 = vsub.f32 %v2478, %v2515
        %v2544 = vsub.f32 %v2479, %v2515
        %v2545 = vsub.f32 %v2480, %v2515
        %v2546 = vsub.f32 %v2481, %v2515
        %v2547 = vsub.f32 %v2482, %v2515
        %v2548 = vsub.f32 %v2483, %v2515
        %v2549 = vsub.f32 %v2484, %v2515
        %v2550 = vsub.f32 %v2485, %v2515
        %v2551 = vsub.f32 %v2486, %v2515
        %v2552 = vsub.f32 %v2487, %v2515
        %v2553 = vsub.f32 %v2488, %v2515
        %v2554 = vsub.f32 %v2489, %v2515
        %v2555 = vsub.f32 %v2490, %v2515
        %v2556 = vsub.f32 %v2491, %v2515
        %v2557 = vsub.f32 %v2492, %v2515
        %v2558 = vsub.f32 %v2493, %v2515
        %v2559 = vsub.f32 %v2494, %v2515
        %v2560 = vsub.f32 %v2495, %v2515
        %v2561 = vsub.f32 %v2496, %v2515
        %v2562 = vsub.f32 %v2497, %v2515
        %v2563 = vsub.f32 %v2498, %v2515
        %v2564 = vsub.f32 %v2499, %v2515
        %v2565 = vsub.f32 %v2500, %v2515
        %v2566 = vsub.f32 %v2501, %v2515
        %v2567 = vsub.f32 %v2502, %v2515
        %v2568 = vsub.f32 %v2503, %v2515
        %v2569 = vsub.f32 %v2504, %v2515
        %v2570 = vsub.f32 %v2505, %v2515
        %v2571 = vsub.f32 %v2506, %v2515
        %v2572 = vsub.f32 %v2507, %v2515
        %v2573 = vsub.f32 %v2508, %v2515
        %v2574 = vsub.f32 %v2509, %v2515
        %v2575 = vsub.f32 %v2510, %v2515
        %v2576 = vsub.f32 %v2511, %v2515
        %v2577 = vsub.f32 %v2512, %v2515
        %v2578 = vsub.f32 %v2513, %v2515
        %v2579 = vsub.f32 %v2514, %v2515
        %v2580 = vmul.f32 %v2516, %v2516
        %v2581 = vmul.f32 %v2517, %v2517
        %v2582 = vmul.f32 %v2518, %v2518
        %v2583 = vmul.f32 %v2519, %v2519
        %v2584 = vmul.f32 %v2520, %v2520
        %v2585 = vmul.f32 %v2521, %v2521
        %v2586 = vmul.f32 %v2522, %v2522
        %v2587 = vmul.f32 %v2523, %v2523
        %v2588 = vmul.f32 %v2524, %v2524
        %v2589 = vmul.f32 %v2525, %v2525
        %v2590 = vmul.f32 %v2526, %v2526
        %v2591 = vmul.f32 %v2527, %v2527
        %v2592 = vmul.f32 %v2528, %v2528
        %v2593 = vmul.f32 %v2529, %v2529
        %v2594 = vmul.f32 %v2530, %v2530
        %v2595 = vmul.f32 %v2531, %v2531
        %v2596 = vmul.f32 %v2532, %v2532
        %v2597 = vmul.f32 %v2533, %v2533
        %v2598 = vmul.f32 %v2534, %v2534
        %v2599 = vmul.f32 %v2535, %v2535
        %v2600 = vmul.f32 %v2536, %v2536
        %v2601 = vmul.f32 %v2537, %v2537
        %v2602 = vmul.f32 %v2538, %v2538
        %v2603 = vmul.f32 %v2539, %v2539
        %v2604 = vmul.f32 %v2540, %v2540
        %v2605 = vmul.f32 %v2541, %v2541
        %v2606 = vmul.f32 %v2542, %v2542
        %v2607 = vmul.f32 %v2543, %v2543
        %v2608 = vmul.f32 %v2544, %v2544
        %v2609 = vmul.f32 %v2545, %v2545
        %v2610 = vmul.f32 %v2546, %v2546
        %v2611 = vmul.f32 %v2547, %v2547
        %v2612 = vmul.f32 %v2548, %v2548
        %v2613 = vmul.f32 %v2549, %v2549
        %v2614 = vmul.f32 %v2550, %v2550
        %v2615 = vmul.f32 %v2551, %v2551
        %v2616 = vmul.f32 %v2552, %v2552
        %v2617 = vmul.f32 %v2553, %v2553
        %v2618 = vmul.f32 %v2554, %v2554
        %v2619 = vmul.f32 %v2555, %v2555
        %v2620 = vmul.f32 %v2556, %v2556
        %v2621 = vmul.f32 %v2557, %v2557
        %v2622 = vmul.f32 %v2558, %v2558
        %v2623 = vmul.f32 %v2559, %v2559
        %v2624 = vmul.f32 %v2560, %v2560
        %v2625 = vmul.f32 %v2561, %v2561
        %v2626 = vmul.f32 %v2562, %v2562
        %v2627 = vmul.f32 %v2563, %v2563
        %v2628 = vmul.f32 %v2564, %v2564
        %v2629 = vmul.f32 %v2565, %v2565
        %v2630 = vmul.f32 %v2566, %v2566
        %v2631 = vmul.f32 %v2567, %v2567
        %v2632 = vmul.f32 %v2568, %v2568
        %v2633 = vmul.f32 %v2569, %v2569
        %v2634 = vmul.f32 %v2570, %v2570
        %v2635 = vmul.f32 %v2571, %v2571
        %v2636 = vmul.f32 %v2572, %v2572
        %v2637 = vmul.f32 %v2573, %v2573
        %v2638 = vmul.f32 %v2574, %v2574
        %v2639 = vmul.f32 %v2575, %v2575
        %v2640 = vmul.f32 %v2576, %v2576
        %v2641 = vmul.f32 %v2577, %v2577
        %v2642 = vmul.f32 %v2578, %v2578
        %v2643 = vmul.f32 %v2579, %v2579
        %v2644 = vsub.f32 0.0, %v2580
        %v2645 = vsub.f32 0.0, %v2581
        %v2646 = vsub.f32 0.0, %v2582
        %v2647 = vsub.f32 0.0, %v2583
        %v2648 = vsub.f32 0.0, %v2584
        %v2649 = vsub.f32 0.0, %v2585
        %v2650 = vsub.f32 0.0, %v2586
        %v2651 = vsub.f32 0.0, %v2587
        %v2652 = vsub.f32 0.0, %v2588
        %v2653 = vsub.f32 0.0, %v2589
        %v2654 = vsub.f32 0.0, %v2590
        %v2655 = vsub.f32 0.0, %v2591
        %v2656 = vsub.f32 0.0, %v2592
        %v2657 = vsub.f32 0.0, %v2593
        %v2658 = vsub.f32 0.0, %v2594
        %v2659 = vsub.f32 0.0, %v2595
        %v2660 = vsub.f32 0.0, %v2596
        %v2661 = vsub.f32 0.0, %v2597
        %v2662 = vsub.f32 0.0, %v2598
        %v2663 = vsub.f32 0.0, %v2599
        %v2664 = vsub.f32 0.0, %v2600
        %v2665 = vsub.f32 0.0, %v2601
        %v2666 = vsub.f32 0.0, %v2602
        %v2667 = vsub.f32 0.0, %v2603
        %v2668 = vsub.f32 0.0, %v2604
        %v2669 = vsub.f32 0.0, %v2605
        %v2670 = vsub.f32 0.0, %v2606
        %v2671 = vsub.f32 0.0, %v2607
        %v2672 = vsub.f32 0.0, %v2608
        %v2673 = vsub.f32 0.0, %v2609
        %v2674 = vsub.f32 0.0, %v2610
        %v2675 = vsub.f32 0.0, %v2611
        %v2676 = vsub.f32 0.0, %v2612
        %v2677 = vsub.f32 0.0, %v2613
        %v2678 = vsub.f32 0.0, %v2614
        %v2679 = vsub.f32 0.0, %v2615
        %v2680 = vsub.f32 0.0, %v2616
        %v2681 = vsub.f32 0.0, %v2617
        %v2682 = vsub.f32 0.0, %v2618
        %v2683 = vsub.f32 0.0, %v2619
        %v2684 = vsub.f32 0.0, %v2620
        %v2685 = vsub.f32 0.0, %v2621
        %v2686 = vsub.f32 0.0, %v2622
        %v2687 = vsub.f32 0.0, %v2623
        %v2688 = vsub.f32 0.0, %v2624
        %v2689 = vsub.f32 0.0, %v2625
        %v2690 = vsub.f32 0.0, %v2626
        %v2691 = vsub.f32 0.0, %v2627
        %v2692 = vsub.f32 0.0, %v2628
        %v2693 = vsub.f32 0.0, %v2629
        %v2694 = vsub.f32 0.0, %v2630
        %v2695 = vsub.f32 0.0, %v2631
        %v2696 = vsub.f32 0.0, %v2632
        %v2697 = vsub.f32 0.0, %v2633
        %v2698 = vsub.f32 0.0, %v2634
        %v2699 = vsub.f32 0.0, %v2635
        %v2700 = vsub.f32 0.0, %v2636
        %v2701 = vsub.f32 0.0, %v2637
        %v2702 = vsub.f32 0.0, %v2638
        %v2703 = vsub.f32 0.0, %v2639
        %v2704 = vsub.f32 0.0, %v2640
        %v2705 = vsub.f32 0.0, %v2641
        %v2706 = vsub.f32 0.0, %v2642
        %v2707 = vsub.f32 0.0, %v2643
        %v2708 = vmul.f32 %v2644, 1.442695
        %v2709 = vpow.pop %v2708
        %v2710 = vmul.f32 %v2645, 1.442695
        %v2711 = vpow.pop %v2710
        %v2712 = vmul.f32 %v2646, 1.442695
        %v2713 = vpow.pop %v2712
        %v2714 = vmul.f32 %v2647, 1.442695
        %v2715 = vpow.pop %v2714
        %v2716 = vmul.f32 %v2648, 1.442695
        %v2717 = vpow.pop %v2716
        %v2718 = vmul.f32 %v2649, 1.442695
        %v2719 = vpow.pop %v2718
        %v2720 = vmul.f32 %v2650, 1.442695
        %v2721 = vpow.pop %v2720
        %v2722 = vmul.f32 %v2651, 1.442695
        %v2723 = vpow.pop %v2722
        %v2724 = vmul.f32 %v2652, 1.442695
        %v2725 = vpow.pop %v2724
        %v2726 = vmul.f32 %v2653, 1.442695
        %v2727 = vpow.pop %v2726
        %v2728 = vmul.f32 %v2654, 1.442695
        %v2729 = vpow.pop %v2728
        %v2730 = vmul.f32 %v2655, 1.442695
        %v2731 = vpow.pop %v2730
        %v2732 = vmul.f32 %v2656, 1.442695
        %v2733 = vpow.pop %v2732
        %v2734 = vmul.f32 %v2657, 1.442695
        %v2735 = vpow.pop %v2734
        %v2736 = vmul.f32 %v2658, 1.442695
        %v2737 = vpow.pop %v2736
        %v2738 = vmul.f32 %v2659, 1.442695
        %v2739 = vpow.pop %v2738
        %v2740 = vmul.f32 %v2660, 1.442695
        %v2741 = vpow.pop %v2740
        %v2742 = vmul.f32 %v2661, 1.442695
        %v2743 = vpow.pop %v2742
        %v2744 = vmul.f32 %v2662, 1.442695
        %v2745 = vpow.pop %v2744
        %v2746 = vmul.f32 %v2663, 1.442695
        %v2747 = vpow.pop %v2746
        %v2748 = vmul.f32 %v2664, 1.442695
        %v2749 = vpow.pop %v2748
        %v2750 = vmul.f32 %v2665, 1.442695
        %v2751 = vpow.pop %v2750
        %v2752 = vmul.f32 %v2666, 1.442695
        %v2753 = vpow.pop %v2752
        %v2754 = vmul.f32 %v2667, 1.442695
        %v2755 = vpow.pop %v2754
        %v2756 = vmul.f32 %v2668, 1.442695
        %v2757 = vpow.pop %v2756
        %v2758 = vmul.f32 %v2669, 1.442695
        %v2759 = vpow.pop %v2758
        %v2760 = vmul.f32 %v2670, 1.442695
        %v2761 = vpow.pop %v2760
        %v2762 = vmul.f32 %v2671, 1.442695
        %v2763 = vpow.pop %v2762
        %v2764 = vmul.f32 %v2672, 1.442695
        %v2765 = vpow.pop %v2764
        %v2766 = vmul.f32 %v2673, 1.442695
        %v2767 = vpow.pop %v2766
        %v2768 = vmul.f32 %v2674, 1.442695
        %v2769 = vpow.pop %v2768
        %v2770 = vmul.f32 %v2675, 1.442695
        %v2771 = vpow.pop %v2770
        %v2772 = vmul.f32 %v2676, 1.442695
        %v2773 = vpow.pop %v2772
        %v2774 = vmul.f32 %v2677, 1.442695
        %v2775 = vpow.pop %v2774
        %v2776 = vmul.f32 %v2678, 1.442695
        %v2777 = vpow.pop %v2776
        %v2778 = vmul.f32 %v2679, 1.442695
        %v2779 = vpow.pop %v2778
        %v2780 = vmul.f32 %v2680, 1.442695
        %v2781 = vpow.pop %v2780
        %v2782 = vmul.f32 %v2681, 1.442695
        %v2783 = vpow.pop %v2782
        %v2784 = vmul.f32 %v2682, 1.442695
        %v2785 = vpow.pop %v2784
        %v2786 = vmul.f32 %v2683, 1.442695
        %v2787 = vpow.pop %v2786
        %v2788 = vmul.f32 %v2684, 1.442695
        %v2789 = vpow.pop %v2788
        %v2790 = vmul.f32 %v2685, 1.442695
        %v2791 = vpow.pop %v2790
        %v2792 = vmul.f32 %v2686, 1.442695
        %v2793 = vpow.pop %v2792
        %v2794 = vmul.f32 %v2687, 1.442695
        %v2795 = vpow.pop %v2794
        %v2796 = vmul.f32 %v2688, 1.442695
        %v2797 = vpow.pop %v2796
        %v2798 = vmul.f32 %v2689, 1.442695
        %v2799 = vpow.pop %v2798
        %v2800 = vmul.f32 %v2690, 1.442695
        %v2801 = vpow.pop %v2800
        %v2802 = vmul.f32 %v2691, 1.442695
        %v2803 = vpow.pop %v2802
        %v2804 = vmul.f32 %v2692, 1.442695
        %v2805 = vpow.pop %v2804
        %v2806 = vmul.f32 %v2693, 1.442695
        %v2807 = vpow.pop %v2806
        %v2808 = vmul.f32 %v2694, 1.442695
        %v2809 = vpow.pop %v2808
        %v2810 = vmul.f32 %v2695, 1.442695
        %v2811 = vpow.pop %v2810
        %v2812 = vmul.f32 %v2696, 1.442695
        %v2813 = vpow.pop %v2812
        %v2814 = vmul.f32 %v2697, 1.442695
        %v2815 = vpow.pop %v2814
        %v2816 = vmul.f32 %v2698, 1.442695
        %v2817 = vpow.pop %v2816
        %v2818 = vmul.f32 %v2699, 1.442695
        %v2819 = vpow.pop %v2818
        %v2820 = vmul.f32 %v2700, 1.442695
        %v2821 = vpow.pop %v2820
        %v2822 = vmul.f32 %v2701, 1.442695
        %v2823 = vpow.pop %v2822
        %v2824 = vmul.f32 %v2702, 1.442695
        %v2825 = vpow.pop %v2824
        %v2826 = vmul.f32 %v2703, 1.442695
        %v2827 = vpow.pop %v2826
        %v2828 = vmul.f32 %v2704, 1.442695
        %v2829 = vpow.pop %v2828
        %v2830 = vmul.f32 %v2705, 1.442695
        %v2831 = vpow.pop %v2830
        %v2832 = vmul.f32 %v2706, 1.442695
        %v2833 = vpow.pop %v2832
        %v2834 = vmul.f32 %v2707, 1.442695
        %v2835 = vpow.pop %v2834
        %v2836 = vpack.c.bf16 %v2711, %v2709
        %v2837 = vpack.c.bf16 %v2715, %v2713
        %v2838 = vpack.c.bf16 %v2719, %v2717
        %v2839 = vpack.c.bf16 %v2723, %v2721
        %v2840 = vpack.c.bf16 %v2727, %v2725
        %v2841 = vpack.c.bf16 %v2731, %v2729
        %v2842 = vpack.c.bf16 %v2735, %v2733
        %v2843 = vpack.c.bf16 %v2739, %v2737
        %v2844 = vpack.c.bf16 %v2743, %v2741
        %v2845 = vpack.c.bf16 %v2747, %v2745
        %v2846 = vpack.c.bf16 %v2751, %v2749
        %v2847 = vpack.c.bf16 %v2755, %v2753
        %v2848 = vpack.c.bf16 %v2759, %v2757
        %v2849 = vpack.c.bf16 %v2763, %v2761
        %v2850 = vpack.c.bf16 %v2767, %v2765
        %v2851 = vpack.c.bf16 %v2771, %v2769
        %v2852 = vpack.c.bf16 %v2775, %v2773
        %v2853 = vpack.c.bf16 %v2779, %v2777
        %v2854 = vpack.c.bf16 %v2783, %v2781
        %v2855 = vpack.c.bf16 %v2787, %v2785
        %v2856 = vpack.c.bf16 %v2791, %v2789
        %v2857 = vpack.c.bf16 %v2795, %v2793
        %v2858 = vpack.c.bf16 %v2799, %v2797
        %v2859 = vpack.c.bf16 %v2803, %v2801
        %v2860 = vpack.c.bf16 %v2807, %v2805
        %v2861 = vpack.c.bf16 %v2811, %v2809
        %v2862 = vpack.c.bf16 %v2815, %v2813
        %v2863 = vpack.c.bf16 %v2819, %v2817
        %v2864 = vpack.c.bf16 %v2823, %v2821
        %v2865 = vpack.c.bf16 %v2827, %v2825
        %v2866 = vpack.c.bf16 %v2831, %v2829
        %v2867 = vpack.c.bf16 %v2835, %v2833
        %v2868 = vld [vmem:[#allocation3] sm:$0xff]
        %v2869 = vld [vmem:[#allocation3 + $0x8] sm:$0xff]
        %v2870 = vld [vmem:[#allocation3 + $0x10] sm:$0xff]
        %v2871 = vld [vmem:[#allocation3 + $0x18] sm:$0xff]
        %v2872 = vld [vmem:[#allocation3 + $0x20] sm:$0xff]
        %v2873 = vld [vmem:[#allocation3 + $0x28] sm:$0xff]
        %v2874 = vld [vmem:[#allocation3 + $0x30] sm:$0xff]
        %v2875 = vld [vmem:[#allocation3 + $0x38] sm:$0xff]
        %v2876 = vld [vmem:[#allocation3 + $0x40] sm:$0xff]
        %v2877 = vld [vmem:[#allocation3 + $0x48] sm:$0xff]
        %v2878 = vld [vmem:[#allocation3 + $0x50] sm:$0xff]
        %v2879 = vld [vmem:[#allocation3 + $0x58] sm:$0xff]
        %v2880 = vld [vmem:[#allocation3 + $0x60] sm:$0xff]
        %v2881 = vld [vmem:[#allocation3 + $0x68] sm:$0xff]
        %v2882 = vld [vmem:[#allocation3 + $0x70] sm:$0xff]
        %v2883 = vld [vmem:[#allocation3 + $0x78] sm:$0xff]
        %v2884 = vld [vmem:[#allocation3 + $0x80] sm:$0xff]
        %v2885 = vld [vmem:[#allocation3 + $0x88] sm:$0xff]
        %v2886 = vld [vmem:[#allocation3 + $0x90] sm:$0xff]
        %v2887 = vld [vmem:[#allocation3 + $0x98] sm:$0xff]
        %v2888 = vld [vmem:[#allocation3 + $0xa0] sm:$0xff]
        %v2889 = vld [vmem:[#allocation3 + $0xa8] sm:$0xff]
        %v2890 = vld [vmem:[#allocation3 + $0xb0] sm:$0xff]
        %v2891 = vld [vmem:[#allocation3 + $0xb8] sm:$0xff]
        %v2892 = vld [vmem:[#allocation3 + $0xc0] sm:$0xff]
        %v2893 = vld [vmem:[#allocation3 + $0xc8] sm:$0xff]
        %v2894 = vld [vmem:[#allocation3 + $0xd0] sm:$0xff]
        %v2895 = vld [vmem:[#allocation3 + $0xd8] sm:$0xff]
        %v2896 = vld [vmem:[#allocation3 + $0xe0] sm:$0xff]
        %v2897 = vld [vmem:[#allocation3 + $0xe8] sm:$0xff]
        %v2898 = vld [vmem:[#allocation3 + $0xf0] sm:$0xff]
        %v2899 = vld [vmem:[#allocation3 + $0xf8] sm:$0xff]
        %v2900 = vld [vmem:[#allocation3 + $0x100] sm:$0xff]
        %v2901 = vld [vmem:[#allocation3 + $0x108] sm:$0xff]
        %v2902 = vld [vmem:[#allocation3 + $0x110] sm:$0xff]
        %v2903 = vld [vmem:[#allocation3 + $0x118] sm:$0xff]
        %v2904 = vld [vmem:[#allocation3 + $0x120] sm:$0xff]
        %v2905 = vld [vmem:[#allocation3 + $0x128] sm:$0xff]
        %v2906 = vld [vmem:[#allocation3 + $0x130] sm:$0xff]
        %v2907 = vld [vmem:[#allocation3 + $0x138] sm:$0xff]
        %v2908 = vld [vmem:[#allocation3 + $0x140] sm:$0xff]
        %v2909 = vld [vmem:[#allocation3 + $0x148] sm:$0xff]
        %v2910 = vld [vmem:[#allocation3 + $0x150] sm:$0xff]
        %v2911 = vld [vmem:[#allocation3 + $0x158] sm:$0xff]
        %v2912 = vld [vmem:[#allocation3 + $0x160] sm:$0xff]
        %v2913 = vld [vmem:[#allocation3 + $0x168] sm:$0xff]
        %v2914 = vld [vmem:[#allocation3 + $0x170] sm:$0xff]
        %v2915 = vld [vmem:[#allocation3 + $0x178] sm:$0xff]
        %v2916 = vld [vmem:[#allocation3 + $0x180] sm:$0xff]
        %v2917 = vld [vmem:[#allocation3 + $0x188] sm:$0xff]
        %v2918 = vld [vmem:[#allocation3 + $0x190] sm:$0xff]
        %v2919 = vld [vmem:[#allocation3 + $0x198] sm:$0xff]
        %v2920 = vld [vmem:[#allocation3 + $0x1a0] sm:$0xff]
        %v2921 = vld [vmem:[#allocation3 + $0x1a8] sm:$0xff]
        %v2922 = vld [vmem:[#allocation3 + $0x1b0] sm:$0xff]
        %v2923 = vld [vmem:[#allocation3 + $0x1b8] sm:$0xff]
        %v2924 = vld [vmem:[#allocation3 + $0x1c0] sm:$0xff]
        %v2925 = vld [vmem:[#allocation3 + $0x1c8] sm:$0xff]
        %v2926 = vld [vmem:[#allocation3 + $0x1d0] sm:$0xff]
        %v2927 = vld [vmem:[#allocation3 + $0x1d8] sm:$0xff]
        %v2928 = vld [vmem:[#allocation3 + $0x1e0] sm:$0xff]
        %v2929 = vld [vmem:[#allocation3 + $0x1e8] sm:$0xff]
        %v2930 = vld [vmem:[#allocation3 + $0x1f0] sm:$0xff]
        %v2931 = vld [vmem:[#allocation3 + $0x1f8] sm:$0xff]
        %2932 = vmatprep.subr.bf16.mxu0 0
        %2933 = vmatpush1.bf16.msra.mxu0 %v359
        %2934 = vmatprep.subr.bf16.mxu0 0
        %2935 = vmatpush1.bf16.msra.mxu0 %v360
        %2936 = vmatprep.subr.bf16.mxu0 0
        %2937 = vmatpush1.bf16.msra.mxu0 %v361
        %2938 = vmatprep.subr.bf16.mxu0 0
        %2939 = vmatpush1.bf16.msra.mxu0 %v362
        %2940 = vmatprep.subr.bf16.mxu0 0
        %2941 = vmatpush1.bf16.msra.mxu0 %v363
        %2942 = vmatprep.subr.bf16.mxu0 0
        %2943 = vmatpush1.bf16.msra.mxu0 %v364
        %2944 = vmatprep.subr.bf16.mxu0 0
        %2945 = vmatpush1.bf16.msra.mxu0 %v365
        %2946 = vmatprep.subr.bf16.mxu0 0
        %2947 = vmatpush1.bf16.msra.mxu0 %v366
        %2948 = vmatprep.subr.bf16.mxu0 0
        %2949 = vmatpush1.bf16.msra.mxu0 0
        %2950 = vmatprep.subr.bf16.mxu0 0
        %2951 = vmatpush1.bf16.msra.mxu0 0
        %2952 = vmatprep.subr.bf16.mxu0 0
        %2953 = vmatpush1.bf16.msra.mxu0 0
        %2954 = vmatprep.subr.bf16.mxu0 0
        %2955 = vmatpush1.bf16.msra.mxu0 0
        %2956 = vmatprep.subr.bf16.mxu0 0
        %2957 = vmatpush1.bf16.msra.mxu0 0
        %2958 = vmatprep.subr.bf16.mxu0 0
        %2959 = vmatpush1.bf16.msra.mxu0 0
        %2960 = vmatprep.subr.bf16.mxu0 0
        %2961 = vmatpush1.bf16.msra.mxu0 0
        %2962 = vmatprep.subr.bf16.mxu0 0
        %2963 = vmatpush1.bf16.msra.mxu0 0
        %2964 = vmatprep.mubr.bf16.mxu0 0
        %2965 = vmatmul.mubr.bf16.gmra.mrb[0].mxu0 %v2836
        %v2966 = vpop.f32.mrb[0].mxu0
        %v2967 = vadd.f32 0.0, %v2966
        %v2968 = vpop.f32.mrb[0].mxu0
        %v2969 = vpop.f32.mrb[0].mxu0
        %v2970 = vadd.f32 0.0, %v2969
        %v2971 = vpop.f32.mrb[0].mxu0
        %2972 = vmatprep.mubr.bf16.mxu0 0
        %2973 = vmatmul.mubr.bf16.gmra.mrb[0].mxu0 %v2837
        %v2974 = vpop.f32.mrb[0].mxu0
        %v2975 = vadd.f32 0.0, %v2974
        %v2976 = vpop.f32.mrb[0].mxu0
        %v2977 = vpop.f32.mrb[0].mxu0
        %v2978 = vadd.f32 0.0, %v2977
        %v2979 = vpop.f32.mrb[0].mxu0
        %2980 = vmatprep.mubr.bf16.mxu0 0
        %2981 = vmatmul.mubr.bf16.gmra.mrb[0].mxu0 %v2838
        %v2982 = vpop.f32.mrb[0].mxu0
        %v2983 = vadd.f32 0.0, %v2982
        %v2984 = vpop.f32.mrb[0].mxu0
        %v2985 = vpop.f32.mrb[0].mxu0
        %v2986 = vadd.f32 0.0, %v2985
        %v2987 = vpop.f32.mrb[0].mxu0
        %2988 = vmatprep.mubr.bf16.mxu0 0
        %2989 = vmatmul.mubr.bf16.gmra.mrb[0].mxu0 %v2839
        %v2990 = vpop.f32.mrb[0].mxu0
        %v2991 = vadd.f32 0.0, %v2990
        %v2992 = vpop.f32.mrb[0].mxu0
        %v2993 = vpop.f32.mrb[0].mxu0
        %v2994 = vadd.f32 0.0, %v2993
        %v2995 = vpop.f32.mrb[0].mxu0
        %2996 = vmatprep.mubr.bf16.mxu0 0
        %2997 = vmatmul.mubr.bf16.gmra.mrb[0].mxu0 %v2840
        %v2998 = vpop.f32.mrb[0].mxu0
        %v2999 = vadd.f32 0.0, %v2998
        %v3000 = vpop.f32.mrb[0].mxu0
        %v3001 = vpop.f32.mrb[0].mxu0
        %v3002 = vadd.f32 0.0, %v3001
        %v3003 = vpop.f32.mrb[0].mxu0
        %3004 = vmatprep.mubr.bf16.mxu0 0
        %3005 = vmatmul.mubr.bf16.gmra.mrb[0].mxu0 %v2841
        %v3006 = vpop.f32.mrb[0].mxu0
        %v3007 = vadd.f32 0.0, %v3006
        %v3008 = vpop.f32.mrb[0].mxu0
        %v3009 = vpop.f32.mrb[0].mxu0
        %v3010 = vadd.f32 0.0, %v3009
        %v3011 = vpop.f32.mrb[0].mxu0
        %3012 = vmatprep.mubr.bf16.mxu0 0
        %3013 = vmatmul.mubr.bf16.gmra.mrb[0].mxu0 %v2842
        %v3014 = vpop.f32.mrb[0].mxu0
        %v3015 = vadd.f32 0.0, %v3014
        %v3016 = vpop.f32.mrb[0].mxu0
        %v3017 = vpop.f32.mrb[0].mxu0
        %v3018 = vadd.f32 0.0, %v3017
        %v3019 = vpop.f32.mrb[0].mxu0
        %3020 = vmatprep.mubr.bf16.mxu0 0
        %3021 = vmatmul.mubr.bf16.gmra.mrb[0].mxu0 %v2843
        %v3022 = vpop.f32.mrb[0].mxu0
        %v3023 = vadd.f32 0.0, %v3022
        %v3024 = vpop.f32.mrb[0].mxu0
        %v3025 = vpop.f32.mrb[0].mxu0
        %v3026 = vadd.f32 0.0, %v3025
        %v3027 = vpop.f32.mrb[0].mxu0
        %3028 = vmatprep.mubr.bf16.mxu0 0
        %3029 = vmatmul.mubr.bf16.gmra.mrb[0].mxu0 %v2844
        %v3030 = vpop.f32.mrb[0].mxu0
        %v3031 = vadd.f32 0.0, %v3030
        %v3032 = vpop.f32.mrb[0].mxu0
        %v3033 = vpop.f32.mrb[0].mxu0
        %v3034 = vadd.f32 0.0, %v3033
        %v3035 = vpop.f32.mrb[0].mxu0
        %3036 = vmatprep.mubr.bf16.mxu0 0
        %3037 = vmatmul.mubr.bf16.gmra.mrb[0].mxu0 %v2845
        %v3038 = vpop.f32.mrb[0].mxu0
        %v3039 = vadd.f32 0.0, %v3038
        %v3040 = vpop.f32.mrb[0].mxu0
        %v3041 = vpop.f32.mrb[0].mxu0
        %v3042 = vadd.f32 0.0, %v3041
        %v3043 = vpop.f32.mrb[0].mxu0
        %3044 = vmatprep.mubr.bf16.mxu0 0
        %3045 = vmatmul.mubr.bf16.gmra.mrb[0].mxu0 %v2846
        %v3046 = vpop.f32.mrb[0].mxu0
        %v3047 = vadd.f32 0.0, %v3046
        %v3048 = vpop.f32.mrb[0].mxu0
        %v3049 = vpop.f32.mrb[0].mxu0
        %v3050 = vadd.f32 0.0, %v3049
        %v3051 = vpop.f32.mrb[0].mxu0
        %3052 = vmatprep.mubr.bf16.mxu0 0
        %3053 = vmatmul.mubr.bf16.gmra.mrb[0].mxu0 %v2847
        %v3054 = vpop.f32.mrb[0].mxu0
        %v3055 = vadd.f32 0.0, %v3054
        %v3056 = vpop.f32.mrb[0].mxu0
        %v3057 = vpop.f32.mrb[0].mxu0
        %v3058 = vadd.f32 0.0, %v3057
        %v3059 = vpop.f32.mrb[0].mxu0
        %3060 = vmatprep.mubr.bf16.mxu0 0
        %3061 = vmatmul.mubr.bf16.gmra.mrb[0].mxu0 %v2848
        %v3062 = vpop.f32.mrb[0].mxu0
        %v3063 = vadd.f32 0.0, %v3062
        %v3064 = vpop.f32.mrb[0].mxu0
        %v3065 = vpop.f32.mrb[0].mxu0
        %v3066 = vadd.f32 0.0, %v3065
        %v3067 = vpop.f32.mrb[0].mxu0
        %3068 = vmatprep.mubr.bf16.mxu0 0
        %3069 = vmatmul.mubr.bf16.gmra.mrb[0].mxu0 %v2849
        %v3070 = vpop.f32.mrb[0].mxu0
        %v3071 = vadd.f32 0.0, %v3070
        %v3072 = vpop.f32.mrb[0].mxu0
        %v3073 = vpop.f32.mrb[0].mxu0
        %v3074 = vadd.f32 0.0, %v3073
        %v3075 = vpop.f32.mrb[0].mxu0
        %3076 = vmatprep.mubr.bf16.mxu0 0
        %3077 = vmatmul.mubr.bf16.gmra.mrb[0].mxu0 %v2850
        %v3078 = vpop.f32.mrb[0].mxu0
        %v3079 = vadd.f32 0.0, %v3078
        %v3080 = vpop.f32.mrb[0].mxu0
        %v3081 = vpop.f32.mrb[0].mxu0
        %v3082 = vadd.f32 0.0, %v3081
        %v3083 = vpop.f32.mrb[0].mxu0
        %3084 = vmatprep.mubr.bf16.mxu0 0
        %3085 = vmatmul.mubr.bf16.gmra.mrb[0].mxu0 %v2851
        %v3086 = vpop.f32.mrb[0].mxu0
        %v3087 = vadd.f32 0.0, %v3086
        %v3088 = vpop.f32.mrb[0].mxu0
        %v3089 = vpop.f32.mrb[0].mxu0
        %v3090 = vadd.f32 0.0, %v3089
        %v3091 = vpop.f32.mrb[0].mxu0
        %3092 = vmatprep.mubr.bf16.mxu0 0
        %3093 = vmatmul.mubr.bf16.gmra.mrb[0].mxu0 %v2852
        %v3094 = vpop.f32.mrb[0].mxu0
        %v3095 = vadd.f32 0.0, %v3094
        %v3096 = vpop.f32.mrb[0].mxu0
        %v3097 = vpop.f32.mrb[0].mxu0
        %v3098 = vadd.f32 0.0, %v3097
        %v3099 = vpop.f32.mrb[0].mxu0
        %3100 = vmatprep.mubr.bf16.mxu0 0
        %3101 = vmatmul.mubr.bf16.gmra.mrb[0].mxu0 %v2853
        %v3102 = vpop.f32.mrb[0].mxu0
        %v3103 = vadd.f32 0.0, %v3102
        %v3104 = vpop.f32.mrb[0].mxu0
        %v3105 = vpop.f32.mrb[0].mxu0
        %v3106 = vadd.f32 0.0, %v3105
        %v3107 = vpop.f32.mrb[0].mxu0
        %3108 = vmatprep.mubr.bf16.mxu0 0
        %3109 = vmatmul.mubr.bf16.gmra.mrb[0].mxu0 %v2854
        %v3110 = vpop.f32.mrb[0].mxu0
        %v3111 = vadd.f32 0.0, %v3110
        %v3112 = vpop.f32.mrb[0].mxu0
        %v3113 = vpop.f32.mrb[0].mxu0
        %v3114 = vadd.f32 0.0, %v3113
        %v3115 = vpop.f32.mrb[0].mxu0
        %3116 = vmatprep.mubr.bf16.mxu0 0
        %3117 = vmatmul.mubr.bf16.gmra.mrb[0].mxu0 %v2855
        %v3118 = vpop.f32.mrb[0].mxu0
        %v3119 = vadd.f32 0.0, %v3118
        %v3120 = vpop.f32.mrb[0].mxu0
        %v3121 = vpop.f32.mrb[0].mxu0
        %v3122 = vadd.f32 0.0, %v3121
        %v3123 = vpop.f32.mrb[0].mxu0
        %3124 = vmatprep.mubr.bf16.mxu0 0
        %3125 = vmatmul.mubr.bf16.gmra.mrb[0].mxu0 %v2856
        %v3126 = vpop.f32.mrb[0].mxu0
        %v3127 = vadd.f32 0.0, %v3126
        %v3128 = vpop.f32.mrb[0].mxu0
        %v3129 = vpop.f32.mrb[0].mxu0
        %v3130 = vadd.f32 0.0, %v3129
        %v3131 = vpop.f32.mrb[0].mxu0
        %3132 = vmatprep.mubr.bf16.mxu0 0
        %3133 = vmatmul.mubr.bf16.gmra.mrb[0].mxu0 %v2857
        %v3134 = vpop.f32.mrb[0].mxu0
        %v3135 = vadd.f32 0.0, %v3134
        %v3136 = vpop.f32.mrb[0].mxu0
        %v3137 = vpop.f32.mrb[0].mxu0
        %v3138 = vadd.f32 0.0, %v3137
        %v3139 = vpop.f32.mrb[0].mxu0
        %3140 = vmatprep.mubr.bf16.mxu0 0
        %3141 = vmatmul.mubr.bf16.gmra.mrb[0].mxu0 %v2858
        %v3142 = vpop.f32.mrb[0].mxu0
        %v3143 = vadd.f32 0.0, %v3142
        %v3144 = vpop.f32.mrb[0].mxu0
        %v3145 = vpop.f32.mrb[0].mxu0
        %v3146 = vadd.f32 0.0, %v3145
        %v3147 = vpop.f32.mrb[0].mxu0
        %3148 = vmatprep.mubr.bf16.mxu0 0
        %3149 = vmatmul.mubr.bf16.gmra.mrb[0].mxu0 %v2859
        %v3150 = vpop.f32.mrb[0].mxu0
        %v3151 = vadd.f32 0.0, %v3150
        %v3152 = vpop.f32.mrb[0].mxu0
        %v3153 = vpop.f32.mrb[0].mxu0
        %v3154 = vadd.f32 0.0, %v3153
        %v3155 = vpop.f32.mrb[0].mxu0
        %3156 = vmatprep.mubr.bf16.mxu0 0
        %3157 = vmatmul.mubr.bf16.gmra.mrb[0].mxu0 %v2860
        %v3158 = vpop.f32.mrb[0].mxu0
        %v3159 = vadd.f32 0.0, %v3158
        %v3160 = vpop.f32.mrb[0].mxu0
        %v3161 = vpop.f32.mrb[0].mxu0
        %v3162 = vadd.f32 0.0, %v3161
        %v3163 = vpop.f32.mrb[0].mxu0
        %3164 = vmatprep.mubr.bf16.mxu0 0
        %3165 = vmatmul.mubr.bf16.gmra.mrb[0].mxu0 %v2861
        %v3166 = vpop.f32.mrb[0].mxu0
        %v3167 = vadd.f32 0.0, %v3166
        %v3168 = vpop.f32.mrb[0].mxu0
        %v3169 = vpop.f32.mrb[0].mxu0
        %v3170 = vadd.f32 0.0, %v3169
        %v3171 = vpop.f32.mrb[0].mxu0
        %3172 = vmatprep.mubr.bf16.mxu0 0
        %3173 = vmatmul.mubr.bf16.gmra.mrb[0].mxu0 %v2862
        %v3174 = vpop.f32.mrb[0].mxu0
        %v3175 = vadd.f32 0.0, %v3174
        %v3176 = vpop.f32.mrb[0].mxu0
        %v3177 = vpop.f32.mrb[0].mxu0
        %v3178 = vadd.f32 0.0, %v3177
        %v3179 = vpop.f32.mrb[0].mxu0
        %3180 = vmatprep.mubr.bf16.mxu0 0
        %3181 = vmatmul.mubr.bf16.gmra.mrb[0].mxu0 %v2863
        %v3182 = vpop.f32.mrb[0].mxu0
        %v3183 = vadd.f32 0.0, %v3182
        %v3184 = vpop.f32.mrb[0].mxu0
        %v3185 = vpop.f32.mrb[0].mxu0
        %v3186 = vadd.f32 0.0, %v3185
        %v3187 = vpop.f32.mrb[0].mxu0
        %3188 = vmatprep.mubr.bf16.mxu0 0
        %3189 = vmatmul.mubr.bf16.gmra.mrb[0].mxu0 %v2864
        %v3190 = vpop.f32.mrb[0].mxu0
        %v3191 = vadd.f32 0.0, %v3190
        %v3192 = vpop.f32.mrb[0].mxu0
        %v3193 = vpop.f32.mrb[0].mxu0
        %v3194 = vadd.f32 0.0, %v3193
        %v3195 = vpop.f32.mrb[0].mxu0
        %3196 = vmatprep.mubr.bf16.mxu0 0
        %3197 = vmatmul.mubr.bf16.gmra.mrb[0].mxu0 %v2865
        %v3198 = vpop.f32.mrb[0].mxu0
        %v3199 = vadd.f32 0.0, %v3198
        %v3200 = vpop.f32.mrb[0].mxu0
        %v3201 = vpop.f32.mrb[0].mxu0
        %v3202 = vadd.f32 0.0, %v3201
        %v3203 = vpop.f32.mrb[0].mxu0
        %3204 = vmatprep.mubr.bf16.mxu0 0
        %3205 = vmatmul.mubr.bf16.gmra.mrb[0].mxu0 %v2866
        %v3206 = vpop.f32.mrb[0].mxu0
        %v3207 = vadd.f32 0.0, %v3206
        %v3208 = vpop.f32.mrb[0].mxu0
        %v3209 = vpop.f32.mrb[0].mxu0
        %v3210 = vadd.f32 0.0, %v3209
        %v3211 = vpop.f32.mrb[0].mxu0
        %3212 = vmatprep.mubr.bf16.mxu0 0
        %3213 = vmatmul.mubr.bf16.gmra.mrb[0].mxu0 %v2867
        %v3214 = vpop.f32.mrb[0].mxu0
        %v3215 = vadd.f32 0.0, %v3214
        %v3216 = vpop.f32.mrb[0].mxu0
        %v3217 = vpop.f32.mrb[0].mxu0
        %v3218 = vadd.f32 0.0, %v3217
        %v3219 = vpop.f32.mrb[0].mxu0
        %3220 = vdwg.mxu0
        %v3222 = vlaneseq
        %v3223 = vshrl.u32 %v3222, 7
        %v3224 = vsub.s32 0, %v3223
        %v3225 = vrot.slane %v367, %v3224
        %v3227 = vmul.f32 %v2967, %v3225
        %v3228 = vmul.f32 %v2970, %v3225
        %v3229 = vmul.f32 %v2975, %v3225
        %v3230 = vmul.f32 %v2978, %v3225
        %v3231 = vmul.f32 %v2983, %v3225
        %v3232 = vmul.f32 %v2986, %v3225
        %v3233 = vmul.f32 %v2991, %v3225
        %v3234 = vmul.f32 %v2994, %v3225
        %v3235 = vmul.f32 %v2999, %v3225
        %v3236 = vmul.f32 %v3002, %v3225
        %v3237 = vmul.f32 %v3007, %v3225
        %v3238 = vmul.f32 %v3010, %v3225
        %v3239 = vmul.f32 %v3015, %v3225
        %v3240 = vmul.f32 %v3018, %v3225
        %v3241 = vmul.f32 %v3023, %v3225
        %v3242 = vmul.f32 %v3026, %v3225
        %v3243 = vmul.f32 %v3031, %v3225
        %v3244 = vmul.f32 %v3034, %v3225
        %v3245 = vmul.f32 %v3039, %v3225
        %v3246 = vmul.f32 %v3042, %v3225
        %v3247 = vmul.f32 %v3047, %v3225
        %v3248 = vmul.f32 %v3050, %v3225
        %v3249 = vmul.f32 %v3055, %v3225
        %v3250 = vmul.f32 %v3058, %v3225
        %v3251 = vmul.f32 %v3063, %v3225
        %v3252 = vmul.f32 %v3066, %v3225
        %v3253 = vmul.f32 %v3071, %v3225
        %v3254 = vmul.f32 %v3074, %v3225
        %v3255 = vmul.f32 %v3079, %v3225
        %v3256 = vmul.f32 %v3082, %v3225
        %v3257 = vmul.f32 %v3087, %v3225
        %v3258 = vmul.f32 %v3090, %v3225
        %v3259 = vmul.f32 %v3095, %v3225
        %v3260 = vmul.f32 %v3098, %v3225
        %v3261 = vmul.f32 %v3103, %v3225
        %v3262 = vmul.f32 %v3106, %v3225
        %v3263 = vmul.f32 %v3111, %v3225
        %v3264 = vmul.f32 %v3114, %v3225
        %v3265 = vmul.f32 %v3119, %v3225
        %v3266 = vmul.f32 %v3122, %v3225
        %v3267 = vmul.f32 %v3127, %v3225
        %v3268 = vmul.f32 %v3130, %v3225
        %v3269 = vmul.f32 %v3135, %v3225
        %v3270 = vmul.f32 %v3138, %v3225
        %v3271 = vmul.f32 %v3143, %v3225
        %v3272 = vmul.f32 %v3146, %v3225
        %v3273 = vmul.f32 %v3151, %v3225
        %v3274 = vmul.f32 %v3154, %v3225
        %v3275 = vmul.f32 %v3159, %v3225
        %v3276 = vmul.f32 %v3162, %v3225
        %v3277 = vmul.f32 %v3167, %v3225
        %v3278 = vmul.f32 %v3170, %v3225
        %v3279 = vmul.f32 %v3175, %v3225
        %v3280 = vmul.f32 %v3178, %v3225
        %v3281 = vmul.f32 %v3183, %v3225
        %v3282 = vmul.f32 %v3186, %v3225
        %v3283 = vmul.f32 %v3191, %v3225
        %v3284 = vmul.f32 %v3194, %v3225
        %v3285 = vmul.f32 %v3199, %v3225
        %v3286 = vmul.f32 %v3202, %v3225
        %v3287 = vmul.f32 %v3207, %v3225
        %v3288 = vmul.f32 %v3210, %v3225
        %v3289 = vmul.f32 %v3215, %v3225
        %v3290 = vmul.f32 %v3218, %v3225
        %v3291 = vadd.f32 %v2868, %v3227
        %v3292 = vadd.f32 %v2869, %v3228
        %v3293 = vadd.f32 %v2870, %v3229
        %v3294 = vadd.f32 %v2871, %v3230
        %v3295 = vadd.f32 %v2872, %v3231
        %v3296 = vadd.f32 %v2873, %v3232
        %v3297 = vadd.f32 %v2874, %v3233
        %v3298 = vadd.f32 %v2875, %v3234
        %v3299 = vadd.f32 %v2876, %v3235
        %v3300 = vadd.f32 %v2877, %v3236
        %v3301 = vadd.f32 %v2878, %v3237
        %v3302 = vadd.f32 %v2879, %v3238
        %v3303 = vadd.f32 %v2880, %v3239
        %v3304 = vadd.f32 %v2881, %v3240
        %v3305 = vadd.f32 %v2882, %v3241
        %v3306 = vadd.f32 %v2883, %v3242
        %v3307 = vadd.f32 %v2884, %v3243
        %v3308 = vadd.f32 %v2885, %v3244
        %v3309 = vadd.f32 %v2886, %v3245
        %v3310 = vadd.f32 %v2887, %v3246
        %v3311 = vadd.f32 %v2888, %v3247
        %v3312 = vadd.f32 %v2889, %v3248
        %v3313 = vadd.f32 %v2890, %v3249
        %v3314 = vadd.f32 %v2891, %v3250
        %v3315 = vadd.f32 %v2892, %v3251
        %v3316 = vadd.f32 %v2893, %v3252
        %v3317 = vadd.f32 %v2894, %v3253
        %v3318 = vadd.f32 %v2895, %v3254
        %v3319 = vadd.f32 %v2896, %v3255
        %v3320 = vadd.f32 %v2897, %v3256
        %v3321 = vadd.f32 %v2898, %v3257
        %v3322 = vadd.f32 %v2899, %v3258
        %v3323 = vadd.f32 %v2900, %v3259
        %v3324 = vadd.f32 %v2901, %v3260
        %v3325 = vadd.f32 %v2902, %v3261
        %v3326 = vadd.f32 %v2903, %v3262
        %v3327 = vadd.f32 %v2904, %v3263
        %v3328 = vadd.f32 %v2905, %v3264
        %v3329 = vadd.f32 %v2906, %v3265
        %v3330 = vadd.f32 %v2907, %v3266
        %v3331 = vadd.f32 %v2908, %v3267
        %v3332 = vadd.f32 %v2909, %v3268
        %v3333 = vadd.f32 %v2910, %v3269
        %v3334 = vadd.f32 %v2911, %v3270
        %v3335 = vadd.f32 %v2912, %v3271
        %v3336 = vadd.f32 %v2913, %v3272
        %v3337 = vadd.f32 %v2914, %v3273
        %v3338 = vadd.f32 %v2915, %v3274
        %v3339 = vadd.f32 %v2916, %v3275
        %v3340 = vadd.f32 %v2917, %v3276
        %v3341 = vadd.f32 %v2918, %v3277
        %v3342 = vadd.f32 %v2919, %v3278
        %v3343 = vadd.f32 %v2920, %v3279
        %v3344 = vadd.f32 %v2921, %v3280
        %v3345 = vadd.f32 %v2922, %v3281
        %v3346 = vadd.f32 %v2923, %v3282
        %v3347 = vadd.f32 %v2924, %v3283
        %v3348 = vadd.f32 %v2925, %v3284
        %v3349 = vadd.f32 %v2926, %v3285
        %v3350 = vadd.f32 %v2927, %v3286
        %v3351 = vadd.f32 %v2928, %v3287
        %v3352 = vadd.f32 %v2929, %v3288
        %v3353 = vadd.f32 %v2930, %v3289
        %v3354 = vadd.f32 %v2931, %v3290
        %3355 = vst [vmem:[#allocation3] sm:$0xff] %v3291
        %3356 = vst [vmem:[#allocation3 + $0x8] sm:$0xff] %v3292
        %3357 = vst [vmem:[#allocation3 + $0x10] sm:$0xff] %v3293
        %3358 = vst [vmem:[#allocation3 + $0x18] sm:$0xff] %v3294
        %3359 = vst [vmem:[#allocation3 + $0x20] sm:$0xff] %v3295
        %3360 = vst [vmem:[#allocation3 + $0x28] sm:$0xff] %v3296
        %3361 = vst [vmem:[#allocation3 + $0x30] sm:$0xff] %v3297
        %3362 = vst [vmem:[#allocation3 + $0x38] sm:$0xff] %v3298
        %3363 = vst [vmem:[#allocation3 + $0x40] sm:$0xff] %v3299
        %3364 = vst [vmem:[#allocation3 + $0x48] sm:$0xff] %v3300
        %3365 = vst [vmem:[#allocation3 + $0x50] sm:$0xff] %v3301
        %3366 = vst [vmem:[#allocation3 + $0x58] sm:$0xff] %v3302
        %3367 = vst [vmem:[#allocation3 + $0x60] sm:$0xff] %v3303
        %3368 = vst [vmem:[#allocation3 + $0x68] sm:$0xff] %v3304
        %3369 = vst [vmem:[#allocation3 + $0x70] sm:$0xff] %v3305
        %3370 = vst [vmem:[#allocation3 + $0x78] sm:$0xff] %v3306
        %3371 = vst [vmem:[#allocation3 + $0x80] sm:$0xff] %v3307
        %3372 = vst [vmem:[#allocation3 + $0x88] sm:$0xff] %v3308
        %3373 = vst [vmem:[#allocation3 + $0x90] sm:$0xff] %v3309
        %3374 = vst [vmem:[#allocation3 + $0x98] sm:$0xff] %v3310
        %3375 = vst [vmem:[#allocation3 + $0xa0] sm:$0xff] %v3311
        %3376 = vst [vmem:[#allocation3 + $0xa8] sm:$0xff] %v3312
        %3377 = vst [vmem:[#allocation3 + $0xb0] sm:$0xff] %v3313
        %3378 = vst [vmem:[#allocation3 + $0xb8] sm:$0xff] %v3314
        %3379 = vst [vmem:[#allocation3 + $0xc0] sm:$0xff] %v3315
        %3380 = vst [vmem:[#allocation3 + $0xc8] sm:$0xff] %v3316
        %3381 = vst [vmem:[#allocation3 + $0xd0] sm:$0xff] %v3317
        %3382 = vst [vmem:[#allocation3 + $0xd8] sm:$0xff] %v3318
        %3383 = vst [vmem:[#allocation3 + $0xe0] sm:$0xff] %v3319
        %3384 = vst [vmem:[#allocation3 + $0xe8] sm:$0xff] %v3320
        %3385 = vst [vmem:[#allocation3 + $0xf0] sm:$0xff] %v3321
        %3386 = vst [vmem:[#allocation3 + $0xf8] sm:$0xff] %v3322
        %3387 = vst [vmem:[#allocation3 + $0x100] sm:$0xff] %v3323
        %3388 = vst [vmem:[#allocation3 + $0x108] sm:$0xff] %v3324
        %3389 = vst [vmem:[#allocation3 + $0x110] sm:$0xff] %v3325
        %3390 = vst [vmem:[#allocation3 + $0x118] sm:$0xff] %v3326
        %3391 = vst [vmem:[#allocation3 + $0x120] sm:$0xff] %v3327
        %3392 = vst [vmem:[#allocation3 + $0x128] sm:$0xff] %v3328
        %3393 = vst [vmem:[#allocation3 + $0x130] sm:$0xff] %v3329
        %3394 = vst [vmem:[#allocation3 + $0x138] sm:$0xff] %v3330
        %3395 = vst [vmem:[#allocation3 + $0x140] sm:$0xff] %v3331
        %3396 = vst [vmem:[#allocation3 + $0x148] sm:$0xff] %v3332
        %3397 = vst [vmem:[#allocation3 + $0x150] sm:$0xff] %v3333
        %3398 = vst [vmem:[#allocation3 + $0x158] sm:$0xff] %v3334
        %3399 = vst [vmem:[#allocation3 + $0x160] sm:$0xff] %v3335
        %3400 = vst [vmem:[#allocation3 + $0x168] sm:$0xff] %v3336
        %3401 = vst [vmem:[#allocation3 + $0x170] sm:$0xff] %v3337
        %3402 = vst [vmem:[#allocation3 + $0x178] sm:$0xff] %v3338
        %3403 = vst [vmem:[#allocation3 + $0x180] sm:$0xff] %v3339
        %3404 = vst [vmem:[#allocation3 + $0x188] sm:$0xff] %v3340
        %3405 = vst [vmem:[#allocation3 + $0x190] sm:$0xff] %v3341
        %3406 = vst [vmem:[#allocation3 + $0x198] sm:$0xff] %v3342
        %3407 = vst [vmem:[#allocation3 + $0x1a0] sm:$0xff] %v3343
        %3408 = vst [vmem:[#allocation3 + $0x1a8] sm:$0xff] %v3344
        %3409 = vst [vmem:[#allocation3 + $0x1b0] sm:$0xff] %v3345
        %3410 = vst [vmem:[#allocation3 + $0x1b8] sm:$0xff] %v3346
        %3411 = vst [vmem:[#allocation3 + $0x1c0] sm:$0xff] %v3347
        %3412 = vst [vmem:[#allocation3 + $0x1c8] sm:$0xff] %v3348
        %3413 = vst [vmem:[#allocation3 + $0x1d0] sm:$0xff] %v3349
        %3414 = vst [vmem:[#allocation3 + $0x1d8] sm:$0xff] %v3350
        %3415 = vst [vmem:[#allocation3 + $0x1e0] sm:$0xff] %v3351
        %3416 = vst [vmem:[#allocation3 + $0x1e8] sm:$0xff] %v3352
        %3417 = vst [vmem:[#allocation3 + $0x1f0] sm:$0xff] %v3353
        %3418 = vst [vmem:[#allocation3 + $0x1f8] sm:$0xff] %v3354
      $region52: #{_lambda_.3} parent=43 // pred_fallthru
        _
      %p3419 = scmp.eq.s32.totalorder %s24, 8
      // Predicated region
      $region53: #{_lambda_.3} parent=43 // pred_check
        %p3420 = pneg %p3419
      $region54: #{_lambda_.3} parent=43 // pred_check_branch
        %3422 = sbr.rel (%p3420) target = $region56
      $region55: #{_lambda_.3} parent=43 // pred_region
        %v3423 = vld [vmem:[#allocation3] sm:$0xff]
        %v3424 = vld [vmem:[#allocation3 + $0x8] sm:$0xff]
        %v3425 = vld [vmem:[#allocation3 + $0x10] sm:$0xff]
        %v3426 = vld [vmem:[#allocation3 + $0x18] sm:$0xff]
        %v3427 = vld [vmem:[#allocation3 + $0x20] sm:$0xff]
        %v3428 = vld [vmem:[#allocation3 + $0x28] sm:$0xff]
        %v3429 = vld [vmem:[#allocation3 + $0x30] sm:$0xff]
        %v3430 = vld [vmem:[#allocation3 + $0x38] sm:$0xff]
        %v3431 = vld [vmem:[#allocation3 + $0x40] sm:$0xff]
        %v3432 = vld [vmem:[#allocation3 + $0x48] sm:$0xff]
        %v3433 = vld [vmem:[#allocation3 + $0x50] sm:$0xff]
        %v3434 = vld [vmem:[#allocation3 + $0x58] sm:$0xff]
        %v3435 = vld [vmem:[#allocation3 + $0x60] sm:$0xff]
        %v3436 = vld [vmem:[#allocation3 + $0x68] sm:$0xff]
        %v3437 = vld [vmem:[#allocation3 + $0x70] sm:$0xff]
        %v3438 = vld [vmem:[#allocation3 + $0x78] sm:$0xff]
        %v3439 = vld [vmem:[#allocation3 + $0x80] sm:$0xff]
        %v3440 = vld [vmem:[#allocation3 + $0x88] sm:$0xff]
        %v3441 = vld [vmem:[#allocation3 + $0x90] sm:$0xff]
        %v3442 = vld [vmem:[#allocation3 + $0x98] sm:$0xff]
        %v3443 = vld [vmem:[#allocation3 + $0xa0] sm:$0xff]
        %v3444 = vld [vmem:[#allocation3 + $0xa8] sm:$0xff]
        %v3445 = vld [vmem:[#allocation3 + $0xb0] sm:$0xff]
        %v3446 = vld [vmem:[#allocation3 + $0xb8] sm:$0xff]
        %v3447 = vld [vmem:[#allocation3 + $0xc0] sm:$0xff]
        %v3448 = vld [vmem:[#allocation3 + $0xc8] sm:$0xff]
        %v3449 = vld [vmem:[#allocation3 + $0xd0] sm:$0xff]
        %v3450 = vld [vmem:[#allocation3 + $0xd8] sm:$0xff]
        %v3451 = vld [vmem:[#allocation3 + $0xe0] sm:$0xff]
        %v3452 = vld [vmem:[#allocation3 + $0xe8] sm:$0xff]
        %v3453 = vld [vmem:[#allocation3 + $0xf0] sm:$0xff]
        %v3454 = vld [vmem:[#allocation3 + $0xf8] sm:$0xff]
        %v3455 = vld [vmem:[#allocation3 + $0x100] sm:$0xff]
        %v3456 = vld [vmem:[#allocation3 + $0x108] sm:$0xff]
        %v3457 = vld [vmem:[#allocation3 + $0x110] sm:$0xff]
        %v3458 = vld [vmem:[#allocation3 + $0x118] sm:$0xff]
        %v3459 = vld [vmem:[#allocation3 + $0x120] sm:$0xff]
        %v3460 = vld [vmem:[#allocation3 + $0x128] sm:$0xff]
        %v3461 = vld [vmem:[#allocation3 + $0x130] sm:$0xff]
        %v3462 = vld [vmem:[#allocation3 + $0x138] sm:$0xff]
        %v3463 = vld [vmem:[#allocation3 + $0x140] sm:$0xff]
        %v3464 = vld [vmem:[#allocation3 + $0x148] sm:$0xff]
        %v3465 = vld [vmem:[#allocation3 + $0x150] sm:$0xff]
        %v3466 = vld [vmem:[#allocation3 + $0x158] sm:$0xff]
        %v3467 = vld [vmem:[#allocation3 + $0x160] sm:$0xff]
        %v3468 = vld [vmem:[#allocation3 + $0x168] sm:$0xff]
        %v3469 = vld [vmem:[#allocation3 + $0x170] sm:$0xff]
        %v3470 = vld [vmem:[#allocation3 + $0x178] sm:$0xff]
        %v3471 = vld [vmem:[#allocation3 + $0x180] sm:$0xff]
        %v3472 = vld [vmem:[#allocation3 + $0x188] sm:$0xff]
        %v3473 = vld [vmem:[#allocation3 + $0x190] sm:$0xff]
        %v3474 = vld [vmem:[#allocation3 + $0x198] sm:$0xff]
        %v3475 = vld [vmem:[#allocation3 + $0x1a0] sm:$0xff]
        %v3476 = vld [vmem:[#allocation3 + $0x1a8] sm:$0xff]
        %v3477 = vld [vmem:[#allocation3 + $0x1b0] sm:$0xff]
        %v3478 = vld [vmem:[#allocation3 + $0x1b8] sm:$0xff]
        %v3479 = vld [vmem:[#allocation3 + $0x1c0] sm:$0xff]
        %v3480 = vld [vmem:[#allocation3 + $0x1c8] sm:$0xff]
        %v3481 = vld [vmem:[#allocation3 + $0x1d0] sm:$0xff]
        %v3482 = vld [vmem:[#allocation3 + $0x1d8] sm:$0xff]
        %v3483 = vld [vmem:[#allocation3 + $0x1e0] sm:$0xff]
        %v3484 = vld [vmem:[#allocation3 + $0x1e8] sm:$0xff]
        %v3485 = vld [vmem:[#allocation3 + $0x1f0] sm:$0xff]
        %v3486 = vld [vmem:[#allocation3 + $0x1f8] sm:$0xff]
        %v3487 = vld [vmem:[%s344] sm:$0x1]
        %v3489 = vlaneseq
        %v3490 = vshrl.u32 %v3489, 7
        %v3491 = vsub.s32 0, %v3490
        %v3492 = vrot.slane %v3487, %v3491
        %v3494 = vadd.f32 %v3423, %v3492
        %v3495 = vadd.f32 %v3424, %v3492
        %v3496 = vadd.f32 %v3425, %v3492
        %v3497 = vadd.f32 %v3426, %v3492
        %v3498 = vadd.f32 %v3427, %v3492
        %v3499 = vadd.f32 %v3428, %v3492
        %v3500 = vadd.f32 %v3429, %v3492
        %v3501 = vadd.f32 %v3430, %v3492
        %v3502 = vadd.f32 %v3431, %v3492
        %v3503 = vadd.f32 %v3432, %v3492
        %v3504 = vadd.f32 %v3433, %v3492
        %v3505 = vadd.f32 %v3434, %v3492
        %v3506 = vadd.f32 %v3435, %v3492
        %v3507 = vadd.f32 %v3436, %v3492
        %v3508 = vadd.f32 %v3437, %v3492
        %v3509 = vadd.f32 %v3438, %v3492
        %v3510 = vadd.f32 %v3439, %v3492
        %v3511 = vadd.f32 %v3440, %v3492
        %v3512 = vadd.f32 %v3441, %v3492
        %v3513 = vadd.f32 %v3442, %v3492
        %v3514 = vadd.f32 %v3443, %v3492
        %v3515 = vadd.f32 %v3444, %v3492
        %v3516 = vadd.f32 %v3445, %v3492
        %v3517 = vadd.f32 %v3446, %v3492
        %v3518 = vadd.f32 %v3447, %v3492
        %v3519 = vadd.f32 %v3448, %v3492
        %v3520 = vadd.f32 %v3449, %v3492
        %v3521 = vadd.f32 %v3450, %v3492
        %v3522 = vadd.f32 %v3451, %v3492
        %v3523 = vadd.f32 %v3452, %v3492
        %v3524 = vadd.f32 %v3453, %v3492
        %v3525 = vadd.f32 %v3454, %v3492
        %v3526 = vadd.f32 %v3455, %v3492
        %v3527 = vadd.f32 %v3456, %v3492
        %v3528 = vadd.f32 %v3457, %v3492
        %v3529 = vadd.f32 %v3458, %v3492
        %v3530 = vadd.f32 %v3459, %v3492
        %v3531 = vadd.f32 %v3460, %v3492
        %v3532 = vadd.f32 %v3461, %v3492
        %v3533 = vadd.f32 %v3462, %v3492
        %v3534 = vadd.f32 %v3463, %v3492
        %v3535 = vadd.f32 %v3464, %v3492
        %v3536 = vadd.f32 %v3465, %v3492
        %v3537 = vadd.f32 %v3466, %v3492
        %v3538 = vadd.f32 %v3467, %v3492
        %v3539 = vadd.f32 %v3468, %v3492
        %v3540 = vadd.f32 %v3469, %v3492
        %v3541 = vadd.f32 %v3470, %v3492
        %v3542 = vadd.f32 %v3471, %v3492
        %v3543 = vadd.f32 %v3472, %v3492
        %v3544 = vadd.f32 %v3473, %v3492
        %v3545 = vadd.f32 %v3474, %v3492
        %v3546 = vadd.f32 %v3475, %v3492
        %v3547 = vadd.f32 %v3476, %v3492
        %v3548 = vadd.f32 %v3477, %v3492
        %v3549 = vadd.f32 %v3478, %v3492
        %v3550 = vadd.f32 %v3479, %v3492
        %v3551 = vadd.f32 %v3480, %v3492
        %v3552 = vadd.f32 %v3481, %v3492
        %v3553 = vadd.f32 %v3482, %v3492
        %v3554 = vadd.f32 %v3483, %v3492
        %v3555 = vadd.f32 %v3484, %v3492
        %v3556 = vadd.f32 %v3485, %v3492
        %v3557 = vadd.f32 %v3486, %v3492
        %v3558 = vmax.f32 %v3494, 0.0
        %v3559 = vmax.f32 %v3495, 0.0
        %v3560 = vmax.f32 %v3496, 0.0
        %v3561 = vmax.f32 %v3497, 0.0
        %v3562 = vmax.f32 %v3498, 0.0
        %v3563 = vmax.f32 %v3499, 0.0
        %v3564 = vmax.f32 %v3500, 0.0
        %v3565 = vmax.f32 %v3501, 0.0
        %v3566 = vmax.f32 %v3502, 0.0
        %v3567 = vmax.f32 %v3503, 0.0
        %v3568 = vmax.f32 %v3504, 0.0
        %v3569 = vmax.f32 %v3505, 0.0
        %v3570 = vmax.f32 %v3506, 0.0
        %v3571 = vmax.f32 %v3507, 0.0
        %v3572 = vmax.f32 %v3508, 0.0
        %v3573 = vmax.f32 %v3509, 0.0
        %v3574 = vmax.f32 %v3510, 0.0
        %v3575 = vmax.f32 %v3511, 0.0
        %v3576 = vmax.f32 %v3512, 0.0
        %v3577 = vmax.f32 %v3513, 0.0
        %v3578 = vmax.f32 %v3514, 0.0
        %v3579 = vmax.f32 %v3515, 0.0
        %v3580 = vmax.f32 %v3516, 0.0
        %v3581 = vmax.f32 %v3517, 0.0
        %v3582 = vmax.f32 %v3518, 0.0
        %v3583 = vmax.f32 %v3519, 0.0
        %v3584 = vmax.f32 %v3520, 0.0
        %v3585 = vmax.f32 %v3521, 0.0
        %v3586 = vmax.f32 %v3522, 0.0
        %v3587 = vmax.f32 %v3523, 0.0
        %v3588 = vmax.f32 %v3524, 0.0
        %v3589 = vmax.f32 %v3525, 0.0
        %v3590 = vmax.f32 %v3526, 0.0
        %v3591 = vmax.f32 %v3527, 0.0
        %v3592 = vmax.f32 %v3528, 0.0
        %v3593 = vmax.f32 %v3529, 0.0
        %v3594 = vmax.f32 %v3530, 0.0
        %v3595 = vmax.f32 %v3531, 0.0
        %v3596 = vmax.f32 %v3532, 0.0
        %v3597 = vmax.f32 %v3533, 0.0
        %v3598 = vmax.f32 %v3534, 0.0
        %v3599 = vmax.f32 %v3535, 0.0
        %v3600 = vmax.f32 %v3536, 0.0
        %v3601 = vmax.f32 %v3537, 0.0
        %v3602 = vmax.f32 %v3538, 0.0
        %v3603 = vmax.f32 %v3539, 0.0
        %v3604 = vmax.f32 %v3540, 0.0
        %v3605 = vmax.f32 %v3541, 0.0
        %v3606 = vmax.f32 %v3542, 0.0
        %v3607 = vmax.f32 %v3543, 0.0
        %v3608 = vmax.f32 %v3544, 0.0
        %v3609 = vmax.f32 %v3545, 0.0
        %v3610 = vmax.f32 %v3546, 0.0
        %v3611 = vmax.f32 %v3547, 0.0
        %v3612 = vmax.f32 %v3548, 0.0
        %v3613 = vmax.f32 %v3549, 0.0
        %v3614 = vmax.f32 %v3550, 0.0
        %v3615 = vmax.f32 %v3551, 0.0
        %v3616 = vmax.f32 %v3552, 0.0
        %v3617 = vmax.f32 %v3553, 0.0
        %v3618 = vmax.f32 %v3554, 0.0
        %v3619 = vmax.f32 %v3555, 0.0
        %v3620 = vmax.f32 %v3556, 0.0
        %v3621 = vmax.f32 %v3557, 0.0
        %v3622 = vpack.c.bf16 %v3559, %v3558
        %v3623 = vpack.c.bf16 %v3561, %v3560
        %v3624 = vpack.c.bf16 %v3563, %v3562
        %v3625 = vpack.c.bf16 %v3565, %v3564
        %v3626 = vpack.c.bf16 %v3567, %v3566
        %v3627 = vpack.c.bf16 %v3569, %v3568
        %v3628 = vpack.c.bf16 %v3571, %v3570
        %v3629 = vpack.c.bf16 %v3573, %v3572
        %v3630 = vpack.c.bf16 %v3575, %v3574
        %v3631 = vpack.c.bf16 %v3577, %v3576
        %v3632 = vpack.c.bf16 %v3579, %v3578
        %v3633 = vpack.c.bf16 %v3581, %v3580
        %v3634 = vpack.c.bf16 %v3583, %v3582
        %v3635 = vpack.c.bf16 %v3585, %v3584
        %v3636 = vpack.c.bf16 %v3587, %v3586
        %v3637 = vpack.c.bf16 %v3589, %v3588
        %v3638 = vpack.c.bf16 %v3591, %v3590
        %v3639 = vpack.c.bf16 %v3593, %v3592
        %v3640 = vpack.c.bf16 %v3595, %v3594
        %v3641 = vpack.c.bf16 %v3597, %v3596
        %v3642 = vpack.c.bf16 %v3599, %v3598
        %v3643 = vpack.c.bf16 %v3601, %v3600
        %v3644 = vpack.c.bf16 %v3603, %v3602
        %v3645 = vpack.c.bf16 %v3605, %v3604
        %v3646 = vpack.c.bf16 %v3607, %v3606
        %v3647 = vpack.c.bf16 %v3609, %v3608
        %v3648 = vpack.c.bf16 %v3611, %v3610
        %v3649 = vpack.c.bf16 %v3613, %v3612
        %v3650 = vpack.c.bf16 %v3615, %v3614
        %v3651 = vpack.c.bf16 %v3617, %v3616
        %v3652 = vpack.c.bf16 %v3619, %v3618
        %v3653 = vpack.c.bf16 %v3621, %v3620
        %v3686 = vunpack.c.l.b16 %v3622
        %v3687 = vunpack.c.h.b16 %v3622
        %v3688 = vunpack.c.l.b16 %v3623
        %v3689 = vunpack.c.h.b16 %v3623
        %v3690 = vunpack.c.l.b16 %v3624
        %v3691 = vunpack.c.h.b16 %v3624
        %v3692 = vunpack.c.l.b16 %v3625
        %v3693 = vunpack.c.h.b16 %v3625
        %v3694 = vunpack.c.l.b16 %v3626
        %v3695 = vunpack.c.h.b16 %v3626
        %v3696 = vunpack.c.l.b16 %v3627
        %v3697 = vunpack.c.h.b16 %v3627
        %v3698 = vunpack.c.l.b16 %v3628
        %v3699 = vunpack.c.h.b16 %v3628
        %v3700 = vunpack.c.l.b16 %v3629
        %v3701 = vunpack.c.h.b16 %v3629
        %v3702 = vunpack.c.l.b16 %v3630
        %v3703 = vunpack.c.h.b16 %v3630
        %v3704 = vunpack.c.l.b16 %v3631
        %v3705 = vunpack.c.h.b16 %v3631
        %v3706 = vunpack.c.l.b16 %v3632
        %v3707 = vunpack.c.h.b16 %v3632
        %v3708 = vunpack.c.l.b16 %v3633
        %v3709 = vunpack.c.h.b16 %v3633
        %v3710 = vunpack.c.l.b16 %v3634
        %v3711 = vunpack.c.h.b16 %v3634
        %v3712 = vunpack.c.l.b16 %v3635
        %v3713 = vunpack.c.h.b16 %v3635
        %v3714 = vunpack.c.l.b16 %v3636
        %v3715 = vunpack.c.h.b16 %v3636
        %v3716 = vunpack.c.l.b16 %v3637
        %v3717 = vunpack.c.h.b16 %v3637
        %v3718 = vunpack.c.l.b16 %v3638
        %v3719 = vunpack.c.h.b16 %v3638
        %v3720 = vunpack.c.l.b16 %v3639
        %v3721 = vunpack.c.h.b16 %v3639
        %v3722 = vunpack.c.l.b16 %v3640
        %v3723 = vunpack.c.h.b16 %v3640
        %v3724 = vunpack.c.l.b16 %v3641
        %v3725 = vunpack.c.h.b16 %v3641
        %v3726 = vunpack.c.l.b16 %v3642
        %v3727 = vunpack.c.h.b16 %v3642
        %v3728 = vunpack.c.l.b16 %v3643
        %v3729 = vunpack.c.h.b16 %v3643
        %v3730 = vunpack.c.l.b16 %v3644
        %v3731 = vunpack.c.h.b16 %v3644
        %v3732 = vunpack.c.l.b16 %v3645
        %v3733 = vunpack.c.h.b16 %v3645
        %v3734 = vunpack.c.l.b16 %v3646
        %v3735 = vunpack.c.h.b16 %v3646
        %v3736 = vunpack.c.l.b16 %v3647
        %v3737 = vunpack.c.h.b16 %v3647
        %v3738 = vunpack.c.l.b16 %v3648
        %v3739 = vunpack.c.h.b16 %v3648
        %v3740 = vunpack.c.l.b16 %v3649
        %v3741 = vunpack.c.h.b16 %v3649
        %v3742 = vunpack.c.l.b16 %v3650
        %v3743 = vunpack.c.h.b16 %v3650
        %v3744 = vunpack.c.l.b16 %v3651
        %v3745 = vunpack.c.h.b16 %v3651
        %v3746 = vunpack.c.l.b16 %v3652
        %v3747 = vunpack.c.h.b16 %v3652
        %v3748 = vunpack.c.l.b16 %v3653
        %v3749 = vunpack.c.h.b16 %v3653
        %v3750 = vpack.c.b16 %v3686, %v3686
        %v3751 = vpack.c.b16 %v3687, %v3687
        %v3752 = vpack.c.b16 %v3688, %v3688
        %v3753 = vpack.c.b16 %v3689, %v3689
        %v3754 = vpack.c.b16 %v3690, %v3690
        %v3755 = vpack.c.b16 %v3691, %v3691
        %v3756 = vpack.c.b16 %v3692, %v3692
        %v3757 = vpack.c.b16 %v3693, %v3693
        %v3758 = vpack.c.b16 %v3694, %v3694
        %v3759 = vpack.c.b16 %v3695, %v3695
        %v3760 = vpack.c.b16 %v3696, %v3696
        %v3761 = vpack.c.b16 %v3697, %v3697
        %v3762 = vpack.c.b16 %v3698, %v3698
        %v3763 = vpack.c.b16 %v3699, %v3699
        %v3764 = vpack.c.b16 %v3700, %v3700
        %v3765 = vpack.c.b16 %v3701, %v3701
        %v3766 = vpack.c.b16 %v3702, %v3702
        %v3767 = vpack.c.b16 %v3703, %v3703
        %v3768 = vpack.c.b16 %v3704, %v3704
        %v3769 = vpack.c.b16 %v3705, %v3705
        %v3770 = vpack.c.b16 %v3706, %v3706
        %v3771 = vpack.c.b16 %v3707, %v3707
        %v3772 = vpack.c.b16 %v3708, %v3708
        %v3773 = vpack.c.b16 %v3709, %v3709
        %v3774 = vpack.c.b16 %v3710, %v3710
        %v3775 = vpack.c.b16 %v3711, %v3711
        %v3776 = vpack.c.b16 %v3712, %v3712
        %v3777 = vpack.c.b16 %v3713, %v3713
        %v3778 = vpack.c.b16 %v3714, %v3714
        %v3779 = vpack.c.b16 %v3715, %v3715
        %v3780 = vpack.c.b16 %v3716, %v3716
        %v3781 = vpack.c.b16 %v3717, %v3717
        %v3782 = vpack.c.b16 %v3718, %v3718
        %v3783 = vpack.c.b16 %v3719, %v3719
        %v3784 = vpack.c.b16 %v3720, %v3720
        %v3785 = vpack.c.b16 %v3721, %v3721
        %v3786 = vpack.c.b16 %v3722, %v3722
        %v3787 = vpack.c.b16 %v3723, %v3723
        %v3788 = vpack.c.b16 %v3724, %v3724
        %v3789 = vpack.c.b16 %v3725, %v3725
        %v3790 = vpack.c.b16 %v3726, %v3726
        %v3791 = vpack.c.b16 %v3727, %v3727
        %v3792 = vpack.c.b16 %v3728, %v3728
        %v3793 = vpack.c.b16 %v3729, %v3729
        %v3794 = vpack.c.b16 %v3730, %v3730
        %v3795 = vpack.c.b16 %v3731, %v3731
        %v3796 = vpack.c.b16 %v3732, %v3732
        %v3797 = vpack.c.b16 %v3733, %v3733
        %v3798 = vpack.c.b16 %v3734, %v3734
        %v3799 = vpack.c.b16 %v3735, %v3735
        %v3800 = vpack.c.b16 %v3736, %v3736
        %v3801 = vpack.c.b16 %v3737, %v3737
        %v3802 = vpack.c.b16 %v3738, %v3738
        %v3803 = vpack.c.b16 %v3739, %v3739
        %v3804 = vpack.c.b16 %v3740, %v3740
        %v3805 = vpack.c.b16 %v3741, %v3741
        %v3806 = vpack.c.b16 %v3742, %v3742
        %v3807 = vpack.c.b16 %v3743, %v3743
        %v3808 = vpack.c.b16 %v3744, %v3744
        %v3809 = vpack.c.b16 %v3745, %v3745
        %v3810 = vpack.c.b16 %v3746, %v3746
        %v3811 = vpack.c.b16 %v3747, %v3747
        %v3812 = vpack.c.b16 %v3748, %v3748
        %v3813 = vpack.c.b16 %v3749, %v3749
        %3878 = vst [vmem:[%s352] sm:$0xf] %v3750
        %3879 = vst [vmem:[%s352 + $0x4] sm:$0xf] %v3751
        %3880 = vst [vmem:[%s352 + $0x8] sm:$0xf] %v3752
        %3881 = vst [vmem:[%s352 + $0xc] sm:$0xf] %v3753
        %3882 = vst [vmem:[%s352 + $0x10] sm:$0xf] %v3754
        %3883 = vst [vmem:[%s352 + $0x14] sm:$0xf] %v3755
        %3884 = vst [vmem:[%s352 + $0x18] sm:$0xf] %v3756
        %3885 = vst [vmem:[%s352 + $0x1c] sm:$0xf] %v3757
        %3886 = vst [vmem:[%s352 + $0x20] sm:$0xf] %v3758
        %3887 = vst [vmem:[%s352 + $0x24] sm:$0xf] %v3759
        %3888 = vst [vmem:[%s352 + $0x28] sm:$0xf] %v3760
        %3889 = vst [vmem:[%s352 + $0x2c] sm:$0xf] %v3761
        %3890 = vst [vmem:[%s352 + $0x30] sm:$0xf] %v3762
        %3891 = vst [vmem:[%s352 + $0x34] sm:$0xf] %v3763
        %3892 = vst [vmem:[%s352 + $0x38] sm:$0xf] %v3764
        %3893 = vst [vmem:[%s352 + $0x3c] sm:$0xf] %v3765
        %3894 = vst [vmem:[%s352 + $0x40] sm:$0xf] %v3766
        %3895 = vst [vmem:[%s352 + $0x44] sm:$0xf] %v3767
        %3896 = vst [vmem:[%s352 + $0x48] sm:$0xf] %v3768
        %3897 = vst [vmem:[%s352 + $0x4c] sm:$0xf] %v3769
        %3898 = vst [vmem:[%s352 + $0x50] sm:$0xf] %v3770
        %3899 = vst [vmem:[%s352 + $0x54] sm:$0xf] %v3771
        %3900 = vst [vmem:[%s352 + $0x58] sm:$0xf] %v3772
        %3901 = vst [vmem:[%s352 + $0x5c] sm:$0xf] %v3773
        %3902 = vst [vmem:[%s352 + $0x60] sm:$0xf] %v3774
        %3903 = vst [vmem:[%s352 + $0x64] sm:$0xf] %v3775
        %3904 = vst [vmem:[%s352 + $0x68] sm:$0xf] %v3776
        %3905 = vst [vmem:[%s352 + $0x6c] sm:$0xf] %v3777
        %3906 = vst [vmem:[%s352 + $0x70] sm:$0xf] %v3778
        %3907 = vst [vmem:[%s352 + $0x74] sm:$0xf] %v3779
        %3908 = vst [vmem:[%s352 + $0x78] sm:$0xf] %v3780
        %3909 = vst [vmem:[%s352 + $0x7c] sm:$0xf] %v3781
        %3910 = vst [vmem:[%s352 + $0x80] sm:$0xf] %v3782
        %3911 = vst [vmem:[%s352 + $0x84] sm:$0xf] %v3783
        %3912 = vst [vmem:[%s352 + $0x88] sm:$0xf] %v3784
        %3913 = vst [vmem:[%s352 + $0x8c] sm:$0xf] %v3785
        %3914 = vst [vmem:[%s352 + $0x90] sm:$0xf] %v3786
        %3915 = vst [vmem:[%s352 + $0x94] sm:$0xf] %v3787
        %3916 = vst [vmem:[%s352 + $0x98] sm:$0xf] %v3788
        %3917 = vst [vmem:[%s352 + $0x9c] sm:$0xf] %v3789
        %3918 = vst [vmem:[%s352 + $0xa0] sm:$0xf] %v3790
        %3919 = vst [vmem:[%s352 + $0xa4] sm:$0xf] %v3791
        %3920 = vst [vmem:[%s352 + $0xa8] sm:$0xf] %v3792
        %3921 = vst [vmem:[%s352 + $0xac] sm:$0xf] %v3793
        %3922 = vst [vmem:[%s352 + $0xb0] sm:$0xf] %v3794
        %3923 = vst [vmem:[%s352 + $0xb4] sm:$0xf] %v3795
        %3924 = vst [vmem:[%s352 + $0xb8] sm:$0xf] %v3796
        %3925 = vst [vmem:[%s352 + $0xbc] sm:$0xf] %v3797
        %3926 = vst [vmem:[%s352 + $0xc0] sm:$0xf] %v3798
        %3927 = vst [vmem:[%s352 + $0xc4] sm:$0xf] %v3799
        %3928 = vst [vmem:[%s352 + $0xc8] sm:$0xf] %v3800
        %3929 = vst [vmem:[%s352 + $0xcc] sm:$0xf] %v3801
        %3930 = vst [vmem:[%s352 + $0xd0] sm:$0xf] %v3802
        %3931 = vst [vmem:[%s352 + $0xd4] sm:$0xf] %v3803
        %3932 = vst [vmem:[%s352 + $0xd8] sm:$0xf] %v3804
        %3933 = vst [vmem:[%s352 + $0xdc] sm:$0xf] %v3805
        %3934 = vst [vmem:[%s352 + $0xe0] sm:$0xf] %v3806
        %3935 = vst [vmem:[%s352 + $0xe4] sm:$0xf] %v3807
        %3936 = vst [vmem:[%s352 + $0xe8] sm:$0xf] %v3808
        %3937 = vst [vmem:[%s352 + $0xec] sm:$0xf] %v3809
        %3938 = vst [vmem:[%s352 + $0xf0] sm:$0xf] %v3810
        %3939 = vst [vmem:[%s352 + $0xf4] sm:$0xf] %v3811
        %3940 = vst [vmem:[%s352 + $0xf8] sm:$0xf] %v3812
        %3941 = vst [vmem:[%s352 + $0xfc] sm:$0xf] %v3813
      $region56: #{_lambda_.3} parent=43 // pred_fallthru
        _
      %s3942 = smul.u32 64, %s23
      %p3943 = scmp.lt.s32.totalorder %s3942, 63
      %s3944 = scalar_select %p3943, %s3942, 63
      %p3945 = scmp.lt.s32.totalorder %s22, 0
      %s3946 = scalar_select %p3945, %s22, 0
      %s3947 = sadd.s32 %s3946, %s3944
      %s3948 = smul.addr %s3947, 4
      %s3949 = scalar_lea.vmem %s6, %s3948
      // Predicated region
      $region57: #{_lambda_.3} parent=43 // pred_check
        %p3950 = pneg %p206
      $region58: #{_lambda_.3} parent=43 // pred_check_branch
        %3952 = sbr.rel (%p3950) target = $region60
      $region59: #{_lambda_.3} parent=43 // pred_region
        %s3953 = smul.u32 64, %s23
      $region60: #{_lambda_.3} parent=43 // pred_fallthru
        _
      // Predicated region
      $region61: #{_lambda_.3} parent=43 // pred_check
        %p3954 = pneg %p206
      $region62: #{_lambda_.3} parent=43 // pred_check_branch
        %3956 = sbr.rel (%p3954) target = $region64
      $region63: #{_lambda_.3} parent=43 // pred_region
        %s3957 = smul.u32 64, %s23
        %p3958 = scmp.lt.s32.totalorder %s3957, 63
        %s3959 = scalar_select %p3958, %s3957, 63
        %p3960 = scmp.lt.s32.totalorder %s22, 0
        %s3961 = scalar_select %p3960, %s22, 0
        %s3962 = sadd.s32 %s3961, %s3959
        %s3963 = smul.addr %s3962, 4
        %s3964 = scalar_lea.vmem %s6, %s3963
      $region64: #{_lambda_.3} parent=43 // pred_fallthru
        _
    $region44: #{_lambda_.3} parent=5 // pred_fallthru
      _
    %p3965 = scmp.le.s32.totalorder 2, %s12
    // Predicated region
    $region65: #{_lambda_.3} parent=5 // pred_check
      %p3966 = pneg %p3965
    $region66: #{_lambda_.3} parent=5 // pred_check_branch
      %3968 = sbr.rel (%p3966) target = $region68
    $region67: #{_lambda_.3} parent=5 // pred_region
      %s3969 = ssub.s32 %s12, 2
    $region68: #{_lambda_.3} parent=5 // pred_fallthru
      _
  $region6: #{_lambda_.3} parent=0 // loop_footer
    %s16 = sadd.s32 1, %s12
  $region7: #{_lambda_.3} parent=0 // loop_footer_branch
    %11 = sbr.rel target = $region3
  $region8: #{_lambda_.3} parent=0 // loop_exit
    _

// kernel: _lambda_.4
$region0: #{_lambda_.4}
  #allocation0 [shape = 'u32[]', space=smem, size = 0x4, offset = 0x4, fixed_abs, tag = 'smem constant byte address 0x4 - core index']
  #allocation1 [shape = 'u32[144,128]{1,0:T(1,128)}', space=vmem, size = 0x12000, scoped, tag = 'internal scratch']
  #allocation2 [shape = 'f32[128,640]{1,0:T(8,128)}', space=vmem, size = 0x50000, scoped, tag = 'scratch operand']
  #allocation3 [shape = 'f32[128,128]{1,0:T(8,128)}', space=vmem, size = 0x10000, scoped, tag = 'scratch operand']
  %s0 = inlined_call_operand.vmem [shape: bf16[128,640], index: 0, kind: input, shape index: {}]
  %s1 = inlined_call_operand.vmem [shape: f32[1,640], index: 1, kind: input, shape index: {}]
  %s2 = inlined_call_operand.vmem [shape: f32[1,640], index: 2, kind: input, shape index: {}]
  %s3 = inlined_call_operand.vmem [shape: s8[5760,128], index: 3, kind: input, shape index: {}]
  %s4 = inlined_call_operand.vmem [shape: f32[9,1,128], index: 4, kind: input, shape index: {}]
  %s5 = inlined_call_operand.vmem [shape: f32[1,128], index: 5, kind: input, shape index: {}]
  %s6 = inlined_call_operand.vmem [shape: bf16[128,128], index: 6, kind: output, shape index: {}]
  %s7 = sld [smem:[#allocation0]]
  $region69: #{_lambda_.4} parent=0
    _
  %s9 = ssub.s32 1, %s7
  %s10 = scalar_select 0, %s9, %s7
  loop: start=0, step=1, limit=11
  $region2: #{_lambda_.4} parent=0 // loop_pre_header
    _
  $region3: #{_lambda_.4} parent=0 // loop_header
    %s12 = sphi 0, %s16
    %p13 = scmp.ge.s32.totalorder %s12, 11
    %s19 = sphi 0, %s38
    %s20 = sphi 0, %s34
    %s21 = sphi 0, %s30
    %s22 = sphi 0, %s19
    %s23 = sphi 0, %s20
    %s24 = sphi 0, %s21
    %s25 = sphi 0, %s22
    %s26 = sphi 0, %s23
    %s27 = sphi 0, %s24
    %s41 = sphi 0, %s43
    %s44 = sphi 0, %s41
    %s45 = sphi 0, %s44
    %s61 = sphi 0, %s45
    %s65 = sphi 0, %s65
    %s67 = sphi 0, %s65
    %s68 = sphi 0, %s67
    %s82 = sphi 0, %s68
    %s86 = sphi 0, %s86
    %s88 = sphi 0, %s86
    %s89 = sphi 0, %s88
    %s103 = sphi 0, %s89
    %s111 = sphi 0, %s113
    %s114 = sphi 0, %s111
    %s115 = sphi 0, %s114
    %s131 = sphi 0, %s115
    %s139 = sphi 0, %s141
    %s142 = sphi 0, %s139
    %s143 = sphi 0, %s142
    %s159 = sphi 0, %s143
    %s165 = sphi 0, %s167
    %s168 = sphi 0, %s165
    %s169 = sphi 0, %s168
    %s185 = sphi 0, %s169
    %s193 = sphi 0, %s195
    %s196 = sphi 0, %s193
    %s197 = sphi 0, %s196
    %s213 = sphi 0, %s197
  $region4: #{_lambda_.4} parent=0 // loop_header_branch
    %15 = sbr.rel (%p13) target = $region8
  $region5: #{_lambda_.4} parent=0 // loop_body
    %s17 = ssub.s32 %s12, 1
    %s18 = ssub.s32 %s12, 2
    %s28 = sadd.s32 1, %s21
    %p29 = scmp.ge.s32.totalorder %s28, 9
    %s30 = scalar_select %p29, 0, %s28
    %s31 = sadd.s32 1, %s20
    %s32 = scalar_select %p29, %s31, %s20
    %p33 = scmp.ge.s32.totalorder %s32, 1
    %s34 = scalar_select %p33, 0, %s32
    %s35 = sadd.s32 1, %s19
    %s36 = scalar_select %p33, %s35, %s19
    %p37 = scmp.ge.s32.totalorder %s36, 1
    %s38 = scalar_select %p37, 0, %s36
    %s39 = ssub.s32 %s20, %s34
    %p40 = scmp.eq.s32.totalorder %s39, 0
    %s42 = sadd.s32 %s41, 1
    %s43 = scalar_select %p40, %s41, %s42
    %p46 = pneg %p40
    %p47 = scmp.eq.s32.totalorder %s12, 8
    %p48 = por %p46, %p47
    %p49 = scmp.ne.s32.totalorder %s41, %s44
    %p50 = scmp.eq.s32.totalorder %s12, 0
    %p51 = por %p49, %p50
    %p52 = scmp.ne.s32.totalorder %s41, %s44
    %p53 = scmp.eq.s32.totalorder %s17, 8
    %p54 = por %p52, %p53
    %p55 = scmp.ne.s32.totalorder %s44, %s45
    %p56 = scmp.eq.s32.totalorder %s17, 0
    %p57 = por %p55, %p56
    %p58 = scmp.ne.s32.totalorder %s44, %s45
    %p59 = scmp.eq.s32.totalorder %s18, 8
    %p60 = por %p58, %p59
    %p62 = scmp.ne.s32.totalorder %s45, %s61
    %p63 = scmp.eq.s32.totalorder %s18, 0
    %p64 = por %p62, %p63
    %s66 = sadd.s32 %s65, 1
    %p69 = scmp.eq.s32.totalorder %s12, 8
    %p70 = scmp.ne.s32.totalorder %s65, %s67
    %p71 = scmp.eq.s32.totalorder %s12, 0
    %p72 = por %p70, %p71
    %p73 = scmp.ne.s32.totalorder %s65, %s67
    %p74 = scmp.eq.s32.totalorder %s17, 8
    %p75 = por %p73, %p74
    %p76 = scmp.ne.s32.totalorder %s67, %s68
    %p77 = scmp.eq.s32.totalorder %s17, 0
    %p78 = por %p76, %p77
    %p79 = scmp.ne.s32.totalorder %s67, %s68
    %p80 = scmp.eq.s32.totalorder %s18, 8
    %p81 = por %p79, %p80
    %p83 = scmp.ne.s32.totalorder %s68, %s82
    %p84 = scmp.eq.s32.totalorder %s18, 0
    %p85 = por %p83, %p84
    %s87 = sadd.s32 %s86, 1
    %p90 = scmp.eq.s32.totalorder %s12, 8
    %p91 = scmp.ne.s32.totalorder %s86, %s88
    %p92 = scmp.eq.s32.totalorder %s12, 0
    %p93 = por %p91, %p92
    %p94 = scmp.ne.s32.totalorder %s86, %s88
    %p95 = scmp.eq.s32.totalorder %s17, 8
    %p96 = por %p94, %p95
    %p97 = scmp.ne.s32.totalorder %s88, %s89
    %p98 = scmp.eq.s32.totalorder %s17, 0
    %p99 = por %p97, %p98
    %p100 = scmp.ne.s32.totalorder %s88, %s89
    %p101 = scmp.eq.s32.totalorder %s18, 8
    %p102 = por %p100, %p101
    %p104 = scmp.ne.s32.totalorder %s89, %s103
    %p105 = scmp.eq.s32.totalorder %s18, 0
    %p106 = por %p104, %p105
    %s107 = ssub.s32 %s21, %s30
    %s108 = ssub.s32 %s19, %s38
    %s109 = sor.u32 %s107, %s108
    %p110 = scmp.eq.s32.totalorder %s109, 0
    %s112 = sadd.s32 %s111, 1
    %s113 = scalar_select %p110, %s111, %s112
    %p116 = pneg %p110
    %p117 = scmp.eq.s32.totalorder %s12, 8
    %p118 = por %p116, %p117
    %p119 = scmp.ne.s32.totalorder %s111, %s114
    %p120 = scmp.eq.s32.totalorder %s12, 0
    %p121 = por %p119, %p120
    %p122 = scmp.ne.s32.totalorder %s111, %s114
    %p123 = scmp.eq.s32.totalorder %s17, 8
    %p124 = por %p122, %p123
    %p125 = scmp.ne.s32.totalorder %s114, %s115
    %p126 = scmp.eq.s32.totalorder %s17, 0
    %p127 = por %p125, %p126
    %p128 = scmp.ne.s32.totalorder %s114, %s115
    %p129 = scmp.eq.s32.totalorder %s18, 8
    %p130 = por %p128, %p129
    %p132 = scmp.ne.s32.totalorder %s115, %s131
    %p133 = scmp.eq.s32.totalorder %s18, 0
    %p134 = por %p132, %p133
    %s135 = ssub.s32 %s21, %s30
    %s136 = ssub.s32 %s19, %s38
    %s137 = sor.u32 %s135, %s136
    %p138 = scmp.eq.s32.totalorder %s137, 0
    %s140 = sadd.s32 %s139, 1
    %s141 = scalar_select %p138, %s139, %s140
    %p144 = pneg %p138
    %p145 = scmp.eq.s32.totalorder %s12, 8
    %p146 = por %p144, %p145
    %p147 = scmp.ne.s32.totalorder %s139, %s142
    %p148 = scmp.eq.s32.totalorder %s12, 0
    %p149 = por %p147, %p148
    %p150 = scmp.ne.s32.totalorder %s139, %s142
    %p151 = scmp.eq.s32.totalorder %s17, 8
    %p152 = por %p150, %p151
    %p153 = scmp.ne.s32.totalorder %s142, %s143
    %p154 = scmp.eq.s32.totalorder %s17, 0
    %p155 = por %p153, %p154
    %p156 = scmp.ne.s32.totalorder %s142, %s143
    %p157 = scmp.eq.s32.totalorder %s18, 8
    %p158 = por %p156, %p157
    %p160 = scmp.ne.s32.totalorder %s143, %s159
    %p161 = scmp.eq.s32.totalorder %s18, 0
    %p162 = por %p160, %p161
    %s163 = ssub.s32 %s19, %s38
    %p164 = scmp.eq.s32.totalorder %s163, 0
    %s166 = sadd.s32 %s165, 1
    %s167 = scalar_select %p164, %s165, %s166
    %p170 = pneg %p164
    %p171 = scmp.eq.s32.totalorder %s12, 8
    %p172 = por %p170, %p171
    %p173 = scmp.ne.s32.totalorder %s165, %s168
    %p174 = scmp.eq.s32.totalorder %s12, 0
    %p175 = por %p173, %p174
    %p176 = scmp.ne.s32.totalorder %s165, %s168
    %p177 = scmp.eq.s32.totalorder %s17, 8
    %p178 = por %p176, %p177
    %p179 = scmp.ne.s32.totalorder %s168, %s169
    %p180 = scmp.eq.s32.totalorder %s17, 0
    %p181 = por %p179, %p180
    %p182 = scmp.ne.s32.totalorder %s168, %s169
    %p183 = scmp.eq.s32.totalorder %s18, 8
    %p184 = por %p182, %p183
    %p186 = scmp.ne.s32.totalorder %s169, %s185
    %p187 = scmp.eq.s32.totalorder %s18, 0
    %p188 = por %p186, %p187
    %s189 = ssub.s32 %s20, %s34
    %s190 = ssub.s32 %s19, %s38
    %s191 = sor.u32 %s189, %s190
    %p192 = scmp.eq.s32.totalorder %s191, 0
    %s194 = sadd.s32 %s193, 1
    %s195 = scalar_select %p192, %s193, %s194
    %p198 = pneg %p192
    %p199 = scmp.eq.s32.totalorder %s12, 8
    %p200 = por %p198, %p199
    %p201 = scmp.ne.s32.totalorder %s193, %s196
    %p202 = scmp.eq.s32.totalorder %s12, 0
    %p203 = por %p201, %p202
    %p204 = scmp.ne.s32.totalorder %s193, %s196
    %p205 = scmp.eq.s32.totalorder %s17, 8
    %p206 = por %p204, %p205
    %p207 = scmp.ne.s32.totalorder %s196, %s197
    %p208 = scmp.eq.s32.totalorder %s17, 0
    %p209 = por %p207, %p208
    %p210 = scmp.ne.s32.totalorder %s196, %s197
    %p211 = scmp.eq.s32.totalorder %s18, 8
    %p212 = por %p210, %p211
    %p214 = scmp.ne.s32.totalorder %s197, %s213
    %p215 = scmp.eq.s32.totalorder %s18, 0
    %p216 = por %p214, %p215
    %p217 = scmp.le.s32.totalorder 1, %s12
    %p218 = scmp.lt.s32.totalorder %s12, 10
    %p219 = pnand %p217, %p218
    %p220 = pneg %p219
    // Predicated region
    $region9: #{_lambda_.4} parent=5 // pred_check
      _
    $region10: #{_lambda_.4} parent=5 // pred_check_branch
      %222 = sbr.rel (%p219) target = $region12
    $region11: #{_lambda_.4} parent=5 // pred_region
      %s223 = ssub.s32 %s12, 1
      // Predicated region
      $region13: #{_lambda_.4} parent=11 // pred_check
        %p224 = pneg %p57
      $region14: #{_lambda_.4} parent=11 // pred_check_branch
        %226 = sbr.rel (%p224) target = $region16
      $region15: #{_lambda_.4} parent=11 // pred_region
        %s227 = smul.u32 16, %s23
        %p228 = scmp.lt.s32.totalorder %s227, 15
        %s229 = scalar_select %p228, %s227, 15
        %s230 = smul.addr %s229, 5
        %s231 = smul.addr %s230, 4
        %s232 = scalar_lea.vmem %s0, %s231
        %s233 = smul.u32 16, %s23
      $region16: #{_lambda_.4} parent=11 // pred_fallthru
        _
      // Predicated region
      $region17: #{_lambda_.4} parent=11 // pred_check
        %p234 = pneg %p78
      $region18: #{_lambda_.4} parent=11 // pred_check_branch
        %236 = sbr.rel (%p234) target = $region20
      $region19: #{_lambda_.4} parent=11 // pred_region
        _
      $region20: #{_lambda_.4} parent=11 // pred_fallthru
        _
      // Predicated region
      $region21: #{_lambda_.4} parent=11 // pred_check
        %p237 = pneg %p99
      $region22: #{_lambda_.4} parent=11 // pred_check_branch
        %239 = sbr.rel (%p237) target = $region24
      $region23: #{_lambda_.4} parent=11 // pred_region
        _
      $region24: #{_lambda_.4} parent=11 // pred_fallthru
        _
      // Predicated region
      $region25: #{_lambda_.4} parent=11 // pred_check
        %p240 = pneg %p181
      $region26: #{_lambda_.4} parent=11 // pred_check_branch
        %242 = sbr.rel (%p240) target = $region28
      $region27: #{_lambda_.4} parent=11 // pred_region
        %p243 = scmp.lt.s32.totalorder %s22, 0
        %s244 = scalar_select %p243, %s22, 0
        %s245 = scalar_lea.vmem %s5, %s244
      $region28: #{_lambda_.4} parent=11 // pred_fallthru
        _
    $region12: #{_lambda_.4} parent=5 // pred_fallthru
      _
    %p246 = scmp.lt.s32.totalorder %s12, 9
    // Predicated region
    $region29: #{_lambda_.4} parent=5 // pred_check
      %p247 = pneg %p246
    $region30: #{_lambda_.4} parent=5 // pred_check_branch
      %249 = sbr.rel (%p247) target = $region32
    $region31: #{_lambda_.4} parent=5 // pred_region
      // Predicated region
      $region33: #{_lambda_.4} parent=31 // pred_check
        %p250 = pneg %p121
      $region34: #{_lambda_.4} parent=31 // pred_check_branch
        %252 = sbr.rel (%p250) target = $region36
      $region35: #{_lambda_.4} parent=31 // pred_region
        %s253 = smul.u32 20, %s21
        %p254 = scmp.lt.s32.totalorder %s253, 179
        %s255 = scalar_select %p254, %s253, 179
        %p256 = scmp.lt.s32.totalorder %s19, 0
        %s257 = scalar_select %p256, %s19, 0
        %s258 = sadd.s32 %s257, %s255
        %s259 = smul.addr %s258, 8
        %s260 = scalar_lea.vmem %s3, %s259
        %s261 = smul.u32 20, %s21
      $region36: #{_lambda_.4} parent=31 // pred_fallthru
        _
      // Predicated region
      $region37: #{_lambda_.4} parent=31 // pred_check
        %p262 = pneg %p149
      $region38: #{_lambda_.4} parent=31 // pred_check_branch
        %264 = sbr.rel (%p262) target = $region40
      $region39: #{_lambda_.4} parent=31 // pred_region
        %p265 = scmp.lt.s32.totalorder %s21, 8
        %s266 = scalar_select %p265, %s21, 8
        %p267 = scmp.lt.s32.totalorder %s19, 0
        %s268 = scalar_select %p267, %s19, 0
        %s269 = sadd.s32 %s268, %s266
        %s270 = scalar_lea.vmem %s4, %s269
      $region40: #{_lambda_.4} parent=31 // pred_fallthru
        _
    $region32: #{_lambda_.4} parent=5 // pred_fallthru
      _
    %p271 = scmp.le.s32.totalorder 1, %s12
    %p272 = scmp.lt.s32.totalorder %s12, 10
    %p273 = pnand %p271, %p272
    %p274 = pneg %p273
    // Predicated region
    $region41: #{_lambda_.4} parent=5 // pred_check
      _
    $region42: #{_lambda_.4} parent=5 // pred_check_branch
      %276 = sbr.rel (%p273) target = $region44
    $region43: #{_lambda_.4} parent=5 // pred_region
      %s277 = ssub.s32 %s12, 1
      %s278 = smul.u32 16, %s23
      %p279 = scmp.lt.s32.totalorder %s278, 15
      %s280 = scalar_select %p279, %s278, 15
      %s281 = smul.addr %s280, 5
      %s282 = smul.addr %s281, 4
      %s283 = scalar_lea.vmem %s0, %s282
      %p284 = pneg %p57
      %p285 = pneg %p54
      %p286 = pneg %p78
      %p287 = pneg %p75
      %p288 = pneg %p99
      %p289 = pneg %p96
      %s290 = smul.u32 20, %s24
      %p291 = scmp.lt.s32.totalorder %s290, 179
      %s292 = scalar_select %p291, %s290, 179
      %p293 = scmp.lt.s32.totalorder %s22, 0
      %s294 = scalar_select %p293, %s22, 0
      %s295 = sadd.s32 %s294, %s292
      %s296 = smul.addr %s295, 8
      %s297 = scalar_lea.vmem %s3, %s296
      %p298 = pneg %p127
      %p299 = pneg %p124
      %p300 = scmp.lt.s32.totalorder %s24, 8
      %s301 = scalar_select %p300, %s24, 8
      %p302 = scmp.lt.s32.totalorder %s22, 0
      %s303 = scalar_select %p302, %s22, 0
      %s304 = sadd.s32 %s303, %s301
      %s305 = scalar_lea.vmem %s4, %s304
      %p306 = pneg %p155
      %p307 = pneg %p152
      %p308 = scmp.lt.s32.totalorder %s22, 0
      %s309 = scalar_select %p308, %s22, 0
      %s310 = scalar_lea.vmem %s5, %s309
      %p311 = pneg %p181
      %p312 = pneg %p178
      %p313 = pneg %p209
      %p314 = pneg %p206
      %s315 = smul.u32 16, %s23
      %p316 = scmp.lt.s32.totalorder %s315, 15
      %s317 = scalar_select %p316, %s315, 15
      %p318 = scmp.lt.s32.totalorder %s22, 0
      %s319 = scalar_select %p318, %s22, 0
      %s320 = sadd.s32 %s319, %s317
      %s321 = smul.addr %s320, 4
      %s322 = scalar_lea.vmem %s6, %s321
      %s323 = smul.u32 16, %s23
      %p324 = scmp.lt.s32.totalorder %s323, 15
      %s325 = scalar_select %p324, %s323, 15
      %s326 = smul.addr %s325, 5
      %s327 = smul.addr %s326, 4
      %s328 = scalar_lea.vmem %s0, %s327
      %s329 = smul.u32 16, %s23
      %s330 = smul.u32 20, %s24
      %p331 = scmp.lt.s32.totalorder %s330, 179
      %s332 = scalar_select %p331, %s330, 179
      %p333 = scmp.lt.s32.totalorder %s22, 0
      %s334 = scalar_select %p333, %s22, 0
      %s335 = sadd.s32 %s334, %s332
      %s336 = smul.addr %s335, 8
      %s337 = scalar_lea.vmem %s3, %s336
      %s338 = smul.u32 20, %s24
      %p339 = scmp.lt.s32.totalorder %s24, 8
      %s340 = scalar_select %p339, %s24, 8
      %p341 = scmp.lt.s32.totalorder %s22, 0
      %s342 = scalar_select %p341, %s22, 0
      %s343 = sadd.s32 %s342, %s340
      %s344 = scalar_lea.vmem %s4, %s343
      %p345 = scmp.lt.s32.totalorder %s22, 0
      %s346 = scalar_select %p345, %s22, 0
      %s347 = scalar_lea.vmem %s5, %s346
      %s348 = smul.u32 16, %s23
      %p349 = scmp.lt.s32.totalorder %s348, 15
      %s350 = scalar_select %p349, %s348, 15
      %p351 = scmp.lt.s32.totalorder %s22, 0
      %s352 = scalar_select %p351, %s22, 0
      %s353 = sadd.s32 %s352, %s350
      %s354 = smul.addr %s353, 4
      %s355 = scalar_lea.vmem %s6, %s354
      %s356 = smul.u32 16, %s23
      %v358 = vld [vmem:[%s337] sm:$0xff]
      %v359 = vld [vmem:[%s337 + $0x8] sm:$0xff]
      %v360 = vld [vmem:[%s337 + $0x10] sm:$0xff]
      %v361 = vld [vmem:[%s337 + $0x18] sm:$0xff]
      %v362 = vld [vmem:[%s337 + $0x20] sm:$0xff]
      %v363 = vld [vmem:[%s337 + $0x28] sm:$0xff]
      %v364 = vld [vmem:[%s337 + $0x30] sm:$0xff]
      %v365 = vld [vmem:[%s337 + $0x38] sm:$0xff]
      %v366 = vld [vmem:[%s337 + $0x40] sm:$0xff]
      %v367 = vld [vmem:[%s337 + $0x48] sm:$0xff]
      %v368 = vld [vmem:[%s337 + $0x50] sm:$0xff]
      %v369 = vld [vmem:[%s337 + $0x58] sm:$0xff]
      %v370 = vld [vmem:[%s337 + $0x60] sm:$0xff]
      %v371 = vld [vmem:[%s337 + $0x68] sm:$0xff]
      %v372 = vld [vmem:[%s337 + $0x70] sm:$0xff]
      %v373 = vld [vmem:[%s337 + $0x78] sm:$0xff]
      %v374 = vld [vmem:[%s337 + $0x80] sm:$0xff]
      %v375 = vld [vmem:[%s337 + $0x88] sm:$0xff]
      %v376 = vld [vmem:[%s337 + $0x90] sm:$0xff]
      %v377 = vld [vmem:[%s337 + $0x98] sm:$0xff]
      %v378 = vunpack.c.l.s8.bf16 %v358
      %v379 = vunpack.c.h.s8.bf16 %v358
      %v380 = vunpack.c.l.s8.bf16 %v359
      %v381 = vunpack.c.h.s8.bf16 %v359
      %v382 = vunpack.c.l.s8.bf16 %v360
      %v383 = vunpack.c.h.s8.bf16 %v360
      %v384 = vunpack.c.l.s8.bf16 %v361
      %v385 = vunpack.c.h.s8.bf16 %v361
      %v386 = vunpack.c.l.s8.bf16 %v362
      %v387 = vunpack.c.h.s8.bf16 %v362
      %v388 = vunpack.c.l.s8.bf16 %v363
      %v389 = vunpack.c.h.s8.bf16 %v363
      %v390 = vunpack.c.l.s8.bf16 %v364
      %v391 = vunpack.c.h.s8.bf16 %v364
      %v392 = vunpack.c.l.s8.bf16 %v365
      %v393 = vunpack.c.h.s8.bf16 %v365
      %v394 = vunpack.c.l.s8.bf16 %v366
      %v395 = vunpack.c.h.s8.bf16 %v366
      %v396 = vunpack.c.l.s8.bf16 %v367
      %v397 = vunpack.c.h.s8.bf16 %v367
      %v398 = vunpack.c.l.s8.bf16 %v368
      %v399 = vunpack.c.h.s8.bf16 %v368
      %v400 = vunpack.c.l.s8.bf16 %v369
      %v401 = vunpack.c.h.s8.bf16 %v369
      %v402 = vunpack.c.l.s8.bf16 %v370
      %v403 = vunpack.c.h.s8.bf16 %v370
      %v404 = vunpack.c.l.s8.bf16 %v371
      %v405 = vunpack.c.h.s8.bf16 %v371
      %v406 = vunpack.c.l.s8.bf16 %v372
      %v407 = vunpack.c.h.s8.bf16 %v372
      %v408 = vunpack.c.l.s8.bf16 %v373
      %v409 = vunpack.c.h.s8.bf16 %v373
      %v410 = vunpack.c.l.s8.bf16 %v374
      %v411 = vunpack.c.h.s8.bf16 %v374
      %v412 = vunpack.c.l.s8.bf16 %v375
      %v413 = vunpack.c.h.s8.bf16 %v375
      %v414 = vunpack.c.l.s8.bf16 %v376
      %v415 = vunpack.c.h.s8.bf16 %v376
      %v416 = vunpack.c.l.s8.bf16 %v377
      %v417 = vunpack.c.h.s8.bf16 %v377
      %v418 = vld [vmem:[%s344] sm:$0x1]
      %p419 = scmp.eq.s32.totalorder %s24, 0
      // Predicated region
      $region45: #{_lambda_.4} parent=43 // pred_check
        %p420 = pneg %p419
      $region46: #{_lambda_.4} parent=43 // pred_check_branch
        %422 = sbr.rel (%p420) target = $region48
      $region47: #{_lambda_.4} parent=43 // pred_region
        %v423 = vld [vmem:[%s328] sm:$0xff]
        %v424 = vld [vmem:[%s328 + $0x8] sm:$0xff]
        %v425 = vld [vmem:[%s328 + $0x10] sm:$0xf]
        %v426 = vld [vmem:[%s328 + $0x14] sm:$0xff]
        %v427 = vld [vmem:[%s328 + $0x1c] sm:$0xff]
        %v428 = vld [vmem:[%s328 + $0x24] sm:$0xf]
        %v429 = vld [vmem:[%s328 + $0x28] sm:$0xff]
        %v430 = vld [vmem:[%s328 + $0x30] sm:$0xff]
        %v431 = vld [vmem:[%s328 + $0x38] sm:$0xf]
        %v432 = vld [vmem:[%s328 + $0x3c] sm:$0xff]
        %v433 = vld [vmem:[%s328 + $0x44] sm:$0xff]
        %v434 = vld [vmem:[%s328 + $0x4c] sm:$0xf]
        %v435 = vld [vmem:[%s328 + $0x50] sm:$0xff]
        %v436 = vld [vmem:[%s328 + $0x58] sm:$0xff]
        %v437 = vld [vmem:[%s328 + $0x60] sm:$0xf]
        %v438 = vld [vmem:[%s328 + $0x64] sm:$0xff]
        %v439 = vld [vmem:[%s328 + $0x6c] sm:$0xff]
        %v440 = vld [vmem:[%s328 + $0x74] sm:$0xf]
        %v441 = vld [vmem:[%s328 + $0x78] sm:$0xff]
        %v442 = vld [vmem:[%s328 + $0x80] sm:$0xff]
        %v443 = vld [vmem:[%s328 + $0x88] sm:$0xf]
        %v444 = vld [vmem:[%s328 + $0x8c] sm:$0xff]
        %v445 = vld [vmem:[%s328 + $0x94] sm:$0xff]
        %v446 = vld [vmem:[%s328 + $0x9c] sm:$0xf]
        %v447 = vld [vmem:[%s328 + $0xa0] sm:$0xff]
        %v448 = vld [vmem:[%s328 + $0xa8] sm:$0xff]
        %v449 = vld [vmem:[%s328 + $0xb0] sm:$0xf]
        %v450 = vld [vmem:[%s328 + $0xb4] sm:$0xff]
        %v451 = vld [vmem:[%s328 + $0xbc] sm:$0xff]
        %v452 = vld [vmem:[%s328 + $0xc4] sm:$0xf]
        %v453 = vld [vmem:[%s328 + $0xc8] sm:$0xff]
        %v454 = vld [vmem:[%s328 + $0xd0] sm:$0xff]
        %v455 = vld [vmem:[%s328 + $0xd8] sm:$0xf]
        %v456 = vld [vmem:[%s328 + $0xdc] sm:$0xff]
        %v457 = vld [vmem:[%s328 + $0xe4] sm:$0xff]
        %v458 = vld [vmem:[%s328 + $0xec] sm:$0xf]
        %v459 = vld [vmem:[%s328 + $0xf0] sm:$0xff]
        %v460 = vld [vmem:[%s328 + $0xf8] sm:$0xff]
        %v461 = vld [vmem:[%s328 + $0x100] sm:$0xf]
        %v462 = vld [vmem:[%s328 + $0x104] sm:$0xff]
        %v463 = vld [vmem:[%s328 + $0x10c] sm:$0xff]
        %v464 = vld [vmem:[%s328 + $0x114] sm:$0xf]
        %v465 = vld [vmem:[%s328 + $0x118] sm:$0xff]
        %v466 = vld [vmem:[%s328 + $0x120] sm:$0xff]
        %v467 = vld [vmem:[%s328 + $0x128] sm:$0xf]
        %v468 = vld [vmem:[%s328 + $0x12c] sm:$0xff]
        %v469 = vld [vmem:[%s328 + $0x134] sm:$0xff]
        %v470 = vld [vmem:[%s328 + $0x13c] sm:$0xf]
        %v471 = vunpack.c.l.bf16 %v423
        %v472 = vunpack.c.h.bf16 %v423
        %v473 = vunpack.c.l.bf16 %v424
        %v474 = vunpack.c.h.bf16 %v424
        %v475 = vunpack.c.l.bf16 %v425
        %v476 = vunpack.c.l.bf16 %v426
        %v477 = vunpack.c.h.bf16 %v426
        %v478 = vunpack.c.l.bf16 %v427
        %v479 = vunpack.c.h.bf16 %v427
        %v480 = vunpack.c.l.bf16 %v428
        %v481 = vunpack.c.l.bf16 %v429
        %v482 = vunpack.c.h.bf16 %v429
        %v483 = vunpack.c.l.bf16 %v430
        %v484 = vunpack.c.h.bf16 %v430
        %v485 = vunpack.c.l.bf16 %v431
        %v486 = vunpack.c.l.bf16 %v432
        %v487 = vunpack.c.h.bf16 %v432
        %v488 = vunpack.c.l.bf16 %v433
        %v489 = vunpack.c.h.bf16 %v433
        %v490 = vunpack.c.l.bf16 %v434
        %v491 = vunpack.c.l.bf16 %v435
        %v492 = vunpack.c.h.bf16 %v435
        %v493 = vunpack.c.l.bf16 %v436
        %v494 = vunpack.c.h.bf16 %v436
        %v495 = vunpack.c.l.bf16 %v437
        %v496 = vunpack.c.l.bf16 %v438
        %v497 = vunpack.c.h.bf16 %v438
        %v498 = vunpack.c.l.bf16 %v439
        %v499 = vunpack.c.h.bf16 %v439
        %v500 = vunpack.c.l.bf16 %v440
        %v501 = vunpack.c.l.bf16 %v441
        %v502 = vunpack.c.h.bf16 %v441
        %v503 = vunpack.c.l.bf16 %v442
        %v504 = vunpack.c.h.bf16 %v442
        %v505 = vunpack.c.l.bf16 %v443
        %v506 = vunpack.c.l.bf16 %v444
        %v507 = vunpack.c.h.bf16 %v444
        %v508 = vunpack.c.l.bf16 %v445
        %v509 = vunpack.c.h.bf16 %v445
        %v510 = vunpack.c.l.bf16 %v446
        %v511 = vunpack.c.l.bf16 %v447
        %v512 = vunpack.c.h.bf16 %v447
        %v513 = vunpack.c.l.bf16 %v448
        %v514 = vunpack.c.h.bf16 %v448
        %v515 = vunpack.c.l.bf16 %v449
        %v516 = vunpack.c.l.bf16 %v450
        %v517 = vunpack.c.h.bf16 %v450
        %v518 = vunpack.c.l.bf16 %v451
        %v519 = vunpack.c.h.bf16 %v451
        %v520 = vunpack.c.l.bf16 %v452
        %v521 = vunpack.c.l.bf16 %v453
        %v522 = vunpack.c.h.bf16 %v453
        %v523 = vunpack.c.l.bf16 %v454
        %v524 = vunpack.c.h.bf16 %v454
        %v525 = vunpack.c.l.bf16 %v455
        %v526 = vunpack.c.l.bf16 %v456
        %v527 = vunpack.c.h.bf16 %v456
        %v528 = vunpack.c.l.bf16 %v457
        %v529 = vunpack.c.h.bf16 %v457
        %v530 = vunpack.c.l.bf16 %v458
        %v531 = vunpack.c.l.bf16 %v459
        %v532 = vunpack.c.h.bf16 %v459
        %v533 = vunpack.c.l.bf16 %v460
        %v534 = vunpack.c.h.bf16 %v460
        %v535 = vunpack.c.l.bf16 %v461
        %v536 = vunpack.c.l.bf16 %v462
        %v537 = vunpack.c.h.bf16 %v462
        %v538 = vunpack.c.l.bf16 %v463
        %v539 = vunpack.c.h.bf16 %v463
        %v540 = vunpack.c.l.bf16 %v464
        %v541 = vunpack.c.l.bf16 %v465
        %v542 = vunpack.c.h.bf16 %v465
        %v543 = vunpack.c.l.bf16 %v466
        %v544 = vunpack.c.h.bf16 %v466
        %v545 = vunpack.c.l.bf16 %v467
        %v546 = vunpack.c.l.bf16 %v468
        %v547 = vunpack.c.h.bf16 %v468
        %v548 = vunpack.c.l.bf16 %v469
        %v549 = vunpack.c.h.bf16 %v469
        %v550 = vunpack.c.l.bf16 %v470
        %v551 = vlaneseq
        %v552 = vand.u32 %v551, 127
        %v553 = vadd.s32 %v552, 128
        %v554 = vadd.s32 %v552, 256
        %v555 = vadd.s32 %v552, 384
        %v556 = vadd.s32 %v552, 512
        %vm557 = vcmp.lt.s32.totalorder %v552, 576
        %vm558 = vcmp.lt.s32.totalorder %v553, 576
        %vm559 = vcmp.lt.s32.totalorder %v554, 576
        %vm560 = vcmp.lt.s32.totalorder %v555, 576
        %vm561 = vcmp.lt.s32.totalorder %v556, 576
        %v562 = vadd.f32 %v471, %v472
        %v563 = vadd.f32 %v562, %v473
        %v564 = vadd.f32 %v563, %v474
        %v565 = vadd.f32 %v564, %v475
        %566 = vadd.xlane.f32.xlu0 %v565
        %v567 = vpop.xlane.xlu0 %566
        %v568 = vadd.f32 %v476, %v477
        %v569 = vadd.f32 %v568, %v478
        %v570 = vadd.f32 %v569, %v479
        %v571 = vadd.f32 %v570, %v480
        %572 = vadd.xlane.f32.xlu0 %v571
        %v573 = vpop.xlane.xlu0 %572
        %v574 = vadd.f32 %v481, %v482
        %v575 = vadd.f32 %v574, %v483
        %v576 = vadd.f32 %v575, %v484
        %v577 = vadd.f32 %v576, %v485
        %578 = vadd.xlane.f32.xlu0 %v577
        %v579 = vpop.xlane.xlu0 %578
        %v580 = vadd.f32 %v486, %v487
        %v581 = vadd.f32 %v580, %v488
        %v582 = vadd.f32 %v581, %v489
        %v583 = vadd.f32 %v582, %v490
        %584 = vadd.xlane.f32.xlu0 %v583
        %v585 = vpop.xlane.xlu0 %584
        %v586 = vadd.f32 %v491, %v492
        %v587 = vadd.f32 %v586, %v493
        %v588 = vadd.f32 %v587, %v494
        %v589 = vadd.f32 %v588, %v495
        %590 = vadd.xlane.f32.xlu0 %v589
        %v591 = vpop.xlane.xlu0 %590
        %v592 = vadd.f32 %v496, %v497
        %v593 = vadd.f32 %v592, %v498
        %v594 = vadd.f32 %v593, %v499
        %v595 = vadd.f32 %v594, %v500
        %596 = vadd.xlane.f32.xlu0 %v595
        %v597 = vpop.xlane.xlu0 %596
        %v598 = vadd.f32 %v501, %v502
        %v599 = vadd.f32 %v598, %v503
        %v600 = vadd.f32 %v599, %v504
        %v601 = vadd.f32 %v600, %v505
        %602 = vadd.xlane.f32.xlu0 %v601
        %v603 = vpop.xlane.xlu0 %602
        %v604 = vadd.f32 %v506, %v507
        %v605 = vadd.f32 %v604, %v508
        %v606 = vadd.f32 %v605, %v509
        %v607 = vadd.f32 %v606, %v510
        %608 = vadd.xlane.f32.xlu0 %v607
        %v609 = vpop.xlane.xlu0 %608
        %v610 = vadd.f32 %v511, %v512
        %v611 = vadd.f32 %v610, %v513
        %v612 = vadd.f32 %v611, %v514
        %v613 = vadd.f32 %v612, %v515
        %614 = vadd.xlane.f32.xlu0 %v613
        %v615 = vpop.xlane.xlu0 %614
        %v616 = vadd.f32 %v516, %v517
        %v617 = vadd.f32 %v616, %v518
        %v618 = vadd.f32 %v617, %v519
        %v619 = vadd.f32 %v618, %v520
        %620 = vadd.xlane.f32.xlu0 %v619
        %v621 = vpop.xlane.xlu0 %620
        %v622 = vadd.f32 %v521, %v522
        %v623 = vadd.f32 %v622, %v523
        %v624 = vadd.f32 %v623, %v524
        %v625 = vadd.f32 %v624, %v525
        %626 = vadd.xlane.f32.xlu0 %v625
        %v627 = vpop.xlane.xlu0 %626
        %v628 = vadd.f32 %v526, %v527
        %v629 = vadd.f32 %v628, %v528
        %v630 = vadd.f32 %v629, %v529
        %v631 = vadd.f32 %v630, %v530
        %632 = vadd.xlane.f32.xlu0 %v631
        %v633 = vpop.xlane.xlu0 %632
        %v634 = vadd.f32 %v531, %v532
        %v635 = vadd.f32 %v634, %v533
        %v636 = vadd.f32 %v635, %v534
        %v637 = vadd.f32 %v636, %v535
        %638 = vadd.xlane.f32.xlu0 %v637
        %v639 = vpop.xlane.xlu0 %638
        %v640 = vadd.f32 %v536, %v537
        %v641 = vadd.f32 %v640, %v538
        %v642 = vadd.f32 %v641, %v539
        %v643 = vadd.f32 %v642, %v540
        %644 = vadd.xlane.f32.xlu0 %v643
        %v645 = vpop.xlane.xlu0 %644
        %v646 = vadd.f32 %v541, %v542
        %v647 = vadd.f32 %v646, %v543
        %v648 = vadd.f32 %v647, %v544
        %v649 = vadd.f32 %v648, %v545
        %650 = vadd.xlane.f32.xlu0 %v649
        %v651 = vpop.xlane.xlu0 %650
        %v652 = vadd.f32 %v546, %v547
        %v653 = vadd.f32 %v652, %v548
        %v654 = vadd.f32 %v653, %v549
        %v655 = vadd.f32 %v654, %v550
        %656 = vadd.xlane.f32.xlu0 %v655
        %v657 = vpop.xlane.xlu0 %656
        %v658 = vmul.f32 %v567, 0.0017361111
        %v659 = vmul.f32 %v573, 0.0017361111
        %v660 = vmul.f32 %v579, 0.0017361111
        %v661 = vmul.f32 %v585, 0.0017361111
        %v662 = vmul.f32 %v591, 0.0017361111
        %v663 = vmul.f32 %v597, 0.0017361111
        %v664 = vmul.f32 %v603, 0.0017361111
        %v665 = vmul.f32 %v609, 0.0017361111
        %v666 = vmul.f32 %v615, 0.0017361111
        %v667 = vmul.f32 %v621, 0.0017361111
        %v668 = vmul.f32 %v627, 0.0017361111
        %v669 = vmul.f32 %v633, 0.0017361111
        %v670 = vmul.f32 %v639, 0.0017361111
        %v671 = vmul.f32 %v645, 0.0017361111
        %v672 = vmul.f32 %v651, 0.0017361111
        %v673 = vmul.f32 %v657, 0.0017361111
        %v674 = vsub.f32 %v471, %v658
        %v675 = vsub.f32 %v472, %v658
        %v676 = vsub.f32 %v473, %v658
        %v677 = vsub.f32 %v474, %v658
        %v678 = vsub.f32 %v475, %v658
        %v679 = vsub.f32 %v476, %v659
        %v680 = vsub.f32 %v477, %v659
        %v681 = vsub.f32 %v478, %v659
        %v682 = vsub.f32 %v479, %v659
        %v683 = vsub.f32 %v480, %v659
        %v684 = vsub.f32 %v481, %v660
        %v685 = vsub.f32 %v482, %v660
        %v686 = vsub.f32 %v483, %v660
        %v687 = vsub.f32 %v484, %v660
        %v688 = vsub.f32 %v485, %v660
        %v689 = vsub.f32 %v486, %v661
        %v690 = vsub.f32 %v487, %v661
        %v691 = vsub.f32 %v488, %v661
        %v692 = vsub.f32 %v489, %v661
        %v693 = vsub.f32 %v490, %v661
        %v694 = vsub.f32 %v491, %v662
        %v695 = vsub.f32 %v492, %v662
        %v696 = vsub.f32 %v493, %v662
        %v697 = vsub.f32 %v494, %v662
        %v698 = vsub.f32 %v495, %v662
        %v699 = vsub.f32 %v496, %v663
        %v700 = vsub.f32 %v497, %v663
        %v701 = vsub.f32 %v498, %v663
        %v702 = vsub.f32 %v499, %v663
        %v703 = vsub.f32 %v500, %v663
        %v704 = vsub.f32 %v501, %v664
        %v705 = vsub.f32 %v502, %v664
        %v706 = vsub.f32 %v503, %v664
        %v707 = vsub.f32 %v504, %v664
        %v708 = vsub.f32 %v505, %v664
        %v709 = vsub.f32 %v506, %v665
        %v710 = vsub.f32 %v507, %v665
        %v711 = vsub.f32 %v508, %v665
        %v712 = vsub.f32 %v509, %v665
        %v713 = vsub.f32 %v510, %v665
        %v714 = vsub.f32 %v511, %v666
        %v715 = vsub.f32 %v512, %v666
        %v716 = vsub.f32 %v513, %v666
        %v717 = vsub.f32 %v514, %v666
        %v718 = vsub.f32 %v515, %v666
        %v719 = vsub.f32 %v516, %v667
        %v720 = vsub.f32 %v517, %v667
        %v721 = vsub.f32 %v518, %v667
        %v722 = vsub.f32 %v519, %v667
        %v723 = vsub.f32 %v520, %v667
        %v724 = vsub.f32 %v521, %v668
        %v725 = vsub.f32 %v522, %v668
        %v726 = vsub.f32 %v523, %v668
        %v727 = vsub.f32 %v524, %v668
        %v728 = vsub.f32 %v525, %v668
        %v729 = vsub.f32 %v526, %v669
        %v730 = vsub.f32 %v527, %v669
        %v731 = vsub.f32 %v528, %v669
        %v732 = vsub.f32 %v529, %v669
        %v733 = vsub.f32 %v530, %v669
        %v734 = vsub.f32 %v531, %v670
        %v735 = vsub.f32 %v532, %v670
        %v736 = vsub.f32 %v533, %v670
        %v737 = vsub.f32 %v534, %v670
        %v738 = vsub.f32 %v535, %v670
        %v739 = vsub.f32 %v536, %v671
        %v740 = vsub.f32 %v537, %v671
        %v741 = vsub.f32 %v538, %v671
        %v742 = vsub.f32 %v539, %v671
        %v743 = vsub.f32 %v540, %v671
        %v744 = vsub.f32 %v541, %v672
        %v745 = vsub.f32 %v542, %v672
        %v746 = vsub.f32 %v543, %v672
        %v747 = vsub.f32 %v544, %v672
        %v748 = vsub.f32 %v545, %v672
        %v749 = vsub.f32 %v546, %v673
        %v750 = vsub.f32 %v547, %v673
        %v751 = vsub.f32 %v548, %v673
        %v752 = vsub.f32 %v549, %v673
        %v753 = vsub.f32 %v550, %v673
        %v754 = vsel %vm557, %v674, 0.0
        %v755 = vsel %vm558, %v675, 0.0
        %v756 = vsel %vm559, %v676, 0.0
        %v757 = vsel %vm560, %v677, 0.0
        %v758 = vsel %vm561, %v678, 0.0
        %v759 = vsel %vm557, %v679, 0.0
        %v760 = vsel %vm558, %v680, 0.0
        %v761 = vsel %vm559, %v681, 0.0
        %v762 = vsel %vm560, %v682, 0.0
        %v763 = vsel %vm561, %v683, 0.0
        %v764 = vsel %vm557, %v684, 0.0
        %v765 = vsel %vm558, %v685, 0.0
        %v766 = vsel %vm559, %v686, 0.0
        %v767 = vsel %vm560, %v687, 0.0
        %v768 = vsel %vm561, %v688, 0.0
        %v769 = vsel %vm557, %v689, 0.0
        %v770 = vsel %vm558, %v690, 0.0
        %v771 = vsel %vm559, %v691, 0.0
        %v772 = vsel %vm560, %v692, 0.0
        %v773 = vsel %vm561, %v693, 0.0
        %v774 = vsel %vm557, %v694, 0.0
        %v775 = vsel %vm558, %v695, 0.0
        %v776 = vsel %vm559, %v696, 0.0
        %v777 = vsel %vm560, %v697, 0.0
        %v778 = vsel %vm561, %v698, 0.0
        %v779 = vsel %vm557, %v699, 0.0
        %v780 = vsel %vm558, %v700, 0.0
        %v781 = vsel %vm559, %v701, 0.0
        %v782 = vsel %vm560, %v702, 0.0
        %v783 = vsel %vm561, %v703, 0.0
        %v784 = vsel %vm557, %v704, 0.0
        %v785 = vsel %vm558, %v705, 0.0
        %v786 = vsel %vm559, %v706, 0.0
        %v787 = vsel %vm560, %v707, 0.0
        %v788 = vsel %vm561, %v708, 0.0
        %v789 = vsel %vm557, %v709, 0.0
        %v790 = vsel %vm558, %v710, 0.0
        %v791 = vsel %vm559, %v711, 0.0
        %v792 = vsel %vm560, %v712, 0.0
        %v793 = vsel %vm561, %v713, 0.0
        %v794 = vsel %vm557, %v714, 0.0
        %v795 = vsel %vm558, %v715, 0.0
        %v796 = vsel %vm559, %v716, 0.0
        %v797 = vsel %vm560, %v717, 0.0
        %v798 = vsel %vm561, %v718, 0.0
        %v799 = vsel %vm557, %v719, 0.0
        %v800 = vsel %vm558, %v720, 0.0
        %v801 = vsel %vm559, %v721, 0.0
        %v802 = vsel %vm560, %v722, 0.0
        %v803 = vsel %vm561, %v723, 0.0
        %v804 = vsel %vm557, %v724, 0.0
        %v805 = vsel %vm558, %v725, 0.0
        %v806 = vsel %vm559, %v726, 0.0
        %v807 = vsel %vm560, %v727, 0.0
        %v808 = vsel %vm561, %v728, 0.0
        %v809 = vsel %vm557, %v729, 0.0
        %v810 = vsel %vm558, %v730, 0.0
        %v811 = vsel %vm559, %v731, 0.0
        %v812 = vsel %vm560, %v732, 0.0
        %v813 = vsel %vm561, %v733, 0.0
        %v814 = vsel %vm557, %v734, 0.0
        %v815 = vsel %vm558, %v735, 0.0
        %v816 = vsel %vm559, %v736, 0.0
        %v817 = vsel %vm560, %v737, 0.0
        %v818 = vsel %vm561, %v738, 0.0
        %v819 = vsel %vm557, %v739, 0.0
        %v820 = vsel %vm558, %v740, 0.0
        %v821 = vsel %vm559, %v741, 0.0
        %v822 = vsel %vm560, %v742, 0.0
        %v823 = vsel %vm561, %v743, 0.0
        %v824 = vsel %vm557, %v744, 0.0
        %v825 = vsel %vm558, %v745, 0.0
        %v826 = vsel %vm559, %v746, 0.0
        %v827 = vsel %vm560, %v747, 0.0
        %v828 = vsel %vm561, %v748, 0.0
        %v829 = vsel %vm557, %v749, 0.0
        %v830 = vsel %vm558, %v750, 0.0
        %v831 = vsel %vm559, %v751, 0.0
        %v832 = vsel %vm560, %v752, 0.0
        %v833 = vsel %vm561, %v753, 0.0
        %v834 = vmul.f32 %v754, %v754
        %v835 = vmul.f32 %v755, %v755
        %v836 = vmul.f32 %v756, %v756
        %v837 = vmul.f32 %v757, %v757
        %v838 = vmul.f32 %v758, %v758
        %v839 = vmul.f32 %v759, %v759
        %v840 = vmul.f32 %v760, %v760
        %v841 = vmul.f32 %v761, %v761
        %v842 = vmul.f32 %v762, %v762
        %v843 = vmul.f32 %v763, %v763
        %v844 = vmul.f32 %v764, %v764
        %v845 = vmul.f32 %v765, %v765
        %v846 = vmul.f32 %v766, %v766
        %v847 = vmul.f32 %v767, %v767
        %v848 = vmul.f32 %v768, %v768
        %v849 = vmul.f32 %v769, %v769
        %v850 = vmul.f32 %v770, %v770
        %v851 = vmul.f32 %v771, %v771
        %v852 = vmul.f32 %v772, %v772
        %v853 = vmul.f32 %v773, %v773
        %v854 = vmul.f32 %v774, %v774
        %v855 = vmul.f32 %v775, %v775
        %v856 = vmul.f32 %v776, %v776
        %v857 = vmul.f32 %v777, %v777
        %v858 = vmul.f32 %v778, %v778
        %v859 = vmul.f32 %v779, %v779
        %v860 = vmul.f32 %v780, %v780
        %v861 = vmul.f32 %v781, %v781
        %v862 = vmul.f32 %v782, %v782
        %v863 = vmul.f32 %v783, %v783
        %v864 = vmul.f32 %v784, %v784
        %v865 = vmul.f32 %v785, %v785
        %v866 = vmul.f32 %v786, %v786
        %v867 = vmul.f32 %v787, %v787
        %v868 = vmul.f32 %v788, %v788
        %v869 = vmul.f32 %v789, %v789
        %v870 = vmul.f32 %v790, %v790
        %v871 = vmul.f32 %v791, %v791
        %v872 = vmul.f32 %v792, %v792
        %v873 = vmul.f32 %v793, %v793
        %v874 = vmul.f32 %v794, %v794
        %v875 = vmul.f32 %v795, %v795
        %v876 = vmul.f32 %v796, %v796
        %v877 = vmul.f32 %v797, %v797
        %v878 = vmul.f32 %v798, %v798
        %v879 = vmul.f32 %v799, %v799
        %v880 = vmul.f32 %v800, %v800
        %v881 = vmul.f32 %v801, %v801
        %v882 = vmul.f32 %v802, %v802
        %v883 = vmul.f32 %v803, %v803
        %v884 = vmul.f32 %v804, %v804
        %v885 = vmul.f32 %v805, %v805
        %v886 = vmul.f32 %v806, %v806
        %v887 = vmul.f32 %v807, %v807
        %v888 = vmul.f32 %v808, %v808
        %v889 = vmul.f32 %v809, %v809
        %v890 = vmul.f32 %v810, %v810
        %v891 = vmul.f32 %v811, %v811
        %v892 = vmul.f32 %v812, %v812
        %v893 = vmul.f32 %v813, %v813
        %v894 = vmul.f32 %v814, %v814
        %v895 = vmul.f32 %v815, %v815
        %v896 = vmul.f32 %v816, %v816
        %v897 = vmul.f32 %v817, %v817
        %v898 = vmul.f32 %v818, %v818
        %v899 = vmul.f32 %v819, %v819
        %v900 = vmul.f32 %v820, %v820
        %v901 = vmul.f32 %v821, %v821
        %v902 = vmul.f32 %v822, %v822
        %v903 = vmul.f32 %v823, %v823
        %v904 = vmul.f32 %v824, %v824
        %v905 = vmul.f32 %v825, %v825
        %v906 = vmul.f32 %v826, %v826
        %v907 = vmul.f32 %v827, %v827
        %v908 = vmul.f32 %v828, %v828
        %v909 = vmul.f32 %v829, %v829
        %v910 = vmul.f32 %v830, %v830
        %v911 = vmul.f32 %v831, %v831
        %v912 = vmul.f32 %v832, %v832
        %v913 = vmul.f32 %v833, %v833
        %v914 = vadd.f32 %v834, %v835
        %v915 = vadd.f32 %v914, %v836
        %v916 = vadd.f32 %v915, %v837
        %v917 = vadd.f32 %v916, %v838
        %918 = vadd.xlane.f32.xlu0 %v917
        %v919 = vpop.xlane.xlu0 %918
        %v920 = vadd.f32 %v839, %v840
        %v921 = vadd.f32 %v920, %v841
        %v922 = vadd.f32 %v921, %v842
        %v923 = vadd.f32 %v922, %v843
        %924 = vadd.xlane.f32.xlu0 %v923
        %v925 = vpop.xlane.xlu0 %924
        %v926 = vadd.f32 %v844, %v845
        %v927 = vadd.f32 %v926, %v846
        %v928 = vadd.f32 %v927, %v847
        %v929 = vadd.f32 %v928, %v848
        %930 = vadd.xlane.f32.xlu0 %v929
        %v931 = vpop.xlane.xlu0 %930
        %v932 = vadd.f32 %v849, %v850
        %v933 = vadd.f32 %v932, %v851
        %v934 = vadd.f32 %v933, %v852
        %v935 = vadd.f32 %v934, %v853
        %936 = vadd.xlane.f32.xlu0 %v935
        %v937 = vpop.xlane.xlu0 %936
        %v938 = vadd.f32 %v854, %v855
        %v939 = vadd.f32 %v938, %v856
        %v940 = vadd.f32 %v939, %v857
        %v941 = vadd.f32 %v940, %v858
        %942 = vadd.xlane.f32.xlu0 %v941
        %v943 = vpop.xlane.xlu0 %942
        %v944 = vadd.f32 %v859, %v860
        %v945 = vadd.f32 %v944, %v861
        %v946 = vadd.f32 %v945, %v862
        %v947 = vadd.f32 %v946, %v863
        %948 = vadd.xlane.f32.xlu0 %v947
        %v949 = vpop.xlane.xlu0 %948
        %v950 = vadd.f32 %v864, %v865
        %v951 = vadd.f32 %v950, %v866
        %v952 = vadd.f32 %v951, %v867
        %v953 = vadd.f32 %v952, %v868
        %954 = vadd.xlane.f32.xlu0 %v953
        %v955 = vpop.xlane.xlu0 %954
        %v956 = vadd.f32 %v869, %v870
        %v957 = vadd.f32 %v956, %v871
        %v958 = vadd.f32 %v957, %v872
        %v959 = vadd.f32 %v958, %v873
        %960 = vadd.xlane.f32.xlu0 %v959
        %v961 = vpop.xlane.xlu0 %960
        %v962 = vadd.f32 %v874, %v875
        %v963 = vadd.f32 %v962, %v876
        %v964 = vadd.f32 %v963, %v877
        %v965 = vadd.f32 %v964, %v878
        %966 = vadd.xlane.f32.xlu0 %v965
        %v967 = vpop.xlane.xlu0 %966
        %v968 = vadd.f32 %v879, %v880
        %v969 = vadd.f32 %v968, %v881
        %v970 = vadd.f32 %v969, %v882
        %v971 = vadd.f32 %v970, %v883
        %972 = vadd.xlane.f32.xlu0 %v971
        %v973 = vpop.xlane.xlu0 %972
        %v974 = vadd.f32 %v884, %v885
        %v975 = vadd.f32 %v974, %v886
        %v976 = vadd.f32 %v975, %v887
        %v977 = vadd.f32 %v976, %v888
        %978 = vadd.xlane.f32.xlu0 %v977
        %v979 = vpop.xlane.xlu0 %978
        %v980 = vadd.f32 %v889, %v890
        %v981 = vadd.f32 %v980, %v891
        %v982 = vadd.f32 %v981, %v892
        %v983 = vadd.f32 %v982, %v893
        %984 = vadd.xlane.f32.xlu0 %v983
        %v985 = vpop.xlane.xlu0 %984
        %v986 = vadd.f32 %v894, %v895
        %v987 = vadd.f32 %v986, %v896
        %v988 = vadd.f32 %v987, %v897
        %v989 = vadd.f32 %v988, %v898
        %990 = vadd.xlane.f32.xlu0 %v989
        %v991 = vpop.xlane.xlu0 %990
        %v992 = vadd.f32 %v899, %v900
        %v993 = vadd.f32 %v992, %v901
        %v994 = vadd.f32 %v993, %v902
        %v995 = vadd.f32 %v994, %v903
        %996 = vadd.xlane.f32.xlu0 %v995
        %v997 = vpop.xlane.xlu0 %996
        %v998 = vadd.f32 %v904, %v905
        %v999 = vadd.f32 %v998, %v906
        %v1000 = vadd.f32 %v999, %v907
        %v1001 = vadd.f32 %v1000, %v908
        %1002 = vadd.xlane.f32.xlu0 %v1001
        %v1003 = vpop.xlane.xlu0 %1002
        %v1004 = vadd.f32 %v909, %v910
        %v1005 = vadd.f32 %v1004, %v911
        %v1006 = vadd.f32 %v1005, %v912
        %v1007 = vadd.f32 %v1006, %v913
        %1008 = vadd.xlane.f32.xlu0 %v1007
        %v1009 = vpop.xlane.xlu0 %1008
        %v1010 = vmul.f32 %v919, 0.0017361111
        %v1011 = vmul.f32 %v925, 0.0017361111
        %v1012 = vmul.f32 %v931, 0.0017361111
        %v1013 = vmul.f32 %v937, 0.0017361111
        %v1014 = vmul.f32 %v943, 0.0017361111
        %v1015 = vmul.f32 %v949, 0.0017361111
        %v1016 = vmul.f32 %v955, 0.0017361111
        %v1017 = vmul.f32 %v961, 0.0017361111
        %v1018 = vmul.f32 %v967, 0.0017361111
        %v1019 = vmul.f32 %v973, 0.0017361111
        %v1020 = vmul.f32 %v979, 0.0017361111
        %v1021 = vmul.f32 %v985, 0.0017361111
        %v1022 = vmul.f32 %v991, 0.0017361111
        %v1023 = vmul.f32 %v997, 0.0017361111
        %v1024 = vmul.f32 %v1003, 0.0017361111
        %v1025 = vmul.f32 %v1009, 0.0017361111
        %v1026 = vadd.f32 %v1010, 1e-05
        %v1027 = vadd.f32 %v1011, 1e-05
        %v1028 = vadd.f32 %v1012, 1e-05
        %v1029 = vadd.f32 %v1013, 1e-05
        %v1030 = vadd.f32 %v1014, 1e-05
        %v1031 = vadd.f32 %v1015, 1e-05
        %v1032 = vadd.f32 %v1016, 1e-05
        %v1033 = vadd.f32 %v1017, 1e-05
        %v1034 = vadd.f32 %v1018, 1e-05
        %v1035 = vadd.f32 %v1019, 1e-05
        %v1036 = vadd.f32 %v1020, 1e-05
        %v1037 = vadd.f32 %v1021, 1e-05
        %v1038 = vadd.f32 %v1022, 1e-05
        %v1039 = vadd.f32 %v1023, 1e-05
        %v1040 = vadd.f32 %v1024, 1e-05
        %v1041 = vadd.f32 %v1025, 1e-05
        %v1042 = vrsqrt.pop %v1026
        %v1043 = vrsqrt.pop %v1027
        %v1044 = vrsqrt.pop %v1028
        %v1045 = vrsqrt.pop %v1029
        %v1046 = vrsqrt.pop %v1030
        %v1047 = vrsqrt.pop %v1031
        %v1048 = vrsqrt.pop %v1032
        %v1049 = vrsqrt.pop %v1033
        %v1050 = vrsqrt.pop %v1034
        %v1051 = vrsqrt.pop %v1035
        %v1052 = vrsqrt.pop %v1036
        %v1053 = vrsqrt.pop %v1037
        %v1054 = vrsqrt.pop %v1038
        %v1055 = vrsqrt.pop %v1039
        %v1056 = vrsqrt.pop %v1040
        %v1057 = vrsqrt.pop %v1041
        %v1058 = vmul.f32 %v754, %v1042
        %v1059 = vmul.f32 %v755, %v1042
        %v1060 = vmul.f32 %v756, %v1042
        %v1061 = vmul.f32 %v757, %v1042
        %v1062 = vmul.f32 %v758, %v1042
        %v1063 = vmul.f32 %v759, %v1043
        %v1064 = vmul.f32 %v760, %v1043
        %v1065 = vmul.f32 %v761, %v1043
        %v1066 = vmul.f32 %v762, %v1043
        %v1067 = vmul.f32 %v763, %v1043
        %v1068 = vmul.f32 %v764, %v1044
        %v1069 = vmul.f32 %v765, %v1044
        %v1070 = vmul.f32 %v766, %v1044
        %v1071 = vmul.f32 %v767, %v1044
        %v1072 = vmul.f32 %v768, %v1044
        %v1073 = vmul.f32 %v769, %v1045
        %v1074 = vmul.f32 %v770, %v1045
        %v1075 = vmul.f32 %v771, %v1045
        %v1076 = vmul.f32 %v772, %v1045
        %v1077 = vmul.f32 %v773, %v1045
        %v1078 = vmul.f32 %v774, %v1046
        %v1079 = vmul.f32 %v775, %v1046
        %v1080 = vmul.f32 %v776, %v1046
        %v1081 = vmul.f32 %v777, %v1046
        %v1082 = vmul.f32 %v778, %v1046
        %v1083 = vmul.f32 %v779, %v1047
        %v1084 = vmul.f32 %v780, %v1047
        %v1085 = vmul.f32 %v781, %v1047
        %v1086 = vmul.f32 %v782, %v1047
        %v1087 = vmul.f32 %v783, %v1047
        %v1088 = vmul.f32 %v784, %v1048
        %v1089 = vmul.f32 %v785, %v1048
        %v1090 = vmul.f32 %v786, %v1048
        %v1091 = vmul.f32 %v787, %v1048
        %v1092 = vmul.f32 %v788, %v1048
        %v1093 = vmul.f32 %v789, %v1049
        %v1094 = vmul.f32 %v790, %v1049
        %v1095 = vmul.f32 %v791, %v1049
        %v1096 = vmul.f32 %v792, %v1049
        %v1097 = vmul.f32 %v793, %v1049
        %v1098 = vmul.f32 %v794, %v1050
        %v1099 = vmul.f32 %v795, %v1050
        %v1100 = vmul.f32 %v796, %v1050
        %v1101 = vmul.f32 %v797, %v1050
        %v1102 = vmul.f32 %v798, %v1050
        %v1103 = vmul.f32 %v799, %v1051
        %v1104 = vmul.f32 %v800, %v1051
        %v1105 = vmul.f32 %v801, %v1051
        %v1106 = vmul.f32 %v802, %v1051
        %v1107 = vmul.f32 %v803, %v1051
        %v1108 = vmul.f32 %v804, %v1052
        %v1109 = vmul.f32 %v805, %v1052
        %v1110 = vmul.f32 %v806, %v1052
        %v1111 = vmul.f32 %v807, %v1052
        %v1112 = vmul.f32 %v808, %v1052
        %v1113 = vmul.f32 %v809, %v1053
        %v1114 = vmul.f32 %v810, %v1053
        %v1115 = vmul.f32 %v811, %v1053
        %v1116 = vmul.f32 %v812, %v1053
        %v1117 = vmul.f32 %v813, %v1053
        %v1118 = vmul.f32 %v814, %v1054
        %v1119 = vmul.f32 %v815, %v1054
        %v1120 = vmul.f32 %v816, %v1054
        %v1121 = vmul.f32 %v817, %v1054
        %v1122 = vmul.f32 %v818, %v1054
        %v1123 = vmul.f32 %v819, %v1055
        %v1124 = vmul.f32 %v820, %v1055
        %v1125 = vmul.f32 %v821, %v1055
        %v1126 = vmul.f32 %v822, %v1055
        %v1127 = vmul.f32 %v823, %v1055
        %v1128 = vmul.f32 %v824, %v1056
        %v1129 = vmul.f32 %v825, %v1056
        %v1130 = vmul.f32 %v826, %v1056
        %v1131 = vmul.f32 %v827, %v1056
        %v1132 = vmul.f32 %v828, %v1056
        %v1133 = vmul.f32 %v829, %v1057
        %v1134 = vmul.f32 %v830, %v1057
        %v1135 = vmul.f32 %v831, %v1057
        %v1136 = vmul.f32 %v832, %v1057
        %v1137 = vmul.f32 %v833, %v1057
        %v1138 = vld [vmem:[%s1] sm:$0x1f]
        %v1140 = vlaneseq
        %v1141 = vshrl.u32 %v1140, 7
        %v1142 = vsub.s32 0, %v1141
        %v1143 = vrot.slane %v1138, %v1142
        %v1144 = vlaneseq
        %v1145 = vshrl.u32 %v1144, 7
        %v1146 = vsub.s32 1, %v1145
        %v1147 = vrot.slane %v1138, %v1146
        %v1148 = vlaneseq
        %v1149 = vshrl.u32 %v1148, 7
        %v1150 = vsub.s32 2, %v1149
        %v1151 = vrot.slane %v1138, %v1150
        %v1152 = vlaneseq
        %v1153 = vshrl.u32 %v1152, 7
        %v1154 = vsub.s32 3, %v1153
        %v1155 = vrot.slane %v1138, %v1154
        %v1156 = vlaneseq
        %v1157 = vshrl.u32 %v1156, 7
        %v1158 = vsub.s32 4, %v1157
        %v1159 = vrot.slane %v1138, %v1158
        %v1165 = vmul.f32 %v1058, %v1143
        %v1166 = vmul.f32 %v1059, %v1147
        %v1167 = vmul.f32 %v1060, %v1151
        %v1168 = vmul.f32 %v1061, %v1155
        %v1169 = vmul.f32 %v1062, %v1159
        %v1170 = vmul.f32 %v1063, %v1143
        %v1171 = vmul.f32 %v1064, %v1147
        %v1172 = vmul.f32 %v1065, %v1151
        %v1173 = vmul.f32 %v1066, %v1155
        %v1174 = vmul.f32 %v1067, %v1159
        %v1175 = vmul.f32 %v1068, %v1143
        %v1176 = vmul.f32 %v1069, %v1147
        %v1177 = vmul.f32 %v1070, %v1151
        %v1178 = vmul.f32 %v1071, %v1155
        %v1179 = vmul.f32 %v1072, %v1159
        %v1180 = vmul.f32 %v1073, %v1143
        %v1181 = vmul.f32 %v1074, %v1147
        %v1182 = vmul.f32 %v1075, %v1151
        %v1183 = vmul.f32 %v1076, %v1155
        %v1184 = vmul.f32 %v1077, %v1159
        %v1185 = vmul.f32 %v1078, %v1143
        %v1186 = vmul.f32 %v1079, %v1147
        %v1187 = vmul.f32 %v1080, %v1151
        %v1188 = vmul.f32 %v1081, %v1155
        %v1189 = vmul.f32 %v1082, %v1159
        %v1190 = vmul.f32 %v1083, %v1143
        %v1191 = vmul.f32 %v1084, %v1147
        %v1192 = vmul.f32 %v1085, %v1151
        %v1193 = vmul.f32 %v1086, %v1155
        %v1194 = vmul.f32 %v1087, %v1159
        %v1195 = vmul.f32 %v1088, %v1143
        %v1196 = vmul.f32 %v1089, %v1147
        %v1197 = vmul.f32 %v1090, %v1151
        %v1198 = vmul.f32 %v1091, %v1155
        %v1199 = vmul.f32 %v1092, %v1159
        %v1200 = vmul.f32 %v1093, %v1143
        %v1201 = vmul.f32 %v1094, %v1147
        %v1202 = vmul.f32 %v1095, %v1151
        %v1203 = vmul.f32 %v1096, %v1155
        %v1204 = vmul.f32 %v1097, %v1159
        %v1205 = vmul.f32 %v1098, %v1143
        %v1206 = vmul.f32 %v1099, %v1147
        %v1207 = vmul.f32 %v1100, %v1151
        %v1208 = vmul.f32 %v1101, %v1155
        %v1209 = vmul.f32 %v1102, %v1159
        %v1210 = vmul.f32 %v1103, %v1143
        %v1211 = vmul.f32 %v1104, %v1147
        %v1212 = vmul.f32 %v1105, %v1151
        %v1213 = vmul.f32 %v1106, %v1155
        %v1214 = vmul.f32 %v1107, %v1159
        %v1215 = vmul.f32 %v1108, %v1143
        %v1216 = vmul.f32 %v1109, %v1147
        %v1217 = vmul.f32 %v1110, %v1151
        %v1218 = vmul.f32 %v1111, %v1155
        %v1219 = vmul.f32 %v1112, %v1159
        %v1220 = vmul.f32 %v1113, %v1143
        %v1221 = vmul.f32 %v1114, %v1147
        %v1222 = vmul.f32 %v1115, %v1151
        %v1223 = vmul.f32 %v1116, %v1155
        %v1224 = vmul.f32 %v1117, %v1159
        %v1225 = vmul.f32 %v1118, %v1143
        %v1226 = vmul.f32 %v1119, %v1147
        %v1227 = vmul.f32 %v1120, %v1151
        %v1228 = vmul.f32 %v1121, %v1155
        %v1229 = vmul.f32 %v1122, %v1159
        %v1230 = vmul.f32 %v1123, %v1143
        %v1231 = vmul.f32 %v1124, %v1147
        %v1232 = vmul.f32 %v1125, %v1151
        %v1233 = vmul.f32 %v1126, %v1155
        %v1234 = vmul.f32 %v1127, %v1159
        %v1235 = vmul.f32 %v1128, %v1143
        %v1236 = vmul.f32 %v1129, %v1147
        %v1237 = vmul.f32 %v1130, %v1151
        %v1238 = vmul.f32 %v1131, %v1155
        %v1239 = vmul.f32 %v1132, %v1159
        %v1240 = vmul.f32 %v1133, %v1143
        %v1241 = vmul.f32 %v1134, %v1147
        %v1242 = vmul.f32 %v1135, %v1151
        %v1243 = vmul.f32 %v1136, %v1155
        %v1244 = vmul.f32 %v1137, %v1159
        %v1245 = vld [vmem:[%s2] sm:$0x1f]
        %v1247 = vlaneseq
        %v1248 = vshrl.u32 %v1247, 7
        %v1249 = vsub.s32 0, %v1248
        %v1250 = vrot.slane %v1245, %v1249
        %v1251 = vlaneseq
        %v1252 = vshrl.u32 %v1251, 7
        %v1253 = vsub.s32 1, %v1252
        %v1254 = vrot.slane %v1245, %v1253
        %v1255 = vlaneseq
        %v1256 = vshrl.u32 %v1255, 7
        %v1257 = vsub.s32 2, %v1256
        %v1258 = vrot.slane %v1245, %v1257
        %v1259 = vlaneseq
        %v1260 = vshrl.u32 %v1259, 7
        %v1261 = vsub.s32 3, %v1260
        %v1262 = vrot.slane %v1245, %v1261
        %v1263 = vlaneseq
        %v1264 = vshrl.u32 %v1263, 7
        %v1265 = vsub.s32 4, %v1264
        %v1266 = vrot.slane %v1245, %v1265
        %v1272 = vadd.f32 %v1165, %v1250
        %v1273 = vadd.f32 %v1166, %v1254
        %v1274 = vadd.f32 %v1167, %v1258
        %v1275 = vadd.f32 %v1168, %v1262
        %v1276 = vadd.f32 %v1169, %v1266
        %v1277 = vadd.f32 %v1170, %v1250
        %v1278 = vadd.f32 %v1171, %v1254
        %v1279 = vadd.f32 %v1172, %v1258
        %v1280 = vadd.f32 %v1173, %v1262
        %v1281 = vadd.f32 %v1174, %v1266
        %v1282 = vadd.f32 %v1175, %v1250
        %v1283 = vadd.f32 %v1176, %v1254
        %v1284 = vadd.f32 %v1177, %v1258
        %v1285 = vadd.f32 %v1178, %v1262
        %v1286 = vadd.f32 %v1179, %v1266
        %v1287 = vadd.f32 %v1180, %v1250
        %v1288 = vadd.f32 %v1181, %v1254
        %v1289 = vadd.f32 %v1182, %v1258
        %v1290 = vadd.f32 %v1183, %v1262
        %v1291 = vadd.f32 %v1184, %v1266
        %v1292 = vadd.f32 %v1185, %v1250
        %v1293 = vadd.f32 %v1186, %v1254
        %v1294 = vadd.f32 %v1187, %v1258
        %v1295 = vadd.f32 %v1188, %v1262
        %v1296 = vadd.f32 %v1189, %v1266
        %v1297 = vadd.f32 %v1190, %v1250
        %v1298 = vadd.f32 %v1191, %v1254
        %v1299 = vadd.f32 %v1192, %v1258
        %v1300 = vadd.f32 %v1193, %v1262
        %v1301 = vadd.f32 %v1194, %v1266
        %v1302 = vadd.f32 %v1195, %v1250
        %v1303 = vadd.f32 %v1196, %v1254
        %v1304 = vadd.f32 %v1197, %v1258
        %v1305 = vadd.f32 %v1198, %v1262
        %v1306 = vadd.f32 %v1199, %v1266
        %v1307 = vadd.f32 %v1200, %v1250
        %v1308 = vadd.f32 %v1201, %v1254
        %v1309 = vadd.f32 %v1202, %v1258
        %v1310 = vadd.f32 %v1203, %v1262
        %v1311 = vadd.f32 %v1204, %v1266
        %v1312 = vadd.f32 %v1205, %v1250
        %v1313 = vadd.f32 %v1206, %v1254
        %v1314 = vadd.f32 %v1207, %v1258
        %v1315 = vadd.f32 %v1208, %v1262
        %v1316 = vadd.f32 %v1209, %v1266
        %v1317 = vadd.f32 %v1210, %v1250
        %v1318 = vadd.f32 %v1211, %v1254
        %v1319 = vadd.f32 %v1212, %v1258
        %v1320 = vadd.f32 %v1213, %v1262
        %v1321 = vadd.f32 %v1214, %v1266
        %v1322 = vadd.f32 %v1215, %v1250
        %v1323 = vadd.f32 %v1216, %v1254
        %v1324 = vadd.f32 %v1217, %v1258
        %v1325 = vadd.f32 %v1218, %v1262
        %v1326 = vadd.f32 %v1219, %v1266
        %v1327 = vadd.f32 %v1220, %v1250
        %v1328 = vadd.f32 %v1221, %v1254
        %v1329 = vadd.f32 %v1222, %v1258
        %v1330 = vadd.f32 %v1223, %v1262
        %v1331 = vadd.f32 %v1224, %v1266
        %v1332 = vadd.f32 %v1225, %v1250
        %v1333 = vadd.f32 %v1226, %v1254
        %v1334 = vadd.f32 %v1227, %v1258
        %v1335 = vadd.f32 %v1228, %v1262
        %v1336 = vadd.f32 %v1229, %v1266
        %v1337 = vadd.f32 %v1230, %v1250
        %v1338 = vadd.f32 %v1231, %v1254
        %v1339 = vadd.f32 %v1232, %v1258
        %v1340 = vadd.f32 %v1233, %v1262
        %v1341 = vadd.f32 %v1234, %v1266
        %v1342 = vadd.f32 %v1235, %v1250
        %v1343 = vadd.f32 %v1236, %v1254
        %v1344 = vadd.f32 %v1237, %v1258
        %v1345 = vadd.f32 %v1238, %v1262
        %v1346 = vadd.f32 %v1239, %v1266
        %v1347 = vadd.f32 %v1240, %v1250
        %v1348 = vadd.f32 %v1241, %v1254
        %v1349 = vadd.f32 %v1242, %v1258
        %v1350 = vadd.f32 %v1243, %v1262
        %v1351 = vadd.f32 %v1244, %v1266
        %v1352 = vmul.f32 %v1272, 1.75
        %v1353 = vmul.f32 %v1273, 1.75
        %v1354 = vmul.f32 %v1274, 1.75
        %v1355 = vmul.f32 %v1275, 1.75
        %v1356 = vmul.f32 %v1276, 1.75
        %v1357 = vmul.f32 %v1277, 1.75
        %v1358 = vmul.f32 %v1278, 1.75
        %v1359 = vmul.f32 %v1279, 1.75
        %v1360 = vmul.f32 %v1280, 1.75
        %v1361 = vmul.f32 %v1281, 1.75
        %v1362 = vmul.f32 %v1282, 1.75
        %v1363 = vmul.f32 %v1283, 1.75
        %v1364 = vmul.f32 %v1284, 1.75
        %v1365 = vmul.f32 %v1285, 1.75
        %v1366 = vmul.f32 %v1286, 1.75
        %v1367 = vmul.f32 %v1287, 1.75
        %v1368 = vmul.f32 %v1288, 1.75
        %v1369 = vmul.f32 %v1289, 1.75
        %v1370 = vmul.f32 %v1290, 1.75
        %v1371 = vmul.f32 %v1291, 1.75
        %v1372 = vmul.f32 %v1292, 1.75
        %v1373 = vmul.f32 %v1293, 1.75
        %v1374 = vmul.f32 %v1294, 1.75
        %v1375 = vmul.f32 %v1295, 1.75
        %v1376 = vmul.f32 %v1296, 1.75
        %v1377 = vmul.f32 %v1297, 1.75
        %v1378 = vmul.f32 %v1298, 1.75
        %v1379 = vmul.f32 %v1299, 1.75
        %v1380 = vmul.f32 %v1300, 1.75
        %v1381 = vmul.f32 %v1301, 1.75
        %v1382 = vmul.f32 %v1302, 1.75
        %v1383 = vmul.f32 %v1303, 1.75
        %v1384 = vmul.f32 %v1304, 1.75
        %v1385 = vmul.f32 %v1305, 1.75
        %v1386 = vmul.f32 %v1306, 1.75
        %v1387 = vmul.f32 %v1307, 1.75
        %v1388 = vmul.f32 %v1308, 1.75
        %v1389 = vmul.f32 %v1309, 1.75
        %v1390 = vmul.f32 %v1310, 1.75
        %v1391 = vmul.f32 %v1311, 1.75
        %v1392 = vmul.f32 %v1312, 1.75
        %v1393 = vmul.f32 %v1313, 1.75
        %v1394 = vmul.f32 %v1314, 1.75
        %v1395 = vmul.f32 %v1315, 1.75
        %v1396 = vmul.f32 %v1316, 1.75
        %v1397 = vmul.f32 %v1317, 1.75
        %v1398 = vmul.f32 %v1318, 1.75
        %v1399 = vmul.f32 %v1319, 1.75
        %v1400 = vmul.f32 %v1320, 1.75
        %v1401 = vmul.f32 %v1321, 1.75
        %v1402 = vmul.f32 %v1322, 1.75
        %v1403 = vmul.f32 %v1323, 1.75
        %v1404 = vmul.f32 %v1324, 1.75
        %v1405 = vmul.f32 %v1325, 1.75
        %v1406 = vmul.f32 %v1326, 1.75
        %v1407 = vmul.f32 %v1327, 1.75
        %v1408 = vmul.f32 %v1328, 1.75
        %v1409 = vmul.f32 %v1329, 1.75
        %v1410 = vmul.f32 %v1330, 1.75
        %v1411 = vmul.f32 %v1331, 1.75
        %v1412 = vmul.f32 %v1332, 1.75
        %v1413 = vmul.f32 %v1333, 1.75
        %v1414 = vmul.f32 %v1334, 1.75
        %v1415 = vmul.f32 %v1335, 1.75
        %v1416 = vmul.f32 %v1336, 1.75
        %v1417 = vmul.f32 %v1337, 1.75
        %v1418 = vmul.f32 %v1338, 1.75
        %v1419 = vmul.f32 %v1339, 1.75
        %v1420 = vmul.f32 %v1340, 1.75
        %v1421 = vmul.f32 %v1341, 1.75
        %v1422 = vmul.f32 %v1342, 1.75
        %v1423 = vmul.f32 %v1343, 1.75
        %v1424 = vmul.f32 %v1344, 1.75
        %v1425 = vmul.f32 %v1345, 1.75
        %v1426 = vmul.f32 %v1346, 1.75
        %v1427 = vmul.f32 %v1347, 1.75
        %v1428 = vmul.f32 %v1348, 1.75
        %v1429 = vmul.f32 %v1349, 1.75
        %v1430 = vmul.f32 %v1350, 1.75
        %v1431 = vmul.f32 %v1351, 1.75
        %1432 = vst [vmem:[#allocation2] sm:$0xff] %v1352
        %1433 = vst [vmem:[#allocation2 + $0x8] sm:$0xff] %v1353
        %1434 = vst [vmem:[#allocation2 + $0x10] sm:$0xff] %v1354
        %1435 = vst [vmem:[#allocation2 + $0x18] sm:$0xff] %v1355
        %1436 = vst [vmem:[#allocation2 + $0x20] sm:$0xff] %v1356
        %1437 = vst [vmem:[#allocation2 + $0x28] sm:$0xff] %v1357
        %1438 = vst [vmem:[#allocation2 + $0x30] sm:$0xff] %v1358
        %1439 = vst [vmem:[#allocation2 + $0x38] sm:$0xff] %v1359
        %1440 = vst [vmem:[#allocation2 + $0x40] sm:$0xff] %v1360
        %1441 = vst [vmem:[#allocation2 + $0x48] sm:$0xff] %v1361
        %1442 = vst [vmem:[#allocation2 + $0x50] sm:$0xff] %v1362
        %1443 = vst [vmem:[#allocation2 + $0x58] sm:$0xff] %v1363
        %1444 = vst [vmem:[#allocation2 + $0x60] sm:$0xff] %v1364
        %1445 = vst [vmem:[#allocation2 + $0x68] sm:$0xff] %v1365
        %1446 = vst [vmem:[#allocation2 + $0x70] sm:$0xff] %v1366
        %1447 = vst [vmem:[#allocation2 + $0x78] sm:$0xff] %v1367
        %1448 = vst [vmem:[#allocation2 + $0x80] sm:$0xff] %v1368
        %1449 = vst [vmem:[#allocation2 + $0x88] sm:$0xff] %v1369
        %1450 = vst [vmem:[#allocation2 + $0x90] sm:$0xff] %v1370
        %1451 = vst [vmem:[#allocation2 + $0x98] sm:$0xff] %v1371
        %1452 = vst [vmem:[#allocation2 + $0xa0] sm:$0xff] %v1372
        %1453 = vst [vmem:[#allocation2 + $0xa8] sm:$0xff] %v1373
        %1454 = vst [vmem:[#allocation2 + $0xb0] sm:$0xff] %v1374
        %1455 = vst [vmem:[#allocation2 + $0xb8] sm:$0xff] %v1375
        %1456 = vst [vmem:[#allocation2 + $0xc0] sm:$0xff] %v1376
        %1457 = vst [vmem:[#allocation2 + $0xc8] sm:$0xff] %v1377
        %1458 = vst [vmem:[#allocation2 + $0xd0] sm:$0xff] %v1378
        %1459 = vst [vmem:[#allocation2 + $0xd8] sm:$0xff] %v1379
        %1460 = vst [vmem:[#allocation2 + $0xe0] sm:$0xff] %v1380
        %1461 = vst [vmem:[#allocation2 + $0xe8] sm:$0xff] %v1381
        %1462 = vst [vmem:[#allocation2 + $0xf0] sm:$0xff] %v1382
        %1463 = vst [vmem:[#allocation2 + $0xf8] sm:$0xff] %v1383
        %1464 = vst [vmem:[#allocation2 + $0x100] sm:$0xff] %v1384
        %1465 = vst [vmem:[#allocation2 + $0x108] sm:$0xff] %v1385
        %1466 = vst [vmem:[#allocation2 + $0x110] sm:$0xff] %v1386
        %1467 = vst [vmem:[#allocation2 + $0x118] sm:$0xff] %v1387
        %1468 = vst [vmem:[#allocation2 + $0x120] sm:$0xff] %v1388
        %1469 = vst [vmem:[#allocation2 + $0x128] sm:$0xff] %v1389
        %1470 = vst [vmem:[#allocation2 + $0x130] sm:$0xff] %v1390
        %1471 = vst [vmem:[#allocation2 + $0x138] sm:$0xff] %v1391
        %1472 = vst [vmem:[#allocation2 + $0x140] sm:$0xff] %v1392
        %1473 = vst [vmem:[#allocation2 + $0x148] sm:$0xff] %v1393
        %1474 = vst [vmem:[#allocation2 + $0x150] sm:$0xff] %v1394
        %1475 = vst [vmem:[#allocation2 + $0x158] sm:$0xff] %v1395
        %1476 = vst [vmem:[#allocation2 + $0x160] sm:$0xff] %v1396
        %1477 = vst [vmem:[#allocation2 + $0x168] sm:$0xff] %v1397
        %1478 = vst [vmem:[#allocation2 + $0x170] sm:$0xff] %v1398
        %1479 = vst [vmem:[#allocation2 + $0x178] sm:$0xff] %v1399
        %1480 = vst [vmem:[#allocation2 + $0x180] sm:$0xff] %v1400
        %1481 = vst [vmem:[#allocation2 + $0x188] sm:$0xff] %v1401
        %1482 = vst [vmem:[#allocation2 + $0x190] sm:$0xff] %v1402
        %1483 = vst [vmem:[#allocation2 + $0x198] sm:$0xff] %v1403
        %1484 = vst [vmem:[#allocation2 + $0x1a0] sm:$0xff] %v1404
        %1485 = vst [vmem:[#allocation2 + $0x1a8] sm:$0xff] %v1405
        %1486 = vst [vmem:[#allocation2 + $0x1b0] sm:$0xff] %v1406
        %1487 = vst [vmem:[#allocation2 + $0x1b8] sm:$0xff] %v1407
        %1488 = vst [vmem:[#allocation2 + $0x1c0] sm:$0xff] %v1408
        %1489 = vst [vmem:[#allocation2 + $0x1c8] sm:$0xff] %v1409
        %1490 = vst [vmem:[#allocation2 + $0x1d0] sm:$0xff] %v1410
        %1491 = vst [vmem:[#allocation2 + $0x1d8] sm:$0xff] %v1411
        %1492 = vst [vmem:[#allocation2 + $0x1e0] sm:$0xff] %v1412
        %1493 = vst [vmem:[#allocation2 + $0x1e8] sm:$0xff] %v1413
        %1494 = vst [vmem:[#allocation2 + $0x1f0] sm:$0xff] %v1414
        %1495 = vst [vmem:[#allocation2 + $0x1f8] sm:$0xff] %v1415
        %1496 = vst [vmem:[#allocation2 + $0x200] sm:$0xff] %v1416
        %1497 = vst [vmem:[#allocation2 + $0x208] sm:$0xff] %v1417
        %1498 = vst [vmem:[#allocation2 + $0x210] sm:$0xff] %v1418
        %1499 = vst [vmem:[#allocation2 + $0x218] sm:$0xff] %v1419
        %1500 = vst [vmem:[#allocation2 + $0x220] sm:$0xff] %v1420
        %1501 = vst [vmem:[#allocation2 + $0x228] sm:$0xff] %v1421
        %1502 = vst [vmem:[#allocation2 + $0x230] sm:$0xff] %v1422
        %1503 = vst [vmem:[#allocation2 + $0x238] sm:$0xff] %v1423
        %1504 = vst [vmem:[#allocation2 + $0x240] sm:$0xff] %v1424
        %1505 = vst [vmem:[#allocation2 + $0x248] sm:$0xff] %v1425
        %1506 = vst [vmem:[#allocation2 + $0x250] sm:$0xff] %v1426
        %1507 = vst [vmem:[#allocation2 + $0x258] sm:$0xff] %v1427
        %1508 = vst [vmem:[#allocation2 + $0x260] sm:$0xff] %v1428
        %1509 = vst [vmem:[#allocation2 + $0x268] sm:$0xff] %v1429
        %1510 = vst [vmem:[#allocation2 + $0x270] sm:$0xff] %v1430
        %1511 = vst [vmem:[#allocation2 + $0x278] sm:$0xff] %v1431
        %v1512 = vxor.u32 %v471, 2147483648
        %v1513 = vxor.u32 %v472, 2147483648
        %v1514 = vxor.u32 %v473, 2147483648
        %v1515 = vxor.u32 %v474, 2147483648
        %v1516 = vxor.u32 %v475, 2147483648
        %v1517 = vxor.u32 %v476, 2147483648
        %v1518 = vxor.u32 %v477, 2147483648
        %v1519 = vxor.u32 %v478, 2147483648
        %v1520 = vxor.u32 %v479, 2147483648
        %v1521 = vxor.u32 %v480, 2147483648
        %v1522 = vxor.u32 %v481, 2147483648
        %v1523 = vxor.u32 %v482, 2147483648
        %v1524 = vxor.u32 %v483, 2147483648
        %v1525 = vxor.u32 %v484, 2147483648
        %v1526 = vxor.u32 %v485, 2147483648
        %v1527 = vxor.u32 %v486, 2147483648
        %v1528 = vxor.u32 %v487, 2147483648
        %v1529 = vxor.u32 %v488, 2147483648
        %v1530 = vxor.u32 %v489, 2147483648
        %v1531 = vxor.u32 %v490, 2147483648
        %v1532 = vxor.u32 %v491, 2147483648
        %v1533 = vxor.u32 %v492, 2147483648
        %v1534 = vxor.u32 %v493, 2147483648
        %v1535 = vxor.u32 %v494, 2147483648
        %v1536 = vxor.u32 %v495, 2147483648
        %v1537 = vxor.u32 %v496, 2147483648
        %v1538 = vxor.u32 %v497, 2147483648
        %v1539 = vxor.u32 %v498, 2147483648
        %v1540 = vxor.u32 %v499, 2147483648
        %v1541 = vxor.u32 %v500, 2147483648
        %v1542 = vxor.u32 %v501, 2147483648
        %v1543 = vxor.u32 %v502, 2147483648
        %v1544 = vxor.u32 %v503, 2147483648
        %v1545 = vxor.u32 %v504, 2147483648
        %v1546 = vxor.u32 %v505, 2147483648
        %v1547 = vxor.u32 %v506, 2147483648
        %v1548 = vxor.u32 %v507, 2147483648
        %v1549 = vxor.u32 %v508, 2147483648
        %v1550 = vxor.u32 %v509, 2147483648
        %v1551 = vxor.u32 %v510, 2147483648
        %v1552 = vxor.u32 %v511, 2147483648
        %v1553 = vxor.u32 %v512, 2147483648
        %v1554 = vxor.u32 %v513, 2147483648
        %v1555 = vxor.u32 %v514, 2147483648
        %v1556 = vxor.u32 %v515, 2147483648
        %v1557 = vxor.u32 %v516, 2147483648
        %v1558 = vxor.u32 %v517, 2147483648
        %v1559 = vxor.u32 %v518, 2147483648
        %v1560 = vxor.u32 %v519, 2147483648
        %v1561 = vxor.u32 %v520, 2147483648
        %v1562 = vxor.u32 %v521, 2147483648
        %v1563 = vxor.u32 %v522, 2147483648
        %v1564 = vxor.u32 %v523, 2147483648
        %v1565 = vxor.u32 %v524, 2147483648
        %v1566 = vxor.u32 %v525, 2147483648
        %v1567 = vxor.u32 %v526, 2147483648
        %v1568 = vxor.u32 %v527, 2147483648
        %v1569 = vxor.u32 %v528, 2147483648
        %v1570 = vxor.u32 %v529, 2147483648
        %v1571 = vxor.u32 %v530, 2147483648
        %v1572 = vxor.u32 %v531, 2147483648
        %v1573 = vxor.u32 %v532, 2147483648
        %v1574 = vxor.u32 %v533, 2147483648
        %v1575 = vxor.u32 %v534, 2147483648
        %v1576 = vxor.u32 %v535, 2147483648
        %v1577 = vxor.u32 %v536, 2147483648
        %v1578 = vxor.u32 %v537, 2147483648
        %v1579 = vxor.u32 %v538, 2147483648
        %v1580 = vxor.u32 %v539, 2147483648
        %v1581 = vxor.u32 %v540, 2147483648
        %v1582 = vxor.u32 %v541, 2147483648
        %v1583 = vxor.u32 %v542, 2147483648
        %v1584 = vxor.u32 %v543, 2147483648
        %v1585 = vxor.u32 %v544, 2147483648
        %v1586 = vxor.u32 %v545, 2147483648
        %v1587 = vxor.u32 %v546, 2147483648
        %v1588 = vxor.u32 %v547, 2147483648
        %v1589 = vxor.u32 %v548, 2147483648
        %v1590 = vxor.u32 %v549, 2147483648
        %v1591 = vxor.u32 %v550, 2147483648
        %v1592 = vmul.f32 %v1512, 1.442695
        %v1593 = vpow.pop %v1592
        %v1594 = vmul.f32 %v1513, 1.442695
        %v1595 = vpow.pop %v1594
        %v1596 = vmul.f32 %v1514, 1.442695
        %v1597 = vpow.pop %v1596
        %v1598 = vmul.f32 %v1515, 1.442695
        %v1599 = vpow.pop %v1598
        %v1600 = vmul.f32 %v1516, 1.442695
        %v1601 = vpow.pop %v1600
        %v1602 = vmul.f32 %v1517, 1.442695
        %v1603 = vpow.pop %v1602
        %v1604 = vmul.f32 %v1518, 1.442695
        %v1605 = vpow.pop %v1604
        %v1606 = vmul.f32 %v1519, 1.442695
        %v1607 = vpow.pop %v1606
        %v1608 = vmul.f32 %v1520, 1.442695
        %v1609 = vpow.pop %v1608
        %v1610 = vmul.f32 %v1521, 1.442695
        %v1611 = vpow.pop %v1610
        %v1612 = vmul.f32 %v1522, 1.442695
        %v1613 = vpow.pop %v1612
        %v1614 = vmul.f32 %v1523, 1.442695
        %v1615 = vpow.pop %v1614
        %v1616 = vmul.f32 %v1524, 1.442695
        %v1617 = vpow.pop %v1616
        %v1618 = vmul.f32 %v1525, 1.442695
        %v1619 = vpow.pop %v1618
        %v1620 = vmul.f32 %v1526, 1.442695
        %v1621 = vpow.pop %v1620
        %v1622 = vmul.f32 %v1527, 1.442695
        %v1623 = vpow.pop %v1622
        %v1624 = vmul.f32 %v1528, 1.442695
        %v1625 = vpow.pop %v1624
        %v1626 = vmul.f32 %v1529, 1.442695
        %v1627 = vpow.pop %v1626
        %v1628 = vmul.f32 %v1530, 1.442695
        %v1629 = vpow.pop %v1628
        %v1630 = vmul.f32 %v1531, 1.442695
        %v1631 = vpow.pop %v1630
        %v1632 = vmul.f32 %v1532, 1.442695
        %v1633 = vpow.pop %v1632
        %v1634 = vmul.f32 %v1533, 1.442695
        %v1635 = vpow.pop %v1634
        %v1636 = vmul.f32 %v1534, 1.442695
        %v1637 = vpow.pop %v1636
        %v1638 = vmul.f32 %v1535, 1.442695
        %v1639 = vpow.pop %v1638
        %v1640 = vmul.f32 %v1536, 1.442695
        %v1641 = vpow.pop %v1640
        %v1642 = vmul.f32 %v1537, 1.442695
        %v1643 = vpow.pop %v1642
        %v1644 = vmul.f32 %v1538, 1.442695
        %v1645 = vpow.pop %v1644
        %v1646 = vmul.f32 %v1539, 1.442695
        %v1647 = vpow.pop %v1646
        %v1648 = vmul.f32 %v1540, 1.442695
        %v1649 = vpow.pop %v1648
        %v1650 = vmul.f32 %v1541, 1.442695
        %v1651 = vpow.pop %v1650
        %v1652 = vmul.f32 %v1542, 1.442695
        %v1653 = vpow.pop %v1652
        %v1654 = vmul.f32 %v1543, 1.442695
        %v1655 = vpow.pop %v1654
        %v1656 = vmul.f32 %v1544, 1.442695
        %v1657 = vpow.pop %v1656
        %v1658 = vmul.f32 %v1545, 1.442695
        %v1659 = vpow.pop %v1658
        %v1660 = vmul.f32 %v1546, 1.442695
        %v1661 = vpow.pop %v1660
        %v1662 = vmul.f32 %v1547, 1.442695
        %v1663 = vpow.pop %v1662
        %v1664 = vmul.f32 %v1548, 1.442695
        %v1665 = vpow.pop %v1664
        %v1666 = vmul.f32 %v1549, 1.442695
        %v1667 = vpow.pop %v1666
        %v1668 = vmul.f32 %v1550, 1.442695
        %v1669 = vpow.pop %v1668
        %v1670 = vmul.f32 %v1551, 1.442695
        %v1671 = vpow.pop %v1670
        %v1672 = vmul.f32 %v1552, 1.442695
        %v1673 = vpow.pop %v1672
        %v1674 = vmul.f32 %v1553, 1.442695
        %v1675 = vpow.pop %v1674
        %v1676 = vmul.f32 %v1554, 1.442695
        %v1677 = vpow.pop %v1676
        %v1678 = vmul.f32 %v1555, 1.442695
        %v1679 = vpow.pop %v1678
        %v1680 = vmul.f32 %v1556, 1.442695
        %v1681 = vpow.pop %v1680
        %v1682 = vmul.f32 %v1557, 1.442695
        %v1683 = vpow.pop %v1682
        %v1684 = vmul.f32 %v1558, 1.442695
        %v1685 = vpow.pop %v1684
        %v1686 = vmul.f32 %v1559, 1.442695
        %v1687 = vpow.pop %v1686
        %v1688 = vmul.f32 %v1560, 1.442695
        %v1689 = vpow.pop %v1688
        %v1690 = vmul.f32 %v1561, 1.442695
        %v1691 = vpow.pop %v1690
        %v1692 = vmul.f32 %v1562, 1.442695
        %v1693 = vpow.pop %v1692
        %v1694 = vmul.f32 %v1563, 1.442695
        %v1695 = vpow.pop %v1694
        %v1696 = vmul.f32 %v1564, 1.442695
        %v1697 = vpow.pop %v1696
        %v1698 = vmul.f32 %v1565, 1.442695
        %v1699 = vpow.pop %v1698
        %v1700 = vmul.f32 %v1566, 1.442695
        %v1701 = vpow.pop %v1700
        %v1702 = vmul.f32 %v1567, 1.442695
        %v1703 = vpow.pop %v1702
        %v1704 = vmul.f32 %v1568, 1.442695
        %v1705 = vpow.pop %v1704
        %v1706 = vmul.f32 %v1569, 1.442695
        %v1707 = vpow.pop %v1706
        %v1708 = vmul.f32 %v1570, 1.442695
        %v1709 = vpow.pop %v1708
        %v1710 = vmul.f32 %v1571, 1.442695
        %v1711 = vpow.pop %v1710
        %v1712 = vmul.f32 %v1572, 1.442695
        %v1713 = vpow.pop %v1712
        %v1714 = vmul.f32 %v1573, 1.442695
        %v1715 = vpow.pop %v1714
        %v1716 = vmul.f32 %v1574, 1.442695
        %v1717 = vpow.pop %v1716
        %v1718 = vmul.f32 %v1575, 1.442695
        %v1719 = vpow.pop %v1718
        %v1720 = vmul.f32 %v1576, 1.442695
        %v1721 = vpow.pop %v1720
        %v1722 = vmul.f32 %v1577, 1.442695
        %v1723 = vpow.pop %v1722
        %v1724 = vmul.f32 %v1578, 1.442695
        %v1725 = vpow.pop %v1724
        %v1726 = vmul.f32 %v1579, 1.442695
        %v1727 = vpow.pop %v1726
        %v1728 = vmul.f32 %v1580, 1.442695
        %v1729 = vpow.pop %v1728
        %v1730 = vmul.f32 %v1581, 1.442695
        %v1731 = vpow.pop %v1730
        %v1732 = vmul.f32 %v1582, 1.442695
        %v1733 = vpow.pop %v1732
        %v1734 = vmul.f32 %v1583, 1.442695
        %v1735 = vpow.pop %v1734
        %v1736 = vmul.f32 %v1584, 1.442695
        %v1737 = vpow.pop %v1736
        %v1738 = vmul.f32 %v1585, 1.442695
        %v1739 = vpow.pop %v1738
        %v1740 = vmul.f32 %v1586, 1.442695
        %v1741 = vpow.pop %v1740
        %v1742 = vmul.f32 %v1587, 1.442695
        %v1743 = vpow.pop %v1742
        %v1744 = vmul.f32 %v1588, 1.442695
        %v1745 = vpow.pop %v1744
        %v1746 = vmul.f32 %v1589, 1.442695
        %v1747 = vpow.pop %v1746
        %v1748 = vmul.f32 %v1590, 1.442695
        %v1749 = vpow.pop %v1748
        %v1750 = vmul.f32 %v1591, 1.442695
        %v1751 = vpow.pop %v1750
        %v1752 = vadd.f32 %v1593, 1.0
        %v1753 = vadd.f32 %v1595, 1.0
        %v1754 = vadd.f32 %v1597, 1.0
        %v1755 = vadd.f32 %v1599, 1.0
        %v1756 = vadd.f32 %v1601, 1.0
        %v1757 = vadd.f32 %v1603, 1.0
        %v1758 = vadd.f32 %v1605, 1.0
        %v1759 = vadd.f32 %v1607, 1.0
        %v1760 = vadd.f32 %v1609, 1.0
        %v1761 = vadd.f32 %v1611, 1.0
        %v1762 = vadd.f32 %v1613, 1.0
        %v1763 = vadd.f32 %v1615, 1.0
        %v1764 = vadd.f32 %v1617, 1.0
        %v1765 = vadd.f32 %v1619, 1.0
        %v1766 = vadd.f32 %v1621, 1.0
        %v1767 = vadd.f32 %v1623, 1.0
        %v1768 = vadd.f32 %v1625, 1.0
        %v1769 = vadd.f32 %v1627, 1.0
        %v1770 = vadd.f32 %v1629, 1.0
        %v1771 = vadd.f32 %v1631, 1.0
        %v1772 = vadd.f32 %v1633, 1.0
        %v1773 = vadd.f32 %v1635, 1.0
        %v1774 = vadd.f32 %v1637, 1.0
        %v1775 = vadd.f32 %v1639, 1.0
        %v1776 = vadd.f32 %v1641, 1.0
        %v1777 = vadd.f32 %v1643, 1.0
        %v1778 = vadd.f32 %v1645, 1.0
        %v1779 = vadd.f32 %v1647, 1.0
        %v1780 = vadd.f32 %v1649, 1.0
        %v1781 = vadd.f32 %v1651, 1.0
        %v1782 = vadd.f32 %v1653, 1.0
        %v1783 = vadd.f32 %v1655, 1.0
        %v1784 = vadd.f32 %v1657, 1.0
        %v1785 = vadd.f32 %v1659, 1.0
        %v1786 = vadd.f32 %v1661, 1.0
        %v1787 = vadd.f32 %v1663, 1.0
        %v1788 = vadd.f32 %v1665, 1.0
        %v1789 = vadd.f32 %v1667, 1.0
        %v1790 = vadd.f32 %v1669, 1.0
        %v1791 = vadd.f32 %v1671, 1.0
        %v1792 = vadd.f32 %v1673, 1.0
        %v1793 = vadd.f32 %v1675, 1.0
        %v1794 = vadd.f32 %v1677, 1.0
        %v1795 = vadd.f32 %v1679, 1.0
        %v1796 = vadd.f32 %v1681, 1.0
        %v1797 = vadd.f32 %v1683, 1.0
        %v1798 = vadd.f32 %v1685, 1.0
        %v1799 = vadd.f32 %v1687, 1.0
        %v1800 = vadd.f32 %v1689, 1.0
        %v1801 = vadd.f32 %v1691, 1.0
        %v1802 = vadd.f32 %v1693, 1.0
        %v1803 = vadd.f32 %v1695, 1.0
        %v1804 = vadd.f32 %v1697, 1.0
        %v1805 = vadd.f32 %v1699, 1.0
        %v1806 = vadd.f32 %v1701, 1.0
        %v1807 = vadd.f32 %v1703, 1.0
        %v1808 = vadd.f32 %v1705, 1.0
        %v1809 = vadd.f32 %v1707, 1.0
        %v1810 = vadd.f32 %v1709, 1.0
        %v1811 = vadd.f32 %v1711, 1.0
        %v1812 = vadd.f32 %v1713, 1.0
        %v1813 = vadd.f32 %v1715, 1.0
        %v1814 = vadd.f32 %v1717, 1.0
        %v1815 = vadd.f32 %v1719, 1.0
        %v1816 = vadd.f32 %v1721, 1.0
        %v1817 = vadd.f32 %v1723, 1.0
        %v1818 = vadd.f32 %v1725, 1.0
        %v1819 = vadd.f32 %v1727, 1.0
        %v1820 = vadd.f32 %v1729, 1.0
        %v1821 = vadd.f32 %v1731, 1.0
        %v1822 = vadd.f32 %v1733, 1.0
        %v1823 = vadd.f32 %v1735, 1.0
        %v1824 = vadd.f32 %v1737, 1.0
        %v1825 = vadd.f32 %v1739, 1.0
        %v1826 = vadd.f32 %v1741, 1.0
        %v1827 = vadd.f32 %v1743, 1.0
        %v1828 = vadd.f32 %v1745, 1.0
        %v1829 = vadd.f32 %v1747, 1.0
        %v1830 = vadd.f32 %v1749, 1.0
        %v1831 = vadd.f32 %v1751, 1.0
        %v1832 = vrcp.pop %v1752
        %v1833 = vmul.f32 1.0, %v1832
        %v1834 = vrcp.pop %v1753
        %v1835 = vmul.f32 1.0, %v1834
        %v1836 = vrcp.pop %v1754
        %v1837 = vmul.f32 1.0, %v1836
        %v1838 = vrcp.pop %v1755
        %v1839 = vmul.f32 1.0, %v1838
        %v1840 = vrcp.pop %v1756
        %v1841 = vmul.f32 1.0, %v1840
        %v1842 = vrcp.pop %v1757
        %v1843 = vmul.f32 1.0, %v1842
        %v1844 = vrcp.pop %v1758
        %v1845 = vmul.f32 1.0, %v1844
        %v1846 = vrcp.pop %v1759
        %v1847 = vmul.f32 1.0, %v1846
        %v1848 = vrcp.pop %v1760
        %v1849 = vmul.f32 1.0, %v1848
        %v1850 = vrcp.pop %v1761
        %v1851 = vmul.f32 1.0, %v1850
        %v1852 = vrcp.pop %v1762
        %v1853 = vmul.f32 1.0, %v1852
        %v1854 = vrcp.pop %v1763
        %v1855 = vmul.f32 1.0, %v1854
        %v1856 = vrcp.pop %v1764
        %v1857 = vmul.f32 1.0, %v1856
        %v1858 = vrcp.pop %v1765
        %v1859 = vmul.f32 1.0, %v1858
        %v1860 = vrcp.pop %v1766
        %v1861 = vmul.f32 1.0, %v1860
        %v1862 = vrcp.pop %v1767
        %v1863 = vmul.f32 1.0, %v1862
        %v1864 = vrcp.pop %v1768
        %v1865 = vmul.f32 1.0, %v1864
        %v1866 = vrcp.pop %v1769
        %v1867 = vmul.f32 1.0, %v1866
        %v1868 = vrcp.pop %v1770
        %v1869 = vmul.f32 1.0, %v1868
        %v1870 = vrcp.pop %v1771
        %v1871 = vmul.f32 1.0, %v1870
        %v1872 = vrcp.pop %v1772
        %v1873 = vmul.f32 1.0, %v1872
        %v1874 = vrcp.pop %v1773
        %v1875 = vmul.f32 1.0, %v1874
        %v1876 = vrcp.pop %v1774
        %v1877 = vmul.f32 1.0, %v1876
        %v1878 = vrcp.pop %v1775
        %v1879 = vmul.f32 1.0, %v1878
        %v1880 = vrcp.pop %v1776
        %v1881 = vmul.f32 1.0, %v1880
        %v1882 = vrcp.pop %v1777
        %v1883 = vmul.f32 1.0, %v1882
        %v1884 = vrcp.pop %v1778
        %v1885 = vmul.f32 1.0, %v1884
        %v1886 = vrcp.pop %v1779
        %v1887 = vmul.f32 1.0, %v1886
        %v1888 = vrcp.pop %v1780
        %v1889 = vmul.f32 1.0, %v1888
        %v1890 = vrcp.pop %v1781
        %v1891 = vmul.f32 1.0, %v1890
        %v1892 = vrcp.pop %v1782
        %v1893 = vmul.f32 1.0, %v1892
        %v1894 = vrcp.pop %v1783
        %v1895 = vmul.f32 1.0, %v1894
        %v1896 = vrcp.pop %v1784
        %v1897 = vmul.f32 1.0, %v1896
        %v1898 = vrcp.pop %v1785
        %v1899 = vmul.f32 1.0, %v1898
        %v1900 = vrcp.pop %v1786
        %v1901 = vmul.f32 1.0, %v1900
        %v1902 = vrcp.pop %v1787
        %v1903 = vmul.f32 1.0, %v1902
        %v1904 = vrcp.pop %v1788
        %v1905 = vmul.f32 1.0, %v1904
        %v1906 = vrcp.pop %v1789
        %v1907 = vmul.f32 1.0, %v1906
        %v1908 = vrcp.pop %v1790
        %v1909 = vmul.f32 1.0, %v1908
        %v1910 = vrcp.pop %v1791
        %v1911 = vmul.f32 1.0, %v1910
        %v1912 = vrcp.pop %v1792
        %v1913 = vmul.f32 1.0, %v1912
        %v1914 = vrcp.pop %v1793
        %v1915 = vmul.f32 1.0, %v1914
        %v1916 = vrcp.pop %v1794
        %v1917 = vmul.f32 1.0, %v1916
        %v1918 = vrcp.pop %v1795
        %v1919 = vmul.f32 1.0, %v1918
        %v1920 = vrcp.pop %v1796
        %v1921 = vmul.f32 1.0, %v1920
        %v1922 = vrcp.pop %v1797
        %v1923 = vmul.f32 1.0, %v1922
        %v1924 = vrcp.pop %v1798
        %v1925 = vmul.f32 1.0, %v1924
        %v1926 = vrcp.pop %v1799
        %v1927 = vmul.f32 1.0, %v1926
        %v1928 = vrcp.pop %v1800
        %v1929 = vmul.f32 1.0, %v1928
        %v1930 = vrcp.pop %v1801
        %v1931 = vmul.f32 1.0, %v1930
        %v1932 = vrcp.pop %v1802
        %v1933 = vmul.f32 1.0, %v1932
        %v1934 = vrcp.pop %v1803
        %v1935 = vmul.f32 1.0, %v1934
        %v1936 = vrcp.pop %v1804
        %v1937 = vmul.f32 1.0, %v1936
        %v1938 = vrcp.pop %v1805
        %v1939 = vmul.f32 1.0, %v1938
        %v1940 = vrcp.pop %v1806
        %v1941 = vmul.f32 1.0, %v1940
        %v1942 = vrcp.pop %v1807
        %v1943 = vmul.f32 1.0, %v1942
        %v1944 = vrcp.pop %v1808
        %v1945 = vmul.f32 1.0, %v1944
        %v1946 = vrcp.pop %v1809
        %v1947 = vmul.f32 1.0, %v1946
        %v1948 = vrcp.pop %v1810
        %v1949 = vmul.f32 1.0, %v1948
        %v1950 = vrcp.pop %v1811
        %v1951 = vmul.f32 1.0, %v1950
        %v1952 = vrcp.pop %v1812
        %v1953 = vmul.f32 1.0, %v1952
        %v1954 = vrcp.pop %v1813
        %v1955 = vmul.f32 1.0, %v1954
        %v1956 = vrcp.pop %v1814
        %v1957 = vmul.f32 1.0, %v1956
        %v1958 = vrcp.pop %v1815
        %v1959 = vmul.f32 1.0, %v1958
        %v1960 = vrcp.pop %v1816
        %v1961 = vmul.f32 1.0, %v1960
        %v1962 = vrcp.pop %v1817
        %v1963 = vmul.f32 1.0, %v1962
        %v1964 = vrcp.pop %v1818
        %v1965 = vmul.f32 1.0, %v1964
        %v1966 = vrcp.pop %v1819
        %v1967 = vmul.f32 1.0, %v1966
        %v1968 = vrcp.pop %v1820
        %v1969 = vmul.f32 1.0, %v1968
        %v1970 = vrcp.pop %v1821
        %v1971 = vmul.f32 1.0, %v1970
        %v1972 = vrcp.pop %v1822
        %v1973 = vmul.f32 1.0, %v1972
        %v1974 = vrcp.pop %v1823
        %v1975 = vmul.f32 1.0, %v1974
        %v1976 = vrcp.pop %v1824
        %v1977 = vmul.f32 1.0, %v1976
        %v1978 = vrcp.pop %v1825
        %v1979 = vmul.f32 1.0, %v1978
        %v1980 = vrcp.pop %v1826
        %v1981 = vmul.f32 1.0, %v1980
        %v1982 = vrcp.pop %v1827
        %v1983 = vmul.f32 1.0, %v1982
        %v1984 = vrcp.pop %v1828
        %v1985 = vmul.f32 1.0, %v1984
        %v1986 = vrcp.pop %v1829
        %v1987 = vmul.f32 1.0, %v1986
        %v1988 = vrcp.pop %v1830
        %v1989 = vmul.f32 1.0, %v1988
        %v1990 = vrcp.pop %v1831
        %v1991 = vmul.f32 1.0, %v1990
        %v1992 = vmul.f32 %v471, %v1833
        %v1993 = vmul.f32 %v472, %v1835
        %v1994 = vmul.f32 %v473, %v1837
        %v1995 = vmul.f32 %v474, %v1839
        %v1996 = vmul.f32 %v475, %v1841
        %v1997 = vmul.f32 %v476, %v1843
        %v1998 = vmul.f32 %v477, %v1845
        %v1999 = vmul.f32 %v478, %v1847
        %v2000 = vmul.f32 %v479, %v1849
        %v2001 = vmul.f32 %v480, %v1851
        %v2002 = vmul.f32 %v481, %v1853
        %v2003 = vmul.f32 %v482, %v1855
        %v2004 = vmul.f32 %v483, %v1857
        %v2005 = vmul.f32 %v484, %v1859
        %v2006 = vmul.f32 %v485, %v1861
        %v2007 = vmul.f32 %v486, %v1863
        %v2008 = vmul.f32 %v487, %v1865
        %v2009 = vmul.f32 %v488, %v1867
        %v2010 = vmul.f32 %v489, %v1869
        %v2011 = vmul.f32 %v490, %v1871
        %v2012 = vmul.f32 %v491, %v1873
        %v2013 = vmul.f32 %v492, %v1875
        %v2014 = vmul.f32 %v493, %v1877
        %v2015 = vmul.f32 %v494, %v1879
        %v2016 = vmul.f32 %v495, %v1881
        %v2017 = vmul.f32 %v496, %v1883
        %v2018 = vmul.f32 %v497, %v1885
        %v2019 = vmul.f32 %v498, %v1887
        %v2020 = vmul.f32 %v499, %v1889
        %v2021 = vmul.f32 %v500, %v1891
        %v2022 = vmul.f32 %v501, %v1893
        %v2023 = vmul.f32 %v502, %v1895
        %v2024 = vmul.f32 %v503, %v1897
        %v2025 = vmul.f32 %v504, %v1899
        %v2026 = vmul.f32 %v505, %v1901
        %v2027 = vmul.f32 %v506, %v1903
        %v2028 = vmul.f32 %v507, %v1905
        %v2029 = vmul.f32 %v508, %v1907
        %v2030 = vmul.f32 %v509, %v1909
        %v2031 = vmul.f32 %v510, %v1911
        %v2032 = vmul.f32 %v511, %v1913
        %v2033 = vmul.f32 %v512, %v1915
        %v2034 = vmul.f32 %v513, %v1917
        %v2035 = vmul.f32 %v514, %v1919
        %v2036 = vmul.f32 %v515, %v1921
        %v2037 = vmul.f32 %v516, %v1923
        %v2038 = vmul.f32 %v517, %v1925
        %v2039 = vmul.f32 %v518, %v1927
        %v2040 = vmul.f32 %v519, %v1929
        %v2041 = vmul.f32 %v520, %v1931
        %v2042 = vmul.f32 %v521, %v1933
        %v2043 = vmul.f32 %v522, %v1935
        %v2044 = vmul.f32 %v523, %v1937
        %v2045 = vmul.f32 %v524, %v1939
        %v2046 = vmul.f32 %v525, %v1941
        %v2047 = vmul.f32 %v526, %v1943
        %v2048 = vmul.f32 %v527, %v1945
        %v2049 = vmul.f32 %v528, %v1947
        %v2050 = vmul.f32 %v529, %v1949
        %v2051 = vmul.f32 %v530, %v1951
        %v2052 = vmul.f32 %v531, %v1953
        %v2053 = vmul.f32 %v532, %v1955
        %v2054 = vmul.f32 %v533, %v1957
        %v2055 = vmul.f32 %v534, %v1959
        %v2056 = vmul.f32 %v535, %v1961
        %v2057 = vmul.f32 %v536, %v1963
        %v2058 = vmul.f32 %v537, %v1965
        %v2059 = vmul.f32 %v538, %v1967
        %v2060 = vmul.f32 %v539, %v1969
        %v2061 = vmul.f32 %v540, %v1971
        %v2062 = vmul.f32 %v541, %v1973
        %v2063 = vmul.f32 %v542, %v1975
        %v2064 = vmul.f32 %v543, %v1977
        %v2065 = vmul.f32 %v544, %v1979
        %v2066 = vmul.f32 %v545, %v1981
        %v2067 = vmul.f32 %v546, %v1983
        %v2068 = vmul.f32 %v547, %v1985
        %v2069 = vmul.f32 %v548, %v1987
        %v2070 = vmul.f32 %v549, %v1989
        %v2071 = vmul.f32 %v550, %v1991
        %v2072 = vpack.c.bf16 %v1997, %v1992
        %v2073 = vpack.c.bf16 %v1998, %v1993
        %v2074 = vpack.c.bf16 %v1999, %v1994
        %v2075 = vpack.c.bf16 %v2000, %v1995
        %v2076 = vpack.c.bf16 %v2001, %v1996
        %v2077 = vpack.c.bf16 %v2007, %v2002
        %v2078 = vpack.c.bf16 %v2008, %v2003
        %v2079 = vpack.c.bf16 %v2009, %v2004
        %v2080 = vpack.c.bf16 %v2010, %v2005
        %v2081 = vpack.c.bf16 %v2011, %v2006
        %v2082 = vpack.c.bf16 %v2017, %v2012
        %v2083 = vpack.c.bf16 %v2018, %v2013
        %v2084 = vpack.c.bf16 %v2019, %v2014
        %v2085 = vpack.c.bf16 %v2020, %v2015
        %v2086 = vpack.c.bf16 %v2021, %v2016
        %v2087 = vpack.c.bf16 %v2027, %v2022
        %v2088 = vpack.c.bf16 %v2028, %v2023
        %v2089 = vpack.c.bf16 %v2029, %v2024
        %v2090 = vpack.c.bf16 %v2030, %v2025
        %v2091 = vpack.c.bf16 %v2031, %v2026
        %v2092 = vpack.c.bf16 %v2037, %v2032
        %v2093 = vpack.c.bf16 %v2038, %v2033
        %v2094 = vpack.c.bf16 %v2039, %v2034
        %v2095 = vpack.c.bf16 %v2040, %v2035
        %v2096 = vpack.c.bf16 %v2041, %v2036
        %v2097 = vpack.c.bf16 %v2047, %v2042
        %v2098 = vpack.c.bf16 %v2048, %v2043
        %v2099 = vpack.c.bf16 %v2049, %v2044
        %v2100 = vpack.c.bf16 %v2050, %v2045
        %v2101 = vpack.c.bf16 %v2051, %v2046
        %v2102 = vpack.c.bf16 %v2057, %v2052
        %v2103 = vpack.c.bf16 %v2058, %v2053
        %v2104 = vpack.c.bf16 %v2059, %v2054
        %v2105 = vpack.c.bf16 %v2060, %v2055
        %v2106 = vpack.c.bf16 %v2061, %v2056
        %v2107 = vpack.c.bf16 %v2067, %v2062
        %v2108 = vpack.c.bf16 %v2068, %v2063
        %v2109 = vpack.c.bf16 %v2069, %v2064
        %v2110 = vpack.c.bf16 %v2070, %v2065
        %v2111 = vpack.c.bf16 %v2071, %v2066
        %2112 = vmatprep.subr.bf16.mxu0 0
        %2113 = vmatpush1.bf16.msra.mxu0 %v378
        %2114 = vmatprep.subr.bf16.mxu0 0
        %2115 = vmatpush1.bf16.msra.mxu0 %v379
        %2116 = vmatprep.subr.bf16.mxu0 0
        %2117 = vmatpush1.bf16.msra.mxu0 %v380
        %2118 = vmatprep.subr.bf16.mxu0 0
        %2119 = vmatpush1.bf16.msra.mxu0 %v381
        %2120 = vmatprep.subr.bf16.mxu0 0
        %2121 = vmatpush1.bf16.msra.mxu0 %v382
        %2122 = vmatprep.subr.bf16.mxu0 0
        %2123 = vmatpush1.bf16.msra.mxu0 %v383
        %2124 = vmatprep.subr.bf16.mxu0 0
        %2125 = vmatpush1.bf16.msra.mxu0 %v384
        %2126 = vmatprep.subr.bf16.mxu0 0
        %2127 = vmatpush1.bf16.msra.mxu0 %v385
        %2128 = vmatprep.subr.bf16.mxu0 0
        %2129 = vmatpush1.bf16.msra.mxu0 %v386
        %2130 = vmatprep.subr.bf16.mxu0 0
        %2131 = vmatpush1.bf16.msra.mxu0 %v387
        %2132 = vmatprep.subr.bf16.mxu0 0
        %2133 = vmatpush1.bf16.msra.mxu0 %v388
        %2134 = vmatprep.subr.bf16.mxu0 0
        %2135 = vmatpush1.bf16.msra.mxu0 %v389
        %2136 = vmatprep.subr.bf16.mxu0 0
        %2137 = vmatpush1.bf16.msra.mxu0 %v390
        %2138 = vmatprep.subr.bf16.mxu0 0
        %2139 = vmatpush1.bf16.msra.mxu0 %v391
        %2140 = vmatprep.subr.bf16.mxu0 0
        %2141 = vmatpush1.bf16.msra.mxu0 %v392
        %2142 = vmatprep.subr.bf16.mxu0 0
        %2143 = vmatpush1.bf16.msra.mxu0 %v393
        %2144 = vmatprep.mubr.bf16.mxu0 %v2073
        %2145 = vmatmul.mubr.bf16.gmra.mrb[0].mxu0 %v2072
        %v2146 = vpop.f32.mrb[0].mxu0
        %v2147 = vadd.f32 0.0, %v2146
        %v2148 = vpop.f32.mrb[0].mxu0
        %v2149 = vpop.f32.mrb[0].mxu0
        %v2150 = vadd.f32 0.0, %v2149
        %v2151 = vpop.f32.mrb[0].mxu0
        %2152 = vmatprep.mubr.bf16.mxu0 %v2078
        %2153 = vmatmul.mubr.bf16.gmra.mrb[0].mxu0 %v2077
        %v2154 = vpop.f32.mrb[0].mxu0
        %v2155 = vadd.f32 0.0, %v2154
        %v2156 = vpop.f32.mrb[0].mxu0
        %v2157 = vpop.f32.mrb[0].mxu0
        %v2158 = vadd.f32 0.0, %v2157
        %v2159 = vpop.f32.mrb[0].mxu0
        %2160 = vmatprep.mubr.bf16.mxu0 %v2083
        %2161 = vmatmul.mubr.bf16.gmra.mrb[0].mxu0 %v2082
        %v2162 = vpop.f32.mrb[0].mxu0
        %v2163 = vadd.f32 0.0, %v2162
        %v2164 = vpop.f32.mrb[0].mxu0
        %v2165 = vpop.f32.mrb[0].mxu0
        %v2166 = vadd.f32 0.0, %v2165
        %v2167 = vpop.f32.mrb[0].mxu0
        %2168 = vmatprep.mubr.bf16.mxu0 %v2088
        %2169 = vmatmul.mubr.bf16.gmra.mrb[0].mxu0 %v2087
        %v2170 = vpop.f32.mrb[0].mxu0
        %v2171 = vadd.f32 0.0, %v2170
        %v2172 = vpop.f32.mrb[0].mxu0
        %v2173 = vpop.f32.mrb[0].mxu0
        %v2174 = vadd.f32 0.0, %v2173
        %v2175 = vpop.f32.mrb[0].mxu0
        %2176 = vmatprep.mubr.bf16.mxu0 %v2093
        %2177 = vmatmul.mubr.bf16.gmra.mrb[0].mxu0 %v2092
        %v2178 = vpop.f32.mrb[0].mxu0
        %v2179 = vadd.f32 0.0, %v2178
        %v2180 = vpop.f32.mrb[0].mxu0
        %v2181 = vpop.f32.mrb[0].mxu0
        %v2182 = vadd.f32 0.0, %v2181
        %v2183 = vpop.f32.mrb[0].mxu0
        %2184 = vmatprep.mubr.bf16.mxu0 %v2098
        %2185 = vmatmul.mubr.bf16.gmra.mrb[0].mxu0 %v2097
        %v2186 = vpop.f32.mrb[0].mxu0
        %v2187 = vadd.f32 0.0, %v2186
        %v2188 = vpop.f32.mrb[0].mxu0
        %v2189 = vpop.f32.mrb[0].mxu0
        %v2190 = vadd.f32 0.0, %v2189
        %v2191 = vpop.f32.mrb[0].mxu0
        %2192 = vmatprep.mubr.bf16.mxu0 %v2103
        %2193 = vmatmul.mubr.bf16.gmra.mrb[0].mxu0 %v2102
        %v2194 = vpop.f32.mrb[0].mxu0
        %v2195 = vadd.f32 0.0, %v2194
        %v2196 = vpop.f32.mrb[0].mxu0
        %v2197 = vpop.f32.mrb[0].mxu0
        %v2198 = vadd.f32 0.0, %v2197
        %v2199 = vpop.f32.mrb[0].mxu0
        %2200 = vmatprep.mubr.bf16.mxu0 %v2108
        %2201 = vmatmul.mubr.bf16.gmra.mrb[0].mxu0 %v2107
        %v2202 = vpop.f32.mrb[0].mxu0
        %v2203 = vadd.f32 0.0, %v2202
        %v2204 = vpop.f32.mrb[0].mxu0
        %v2205 = vpop.f32.mrb[0].mxu0
        %v2206 = vadd.f32 0.0, %v2205
        %v2207 = vpop.f32.mrb[0].mxu0
        %2208 = vdwg.mxu0
        %2209 = vmatprep.subr.bf16.mxu0 0
        %2210 = vmatpush1.bf16.msra.mxu0 %v394
        %2211 = vmatprep.subr.bf16.mxu0 0
        %2212 = vmatpush1.bf16.msra.mxu0 %v395
        %2213 = vmatprep.subr.bf16.mxu0 0
        %2214 = vmatpush1.bf16.msra.mxu0 %v396
        %2215 = vmatprep.subr.bf16.mxu0 0
        %2216 = vmatpush1.bf16.msra.mxu0 %v397
        %2217 = vmatprep.subr.bf16.mxu0 0
        %2218 = vmatpush1.bf16.msra.mxu0 %v398
        %2219 = vmatprep.subr.bf16.mxu0 0
        %2220 = vmatpush1.bf16.msra.mxu0 %v399
        %2221 = vmatprep.subr.bf16.mxu0 0
        %2222 = vmatpush1.bf16.msra.mxu0 %v400
        %2223 = vmatprep.subr.bf16.mxu0 0
        %2224 = vmatpush1.bf16.msra.mxu0 %v401
        %2225 = vmatprep.subr.bf16.mxu0 0
        %2226 = vmatpush1.bf16.msra.mxu0 %v402
        %2227 = vmatprep.subr.bf16.mxu0 0
        %2228 = vmatpush1.bf16.msra.mxu0 %v403
        %2229 = vmatprep.subr.bf16.mxu0 0
        %2230 = vmatpush1.bf16.msra.mxu0 %v404
        %2231 = vmatprep.subr.bf16.mxu0 0
        %2232 = vmatpush1.bf16.msra.mxu0 %v405
        %2233 = vmatprep.subr.bf16.mxu0 0
        %2234 = vmatpush1.bf16.msra.mxu0 %v406
        %2235 = vmatprep.subr.bf16.mxu0 0
        %2236 = vmatpush1.bf16.msra.mxu0 %v407
        %2237 = vmatprep.subr.bf16.mxu0 0
        %2238 = vmatpush1.bf16.msra.mxu0 %v408
        %2239 = vmatprep.subr.bf16.mxu0 0
        %2240 = vmatpush1.bf16.msra.mxu0 %v409
        %2241 = vmatprep.mubr.bf16.mxu0 %v2075
        %2242 = vmatmul.mubr.bf16.gmra.mrb[0].mxu0 %v2074
        %v2243 = vpop.f32.mrb[0].mxu0
        %v2244 = vadd.f32 %v2147, %v2243
        %v2245 = vpop.f32.mrb[0].mxu0
        %v2246 = vpop.f32.mrb[0].mxu0
        %v2247 = vadd.f32 %v2150, %v2246
        %v2248 = vpop.f32.mrb[0].mxu0
        %2249 = vmatprep.mubr.bf16.mxu0 %v2080
        %2250 = vmatmul.mubr.bf16.gmra.mrb[0].mxu0 %v2079
        %v2251 = vpop.f32.mrb[0].mxu0
        %v2252 = vadd.f32 %v2155, %v2251
        %v2253 = vpop.f32.mrb[0].mxu0
        %v2254 = vpop.f32.mrb[0].mxu0
        %v2255 = vadd.f32 %v2158, %v2254
        %v2256 = vpop.f32.mrb[0].mxu0
        %2257 = vmatprep.mubr.bf16.mxu0 %v2085
        %2258 = vmatmul.mubr.bf16.gmra.mrb[0].mxu0 %v2084
        %v2259 = vpop.f32.mrb[0].mxu0
        %v2260 = vadd.f32 %v2163, %v2259
        %v2261 = vpop.f32.mrb[0].mxu0
        %v2262 = vpop.f32.mrb[0].mxu0
        %v2263 = vadd.f32 %v2166, %v2262
        %v2264 = vpop.f32.mrb[0].mxu0
        %2265 = vmatprep.mubr.bf16.mxu0 %v2090
        %2266 = vmatmul.mubr.bf16.gmra.mrb[0].mxu0 %v2089
        %v2267 = vpop.f32.mrb[0].mxu0
        %v2268 = vadd.f32 %v2171, %v2267
        %v2269 = vpop.f32.mrb[0].mxu0
        %v2270 = vpop.f32.mrb[0].mxu0
        %v2271 = vadd.f32 %v2174, %v2270
        %v2272 = vpop.f32.mrb[0].mxu0
        %2273 = vmatprep.mubr.bf16.mxu0 %v2095
        %2274 = vmatmul.mubr.bf16.gmra.mrb[0].mxu0 %v2094
        %v2275 = vpop.f32.mrb[0].mxu0
        %v2276 = vadd.f32 %v2179, %v2275
        %v2277 = vpop.f32.mrb[0].mxu0
        %v2278 = vpop.f32.mrb[0].mxu0
        %v2279 = vadd.f32 %v2182, %v2278
        %v2280 = vpop.f32.mrb[0].mxu0
        %2281 = vmatprep.mubr.bf16.mxu0 %v2100
        %2282 = vmatmul.mubr.bf16.gmra.mrb[0].mxu0 %v2099
        %v2283 = vpop.f32.mrb[0].mxu0
        %v2284 = vadd.f32 %v2187, %v2283
        %v2285 = vpop.f32.mrb[0].mxu0
        %v2286 = vpop.f32.mrb[0].mxu0
        %v2287 = vadd.f32 %v2190, %v2286
        %v2288 = vpop.f32.mrb[0].mxu0
        %2289 = vmatprep.mubr.bf16.mxu0 %v2105
        %2290 = vmatmul.mubr.bf16.gmra.mrb[0].mxu0 %v2104
        %v2291 = vpop.f32.mrb[0].mxu0
        %v2292 = vadd.f32 %v2195, %v2291
        %v2293 = vpop.f32.mrb[0].mxu0
        %v2294 = vpop.f32.mrb[0].mxu0
        %v2295 = vadd.f32 %v2198, %v2294
        %v2296 = vpop.f32.mrb[0].mxu0
        %2297 = vmatprep.mubr.bf16.mxu0 %v2110
        %2298 = vmatmul.mubr.bf16.gmra.mrb[0].mxu0 %v2109
        %v2299 = vpop.f32.mrb[0].mxu0
        %v2300 = vadd.f32 %v2203, %v2299
        %v2301 = vpop.f32.mrb[0].mxu0
        %v2302 = vpop.f32.mrb[0].mxu0
        %v2303 = vadd.f32 %v2206, %v2302
        %v2304 = vpop.f32.mrb[0].mxu0
        %2305 = vdwg.mxu0
        %2306 = vmatprep.subr.bf16.mxu0 0
        %2307 = vmatpush1.bf16.msra.mxu0 %v410
        %2308 = vmatprep.subr.bf16.mxu0 0
        %2309 = vmatpush1.bf16.msra.mxu0 %v411
        %2310 = vmatprep.subr.bf16.mxu0 0
        %2311 = vmatpush1.bf16.msra.mxu0 %v412
        %2312 = vmatprep.subr.bf16.mxu0 0
        %2313 = vmatpush1.bf16.msra.mxu0 %v413
        %2314 = vmatprep.subr.bf16.mxu0 0
        %2315 = vmatpush1.bf16.msra.mxu0 %v414
        %2316 = vmatprep.subr.bf16.mxu0 0
        %2317 = vmatpush1.bf16.msra.mxu0 %v415
        %2318 = vmatprep.subr.bf16.mxu0 0
        %2319 = vmatpush1.bf16.msra.mxu0 %v416
        %2320 = vmatprep.subr.bf16.mxu0 0
        %2321 = vmatpush1.bf16.msra.mxu0 %v417
        %2322 = vmatprep.subr.bf16.mxu0 0
        %2323 = vmatpush1.bf16.msra.mxu0 0
        %2324 = vmatprep.subr.bf16.mxu0 0
        %2325 = vmatpush1.bf16.msra.mxu0 0
        %2326 = vmatprep.subr.bf16.mxu0 0
        %2327 = vmatpush1.bf16.msra.mxu0 0
        %2328 = vmatprep.subr.bf16.mxu0 0
        %2329 = vmatpush1.bf16.msra.mxu0 0
        %2330 = vmatprep.subr.bf16.mxu0 0
        %2331 = vmatpush1.bf16.msra.mxu0 0
        %2332 = vmatprep.subr.bf16.mxu0 0
        %2333 = vmatpush1.bf16.msra.mxu0 0
        %2334 = vmatprep.subr.bf16.mxu0 0
        %2335 = vmatpush1.bf16.msra.mxu0 0
        %2336 = vmatprep.subr.bf16.mxu0 0
        %2337 = vmatpush1.bf16.msra.mxu0 0
        %2338 = vmatprep.mubr.bf16.mxu0 0
        %2339 = vmatmul.mubr.bf16.gmra.mrb[0].mxu0 %v2076
        %v2340 = vpop.f32.mrb[0].mxu0
        %v2341 = vadd.f32 %v2244, %v2340
        %v2342 = vpop.f32.mrb[0].mxu0
        %v2343 = vpop.f32.mrb[0].mxu0
        %v2344 = vadd.f32 %v2247, %v2343
        %v2345 = vpop.f32.mrb[0].mxu0
        %2346 = vmatprep.mubr.bf16.mxu0 0
        %2347 = vmatmul.mubr.bf16.gmra.mrb[0].mxu0 %v2081
        %v2348 = vpop.f32.mrb[0].mxu0
        %v2349 = vadd.f32 %v2252, %v2348
        %v2350 = vpop.f32.mrb[0].mxu0
        %v2351 = vpop.f32.mrb[0].mxu0
        %v2352 = vadd.f32 %v2255, %v2351
        %v2353 = vpop.f32.mrb[0].mxu0
        %2354 = vmatprep.mubr.bf16.mxu0 0
        %2355 = vmatmul.mubr.bf16.gmra.mrb[0].mxu0 %v2086
        %v2356 = vpop.f32.mrb[0].mxu0
        %v2357 = vadd.f32 %v2260, %v2356
        %v2358 = vpop.f32.mrb[0].mxu0
        %v2359 = vpop.f32.mrb[0].mxu0
        %v2360 = vadd.f32 %v2263, %v2359
        %v2361 = vpop.f32.mrb[0].mxu0
        %2362 = vmatprep.mubr.bf16.mxu0 0
        %2363 = vmatmul.mubr.bf16.gmra.mrb[0].mxu0 %v2091
        %v2364 = vpop.f32.mrb[0].mxu0
        %v2365 = vadd.f32 %v2268, %v2364
        %v2366 = vpop.f32.mrb[0].mxu0
        %v2367 = vpop.f32.mrb[0].mxu0
        %v2368 = vadd.f32 %v2271, %v2367
        %v2369 = vpop.f32.mrb[0].mxu0
        %2370 = vmatprep.mubr.bf16.mxu0 0
        %2371 = vmatmul.mubr.bf16.gmra.mrb[0].mxu0 %v2096
        %v2372 = vpop.f32.mrb[0].mxu0
        %v2373 = vadd.f32 %v2276, %v2372
        %v2374 = vpop.f32.mrb[0].mxu0
        %v2375 = vpop.f32.mrb[0].mxu0
        %v2376 = vadd.f32 %v2279, %v2375
        %v2377 = vpop.f32.mrb[0].mxu0
        %2378 = vmatprep.mubr.bf16.mxu0 0
        %2379 = vmatmul.mubr.bf16.gmra.mrb[0].mxu0 %v2101
        %v2380 = vpop.f32.mrb[0].mxu0
        %v2381 = vadd.f32 %v2284, %v2380
        %v2382 = vpop.f32.mrb[0].mxu0
        %v2383 = vpop.f32.mrb[0].mxu0
        %v2384 = vadd.f32 %v2287, %v2383
        %v2385 = vpop.f32.mrb[0].mxu0
        %2386 = vmatprep.mubr.bf16.mxu0 0
        %2387 = vmatmul.mubr.bf16.gmra.mrb[0].mxu0 %v2106
        %v2388 = vpop.f32.mrb[0].mxu0
        %v2389 = vadd.f32 %v2292, %v2388
        %v2390 = vpop.f32.mrb[0].mxu0
        %v2391 = vpop.f32.mrb[0].mxu0
        %v2392 = vadd.f32 %v2295, %v2391
        %v2393 = vpop.f32.mrb[0].mxu0
        %2394 = vmatprep.mubr.bf16.mxu0 0
        %2395 = vmatmul.mubr.bf16.gmra.mrb[0].mxu0 %v2111
        %v2396 = vpop.f32.mrb[0].mxu0
        %v2397 = vadd.f32 %v2300, %v2396
        %v2398 = vpop.f32.mrb[0].mxu0
        %v2399 = vpop.f32.mrb[0].mxu0
        %v2400 = vadd.f32 %v2303, %v2399
        %v2401 = vpop.f32.mrb[0].mxu0
        %2402 = vdwg.mxu0
        %v2404 = vlaneseq
        %v2405 = vshrl.u32 %v2404, 7
        %v2406 = vsub.s32 0, %v2405
        %v2407 = vrot.slane %v418, %v2406
        %v2409 = vmul.f32 %v2341, %v2407
        %v2410 = vmul.f32 %v2344, %v2407
        %v2411 = vmul.f32 %v2349, %v2407
        %v2412 = vmul.f32 %v2352, %v2407
        %v2413 = vmul.f32 %v2357, %v2407
        %v2414 = vmul.f32 %v2360, %v2407
        %v2415 = vmul.f32 %v2365, %v2407
        %v2416 = vmul.f32 %v2368, %v2407
        %v2417 = vmul.f32 %v2373, %v2407
        %v2418 = vmul.f32 %v2376, %v2407
        %v2419 = vmul.f32 %v2381, %v2407
        %v2420 = vmul.f32 %v2384, %v2407
        %v2421 = vmul.f32 %v2389, %v2407
        %v2422 = vmul.f32 %v2392, %v2407
        %v2423 = vmul.f32 %v2397, %v2407
        %v2424 = vmul.f32 %v2400, %v2407
        %2425 = vst [vmem:[#allocation3] sm:$0xff] %v2409
        %2426 = vst [vmem:[#allocation3 + $0x8] sm:$0xff] %v2410
        %2427 = vst [vmem:[#allocation3 + $0x10] sm:$0xff] %v2411
        %2428 = vst [vmem:[#allocation3 + $0x18] sm:$0xff] %v2412
        %2429 = vst [vmem:[#allocation3 + $0x20] sm:$0xff] %v2413
        %2430 = vst [vmem:[#allocation3 + $0x28] sm:$0xff] %v2414
        %2431 = vst [vmem:[#allocation3 + $0x30] sm:$0xff] %v2415
        %2432 = vst [vmem:[#allocation3 + $0x38] sm:$0xff] %v2416
        %2433 = vst [vmem:[#allocation3 + $0x40] sm:$0xff] %v2417
        %2434 = vst [vmem:[#allocation3 + $0x48] sm:$0xff] %v2418
        %2435 = vst [vmem:[#allocation3 + $0x50] sm:$0xff] %v2419
        %2436 = vst [vmem:[#allocation3 + $0x58] sm:$0xff] %v2420
        %2437 = vst [vmem:[#allocation3 + $0x60] sm:$0xff] %v2421
        %2438 = vst [vmem:[#allocation3 + $0x68] sm:$0xff] %v2422
        %2439 = vst [vmem:[#allocation3 + $0x70] sm:$0xff] %v2423
        %2440 = vst [vmem:[#allocation3 + $0x78] sm:$0xff] %v2424
      $region48: #{_lambda_.4} parent=43 // pred_fallthru
        _
      %p2441 = scmp.gt.s32.totalorder %s24, 0
      // Predicated region
      $region49: #{_lambda_.4} parent=43 // pred_check
        %p2442 = pneg %p2441
      $region50: #{_lambda_.4} parent=43 // pred_check_branch
        %2444 = sbr.rel (%p2442) target = $region52
      $region51: #{_lambda_.4} parent=43 // pred_region
        %s2445 = ssub.s32 %s24, 1
        %s2446 = scvt.s32.f32 %s2445
        %s2447 = sadd.f32 %s2446, -3.5
        %v2448 = vld [vmem:[#allocation2] sm:$0xff]
        %v2449 = vld [vmem:[#allocation2 + $0x8] sm:$0xff]
        %v2450 = vld [vmem:[#allocation2 + $0x10] sm:$0xff]
        %v2451 = vld [vmem:[#allocation2 + $0x18] sm:$0xff]
        %v2452 = vld [vmem:[#allocation2 + $0x20] sm:$0xff]
        %v2453 = vld [vmem:[#allocation2 + $0x28] sm:$0xff]
        %v2454 = vld [vmem:[#allocation2 + $0x30] sm:$0xff]
        %v2455 = vld [vmem:[#allocation2 + $0x38] sm:$0xff]
        %v2456 = vld [vmem:[#allocation2 + $0x40] sm:$0xff]
        %v2457 = vld [vmem:[#allocation2 + $0x48] sm:$0xff]
        %v2458 = vld [vmem:[#allocation2 + $0x50] sm:$0xff]
        %v2459 = vld [vmem:[#allocation2 + $0x58] sm:$0xff]
        %v2460 = vld [vmem:[#allocation2 + $0x60] sm:$0xff]
        %v2461 = vld [vmem:[#allocation2 + $0x68] sm:$0xff]
        %v2462 = vld [vmem:[#allocation2 + $0x70] sm:$0xff]
        %v2463 = vld [vmem:[#allocation2 + $0x78] sm:$0xff]
        %v2464 = vld [vmem:[#allocation2 + $0x80] sm:$0xff]
        %v2465 = vld [vmem:[#allocation2 + $0x88] sm:$0xff]
        %v2466 = vld [vmem:[#allocation2 + $0x90] sm:$0xff]
        %v2467 = vld [vmem:[#allocation2 + $0x98] sm:$0xff]
        %v2468 = vld [vmem:[#allocation2 + $0xa0] sm:$0xff]
        %v2469 = vld [vmem:[#allocation2 + $0xa8] sm:$0xff]
        %v2470 = vld [vmem:[#allocation2 + $0xb0] sm:$0xff]
        %v2471 = vld [vmem:[#allocation2 + $0xb8] sm:$0xff]
        %v2472 = vld [vmem:[#allocation2 + $0xc0] sm:$0xff]
        %v2473 = vld [vmem:[#allocation2 + $0xc8] sm:$0xff]
        %v2474 = vld [vmem:[#allocation2 + $0xd0] sm:$0xff]
        %v2475 = vld [vmem:[#allocation2 + $0xd8] sm:$0xff]
        %v2476 = vld [vmem:[#allocation2 + $0xe0] sm:$0xff]
        %v2477 = vld [vmem:[#allocation2 + $0xe8] sm:$0xff]
        %v2478 = vld [vmem:[#allocation2 + $0xf0] sm:$0xff]
        %v2479 = vld [vmem:[#allocation2 + $0xf8] sm:$0xff]
        %v2480 = vld [vmem:[#allocation2 + $0x100] sm:$0xff]
        %v2481 = vld [vmem:[#allocation2 + $0x108] sm:$0xff]
        %v2482 = vld [vmem:[#allocation2 + $0x110] sm:$0xff]
        %v2483 = vld [vmem:[#allocation2 + $0x118] sm:$0xff]
        %v2484 = vld [vmem:[#allocation2 + $0x120] sm:$0xff]
        %v2485 = vld [vmem:[#allocation2 + $0x128] sm:$0xff]
        %v2486 = vld [vmem:[#allocation2 + $0x130] sm:$0xff]
        %v2487 = vld [vmem:[#allocation2 + $0x138] sm:$0xff]
        %v2488 = vld [vmem:[#allocation2 + $0x140] sm:$0xff]
        %v2489 = vld [vmem:[#allocation2 + $0x148] sm:$0xff]
        %v2490 = vld [vmem:[#allocation2 + $0x150] sm:$0xff]
        %v2491 = vld [vmem:[#allocation2 + $0x158] sm:$0xff]
        %v2492 = vld [vmem:[#allocation2 + $0x160] sm:$0xff]
        %v2493 = vld [vmem:[#allocation2 + $0x168] sm:$0xff]
        %v2494 = vld [vmem:[#allocation2 + $0x170] sm:$0xff]
        %v2495 = vld [vmem:[#allocation2 + $0x178] sm:$0xff]
        %v2496 = vld [vmem:[#allocation2 + $0x180] sm:$0xff]
        %v2497 = vld [vmem:[#allocation2 + $0x188] sm:$0xff]
        %v2498 = vld [vmem:[#allocation2 + $0x190] sm:$0xff]
        %v2499 = vld [vmem:[#allocation2 + $0x198] sm:$0xff]
        %v2500 = vld [vmem:[#allocation2 + $0x1a0] sm:$0xff]
        %v2501 = vld [vmem:[#allocation2 + $0x1a8] sm:$0xff]
        %v2502 = vld [vmem:[#allocation2 + $0x1b0] sm:$0xff]
        %v2503 = vld [vmem:[#allocation2 + $0x1b8] sm:$0xff]
        %v2504 = vld [vmem:[#allocation2 + $0x1c0] sm:$0xff]
        %v2505 = vld [vmem:[#allocation2 + $0x1c8] sm:$0xff]
        %v2506 = vld [vmem:[#allocation2 + $0x1d0] sm:$0xff]
        %v2507 = vld [vmem:[#allocation2 + $0x1d8] sm:$0xff]
        %v2508 = vld [vmem:[#allocation2 + $0x1e0] sm:$0xff]
        %v2509 = vld [vmem:[#allocation2 + $0x1e8] sm:$0xff]
        %v2510 = vld [vmem:[#allocation2 + $0x1f0] sm:$0xff]
        %v2511 = vld [vmem:[#allocation2 + $0x1f8] sm:$0xff]
        %v2512 = vld [vmem:[#allocation2 + $0x200] sm:$0xff]
        %v2513 = vld [vmem:[#allocation2 + $0x208] sm:$0xff]
        %v2514 = vld [vmem:[#allocation2 + $0x210] sm:$0xff]
        %v2515 = vld [vmem:[#allocation2 + $0x218] sm:$0xff]
        %v2516 = vld [vmem:[#allocation2 + $0x220] sm:$0xff]
        %v2517 = vld [vmem:[#allocation2 + $0x228] sm:$0xff]
        %v2518 = vld [vmem:[#allocation2 + $0x230] sm:$0xff]
        %v2519 = vld [vmem:[#allocation2 + $0x238] sm:$0xff]
        %v2520 = vld [vmem:[#allocation2 + $0x240] sm:$0xff]
        %v2521 = vld [vmem:[#allocation2 + $0x248] sm:$0xff]
        %v2522 = vld [vmem:[#allocation2 + $0x250] sm:$0xff]
        %v2523 = vld [vmem:[#allocation2 + $0x258] sm:$0xff]
        %v2524 = vld [vmem:[#allocation2 + $0x260] sm:$0xff]
        %v2525 = vld [vmem:[#allocation2 + $0x268] sm:$0xff]
        %v2526 = vld [vmem:[#allocation2 + $0x270] sm:$0xff]
        %v2527 = vld [vmem:[#allocation2 + $0x278] sm:$0xff]
        %v2528 = vstv %s2447
        %v2529 = vsub.f32 %v2448, %v2528
        %v2530 = vsub.f32 %v2449, %v2528
        %v2531 = vsub.f32 %v2450, %v2528
        %v2532 = vsub.f32 %v2451, %v2528
        %v2533 = vsub.f32 %v2452, %v2528
        %v2534 = vsub.f32 %v2453, %v2528
        %v2535 = vsub.f32 %v2454, %v2528
        %v2536 = vsub.f32 %v2455, %v2528
        %v2537 = vsub.f32 %v2456, %v2528
        %v2538 = vsub.f32 %v2457, %v2528
        %v2539 = vsub.f32 %v2458, %v2528
        %v2540 = vsub.f32 %v2459, %v2528
        %v2541 = vsub.f32 %v2460, %v2528
        %v2542 = vsub.f32 %v2461, %v2528
        %v2543 = vsub.f32 %v2462, %v2528
        %v2544 = vsub.f32 %v2463, %v2528
        %v2545 = vsub.f32 %v2464, %v2528
        %v2546 = vsub.f32 %v2465, %v2528
        %v2547 = vsub.f32 %v2466, %v2528
        %v2548 = vsub.f32 %v2467, %v2528
        %v2549 = vsub.f32 %v2468, %v2528
        %v2550 = vsub.f32 %v2469, %v2528
        %v2551 = vsub.f32 %v2470, %v2528
        %v2552 = vsub.f32 %v2471, %v2528
        %v2553 = vsub.f32 %v2472, %v2528
        %v2554 = vsub.f32 %v2473, %v2528
        %v2555 = vsub.f32 %v2474, %v2528
        %v2556 = vsub.f32 %v2475, %v2528
        %v2557 = vsub.f32 %v2476, %v2528
        %v2558 = vsub.f32 %v2477, %v2528
        %v2559 = vsub.f32 %v2478, %v2528
        %v2560 = vsub.f32 %v2479, %v2528
        %v2561 = vsub.f32 %v2480, %v2528
        %v2562 = vsub.f32 %v2481, %v2528
        %v2563 = vsub.f32 %v2482, %v2528
        %v2564 = vsub.f32 %v2483, %v2528
        %v2565 = vsub.f32 %v2484, %v2528
        %v2566 = vsub.f32 %v2485, %v2528
        %v2567 = vsub.f32 %v2486, %v2528
        %v2568 = vsub.f32 %v2487, %v2528
        %v2569 = vsub.f32 %v2488, %v2528
        %v2570 = vsub.f32 %v2489, %v2528
        %v2571 = vsub.f32 %v2490, %v2528
        %v2572 = vsub.f32 %v2491, %v2528
        %v2573 = vsub.f32 %v2492, %v2528
        %v2574 = vsub.f32 %v2493, %v2528
        %v2575 = vsub.f32 %v2494, %v2528
        %v2576 = vsub.f32 %v2495, %v2528
        %v2577 = vsub.f32 %v2496, %v2528
        %v2578 = vsub.f32 %v2497, %v2528
        %v2579 = vsub.f32 %v2498, %v2528
        %v2580 = vsub.f32 %v2499, %v2528
        %v2581 = vsub.f32 %v2500, %v2528
        %v2582 = vsub.f32 %v2501, %v2528
        %v2583 = vsub.f32 %v2502, %v2528
        %v2584 = vsub.f32 %v2503, %v2528
        %v2585 = vsub.f32 %v2504, %v2528
        %v2586 = vsub.f32 %v2505, %v2528
        %v2587 = vsub.f32 %v2506, %v2528
        %v2588 = vsub.f32 %v2507, %v2528
        %v2589 = vsub.f32 %v2508, %v2528
        %v2590 = vsub.f32 %v2509, %v2528
        %v2591 = vsub.f32 %v2510, %v2528
        %v2592 = vsub.f32 %v2511, %v2528
        %v2593 = vsub.f32 %v2512, %v2528
        %v2594 = vsub.f32 %v2513, %v2528
        %v2595 = vsub.f32 %v2514, %v2528
        %v2596 = vsub.f32 %v2515, %v2528
        %v2597 = vsub.f32 %v2516, %v2528
        %v2598 = vsub.f32 %v2517, %v2528
        %v2599 = vsub.f32 %v2518, %v2528
        %v2600 = vsub.f32 %v2519, %v2528
        %v2601 = vsub.f32 %v2520, %v2528
        %v2602 = vsub.f32 %v2521, %v2528
        %v2603 = vsub.f32 %v2522, %v2528
        %v2604 = vsub.f32 %v2523, %v2528
        %v2605 = vsub.f32 %v2524, %v2528
        %v2606 = vsub.f32 %v2525, %v2528
        %v2607 = vsub.f32 %v2526, %v2528
        %v2608 = vsub.f32 %v2527, %v2528
        %v2609 = vmul.f32 %v2529, %v2529
        %v2610 = vmul.f32 %v2530, %v2530
        %v2611 = vmul.f32 %v2531, %v2531
        %v2612 = vmul.f32 %v2532, %v2532
        %v2613 = vmul.f32 %v2533, %v2533
        %v2614 = vmul.f32 %v2534, %v2534
        %v2615 = vmul.f32 %v2535, %v2535
        %v2616 = vmul.f32 %v2536, %v2536
        %v2617 = vmul.f32 %v2537, %v2537
        %v2618 = vmul.f32 %v2538, %v2538
        %v2619 = vmul.f32 %v2539, %v2539
        %v2620 = vmul.f32 %v2540, %v2540
        %v2621 = vmul.f32 %v2541, %v2541
        %v2622 = vmul.f32 %v2542, %v2542
        %v2623 = vmul.f32 %v2543, %v2543
        %v2624 = vmul.f32 %v2544, %v2544
        %v2625 = vmul.f32 %v2545, %v2545
        %v2626 = vmul.f32 %v2546, %v2546
        %v2627 = vmul.f32 %v2547, %v2547
        %v2628 = vmul.f32 %v2548, %v2548
        %v2629 = vmul.f32 %v2549, %v2549
        %v2630 = vmul.f32 %v2550, %v2550
        %v2631 = vmul.f32 %v2551, %v2551
        %v2632 = vmul.f32 %v2552, %v2552
        %v2633 = vmul.f32 %v2553, %v2553
        %v2634 = vmul.f32 %v2554, %v2554
        %v2635 = vmul.f32 %v2555, %v2555
        %v2636 = vmul.f32 %v2556, %v2556
        %v2637 = vmul.f32 %v2557, %v2557
        %v2638 = vmul.f32 %v2558, %v2558
        %v2639 = vmul.f32 %v2559, %v2559
        %v2640 = vmul.f32 %v2560, %v2560
        %v2641 = vmul.f32 %v2561, %v2561
        %v2642 = vmul.f32 %v2562, %v2562
        %v2643 = vmul.f32 %v2563, %v2563
        %v2644 = vmul.f32 %v2564, %v2564
        %v2645 = vmul.f32 %v2565, %v2565
        %v2646 = vmul.f32 %v2566, %v2566
        %v2647 = vmul.f32 %v2567, %v2567
        %v2648 = vmul.f32 %v2568, %v2568
        %v2649 = vmul.f32 %v2569, %v2569
        %v2650 = vmul.f32 %v2570, %v2570
        %v2651 = vmul.f32 %v2571, %v2571
        %v2652 = vmul.f32 %v2572, %v2572
        %v2653 = vmul.f32 %v2573, %v2573
        %v2654 = vmul.f32 %v2574, %v2574
        %v2655 = vmul.f32 %v2575, %v2575
        %v2656 = vmul.f32 %v2576, %v2576
        %v2657 = vmul.f32 %v2577, %v2577
        %v2658 = vmul.f32 %v2578, %v2578
        %v2659 = vmul.f32 %v2579, %v2579
        %v2660 = vmul.f32 %v2580, %v2580
        %v2661 = vmul.f32 %v2581, %v2581
        %v2662 = vmul.f32 %v2582, %v2582
        %v2663 = vmul.f32 %v2583, %v2583
        %v2664 = vmul.f32 %v2584, %v2584
        %v2665 = vmul.f32 %v2585, %v2585
        %v2666 = vmul.f32 %v2586, %v2586
        %v2667 = vmul.f32 %v2587, %v2587
        %v2668 = vmul.f32 %v2588, %v2588
        %v2669 = vmul.f32 %v2589, %v2589
        %v2670 = vmul.f32 %v2590, %v2590
        %v2671 = vmul.f32 %v2591, %v2591
        %v2672 = vmul.f32 %v2592, %v2592
        %v2673 = vmul.f32 %v2593, %v2593
        %v2674 = vmul.f32 %v2594, %v2594
        %v2675 = vmul.f32 %v2595, %v2595
        %v2676 = vmul.f32 %v2596, %v2596
        %v2677 = vmul.f32 %v2597, %v2597
        %v2678 = vmul.f32 %v2598, %v2598
        %v2679 = vmul.f32 %v2599, %v2599
        %v2680 = vmul.f32 %v2600, %v2600
        %v2681 = vmul.f32 %v2601, %v2601
        %v2682 = vmul.f32 %v2602, %v2602
        %v2683 = vmul.f32 %v2603, %v2603
        %v2684 = vmul.f32 %v2604, %v2604
        %v2685 = vmul.f32 %v2605, %v2605
        %v2686 = vmul.f32 %v2606, %v2606
        %v2687 = vmul.f32 %v2607, %v2607
        %v2688 = vmul.f32 %v2608, %v2608
        %v2689 = vsub.f32 0.0, %v2609
        %v2690 = vsub.f32 0.0, %v2610
        %v2691 = vsub.f32 0.0, %v2611
        %v2692 = vsub.f32 0.0, %v2612
        %v2693 = vsub.f32 0.0, %v2613
        %v2694 = vsub.f32 0.0, %v2614
        %v2695 = vsub.f32 0.0, %v2615
        %v2696 = vsub.f32 0.0, %v2616
        %v2697 = vsub.f32 0.0, %v2617
        %v2698 = vsub.f32 0.0, %v2618
        %v2699 = vsub.f32 0.0, %v2619
        %v2700 = vsub.f32 0.0, %v2620
        %v2701 = vsub.f32 0.0, %v2621
        %v2702 = vsub.f32 0.0, %v2622
        %v2703 = vsub.f32 0.0, %v2623
        %v2704 = vsub.f32 0.0, %v2624
        %v2705 = vsub.f32 0.0, %v2625
        %v2706 = vsub.f32 0.0, %v2626
        %v2707 = vsub.f32 0.0, %v2627
        %v2708 = vsub.f32 0.0, %v2628
        %v2709 = vsub.f32 0.0, %v2629
        %v2710 = vsub.f32 0.0, %v2630
        %v2711 = vsub.f32 0.0, %v2631
        %v2712 = vsub.f32 0.0, %v2632
        %v2713 = vsub.f32 0.0, %v2633
        %v2714 = vsub.f32 0.0, %v2634
        %v2715 = vsub.f32 0.0, %v2635
        %v2716 = vsub.f32 0.0, %v2636
        %v2717 = vsub.f32 0.0, %v2637
        %v2718 = vsub.f32 0.0, %v2638
        %v2719 = vsub.f32 0.0, %v2639
        %v2720 = vsub.f32 0.0, %v2640
        %v2721 = vsub.f32 0.0, %v2641
        %v2722 = vsub.f32 0.0, %v2642
        %v2723 = vsub.f32 0.0, %v2643
        %v2724 = vsub.f32 0.0, %v2644
        %v2725 = vsub.f32 0.0, %v2645
        %v2726 = vsub.f32 0.0, %v2646
        %v2727 = vsub.f32 0.0, %v2647
        %v2728 = vsub.f32 0.0, %v2648
        %v2729 = vsub.f32 0.0, %v2649
        %v2730 = vsub.f32 0.0, %v2650
        %v2731 = vsub.f32 0.0, %v2651
        %v2732 = vsub.f32 0.0, %v2652
        %v2733 = vsub.f32 0.0, %v2653
        %v2734 = vsub.f32 0.0, %v2654
        %v2735 = vsub.f32 0.0, %v2655
        %v2736 = vsub.f32 0.0, %v2656
        %v2737 = vsub.f32 0.0, %v2657
        %v2738 = vsub.f32 0.0, %v2658
        %v2739 = vsub.f32 0.0, %v2659
        %v2740 = vsub.f32 0.0, %v2660
        %v2741 = vsub.f32 0.0, %v2661
        %v2742 = vsub.f32 0.0, %v2662
        %v2743 = vsub.f32 0.0, %v2663
        %v2744 = vsub.f32 0.0, %v2664
        %v2745 = vsub.f32 0.0, %v2665
        %v2746 = vsub.f32 0.0, %v2666
        %v2747 = vsub.f32 0.0, %v2667
        %v2748 = vsub.f32 0.0, %v2668
        %v2749 = vsub.f32 0.0, %v2669
        %v2750 = vsub.f32 0.0, %v2670
        %v2751 = vsub.f32 0.0, %v2671
        %v2752 = vsub.f32 0.0, %v2672
        %v2753 = vsub.f32 0.0, %v2673
        %v2754 = vsub.f32 0.0, %v2674
        %v2755 = vsub.f32 0.0, %v2675
        %v2756 = vsub.f32 0.0, %v2676
        %v2757 = vsub.f32 0.0, %v2677
        %v2758 = vsub.f32 0.0, %v2678
        %v2759 = vsub.f32 0.0, %v2679
        %v2760 = vsub.f32 0.0, %v2680
        %v2761 = vsub.f32 0.0, %v2681
        %v2762 = vsub.f32 0.0, %v2682
        %v2763 = vsub.f32 0.0, %v2683
        %v2764 = vsub.f32 0.0, %v2684
        %v2765 = vsub.f32 0.0, %v2685
        %v2766 = vsub.f32 0.0, %v2686
        %v2767 = vsub.f32 0.0, %v2687
        %v2768 = vsub.f32 0.0, %v2688
        %v2769 = vmul.f32 %v2689, 1.442695
        %v2770 = vpow.pop %v2769
        %v2771 = vmul.f32 %v2690, 1.442695
        %v2772 = vpow.pop %v2771
        %v2773 = vmul.f32 %v2691, 1.442695
        %v2774 = vpow.pop %v2773
        %v2775 = vmul.f32 %v2692, 1.442695
        %v2776 = vpow.pop %v2775
        %v2777 = vmul.f32 %v2693, 1.442695
        %v2778 = vpow.pop %v2777
        %v2779 = vmul.f32 %v2694, 1.442695
        %v2780 = vpow.pop %v2779
        %v2781 = vmul.f32 %v2695, 1.442695
        %v2782 = vpow.pop %v2781
        %v2783 = vmul.f32 %v2696, 1.442695
        %v2784 = vpow.pop %v2783
        %v2785 = vmul.f32 %v2697, 1.442695
        %v2786 = vpow.pop %v2785
        %v2787 = vmul.f32 %v2698, 1.442695
        %v2788 = vpow.pop %v2787
        %v2789 = vmul.f32 %v2699, 1.442695
        %v2790 = vpow.pop %v2789
        %v2791 = vmul.f32 %v2700, 1.442695
        %v2792 = vpow.pop %v2791
        %v2793 = vmul.f32 %v2701, 1.442695
        %v2794 = vpow.pop %v2793
        %v2795 = vmul.f32 %v2702, 1.442695
        %v2796 = vpow.pop %v2795
        %v2797 = vmul.f32 %v2703, 1.442695
        %v2798 = vpow.pop %v2797
        %v2799 = vmul.f32 %v2704, 1.442695
        %v2800 = vpow.pop %v2799
        %v2801 = vmul.f32 %v2705, 1.442695
        %v2802 = vpow.pop %v2801
        %v2803 = vmul.f32 %v2706, 1.442695
        %v2804 = vpow.pop %v2803
        %v2805 = vmul.f32 %v2707, 1.442695
        %v2806 = vpow.pop %v2805
        %v2807 = vmul.f32 %v2708, 1.442695
        %v2808 = vpow.pop %v2807
        %v2809 = vmul.f32 %v2709, 1.442695
        %v2810 = vpow.pop %v2809
        %v2811 = vmul.f32 %v2710, 1.442695
        %v2812 = vpow.pop %v2811
        %v2813 = vmul.f32 %v2711, 1.442695
        %v2814 = vpow.pop %v2813
        %v2815 = vmul.f32 %v2712, 1.442695
        %v2816 = vpow.pop %v2815
        %v2817 = vmul.f32 %v2713, 1.442695
        %v2818 = vpow.pop %v2817
        %v2819 = vmul.f32 %v2714, 1.442695
        %v2820 = vpow.pop %v2819
        %v2821 = vmul.f32 %v2715, 1.442695
        %v2822 = vpow.pop %v2821
        %v2823 = vmul.f32 %v2716, 1.442695
        %v2824 = vpow.pop %v2823
        %v2825 = vmul.f32 %v2717, 1.442695
        %v2826 = vpow.pop %v2825
        %v2827 = vmul.f32 %v2718, 1.442695
        %v2828 = vpow.pop %v2827
        %v2829 = vmul.f32 %v2719, 1.442695
        %v2830 = vpow.pop %v2829
        %v2831 = vmul.f32 %v2720, 1.442695
        %v2832 = vpow.pop %v2831
        %v2833 = vmul.f32 %v2721, 1.442695
        %v2834 = vpow.pop %v2833
        %v2835 = vmul.f32 %v2722, 1.442695
        %v2836 = vpow.pop %v2835
        %v2837 = vmul.f32 %v2723, 1.442695
        %v2838 = vpow.pop %v2837
        %v2839 = vmul.f32 %v2724, 1.442695
        %v2840 = vpow.pop %v2839
        %v2841 = vmul.f32 %v2725, 1.442695
        %v2842 = vpow.pop %v2841
        %v2843 = vmul.f32 %v2726, 1.442695
        %v2844 = vpow.pop %v2843
        %v2845 = vmul.f32 %v2727, 1.442695
        %v2846 = vpow.pop %v2845
        %v2847 = vmul.f32 %v2728, 1.442695
        %v2848 = vpow.pop %v2847
        %v2849 = vmul.f32 %v2729, 1.442695
        %v2850 = vpow.pop %v2849
        %v2851 = vmul.f32 %v2730, 1.442695
        %v2852 = vpow.pop %v2851
        %v2853 = vmul.f32 %v2731, 1.442695
        %v2854 = vpow.pop %v2853
        %v2855 = vmul.f32 %v2732, 1.442695
        %v2856 = vpow.pop %v2855
        %v2857 = vmul.f32 %v2733, 1.442695
        %v2858 = vpow.pop %v2857
        %v2859 = vmul.f32 %v2734, 1.442695
        %v2860 = vpow.pop %v2859
        %v2861 = vmul.f32 %v2735, 1.442695
        %v2862 = vpow.pop %v2861
        %v2863 = vmul.f32 %v2736, 1.442695
        %v2864 = vpow.pop %v2863
        %v2865 = vmul.f32 %v2737, 1.442695
        %v2866 = vpow.pop %v2865
        %v2867 = vmul.f32 %v2738, 1.442695
        %v2868 = vpow.pop %v2867
        %v2869 = vmul.f32 %v2739, 1.442695
        %v2870 = vpow.pop %v2869
        %v2871 = vmul.f32 %v2740, 1.442695
        %v2872 = vpow.pop %v2871
        %v2873 = vmul.f32 %v2741, 1.442695
        %v2874 = vpow.pop %v2873
        %v2875 = vmul.f32 %v2742, 1.442695
        %v2876 = vpow.pop %v2875
        %v2877 = vmul.f32 %v2743, 1.442695
        %v2878 = vpow.pop %v2877
        %v2879 = vmul.f32 %v2744, 1.442695
        %v2880 = vpow.pop %v2879
        %v2881 = vmul.f32 %v2745, 1.442695
        %v2882 = vpow.pop %v2881
        %v2883 = vmul.f32 %v2746, 1.442695
        %v2884 = vpow.pop %v2883
        %v2885 = vmul.f32 %v2747, 1.442695
        %v2886 = vpow.pop %v2885
        %v2887 = vmul.f32 %v2748, 1.442695
        %v2888 = vpow.pop %v2887
        %v2889 = vmul.f32 %v2749, 1.442695
        %v2890 = vpow.pop %v2889
        %v2891 = vmul.f32 %v2750, 1.442695
        %v2892 = vpow.pop %v2891
        %v2893 = vmul.f32 %v2751, 1.442695
        %v2894 = vpow.pop %v2893
        %v2895 = vmul.f32 %v2752, 1.442695
        %v2896 = vpow.pop %v2895
        %v2897 = vmul.f32 %v2753, 1.442695
        %v2898 = vpow.pop %v2897
        %v2899 = vmul.f32 %v2754, 1.442695
        %v2900 = vpow.pop %v2899
        %v2901 = vmul.f32 %v2755, 1.442695
        %v2902 = vpow.pop %v2901
        %v2903 = vmul.f32 %v2756, 1.442695
        %v2904 = vpow.pop %v2903
        %v2905 = vmul.f32 %v2757, 1.442695
        %v2906 = vpow.pop %v2905
        %v2907 = vmul.f32 %v2758, 1.442695
        %v2908 = vpow.pop %v2907
        %v2909 = vmul.f32 %v2759, 1.442695
        %v2910 = vpow.pop %v2909
        %v2911 = vmul.f32 %v2760, 1.442695
        %v2912 = vpow.pop %v2911
        %v2913 = vmul.f32 %v2761, 1.442695
        %v2914 = vpow.pop %v2913
        %v2915 = vmul.f32 %v2762, 1.442695
        %v2916 = vpow.pop %v2915
        %v2917 = vmul.f32 %v2763, 1.442695
        %v2918 = vpow.pop %v2917
        %v2919 = vmul.f32 %v2764, 1.442695
        %v2920 = vpow.pop %v2919
        %v2921 = vmul.f32 %v2765, 1.442695
        %v2922 = vpow.pop %v2921
        %v2923 = vmul.f32 %v2766, 1.442695
        %v2924 = vpow.pop %v2923
        %v2925 = vmul.f32 %v2767, 1.442695
        %v2926 = vpow.pop %v2925
        %v2927 = vmul.f32 %v2768, 1.442695
        %v2928 = vpow.pop %v2927
        %v2929 = vpack.c.bf16 %v2780, %v2770
        %v2930 = vpack.c.bf16 %v2782, %v2772
        %v2931 = vpack.c.bf16 %v2784, %v2774
        %v2932 = vpack.c.bf16 %v2786, %v2776
        %v2933 = vpack.c.bf16 %v2788, %v2778
        %v2934 = vpack.c.bf16 %v2800, %v2790
        %v2935 = vpack.c.bf16 %v2802, %v2792
        %v2936 = vpack.c.bf16 %v2804, %v2794
        %v2937 = vpack.c.bf16 %v2806, %v2796
        %v2938 = vpack.c.bf16 %v2808, %v2798
        %v2939 = vpack.c.bf16 %v2820, %v2810
        %v2940 = vpack.c.bf16 %v2822, %v2812
        %v2941 = vpack.c.bf16 %v2824, %v2814
        %v2942 = vpack.c.bf16 %v2826, %v2816
        %v2943 = vpack.c.bf16 %v2828, %v2818
        %v2944 = vpack.c.bf16 %v2840, %v2830
        %v2945 = vpack.c.bf16 %v2842, %v2832
        %v2946 = vpack.c.bf16 %v2844, %v2834
        %v2947 = vpack.c.bf16 %v2846, %v2836
        %v2948 = vpack.c.bf16 %v2848, %v2838
        %v2949 = vpack.c.bf16 %v2860, %v2850
        %v2950 = vpack.c.bf16 %v2862, %v2852
        %v2951 = vpack.c.bf16 %v2864, %v2854
        %v2952 = vpack.c.bf16 %v2866, %v2856
        %v2953 = vpack.c.bf16 %v2868, %v2858
        %v2954 = vpack.c.bf16 %v2880, %v2870
        %v2955 = vpack.c.bf16 %v2882, %v2872
        %v2956 = vpack.c.bf16 %v2884, %v2874
        %v2957 = vpack.c.bf16 %v2886, %v2876
        %v2958 = vpack.c.bf16 %v2888, %v2878
        %v2959 = vpack.c.bf16 %v2900, %v2890
        %v2960 = vpack.c.bf16 %v2902, %v2892
        %v2961 = vpack.c.bf16 %v2904, %v2894
        %v2962 = vpack.c.bf16 %v2906, %v2896
        %v2963 = vpack.c.bf16 %v2908, %v2898
        %v2964 = vpack.c.bf16 %v2920, %v2910
        %v2965 = vpack.c.bf16 %v2922, %v2912
        %v2966 = vpack.c.bf16 %v2924, %v2914
        %v2967 = vpack.c.bf16 %v2926, %v2916
        %v2968 = vpack.c.bf16 %v2928, %v2918
        %v2969 = vld [vmem:[#allocation3] sm:$0xff]
        %v2970 = vld [vmem:[#allocation3 + $0x8] sm:$0xff]
        %v2971 = vld [vmem:[#allocation3 + $0x10] sm:$0xff]
        %v2972 = vld [vmem:[#allocation3 + $0x18] sm:$0xff]
        %v2973 = vld [vmem:[#allocation3 + $0x20] sm:$0xff]
        %v2974 = vld [vmem:[#allocation3 + $0x28] sm:$0xff]
        %v2975 = vld [vmem:[#allocation3 + $0x30] sm:$0xff]
        %v2976 = vld [vmem:[#allocation3 + $0x38] sm:$0xff]
        %v2977 = vld [vmem:[#allocation3 + $0x40] sm:$0xff]
        %v2978 = vld [vmem:[#allocation3 + $0x48] sm:$0xff]
        %v2979 = vld [vmem:[#allocation3 + $0x50] sm:$0xff]
        %v2980 = vld [vmem:[#allocation3 + $0x58] sm:$0xff]
        %v2981 = vld [vmem:[#allocation3 + $0x60] sm:$0xff]
        %v2982 = vld [vmem:[#allocation3 + $0x68] sm:$0xff]
        %v2983 = vld [vmem:[#allocation3 + $0x70] sm:$0xff]
        %v2984 = vld [vmem:[#allocation3 + $0x78] sm:$0xff]
        %2985 = vmatprep.subr.bf16.mxu0 0
        %2986 = vmatpush1.bf16.msra.mxu0 %v378
        %2987 = vmatprep.subr.bf16.mxu0 0
        %2988 = vmatpush1.bf16.msra.mxu0 %v379
        %2989 = vmatprep.subr.bf16.mxu0 0
        %2990 = vmatpush1.bf16.msra.mxu0 %v380
        %2991 = vmatprep.subr.bf16.mxu0 0
        %2992 = vmatpush1.bf16.msra.mxu0 %v381
        %2993 = vmatprep.subr.bf16.mxu0 0
        %2994 = vmatpush1.bf16.msra.mxu0 %v382
        %2995 = vmatprep.subr.bf16.mxu0 0
        %2996 = vmatpush1.bf16.msra.mxu0 %v383
        %2997 = vmatprep.subr.bf16.mxu0 0
        %2998 = vmatpush1.bf16.msra.mxu0 %v384
        %2999 = vmatprep.subr.bf16.mxu0 0
        %3000 = vmatpush1.bf16.msra.mxu0 %v385
        %3001 = vmatprep.subr.bf16.mxu0 0
        %3002 = vmatpush1.bf16.msra.mxu0 %v386
        %3003 = vmatprep.subr.bf16.mxu0 0
        %3004 = vmatpush1.bf16.msra.mxu0 %v387
        %3005 = vmatprep.subr.bf16.mxu0 0
        %3006 = vmatpush1.bf16.msra.mxu0 %v388
        %3007 = vmatprep.subr.bf16.mxu0 0
        %3008 = vmatpush1.bf16.msra.mxu0 %v389
        %3009 = vmatprep.subr.bf16.mxu0 0
        %3010 = vmatpush1.bf16.msra.mxu0 %v390
        %3011 = vmatprep.subr.bf16.mxu0 0
        %3012 = vmatpush1.bf16.msra.mxu0 %v391
        %3013 = vmatprep.subr.bf16.mxu0 0
        %3014 = vmatpush1.bf16.msra.mxu0 %v392
        %3015 = vmatprep.subr.bf16.mxu0 0
        %3016 = vmatpush1.bf16.msra.mxu0 %v393
        %3017 = vmatprep.mubr.bf16.mxu0 %v2930
        %3018 = vmatmul.mubr.bf16.gmra.mrb[0].mxu0 %v2929
        %v3019 = vpop.f32.mrb[0].mxu0
        %v3020 = vadd.f32 0.0, %v3019
        %v3021 = vpop.f32.mrb[0].mxu0
        %v3022 = vpop.f32.mrb[0].mxu0
        %v3023 = vadd.f32 0.0, %v3022
        %v3024 = vpop.f32.mrb[0].mxu0
        %3025 = vmatprep.mubr.bf16.mxu0 %v2935
        %3026 = vmatmul.mubr.bf16.gmra.mrb[0].mxu0 %v2934
        %v3027 = vpop.f32.mrb[0].mxu0
        %v3028 = vadd.f32 0.0, %v3027
        %v3029 = vpop.f32.mrb[0].mxu0
        %v3030 = vpop.f32.mrb[0].mxu0
        %v3031 = vadd.f32 0.0, %v3030
        %v3032 = vpop.f32.mrb[0].mxu0
        %3033 = vmatprep.mubr.bf16.mxu0 %v2940
        %3034 = vmatmul.mubr.bf16.gmra.mrb[0].mxu0 %v2939
        %v3035 = vpop.f32.mrb[0].mxu0
        %v3036 = vadd.f32 0.0, %v3035
        %v3037 = vpop.f32.mrb[0].mxu0
        %v3038 = vpop.f32.mrb[0].mxu0
        %v3039 = vadd.f32 0.0, %v3038
        %v3040 = vpop.f32.mrb[0].mxu0
        %3041 = vmatprep.mubr.bf16.mxu0 %v2945
        %3042 = vmatmul.mubr.bf16.gmra.mrb[0].mxu0 %v2944
        %v3043 = vpop.f32.mrb[0].mxu0
        %v3044 = vadd.f32 0.0, %v3043
        %v3045 = vpop.f32.mrb[0].mxu0
        %v3046 = vpop.f32.mrb[0].mxu0
        %v3047 = vadd.f32 0.0, %v3046
        %v3048 = vpop.f32.mrb[0].mxu0
        %3049 = vmatprep.mubr.bf16.mxu0 %v2950
        %3050 = vmatmul.mubr.bf16.gmra.mrb[0].mxu0 %v2949
        %v3051 = vpop.f32.mrb[0].mxu0
        %v3052 = vadd.f32 0.0, %v3051
        %v3053 = vpop.f32.mrb[0].mxu0
        %v3054 = vpop.f32.mrb[0].mxu0
        %v3055 = vadd.f32 0.0, %v3054
        %v3056 = vpop.f32.mrb[0].mxu0
        %3057 = vmatprep.mubr.bf16.mxu0 %v2955
        %3058 = vmatmul.mubr.bf16.gmra.mrb[0].mxu0 %v2954
        %v3059 = vpop.f32.mrb[0].mxu0
        %v3060 = vadd.f32 0.0, %v3059
        %v3061 = vpop.f32.mrb[0].mxu0
        %v3062 = vpop.f32.mrb[0].mxu0
        %v3063 = vadd.f32 0.0, %v3062
        %v3064 = vpop.f32.mrb[0].mxu0
        %3065 = vmatprep.mubr.bf16.mxu0 %v2960
        %3066 = vmatmul.mubr.bf16.gmra.mrb[0].mxu0 %v2959
        %v3067 = vpop.f32.mrb[0].mxu0
        %v3068 = vadd.f32 0.0, %v3067
        %v3069 = vpop.f32.mrb[0].mxu0
        %v3070 = vpop.f32.mrb[0].mxu0
        %v3071 = vadd.f32 0.0, %v3070
        %v3072 = vpop.f32.mrb[0].mxu0
        %3073 = vmatprep.mubr.bf16.mxu0 %v2965
        %3074 = vmatmul.mubr.bf16.gmra.mrb[0].mxu0 %v2964
        %v3075 = vpop.f32.mrb[0].mxu0
        %v3076 = vadd.f32 0.0, %v3075
        %v3077 = vpop.f32.mrb[0].mxu0
        %v3078 = vpop.f32.mrb[0].mxu0
        %v3079 = vadd.f32 0.0, %v3078
        %v3080 = vpop.f32.mrb[0].mxu0
        %3081 = vdwg.mxu0
        %3082 = vmatprep.subr.bf16.mxu0 0
        %3083 = vmatpush1.bf16.msra.mxu0 %v394
        %3084 = vmatprep.subr.bf16.mxu0 0
        %3085 = vmatpush1.bf16.msra.mxu0 %v395
        %3086 = vmatprep.subr.bf16.mxu0 0
        %3087 = vmatpush1.bf16.msra.mxu0 %v396
        %3088 = vmatprep.subr.bf16.mxu0 0
        %3089 = vmatpush1.bf16.msra.mxu0 %v397
        %3090 = vmatprep.subr.bf16.mxu0 0
        %3091 = vmatpush1.bf16.msra.mxu0 %v398
        %3092 = vmatprep.subr.bf16.mxu0 0
        %3093 = vmatpush1.bf16.msra.mxu0 %v399
        %3094 = vmatprep.subr.bf16.mxu0 0
        %3095 = vmatpush1.bf16.msra.mxu0 %v400
        %3096 = vmatprep.subr.bf16.mxu0 0
        %3097 = vmatpush1.bf16.msra.mxu0 %v401
        %3098 = vmatprep.subr.bf16.mxu0 0
        %3099 = vmatpush1.bf16.msra.mxu0 %v402
        %3100 = vmatprep.subr.bf16.mxu0 0
        %3101 = vmatpush1.bf16.msra.mxu0 %v403
        %3102 = vmatprep.subr.bf16.mxu0 0
        %3103 = vmatpush1.bf16.msra.mxu0 %v404
        %3104 = vmatprep.subr.bf16.mxu0 0
        %3105 = vmatpush1.bf16.msra.mxu0 %v405
        %3106 = vmatprep.subr.bf16.mxu0 0
        %3107 = vmatpush1.bf16.msra.mxu0 %v406
        %3108 = vmatprep.subr.bf16.mxu0 0
        %3109 = vmatpush1.bf16.msra.mxu0 %v407
        %3110 = vmatprep.subr.bf16.mxu0 0
        %3111 = vmatpush1.bf16.msra.mxu0 %v408
        %3112 = vmatprep.subr.bf16.mxu0 0
        %3113 = vmatpush1.bf16.msra.mxu0 %v409
        %3114 = vmatprep.mubr.bf16.mxu0 %v2932
        %3115 = vmatmul.mubr.bf16.gmra.mrb[0].mxu0 %v2931
        %v3116 = vpop.f32.mrb[0].mxu0
        %v3117 = vadd.f32 %v3020, %v3116
        %v3118 = vpop.f32.mrb[0].mxu0
        %v3119 = vpop.f32.mrb[0].mxu0
        %v3120 = vadd.f32 %v3023, %v3119
        %v3121 = vpop.f32.mrb[0].mxu0
        %3122 = vmatprep.mubr.bf16.mxu0 %v2937
        %3123 = vmatmul.mubr.bf16.gmra.mrb[0].mxu0 %v2936
        %v3124 = vpop.f32.mrb[0].mxu0
        %v3125 = vadd.f32 %v3028, %v3124
        %v3126 = vpop.f32.mrb[0].mxu0
        %v3127 = vpop.f32.mrb[0].mxu0
        %v3128 = vadd.f32 %v3031, %v3127
        %v3129 = vpop.f32.mrb[0].mxu0
        %3130 = vmatprep.mubr.bf16.mxu0 %v2942
        %3131 = vmatmul.mubr.bf16.gmra.mrb[0].mxu0 %v2941
        %v3132 = vpop.f32.mrb[0].mxu0
        %v3133 = vadd.f32 %v3036, %v3132
        %v3134 = vpop.f32.mrb[0].mxu0
        %v3135 = vpop.f32.mrb[0].mxu0
        %v3136 = vadd.f32 %v3039, %v3135
        %v3137 = vpop.f32.mrb[0].mxu0
        %3138 = vmatprep.mubr.bf16.mxu0 %v2947
        %3139 = vmatmul.mubr.bf16.gmra.mrb[0].mxu0 %v2946
        %v3140 = vpop.f32.mrb[0].mxu0
        %v3141 = vadd.f32 %v3044, %v3140
        %v3142 = vpop.f32.mrb[0].mxu0
        %v3143 = vpop.f32.mrb[0].mxu0
        %v3144 = vadd.f32 %v3047, %v3143
        %v3145 = vpop.f32.mrb[0].mxu0
        %3146 = vmatprep.mubr.bf16.mxu0 %v2952
        %3147 = vmatmul.mubr.bf16.gmra.mrb[0].mxu0 %v2951
        %v3148 = vpop.f32.mrb[0].mxu0
        %v3149 = vadd.f32 %v3052, %v3148
        %v3150 = vpop.f32.mrb[0].mxu0
        %v3151 = vpop.f32.mrb[0].mxu0
        %v3152 = vadd.f32 %v3055, %v3151
        %v3153 = vpop.f32.mrb[0].mxu0
        %3154 = vmatprep.mubr.bf16.mxu0 %v2957
        %3155 = vmatmul.mubr.bf16.gmra.mrb[0].mxu0 %v2956
        %v3156 = vpop.f32.mrb[0].mxu0
        %v3157 = vadd.f32 %v3060, %v3156
        %v3158 = vpop.f32.mrb[0].mxu0
        %v3159 = vpop.f32.mrb[0].mxu0
        %v3160 = vadd.f32 %v3063, %v3159
        %v3161 = vpop.f32.mrb[0].mxu0
        %3162 = vmatprep.mubr.bf16.mxu0 %v2962
        %3163 = vmatmul.mubr.bf16.gmra.mrb[0].mxu0 %v2961
        %v3164 = vpop.f32.mrb[0].mxu0
        %v3165 = vadd.f32 %v3068, %v3164
        %v3166 = vpop.f32.mrb[0].mxu0
        %v3167 = vpop.f32.mrb[0].mxu0
        %v3168 = vadd.f32 %v3071, %v3167
        %v3169 = vpop.f32.mrb[0].mxu0
        %3170 = vmatprep.mubr.bf16.mxu0 %v2967
        %3171 = vmatmul.mubr.bf16.gmra.mrb[0].mxu0 %v2966
        %v3172 = vpop.f32.mrb[0].mxu0
        %v3173 = vadd.f32 %v3076, %v3172
        %v3174 = vpop.f32.mrb[0].mxu0
        %v3175 = vpop.f32.mrb[0].mxu0
        %v3176 = vadd.f32 %v3079, %v3175
        %v3177 = vpop.f32.mrb[0].mxu0
        %3178 = vdwg.mxu0
        %3179 = vmatprep.subr.bf16.mxu0 0
        %3180 = vmatpush1.bf16.msra.mxu0 %v410
        %3181 = vmatprep.subr.bf16.mxu0 0
        %3182 = vmatpush1.bf16.msra.mxu0 %v411
        %3183 = vmatprep.subr.bf16.mxu0 0
        %3184 = vmatpush1.bf16.msra.mxu0 %v412
        %3185 = vmatprep.subr.bf16.mxu0 0
        %3186 = vmatpush1.bf16.msra.mxu0 %v413
        %3187 = vmatprep.subr.bf16.mxu0 0
        %3188 = vmatpush1.bf16.msra.mxu0 %v414
        %3189 = vmatprep.subr.bf16.mxu0 0
        %3190 = vmatpush1.bf16.msra.mxu0 %v415
        %3191 = vmatprep.subr.bf16.mxu0 0
        %3192 = vmatpush1.bf16.msra.mxu0 %v416
        %3193 = vmatprep.subr.bf16.mxu0 0
        %3194 = vmatpush1.bf16.msra.mxu0 %v417
        %3195 = vmatprep.subr.bf16.mxu0 0
        %3196 = vmatpush1.bf16.msra.mxu0 0
        %3197 = vmatprep.subr.bf16.mxu0 0
        %3198 = vmatpush1.bf16.msra.mxu0 0
        %3199 = vmatprep.subr.bf16.mxu0 0
        %3200 = vmatpush1.bf16.msra.mxu0 0
        %3201 = vmatprep.subr.bf16.mxu0 0
        %3202 = vmatpush1.bf16.msra.mxu0 0
        %3203 = vmatprep.subr.bf16.mxu0 0
        %3204 = vmatpush1.bf16.msra.mxu0 0
        %3205 = vmatprep.subr.bf16.mxu0 0
        %3206 = vmatpush1.bf16.msra.mxu0 0
        %3207 = vmatprep.subr.bf16.mxu0 0
        %3208 = vmatpush1.bf16.msra.mxu0 0
        %3209 = vmatprep.subr.bf16.mxu0 0
        %3210 = vmatpush1.bf16.msra.mxu0 0
        %3211 = vmatprep.mubr.bf16.mxu0 0
        %3212 = vmatmul.mubr.bf16.gmra.mrb[0].mxu0 %v2933
        %v3213 = vpop.f32.mrb[0].mxu0
        %v3214 = vadd.f32 %v3117, %v3213
        %v3215 = vpop.f32.mrb[0].mxu0
        %v3216 = vpop.f32.mrb[0].mxu0
        %v3217 = vadd.f32 %v3120, %v3216
        %v3218 = vpop.f32.mrb[0].mxu0
        %3219 = vmatprep.mubr.bf16.mxu0 0
        %3220 = vmatmul.mubr.bf16.gmra.mrb[0].mxu0 %v2938
        %v3221 = vpop.f32.mrb[0].mxu0
        %v3222 = vadd.f32 %v3125, %v3221
        %v3223 = vpop.f32.mrb[0].mxu0
        %v3224 = vpop.f32.mrb[0].mxu0
        %v3225 = vadd.f32 %v3128, %v3224
        %v3226 = vpop.f32.mrb[0].mxu0
        %3227 = vmatprep.mubr.bf16.mxu0 0
        %3228 = vmatmul.mubr.bf16.gmra.mrb[0].mxu0 %v2943
        %v3229 = vpop.f32.mrb[0].mxu0
        %v3230 = vadd.f32 %v3133, %v3229
        %v3231 = vpop.f32.mrb[0].mxu0
        %v3232 = vpop.f32.mrb[0].mxu0
        %v3233 = vadd.f32 %v3136, %v3232
        %v3234 = vpop.f32.mrb[0].mxu0
        %3235 = vmatprep.mubr.bf16.mxu0 0
        %3236 = vmatmul.mubr.bf16.gmra.mrb[0].mxu0 %v2948
        %v3237 = vpop.f32.mrb[0].mxu0
        %v3238 = vadd.f32 %v3141, %v3237
        %v3239 = vpop.f32.mrb[0].mxu0
        %v3240 = vpop.f32.mrb[0].mxu0
        %v3241 = vadd.f32 %v3144, %v3240
        %v3242 = vpop.f32.mrb[0].mxu0
        %3243 = vmatprep.mubr.bf16.mxu0 0
        %3244 = vmatmul.mubr.bf16.gmra.mrb[0].mxu0 %v2953
        %v3245 = vpop.f32.mrb[0].mxu0
        %v3246 = vadd.f32 %v3149, %v3245
        %v3247 = vpop.f32.mrb[0].mxu0
        %v3248 = vpop.f32.mrb[0].mxu0
        %v3249 = vadd.f32 %v3152, %v3248
        %v3250 = vpop.f32.mrb[0].mxu0
        %3251 = vmatprep.mubr.bf16.mxu0 0
        %3252 = vmatmul.mubr.bf16.gmra.mrb[0].mxu0 %v2958
        %v3253 = vpop.f32.mrb[0].mxu0
        %v3254 = vadd.f32 %v3157, %v3253
        %v3255 = vpop.f32.mrb[0].mxu0
        %v3256 = vpop.f32.mrb[0].mxu0
        %v3257 = vadd.f32 %v3160, %v3256
        %v3258 = vpop.f32.mrb[0].mxu0
        %3259 = vmatprep.mubr.bf16.mxu0 0
        %3260 = vmatmul.mubr.bf16.gmra.mrb[0].mxu0 %v2963
        %v3261 = vpop.f32.mrb[0].mxu0
        %v3262 = vadd.f32 %v3165, %v3261
        %v3263 = vpop.f32.mrb[0].mxu0
        %v3264 = vpop.f32.mrb[0].mxu0
        %v3265 = vadd.f32 %v3168, %v3264
        %v3266 = vpop.f32.mrb[0].mxu0
        %3267 = vmatprep.mubr.bf16.mxu0 0
        %3268 = vmatmul.mubr.bf16.gmra.mrb[0].mxu0 %v2968
        %v3269 = vpop.f32.mrb[0].mxu0
        %v3270 = vadd.f32 %v3173, %v3269
        %v3271 = vpop.f32.mrb[0].mxu0
        %v3272 = vpop.f32.mrb[0].mxu0
        %v3273 = vadd.f32 %v3176, %v3272
        %v3274 = vpop.f32.mrb[0].mxu0
        %3275 = vdwg.mxu0
        %v3277 = vlaneseq
        %v3278 = vshrl.u32 %v3277, 7
        %v3279 = vsub.s32 0, %v3278
        %v3280 = vrot.slane %v418, %v3279
        %v3282 = vmul.f32 %v3214, %v3280
        %v3283 = vmul.f32 %v3217, %v3280
        %v3284 = vmul.f32 %v3222, %v3280
        %v3285 = vmul.f32 %v3225, %v3280
        %v3286 = vmul.f32 %v3230, %v3280
        %v3287 = vmul.f32 %v3233, %v3280
        %v3288 = vmul.f32 %v3238, %v3280
        %v3289 = vmul.f32 %v3241, %v3280
        %v3290 = vmul.f32 %v3246, %v3280
        %v3291 = vmul.f32 %v3249, %v3280
        %v3292 = vmul.f32 %v3254, %v3280
        %v3293 = vmul.f32 %v3257, %v3280
        %v3294 = vmul.f32 %v3262, %v3280
        %v3295 = vmul.f32 %v3265, %v3280
        %v3296 = vmul.f32 %v3270, %v3280
        %v3297 = vmul.f32 %v3273, %v3280
        %v3298 = vadd.f32 %v2969, %v3282
        %v3299 = vadd.f32 %v2970, %v3283
        %v3300 = vadd.f32 %v2971, %v3284
        %v3301 = vadd.f32 %v2972, %v3285
        %v3302 = vadd.f32 %v2973, %v3286
        %v3303 = vadd.f32 %v2974, %v3287
        %v3304 = vadd.f32 %v2975, %v3288
        %v3305 = vadd.f32 %v2976, %v3289
        %v3306 = vadd.f32 %v2977, %v3290
        %v3307 = vadd.f32 %v2978, %v3291
        %v3308 = vadd.f32 %v2979, %v3292
        %v3309 = vadd.f32 %v2980, %v3293
        %v3310 = vadd.f32 %v2981, %v3294
        %v3311 = vadd.f32 %v2982, %v3295
        %v3312 = vadd.f32 %v2983, %v3296
        %v3313 = vadd.f32 %v2984, %v3297
        %3314 = vst [vmem:[#allocation3] sm:$0xff] %v3298
        %3315 = vst [vmem:[#allocation3 + $0x8] sm:$0xff] %v3299
        %3316 = vst [vmem:[#allocation3 + $0x10] sm:$0xff] %v3300
        %3317 = vst [vmem:[#allocation3 + $0x18] sm:$0xff] %v3301
        %3318 = vst [vmem:[#allocation3 + $0x20] sm:$0xff] %v3302
        %3319 = vst [vmem:[#allocation3 + $0x28] sm:$0xff] %v3303
        %3320 = vst [vmem:[#allocation3 + $0x30] sm:$0xff] %v3304
        %3321 = vst [vmem:[#allocation3 + $0x38] sm:$0xff] %v3305
        %3322 = vst [vmem:[#allocation3 + $0x40] sm:$0xff] %v3306
        %3323 = vst [vmem:[#allocation3 + $0x48] sm:$0xff] %v3307
        %3324 = vst [vmem:[#allocation3 + $0x50] sm:$0xff] %v3308
        %3325 = vst [vmem:[#allocation3 + $0x58] sm:$0xff] %v3309
        %3326 = vst [vmem:[#allocation3 + $0x60] sm:$0xff] %v3310
        %3327 = vst [vmem:[#allocation3 + $0x68] sm:$0xff] %v3311
        %3328 = vst [vmem:[#allocation3 + $0x70] sm:$0xff] %v3312
        %3329 = vst [vmem:[#allocation3 + $0x78] sm:$0xff] %v3313
      $region52: #{_lambda_.4} parent=43 // pred_fallthru
        _
      %p3330 = scmp.eq.s32.totalorder %s24, 8
      // Predicated region
      $region53: #{_lambda_.4} parent=43 // pred_check
        %p3331 = pneg %p3330
      $region54: #{_lambda_.4} parent=43 // pred_check_branch
        %3333 = sbr.rel (%p3331) target = $region56
      $region55: #{_lambda_.4} parent=43 // pred_region
        %v3334 = vld [vmem:[#allocation3] sm:$0xff]
        %v3335 = vld [vmem:[#allocation3 + $0x8] sm:$0xff]
        %v3336 = vld [vmem:[#allocation3 + $0x10] sm:$0xff]
        %v3337 = vld [vmem:[#allocation3 + $0x18] sm:$0xff]
        %v3338 = vld [vmem:[#allocation3 + $0x20] sm:$0xff]
        %v3339 = vld [vmem:[#allocation3 + $0x28] sm:$0xff]
        %v3340 = vld [vmem:[#allocation3 + $0x30] sm:$0xff]
        %v3341 = vld [vmem:[#allocation3 + $0x38] sm:$0xff]
        %v3342 = vld [vmem:[#allocation3 + $0x40] sm:$0xff]
        %v3343 = vld [vmem:[#allocation3 + $0x48] sm:$0xff]
        %v3344 = vld [vmem:[#allocation3 + $0x50] sm:$0xff]
        %v3345 = vld [vmem:[#allocation3 + $0x58] sm:$0xff]
        %v3346 = vld [vmem:[#allocation3 + $0x60] sm:$0xff]
        %v3347 = vld [vmem:[#allocation3 + $0x68] sm:$0xff]
        %v3348 = vld [vmem:[#allocation3 + $0x70] sm:$0xff]
        %v3349 = vld [vmem:[#allocation3 + $0x78] sm:$0xff]
        %v3350 = vld [vmem:[%s347] sm:$0x1]
        %v3352 = vlaneseq
        %v3353 = vshrl.u32 %v3352, 7
        %v3354 = vsub.s32 0, %v3353
        %v3355 = vrot.slane %v3350, %v3354
        %v3357 = vadd.f32 %v3334, %v3355
        %v3358 = vadd.f32 %v3335, %v3355
        %v3359 = vadd.f32 %v3336, %v3355
        %v3360 = vadd.f32 %v3337, %v3355
        %v3361 = vadd.f32 %v3338, %v3355
        %v3362 = vadd.f32 %v3339, %v3355
        %v3363 = vadd.f32 %v3340, %v3355
        %v3364 = vadd.f32 %v3341, %v3355
        %v3365 = vadd.f32 %v3342, %v3355
        %v3366 = vadd.f32 %v3343, %v3355
        %v3367 = vadd.f32 %v3344, %v3355
        %v3368 = vadd.f32 %v3345, %v3355
        %v3369 = vadd.f32 %v3346, %v3355
        %v3370 = vadd.f32 %v3347, %v3355
        %v3371 = vadd.f32 %v3348, %v3355
        %v3372 = vadd.f32 %v3349, %v3355
        %v3373 = vmax.f32 %v3357, 0.0
        %v3374 = vmax.f32 %v3358, 0.0
        %v3375 = vmax.f32 %v3359, 0.0
        %v3376 = vmax.f32 %v3360, 0.0
        %v3377 = vmax.f32 %v3361, 0.0
        %v3378 = vmax.f32 %v3362, 0.0
        %v3379 = vmax.f32 %v3363, 0.0
        %v3380 = vmax.f32 %v3364, 0.0
        %v3381 = vmax.f32 %v3365, 0.0
        %v3382 = vmax.f32 %v3366, 0.0
        %v3383 = vmax.f32 %v3367, 0.0
        %v3384 = vmax.f32 %v3368, 0.0
        %v3385 = vmax.f32 %v3369, 0.0
        %v3386 = vmax.f32 %v3370, 0.0
        %v3387 = vmax.f32 %v3371, 0.0
        %v3388 = vmax.f32 %v3372, 0.0
        %v3389 = vpack.c.bf16 %v3374, %v3373
        %v3390 = vpack.c.bf16 %v3376, %v3375
        %v3391 = vpack.c.bf16 %v3378, %v3377
        %v3392 = vpack.c.bf16 %v3380, %v3379
        %v3393 = vpack.c.bf16 %v3382, %v3381
        %v3394 = vpack.c.bf16 %v3384, %v3383
        %v3395 = vpack.c.bf16 %v3386, %v3385
        %v3396 = vpack.c.bf16 %v3388, %v3387
        %v3405 = vunpack.c.l.b16 %v3389
        %v3406 = vunpack.c.h.b16 %v3389
        %v3407 = vunpack.c.l.b16 %v3390
        %v3408 = vunpack.c.h.b16 %v3390
        %v3409 = vunpack.c.l.b16 %v3391
        %v3410 = vunpack.c.h.b16 %v3391
        %v3411 = vunpack.c.l.b16 %v3392
        %v3412 = vunpack.c.h.b16 %v3392
        %v3413 = vunpack.c.l.b16 %v3393
        %v3414 = vunpack.c.h.b16 %v3393
        %v3415 = vunpack.c.l.b16 %v3394
        %v3416 = vunpack.c.h.b16 %v3394
        %v3417 = vunpack.c.l.b16 %v3395
        %v3418 = vunpack.c.h.b16 %v3395
        %v3419 = vunpack.c.l.b16 %v3396
        %v3420 = vunpack.c.h.b16 %v3396
        %v3421 = vpack.c.b16 %v3405, %v3405
        %v3422 = vpack.c.b16 %v3406, %v3406
        %v3423 = vpack.c.b16 %v3407, %v3407
        %v3424 = vpack.c.b16 %v3408, %v3408
        %v3425 = vpack.c.b16 %v3409, %v3409
        %v3426 = vpack.c.b16 %v3410, %v3410
        %v3427 = vpack.c.b16 %v3411, %v3411
        %v3428 = vpack.c.b16 %v3412, %v3412
        %v3429 = vpack.c.b16 %v3413, %v3413
        %v3430 = vpack.c.b16 %v3414, %v3414
        %v3431 = vpack.c.b16 %v3415, %v3415
        %v3432 = vpack.c.b16 %v3416, %v3416
        %v3433 = vpack.c.b16 %v3417, %v3417
        %v3434 = vpack.c.b16 %v3418, %v3418
        %v3435 = vpack.c.b16 %v3419, %v3419
        %v3436 = vpack.c.b16 %v3420, %v3420
        %3453 = vst [vmem:[%s355] sm:$0xf] %v3421
        %3454 = vst [vmem:[%s355 + $0x4] sm:$0xf] %v3422
        %3455 = vst [vmem:[%s355 + $0x8] sm:$0xf] %v3423
        %3456 = vst [vmem:[%s355 + $0xc] sm:$0xf] %v3424
        %3457 = vst [vmem:[%s355 + $0x10] sm:$0xf] %v3425
        %3458 = vst [vmem:[%s355 + $0x14] sm:$0xf] %v3426
        %3459 = vst [vmem:[%s355 + $0x18] sm:$0xf] %v3427
        %3460 = vst [vmem:[%s355 + $0x1c] sm:$0xf] %v3428
        %3461 = vst [vmem:[%s355 + $0x20] sm:$0xf] %v3429
        %3462 = vst [vmem:[%s355 + $0x24] sm:$0xf] %v3430
        %3463 = vst [vmem:[%s355 + $0x28] sm:$0xf] %v3431
        %3464 = vst [vmem:[%s355 + $0x2c] sm:$0xf] %v3432
        %3465 = vst [vmem:[%s355 + $0x30] sm:$0xf] %v3433
        %3466 = vst [vmem:[%s355 + $0x34] sm:$0xf] %v3434
        %3467 = vst [vmem:[%s355 + $0x38] sm:$0xf] %v3435
        %3468 = vst [vmem:[%s355 + $0x3c] sm:$0xf] %v3436
      $region56: #{_lambda_.4} parent=43 // pred_fallthru
        _
      %s3469 = smul.u32 16, %s23
      %p3470 = scmp.lt.s32.totalorder %s3469, 15
      %s3471 = scalar_select %p3470, %s3469, 15
      %p3472 = scmp.lt.s32.totalorder %s22, 0
      %s3473 = scalar_select %p3472, %s22, 0
      %s3474 = sadd.s32 %s3473, %s3471
      %s3475 = smul.addr %s3474, 4
      %s3476 = scalar_lea.vmem %s6, %s3475
      // Predicated region
      $region57: #{_lambda_.4} parent=43 // pred_check
        %p3477 = pneg %p206
      $region58: #{_lambda_.4} parent=43 // pred_check_branch
        %3479 = sbr.rel (%p3477) target = $region60
      $region59: #{_lambda_.4} parent=43 // pred_region
        %s3480 = smul.u32 16, %s23
      $region60: #{_lambda_.4} parent=43 // pred_fallthru
        _
      // Predicated region
      $region61: #{_lambda_.4} parent=43 // pred_check
        %p3481 = pneg %p206
      $region62: #{_lambda_.4} parent=43 // pred_check_branch
        %3483 = sbr.rel (%p3481) target = $region64
      $region63: #{_lambda_.4} parent=43 // pred_region
        %s3484 = smul.u32 16, %s23
        %p3485 = scmp.lt.s32.totalorder %s3484, 15
        %s3486 = scalar_select %p3485, %s3484, 15
        %p3487 = scmp.lt.s32.totalorder %s22, 0
        %s3488 = scalar_select %p3487, %s22, 0
        %s3489 = sadd.s32 %s3488, %s3486
        %s3490 = smul.addr %s3489, 4
        %s3491 = scalar_lea.vmem %s6, %s3490
      $region64: #{_lambda_.4} parent=43 // pred_fallthru
        _
    $region44: #{_lambda_.4} parent=5 // pred_fallthru
      _
    %p3492 = scmp.le.s32.totalorder 2, %s12
    // Predicated region
    $region65: #{_lambda_.4} parent=5 // pred_check
      %p3493 = pneg %p3492
    $region66: #{_lambda_.4} parent=5 // pred_check_branch
      %3495 = sbr.rel (%p3493) target = $region68
    $region67: #{_lambda_.4} parent=5 // pred_region
      %s3496 = ssub.s32 %s12, 2
    $region68: #{_lambda_.4} parent=5 // pred_fallthru
      _
  $region6: #{_lambda_.4} parent=0 // loop_footer
    %s16 = sadd.s32 1, %s12
  $region7: #{_lambda_.4} parent=0 // loop_footer_branch
    %11 = sbr.rel target = $region3
  $region8: #{_lambda_.4} parent=0 // loop_exit
    _

// kernel: _lambda_.5
$region0: #{_lambda_.5}
  #allocation0 [shape = 'u32[]', space=smem, size = 0x4, offset = 0x4, fixed_abs, tag = 'smem constant byte address 0x4 - core index']
  #allocation1 [shape = 'u32[144,128]{1,0:T(1,128)}', space=vmem, size = 0x12000, scoped, tag = 'internal scratch']
  #allocation2 [shape = 'f32[32,1152]{1,0:T(8,128)}', space=vmem, size = 0x24000, scoped, tag = 'scratch operand']
  #allocation3 [shape = 'f32[32,128]{1,0:T(8,128)}', space=vmem, size = 0x4000, scoped, tag = 'scratch operand']
  %s0 = inlined_call_operand.vmem [shape: bf16[32,1152], index: 0, kind: input, shape index: {}]
  %s1 = inlined_call_operand.vmem [shape: f32[1,1152], index: 1, kind: input, shape index: {}]
  %s2 = inlined_call_operand.vmem [shape: f32[1,1152], index: 2, kind: input, shape index: {}]
  %s3 = inlined_call_operand.vmem [shape: s8[10368,256], index: 3, kind: input, shape index: {}]
  %s4 = inlined_call_operand.vmem [shape: f32[9,1,256], index: 4, kind: input, shape index: {}]
  %s5 = inlined_call_operand.vmem [shape: f32[1,256], index: 5, kind: input, shape index: {}]
  %s6 = inlined_call_operand.vmem [shape: bf16[32,256], index: 6, kind: output, shape index: {}]
  %s7 = sld [smem:[#allocation0]]
  $region144: #{_lambda_.5} parent=0
    _
  %s9 = ssub.s32 1, %s7
  %s10 = scalar_select 0, %s9, %s7
  $region1: #{_lambda_.5} parent=0
    #allocation4 [shape = 'u8[294912]{0}', space=vmem, size = 0x48000, scoped, tag = 'input window, operand 3']
    #allocation5 [shape = 'u8[16384]{0}', space=vmem, size = 0x4000, scoped, tag = 'output window, operand 0']
    loop: start=0, step=1, limit=20
    $region2: #{_lambda_.5} parent=1 // loop_pre_header
      _
    $region3: #{_lambda_.5} parent=1 // loop_header
      %s12 = sphi 0, %s16
      %p13 = scmp.ge.s32.totalorder %s12, 20
      %s19 = sphi 0, %s38
      %s20 = sphi 0, %s34
      %s21 = sphi 0, %s30
      %s22 = sphi 0, %s19
      %s23 = sphi 0, %s20
      %s24 = sphi 0, %s21
      %s25 = sphi 0, %s22
      %s26 = sphi 0, %s23
      %s27 = sphi 0, %s24
      %s41 = sphi 0, %s43
      %s44 = sphi 0, %s41
      %s45 = sphi 0, %s44
      %s61 = sphi 0, %s45
      %s65 = sphi 0, %s65
      %s67 = sphi 0, %s65
      %s68 = sphi 0, %s67
      %s82 = sphi 0, %s68
      %s86 = sphi 0, %s86
      %s88 = sphi 0, %s86
      %s89 = sphi 0, %s88
      %s103 = sphi 0, %s89
      %s111 = sphi 0, %s113
      %s114 = sphi 0, %s111
      %s115 = sphi 0, %s114
      %s131 = sphi 0, %s115
      %s139 = sphi 0, %s141
      %s142 = sphi 0, %s139
      %s143 = sphi 0, %s142
      %s159 = sphi 0, %s143
      %s165 = sphi 0, %s167
      %s168 = sphi 0, %s165
      %s169 = sphi 0, %s168
      %s185 = sphi 0, %s169
      %s193 = sphi 0, %s195
      %s196 = sphi 0, %s193
      %s197 = sphi 0, %s196
      %s213 = sphi 0, %s197
    $region4: #{_lambda_.5} parent=1 // loop_header_branch
      %15 = sbr.rel (%p13) target = $region8
    $region5: #{_lambda_.5} parent=1 // loop_body
      %s17 = ssub.s32 %s12, 1
      %s18 = ssub.s32 %s12, 2
      %s28 = sadd.s32 1, %s21
      %p29 = scmp.ge.s32.totalorder %s28, 9
      %s30 = scalar_select %p29, 0, %s28
      %s31 = sadd.s32 1, %s20
      %s32 = scalar_select %p29, %s31, %s20
      %p33 = scmp.ge.s32.totalorder %s32, 1
      %s34 = scalar_select %p33, 0, %s32
      %s35 = sadd.s32 1, %s19
      %s36 = scalar_select %p33, %s35, %s19
      %p37 = scmp.ge.s32.totalorder %s36, 2
      %s38 = scalar_select %p37, 0, %s36
      %s39 = ssub.s32 %s20, %s34
      %p40 = scmp.eq.s32.totalorder %s39, 0
      %s42 = sadd.s32 %s41, 1
      %s43 = scalar_select %p40, %s41, %s42
      %p46 = pneg %p40
      %p47 = scmp.eq.s32.totalorder %s12, 17
      %p48 = por %p46, %p47
      %p49 = scmp.ne.s32.totalorder %s41, %s44
      %p50 = scmp.eq.s32.totalorder %s12, 0
      %p51 = por %p49, %p50
      %p52 = scmp.ne.s32.totalorder %s41, %s44
      %p53 = scmp.eq.s32.totalorder %s17, 17
      %p54 = por %p52, %p53
      %p55 = scmp.ne.s32.totalorder %s44, %s45
      %p56 = scmp.eq.s32.totalorder %s17, 0
      %p57 = por %p55, %p56
      %p58 = scmp.ne.s32.totalorder %s44, %s45
      %p59 = scmp.eq.s32.totalorder %s18, 17
      %p60 = por %p58, %p59
      %p62 = scmp.ne.s32.totalorder %s45, %s61
      %p63 = scmp.eq.s32.totalorder %s18, 0
      %p64 = por %p62, %p63
      %s66 = sadd.s32 %s65, 1
      %p69 = scmp.eq.s32.totalorder %s12, 17
      %p70 = scmp.ne.s32.totalorder %s65, %s67
      %p71 = scmp.eq.s32.totalorder %s12, 0
      %p72 = por %p70, %p71
      %p73 = scmp.ne.s32.totalorder %s65, %s67
      %p74 = scmp.eq.s32.totalorder %s17, 17
      %p75 = por %p73, %p74
      %p76 = scmp.ne.s32.totalorder %s67, %s68
      %p77 = scmp.eq.s32.totalorder %s17, 0
      %p78 = por %p76, %p77
      %p79 = scmp.ne.s32.totalorder %s67, %s68
      %p80 = scmp.eq.s32.totalorder %s18, 17
      %p81 = por %p79, %p80
      %p83 = scmp.ne.s32.totalorder %s68, %s82
      %p84 = scmp.eq.s32.totalorder %s18, 0
      %p85 = por %p83, %p84
      %s87 = sadd.s32 %s86, 1
      %p90 = scmp.eq.s32.totalorder %s12, 17
      %p91 = scmp.ne.s32.totalorder %s86, %s88
      %p92 = scmp.eq.s32.totalorder %s12, 0
      %p93 = por %p91, %p92
      %p94 = scmp.ne.s32.totalorder %s86, %s88
      %p95 = scmp.eq.s32.totalorder %s17, 17
      %p96 = por %p94, %p95
      %p97 = scmp.ne.s32.totalorder %s88, %s89
      %p98 = scmp.eq.s32.totalorder %s17, 0
      %p99 = por %p97, %p98
      %p100 = scmp.ne.s32.totalorder %s88, %s89
      %p101 = scmp.eq.s32.totalorder %s18, 17
      %p102 = por %p100, %p101
      %p104 = scmp.ne.s32.totalorder %s89, %s103
      %p105 = scmp.eq.s32.totalorder %s18, 0
      %p106 = por %p104, %p105
      %s107 = ssub.s32 %s21, %s30
      %s108 = ssub.s32 %s19, %s38
      %s109 = sor.u32 %s107, %s108
      %p110 = scmp.eq.s32.totalorder %s109, 0
      %s112 = sadd.s32 %s111, 1
      %s113 = scalar_select %p110, %s111, %s112
      %p116 = pneg %p110
      %p117 = scmp.eq.s32.totalorder %s12, 17
      %p118 = por %p116, %p117
      %p119 = scmp.ne.s32.totalorder %s111, %s114
      %p120 = scmp.eq.s32.totalorder %s12, 0
      %p121 = por %p119, %p120
      %p122 = scmp.ne.s32.totalorder %s111, %s114
      %p123 = scmp.eq.s32.totalorder %s17, 17
      %p124 = por %p122, %p123
      %p125 = scmp.ne.s32.totalorder %s114, %s115
      %p126 = scmp.eq.s32.totalorder %s17, 0
      %p127 = por %p125, %p126
      %p128 = scmp.ne.s32.totalorder %s114, %s115
      %p129 = scmp.eq.s32.totalorder %s18, 17
      %p130 = por %p128, %p129
      %p132 = scmp.ne.s32.totalorder %s115, %s131
      %p133 = scmp.eq.s32.totalorder %s18, 0
      %p134 = por %p132, %p133
      %s135 = ssub.s32 %s21, %s30
      %s136 = ssub.s32 %s19, %s38
      %s137 = sor.u32 %s135, %s136
      %p138 = scmp.eq.s32.totalorder %s137, 0
      %s140 = sadd.s32 %s139, 1
      %s141 = scalar_select %p138, %s139, %s140
      %p144 = pneg %p138
      %p145 = scmp.eq.s32.totalorder %s12, 17
      %p146 = por %p144, %p145
      %p147 = scmp.ne.s32.totalorder %s139, %s142
      %p148 = scmp.eq.s32.totalorder %s12, 0
      %p149 = por %p147, %p148
      %p150 = scmp.ne.s32.totalorder %s139, %s142
      %p151 = scmp.eq.s32.totalorder %s17, 17
      %p152 = por %p150, %p151
      %p153 = scmp.ne.s32.totalorder %s142, %s143
      %p154 = scmp.eq.s32.totalorder %s17, 0
      %p155 = por %p153, %p154
      %p156 = scmp.ne.s32.totalorder %s142, %s143
      %p157 = scmp.eq.s32.totalorder %s18, 17
      %p158 = por %p156, %p157
      %p160 = scmp.ne.s32.totalorder %s143, %s159
      %p161 = scmp.eq.s32.totalorder %s18, 0
      %p162 = por %p160, %p161
      %s163 = ssub.s32 %s19, %s38
      %p164 = scmp.eq.s32.totalorder %s163, 0
      %s166 = sadd.s32 %s165, 1
      %s167 = scalar_select %p164, %s165, %s166
      %p170 = pneg %p164
      %p171 = scmp.eq.s32.totalorder %s12, 17
      %p172 = por %p170, %p171
      %p173 = scmp.ne.s32.totalorder %s165, %s168
      %p174 = scmp.eq.s32.totalorder %s12, 0
      %p175 = por %p173, %p174
      %p176 = scmp.ne.s32.totalorder %s165, %s168
      %p177 = scmp.eq.s32.totalorder %s17, 17
      %p178 = por %p176, %p177
      %p179 = scmp.ne.s32.totalorder %s168, %s169
      %p180 = scmp.eq.s32.totalorder %s17, 0
      %p181 = por %p179, %p180
      %p182 = scmp.ne.s32.totalorder %s168, %s169
      %p183 = scmp.eq.s32.totalorder %s18, 17
      %p184 = por %p182, %p183
      %p186 = scmp.ne.s32.totalorder %s169, %s185
      %p187 = scmp.eq.s32.totalorder %s18, 0
      %p188 = por %p186, %p187
      %s189 = ssub.s32 %s20, %s34
      %s190 = ssub.s32 %s19, %s38
      %s191 = sor.u32 %s189, %s190
      %p192 = scmp.eq.s32.totalorder %s191, 0
      %s194 = sadd.s32 %s193, 1
      %s195 = scalar_select %p192, %s193, %s194
      %p198 = pneg %p192
      %p199 = scmp.eq.s32.totalorder %s12, 17
      %p200 = por %p198, %p199
      %p201 = scmp.ne.s32.totalorder %s193, %s196
      %p202 = scmp.eq.s32.totalorder %s12, 0
      %p203 = por %p201, %p202
      %p204 = scmp.ne.s32.totalorder %s193, %s196
      %p205 = scmp.eq.s32.totalorder %s17, 17
      %p206 = por %p204, %p205
      %p207 = scmp.ne.s32.totalorder %s196, %s197
      %p208 = scmp.eq.s32.totalorder %s17, 0
      %p209 = por %p207, %p208
      %p210 = scmp.ne.s32.totalorder %s196, %s197
      %p211 = scmp.eq.s32.totalorder %s18, 17
      %p212 = por %p210, %p211
      %p214 = scmp.ne.s32.totalorder %s197, %s213
      %p215 = scmp.eq.s32.totalorder %s18, 0
      %p216 = por %p214, %p215
      %p217 = scmp.le.s32.totalorder 1, %s12
      %p218 = scmp.lt.s32.totalorder %s12, 19
      %p219 = pnand %p217, %p218
      %p220 = pneg %p219
      // Predicated region
      $region9: #{_lambda_.5} parent=5 // pred_check
        _
      $region10: #{_lambda_.5} parent=5 // pred_check_branch
        %222 = sbr.rel (%p219) target = $region12
      $region11: #{_lambda_.5} parent=5 // pred_region
        %s223 = ssub.s32 %s12, 1
        // Predicated region
        $region13: #{_lambda_.5} parent=11 // pred_check
          %p224 = pneg %p57
        $region14: #{_lambda_.5} parent=11 // pred_check_branch
          %226 = sbr.rel (%p224) target = $region16
        $region15: #{_lambda_.5} parent=11 // pred_region
          %s227 = smul.u32 4, %s23
          %p228 = scmp.lt.s32.totalorder %s227, 3
          %s229 = scalar_select %p228, %s227, 3
          %s230 = smul.addr %s229, 9
          %s231 = smul.addr %s230, 4
          %s232 = scalar_lea.vmem %s0, %s231
          %s233 = smul.u32 4, %s23
        $region16: #{_lambda_.5} parent=11 // pred_fallthru
          _
        // Predicated region
        $region17: #{_lambda_.5} parent=11 // pred_check
          %p234 = pneg %p78
        $region18: #{_lambda_.5} parent=11 // pred_check_branch
          %236 = sbr.rel (%p234) target = $region20
        $region19: #{_lambda_.5} parent=11 // pred_region
          _
        $region20: #{_lambda_.5} parent=11 // pred_fallthru
          _
        // Predicated region
        $region21: #{_lambda_.5} parent=11 // pred_check
          %p237 = pneg %p99
        $region22: #{_lambda_.5} parent=11 // pred_check_branch
          %239 = sbr.rel (%p237) target = $region24
        $region23: #{_lambda_.5} parent=11 // pred_region
          _
        $region24: #{_lambda_.5} parent=11 // pred_fallthru
          _
      $region12: #{_lambda_.5} parent=5 // pred_fallthru
        _
      %p240 = scmp.lt.s32.totalorder %s12, 18
      // Predicated region
      $region25: #{_lambda_.5} parent=5 // pred_check
        %p241 = pneg %p240
      $region26: #{_lambda_.5} parent=5 // pred_check_branch
        %243 = sbr.rel (%p241) target = $region28
      $region27: #{_lambda_.5} parent=5 // pred_region
        // Predicated region
        $region29: #{_lambda_.5} parent=27 // pred_check
          %p244 = pneg %p121
        $region30: #{_lambda_.5} parent=27 // pred_check_branch
          %246 = sbr.rel (%p244) target = $region32
        $region31: #{_lambda_.5} parent=27 // pred_region
          %s247 = sand.u32 %s111, 1
          %s248 = sand.u32 %s111, 1
          %s249 = smul.addr %s248, 288
          %s250 = scalar_lea.vmem [#allocation4], %s249
          %s251 = smul.u32 36, %s21
          %s252 = smul.addr %s251, 2
          %s253 = sadd.s32 %s19, %s252
          %s254 = smul.addr %s253, 8
          %s255 = scalar_lea.vmem %s3, %s254
          // Predicated region
          $region33: #{_lambda_.5} parent=31 // pred_check
            _
          $region34: #{_lambda_.5} parent=31 // pred_check_branch
            %257 = sbr.rel (0) target = $region36
          $region35: #{_lambda_.5} parent=31 // pred_region
            // Predicated region
            $region37: #{_lambda_.5} parent=35 // pred_check
              _
            $region38: #{_lambda_.5} parent=35 // pred_check_branch
              %259 = sbr.rel (0) target = $region40
            $region39: #{_lambda_.5} parent=35 // pred_region
              // Predicated region
              $region52: #{_lambda_.5} parent=39 // pred_check
                _
              $region53: #{_lambda_.5} parent=39 // pred_check_branch
                %344 = sbr.rel (0) target = $region55
              $region54: #{_lambda_.5} parent=39 // pred_region
                loop: start=0, step=1, limit=1
                $region56: #{_lambda_.5} parent=54 // loop_pre_header
                  _
                $region57: #{_lambda_.5} parent=54 // loop_header
                  %s346 = sphi 0, %s350
                  %p347 = scmp.ge.s32.totalorder %s346, 1
                  %s351 = sphi %s255, %s255
                  %s352 = sphi %s250, %s250
                $region58: #{_lambda_.5} parent=54 // loop_header_branch
                  %349 = sbr.rel (%p347) target = $region62
                $region59: #{_lambda_.5} parent=54 // loop_body
                  %v353 = vld [vmem:[%s351] sm:$0xff]
                  %354 = vst [vmem:[%s352] sm:$0xff] %v353
                  %v355 = vld [vmem:[%s351 + $0x10] sm:$0xff]
                  %356 = vst [vmem:[%s352 + $0x8] sm:$0xff] %v355
                  %v357 = vld [vmem:[%s351 + $0x20] sm:$0xff]
                  %358 = vst [vmem:[%s352 + $0x10] sm:$0xff] %v357
                  %v359 = vld [vmem:[%s351 + $0x30] sm:$0xff]
                  %360 = vst [vmem:[%s352 + $0x18] sm:$0xff] %v359
                  %v361 = vld [vmem:[%s351 + $0x40] sm:$0xff]
                  %362 = vst [vmem:[%s352 + $0x20] sm:$0xff] %v361
                  %v363 = vld [vmem:[%s351 + $0x50] sm:$0xff]
                  %364 = vst [vmem:[%s352 + $0x28] sm:$0xff] %v363
                  %v365 = vld [vmem:[%s351 + $0x60] sm:$0xff]
                  %366 = vst [vmem:[%s352 + $0x30] sm:$0xff] %v365
                  %v367 = vld [vmem:[%s351 + $0x70] sm:$0xff]
                  %368 = vst [vmem:[%s352 + $0x38] sm:$0xff] %v367
                  %v369 = vld [vmem:[%s351 + $0x80] sm:$0xff]
                  %370 = vst [vmem:[%s352 + $0x40] sm:$0xff] %v369
                  %v371 = vld [vmem:[%s351 + $0x90] sm:$0xff]
                  %372 = vst [vmem:[%s352 + $0x48] sm:$0xff] %v371
                  %v373 = vld [vmem:[%s351 + $0xa0] sm:$0xff]
                  %374 = vst [vmem:[%s352 + $0x50] sm:$0xff] %v373
                  %v375 = vld [vmem:[%s351 + $0xb0] sm:$0xff]
                  %376 = vst [vmem:[%s352 + $0x58] sm:$0xff] %v375
                  %v377 = vld [vmem:[%s351 + $0xc0] sm:$0xff]
                  %378 = vst [vmem:[%s352 + $0x60] sm:$0xff] %v377
                  %v379 = vld [vmem:[%s351 + $0xd0] sm:$0xff]
                  %380 = vst [vmem:[%s352 + $0x68] sm:$0xff] %v379
                  %v381 = vld [vmem:[%s351 + $0xe0] sm:$0xff]
                  %382 = vst [vmem:[%s352 + $0x70] sm:$0xff] %v381
                  %v383 = vld [vmem:[%s351 + $0xf0] sm:$0xff]
                  %384 = vst [vmem:[%s352 + $0x78] sm:$0xff] %v383
                  %v385 = vld [vmem:[%s351 + $0x100] sm:$0xff]
                  %386 = vst [vmem:[%s352 + $0x80] sm:$0xff] %v385
                  %v387 = vld [vmem:[%s351 + $0x110] sm:$0xff]
                  %388 = vst [vmem:[%s352 + $0x88] sm:$0xff] %v387
                  %v389 = vld [vmem:[%s351 + $0x120] sm:$0xff]
                  %390 = vst [vmem:[%s352 + $0x90] sm:$0xff] %v389
                  %v391 = vld [vmem:[%s351 + $0x130] sm:$0xff]
                  %392 = vst [vmem:[%s352 + $0x98] sm:$0xff] %v391
                  %v393 = vld [vmem:[%s351 + $0x140] sm:$0xff]
                  %394 = vst [vmem:[%s352 + $0xa0] sm:$0xff] %v393
                  %v395 = vld [vmem:[%s351 + $0x150] sm:$0xff]
                  %396 = vst [vmem:[%s352 + $0xa8] sm:$0xff] %v395
                  %v397 = vld [vmem:[%s351 + $0x160] sm:$0xff]
                  %398 = vst [vmem:[%s352 + $0xb0] sm:$0xff] %v397
                  %v399 = vld [vmem:[%s351 + $0x170] sm:$0xff]
                  %400 = vst [vmem:[%s352 + $0xb8] sm:$0xff] %v399
                  %v401 = vld [vmem:[%s351 + $0x180] sm:$0xff]
                  %402 = vst [vmem:[%s352 + $0xc0] sm:$0xff] %v401
                  %v403 = vld [vmem:[%s351 + $0x190] sm:$0xff]
                  %404 = vst [vmem:[%s352 + $0xc8] sm:$0xff] %v403
                  %v405 = vld [vmem:[%s351 + $0x1a0] sm:$0xff]
                  %406 = vst [vmem:[%s352 + $0xd0] sm:$0xff] %v405
                  %v407 = vld [vmem:[%s351 + $0x1b0] sm:$0xff]
                  %408 = vst [vmem:[%s352 + $0xd8] sm:$0xff] %v407
                  %v409 = vld [vmem:[%s351 + $0x1c0] sm:$0xff]
                  %410 = vst [vmem:[%s352 + $0xe0] sm:$0xff] %v409
                  %v411 = vld [vmem:[%s351 + $0x1d0] sm:$0xff]
                  %412 = vst [vmem:[%s352 + $0xe8] sm:$0xff] %v411
                  %v413 = vld [vmem:[%s351 + $0x1e0] sm:$0xff]
                  %414 = vst [vmem:[%s352 + $0xf0] sm:$0xff] %v413
                  %v415 = vld [vmem:[%s351 + $0x1f0] sm:$0xff]
                  %416 = vst [vmem:[%s352 + $0xf8] sm:$0xff] %v415
                  %v417 = vld [vmem:[%s351 + $0x200] sm:$0xff]
                  %418 = vst [vmem:[%s352 + $0x100] sm:$0xff] %v417
                  %v419 = vld [vmem:[%s351 + $0x210] sm:$0xff]
                  %420 = vst [vmem:[%s352 + $0x108] sm:$0xff] %v419
                  %v421 = vld [vmem:[%s351 + $0x220] sm:$0xff]
                  %422 = vst [vmem:[%s352 + $0x110] sm:$0xff] %v421
                  %v423 = vld [vmem:[%s351 + $0x230] sm:$0xff]
                  %424 = vst [vmem:[%s352 + $0x118] sm:$0xff] %v423
                $region60: #{_lambda_.5} parent=54 // loop_footer
                  %s350 = sadd.s32 1, %s346
                $region61: #{_lambda_.5} parent=54 // loop_footer_branch
                  %345 = sbr.rel target = $region57
                $region62: #{_lambda_.5} parent=54 // loop_exit
                  _
              $region55: #{_lambda_.5} parent=39 // pred_fallthru
                _
              // Predicated region
              $region63: #{_lambda_.5} parent=39 // pred_check
                _
              $region64: #{_lambda_.5} parent=39 // pred_check_branch
                %426 = sbr.rel target = $region66
              $region65: #{_lambda_.5} parent=39 // pred_region
                _
              $region66: #{_lambda_.5} parent=39 // pred_fallthru
                _
            $region40: #{_lambda_.5} parent=35 // pred_fallthru
              _
            // Predicated region
            $region41: #{_lambda_.5} parent=35 // pred_check
              _
            $region42: #{_lambda_.5} parent=35 // pred_check_branch
              %261 = sbr.rel target = $region44
            $region43: #{_lambda_.5} parent=35 // pred_region
              loop: start=0, step=1, limit=1
              $region45: #{_lambda_.5} parent=43 // loop_pre_header
                _
              $region46: #{_lambda_.5} parent=43 // loop_header
                %s264 = sphi 0, %s268
                %p265 = scmp.ge.s32.totalorder %s264, 1
                %s269 = sphi %s255, %s255
                %s270 = sphi %s250, %s250
              $region47: #{_lambda_.5} parent=43 // loop_header_branch
                %267 = sbr.rel (%p265) target = $region51
              $region48: #{_lambda_.5} parent=43 // loop_body
                %v271 = vld [vmem:[%s269] sm:$0xff]
                %272 = vst [vmem:[%s270] sm:$0xff] %v271
                %v273 = vld [vmem:[%s269 + $0x10] sm:$0xff]
                %274 = vst [vmem:[%s270 + $0x8] sm:$0xff] %v273
                %v275 = vld [vmem:[%s269 + $0x20] sm:$0xff]
                %276 = vst [vmem:[%s270 + $0x10] sm:$0xff] %v275
                %v277 = vld [vmem:[%s269 + $0x30] sm:$0xff]
                %278 = vst [vmem:[%s270 + $0x18] sm:$0xff] %v277
                %v279 = vld [vmem:[%s269 + $0x40] sm:$0xff]
                %280 = vst [vmem:[%s270 + $0x20] sm:$0xff] %v279
                %v281 = vld [vmem:[%s269 + $0x50] sm:$0xff]
                %282 = vst [vmem:[%s270 + $0x28] sm:$0xff] %v281
                %v283 = vld [vmem:[%s269 + $0x60] sm:$0xff]
                %284 = vst [vmem:[%s270 + $0x30] sm:$0xff] %v283
                %v285 = vld [vmem:[%s269 + $0x70] sm:$0xff]
                %286 = vst [vmem:[%s270 + $0x38] sm:$0xff] %v285
                %v287 = vld [vmem:[%s269 + $0x80] sm:$0xff]
                %288 = vst [vmem:[%s270 + $0x40] sm:$0xff] %v287
                %v289 = vld [vmem:[%s269 + $0x90] sm:$0xff]
                %290 = vst [vmem:[%s270 + $0x48] sm:$0xff] %v289
                %v291 = vld [vmem:[%s269 + $0xa0] sm:$0xff]
                %292 = vst [vmem:[%s270 + $0x50] sm:$0xff] %v291
                %v293 = vld [vmem:[%s269 + $0xb0] sm:$0xff]
                %294 = vst [vmem:[%s270 + $0x58] sm:$0xff] %v293
                %v295 = vld [vmem:[%s269 + $0xc0] sm:$0xff]
                %296 = vst [vmem:[%s270 + $0x60] sm:$0xff] %v295
                %v297 = vld [vmem:[%s269 + $0xd0] sm:$0xff]
                %298 = vst [vmem:[%s270 + $0x68] sm:$0xff] %v297
                %v299 = vld [vmem:[%s269 + $0xe0] sm:$0xff]
                %300 = vst [vmem:[%s270 + $0x70] sm:$0xff] %v299
                %v301 = vld [vmem:[%s269 + $0xf0] sm:$0xff]
                %302 = vst [vmem:[%s270 + $0x78] sm:$0xff] %v301
                %v303 = vld [vmem:[%s269 + $0x100] sm:$0xff]
                %304 = vst [vmem:[%s270 + $0x80] sm:$0xff] %v303
                %v305 = vld [vmem:[%s269 + $0x110] sm:$0xff]
                %306 = vst [vmem:[%s270 + $0x88] sm:$0xff] %v305
                %v307 = vld [vmem:[%s269 + $0x120] sm:$0xff]
                %308 = vst [vmem:[%s270 + $0x90] sm:$0xff] %v307
                %v309 = vld [vmem:[%s269 + $0x130] sm:$0xff]
                %310 = vst [vmem:[%s270 + $0x98] sm:$0xff] %v309
                %v311 = vld [vmem:[%s269 + $0x140] sm:$0xff]
                %312 = vst [vmem:[%s270 + $0xa0] sm:$0xff] %v311
                %v313 = vld [vmem:[%s269 + $0x150] sm:$0xff]
                %314 = vst [vmem:[%s270 + $0xa8] sm:$0xff] %v313
                %v315 = vld [vmem:[%s269 + $0x160] sm:$0xff]
                %316 = vst [vmem:[%s270 + $0xb0] sm:$0xff] %v315
                %v317 = vld [vmem:[%s269 + $0x170] sm:$0xff]
                %318 = vst [vmem:[%s270 + $0xb8] sm:$0xff] %v317
                %v319 = vld [vmem:[%s269 + $0x180] sm:$0xff]
                %320 = vst [vmem:[%s270 + $0xc0] sm:$0xff] %v319
                %v321 = vld [vmem:[%s269 + $0x190] sm:$0xff]
                %322 = vst [vmem:[%s270 + $0xc8] sm:$0xff] %v321
                %v323 = vld [vmem:[%s269 + $0x1a0] sm:$0xff]
                %324 = vst [vmem:[%s270 + $0xd0] sm:$0xff] %v323
                %v325 = vld [vmem:[%s269 + $0x1b0] sm:$0xff]
                %326 = vst [vmem:[%s270 + $0xd8] sm:$0xff] %v325
                %v327 = vld [vmem:[%s269 + $0x1c0] sm:$0xff]
                %328 = vst [vmem:[%s270 + $0xe0] sm:$0xff] %v327
                %v329 = vld [vmem:[%s269 + $0x1d0] sm:$0xff]
                %330 = vst [vmem:[%s270 + $0xe8] sm:$0xff] %v329
                %v331 = vld [vmem:[%s269 + $0x1e0] sm:$0xff]
                %332 = vst [vmem:[%s270 + $0xf0] sm:$0xff] %v331
                %v333 = vld [vmem:[%s269 + $0x1f0] sm:$0xff]
                %334 = vst [vmem:[%s270 + $0xf8] sm:$0xff] %v333
                %v335 = vld [vmem:[%s269 + $0x200] sm:$0xff]
                %336 = vst [vmem:[%s270 + $0x100] sm:$0xff] %v335
                %v337 = vld [vmem:[%s269 + $0x210] sm:$0xff]
                %338 = vst [vmem:[%s270 + $0x108] sm:$0xff] %v337
                %v339 = vld [vmem:[%s269 + $0x220] sm:$0xff]
                %340 = vst [vmem:[%s270 + $0x110] sm:$0xff] %v339
                %v341 = vld [vmem:[%s269 + $0x230] sm:$0xff]
                %342 = vst [vmem:[%s270 + $0x118] sm:$0xff] %v341
              $region49: #{_lambda_.5} parent=43 // loop_footer
                %s268 = sadd.s32 1, %s264
              $region50: #{_lambda_.5} parent=43 // loop_footer_branch
                %263 = sbr.rel target = $region46
              $region51: #{_lambda_.5} parent=43 // loop_exit
                _
            $region44: #{_lambda_.5} parent=35 // pred_fallthru
              _
          $region36: #{_lambda_.5} parent=31 // pred_fallthru
            _
          %427 = vnop
        $region32: #{_lambda_.5} parent=27 // pred_fallthru
          _
        // Predicated region
        $region67: #{_lambda_.5} parent=27 // pred_check
          %p428 = pneg %p149
        $region68: #{_lambda_.5} parent=27 // pred_check_branch
          %430 = sbr.rel (%p428) target = $region70
        $region69: #{_lambda_.5} parent=27 // pred_region
          %p431 = scmp.lt.s32.totalorder %s21, 8
          %s432 = scalar_select %p431, %s21, 8
          %p433 = scmp.lt.s32.totalorder %s19, 1
          %s434 = scalar_select %p433, %s19, 1
          %s435 = smul.addr %s432, 2
          %s436 = sadd.s32 %s434, %s435
          %s437 = scalar_lea.vmem %s4, %s436
        $region70: #{_lambda_.5} parent=27 // pred_fallthru
          _
        // Predicated region
        $region71: #{_lambda_.5} parent=27 // pred_check
          %p438 = pneg %p175
        $region72: #{_lambda_.5} parent=27 // pred_check_branch
          %440 = sbr.rel (%p438) target = $region74
        $region73: #{_lambda_.5} parent=27 // pred_region
          %p441 = scmp.lt.s32.totalorder %s19, 1
          %s442 = scalar_select %p441, %s19, 1
          %s443 = scalar_lea.vmem %s5, %s442
        $region74: #{_lambda_.5} parent=27 // pred_fallthru
          _
      $region28: #{_lambda_.5} parent=5 // pred_fallthru
        _
      %p444 = scmp.le.s32.totalorder 1, %s12
      %p445 = scmp.lt.s32.totalorder %s12, 19
      %p446 = pnand %p444, %p445
      %p447 = pneg %p446
      // Predicated region
      $region75: #{_lambda_.5} parent=5 // pred_check
        _
      $region76: #{_lambda_.5} parent=5 // pred_check_branch
        %449 = sbr.rel (%p446) target = $region78
      $region77: #{_lambda_.5} parent=5 // pred_region
        %s450 = ssub.s32 %s12, 1
        %s451 = sand.u32 %s114, 1
        %s452 = sand.u32 %s114, 1
        %s453 = smul.addr %s452, 288
        %s454 = scalar_lea.vmem [#allocation4], %s453
        // Predicated region
        $region79: #{_lambda_.5} parent=77 // pred_check
          %p455 = pneg %p127
        $region80: #{_lambda_.5} parent=77 // pred_check_branch
          %457 = sbr.rel (%p455) target = $region82
        $region81: #{_lambda_.5} parent=77 // pred_region
          _
        $region82: #{_lambda_.5} parent=77 // pred_fallthru
          _
        %s458 = smul.u32 4, %s23
        %p459 = scmp.lt.s32.totalorder %s458, 3
        %s460 = scalar_select %p459, %s458, 3
        %s461 = smul.addr %s460, 9
        %s462 = smul.addr %s461, 4
        %s463 = scalar_lea.vmem %s0, %s462
        %p464 = pneg %p57
        %p465 = pneg %p54
        %p466 = pneg %p78
        %p467 = pneg %p75
        %p468 = pneg %p99
        %p469 = pneg %p96
        %s470 = sand.u32 %s114, 1
        %s471 = sand.u32 %s114, 1
        %s472 = smul.addr %s471, 288
        %s473 = scalar_lea.vmem [#allocation4], %s472
        %p474 = pneg %p127
        %p475 = pneg %p124
        %p476 = scmp.lt.s32.totalorder %s24, 8
        %s477 = scalar_select %p476, %s24, 8
        %p478 = scmp.lt.s32.totalorder %s22, 1
        %s479 = scalar_select %p478, %s22, 1
        %s480 = smul.addr %s477, 2
        %s481 = sadd.s32 %s479, %s480
        %s482 = scalar_lea.vmem %s4, %s481
        %p483 = pneg %p155
        %p484 = pneg %p152
        %p485 = scmp.lt.s32.totalorder %s22, 1
        %s486 = scalar_select %p485, %s22, 1
        %s487 = scalar_lea.vmem %s5, %s486
        %p488 = pneg %p181
        %p489 = pneg %p178
        %p490 = pneg %p209
        %p491 = pneg %p206
        %s492 = sand.u32 %s196, 1
        %s493 = sand.u32 %s196, 1
        %s494 = smul.addr %s493, 16
        %s495 = scalar_lea.vmem [#allocation5], %s494
        %s496 = smul.u32 4, %s23
        %p497 = scmp.lt.s32.totalorder %s496, 3
        %s498 = scalar_select %p497, %s496, 3
        %s499 = smul.addr %s498, 9
        %s500 = smul.addr %s499, 4
        %s501 = scalar_lea.vmem %s0, %s500
        %s502 = smul.u32 4, %s23
        %s503 = smul.u32 36, %s24
        %p504 = scmp.lt.s32.totalorder %s24, 8
        %s505 = scalar_select %p504, %s24, 8
        %p506 = scmp.lt.s32.totalorder %s22, 1
        %s507 = scalar_select %p506, %s22, 1
        %s508 = smul.addr %s505, 2
        %s509 = sadd.s32 %s507, %s508
        %s510 = scalar_lea.vmem %s4, %s509
        %p511 = scmp.lt.s32.totalorder %s22, 1
        %s512 = scalar_select %p511, %s22, 1
        %s513 = scalar_lea.vmem %s5, %s512
        %s514 = smul.u32 4, %s23
        %v516 = vld [vmem:[%s454] sm:$0xff]
        %v517 = vld [vmem:[%s454 + $0x8] sm:$0xff]
        %v518 = vld [vmem:[%s454 + $0x10] sm:$0xff]
        %v519 = vld [vmem:[%s454 + $0x18] sm:$0xff]
        %v520 = vld [vmem:[%s454 + $0x20] sm:$0xff]
        %v521 = vld [vmem:[%s454 + $0x28] sm:$0xff]
        %v522 = vld [vmem:[%s454 + $0x30] sm:$0xff]
        %v523 = vld [vmem:[%s454 + $0x38] sm:$0xff]
        %v524 = vld [vmem:[%s454 + $0x40] sm:$0xff]
        %v525 = vld [vmem:[%s454 + $0x48] sm:$0xff]
        %v526 = vld [vmem:[%s454 + $0x50] sm:$0xff]
        %v527 = vld [vmem:[%s454 + $0x58] sm:$0xff]
        %v528 = vld [vmem:[%s454 + $0x60] sm:$0xff]
        %v529 = vld [vmem:[%s454 + $0x68] sm:$0xff]
        %v530 = vld [vmem:[%s454 + $0x70] sm:$0xff]
        %v531 = vld [vmem:[%s454 + $0x78] sm:$0xff]
        %v532 = vld [vmem:[%s454 + $0x80] sm:$0xff]
        %v533 = vld [vmem:[%s454 + $0x88] sm:$0xff]
        %v534 = vld [vmem:[%s454 + $0x90] sm:$0xff]
        %v535 = vld [vmem:[%s454 + $0x98] sm:$0xff]
        %v536 = vld [vmem:[%s454 + $0xa0] sm:$0xff]
        %v537 = vld [vmem:[%s454 + $0xa8] sm:$0xff]
        %v538 = vld [vmem:[%s454 + $0xb0] sm:$0xff]
        %v539 = vld [vmem:[%s454 + $0xb8] sm:$0xff]
        %v540 = vld [vmem:[%s454 + $0xc0] sm:$0xff]
        %v541 = vld [vmem:[%s454 + $0xc8] sm:$0xff]
        %v542 = vld [vmem:[%s454 + $0xd0] sm:$0xff]
        %v543 = vld [vmem:[%s454 + $0xd8] sm:$0xff]
        %v544 = vld [vmem:[%s454 + $0xe0] sm:$0xff]
        %v545 = vld [vmem:[%s454 + $0xe8] sm:$0xff]
        %v546 = vld [vmem:[%s454 + $0xf0] sm:$0xff]
        %v547 = vld [vmem:[%s454 + $0xf8] sm:$0xff]
        %v548 = vld [vmem:[%s454 + $0x100] sm:$0xff]
        %v549 = vld [vmem:[%s454 + $0x108] sm:$0xff]
        %v550 = vld [vmem:[%s454 + $0x110] sm:$0xff]
        %v551 = vld [vmem:[%s454 + $0x118] sm:$0xff]
        %v552 = vunpack.c.l.s8.bf16 %v516
        %v553 = vunpack.c.h.s8.bf16 %v516
        %v554 = vunpack.c.l.s8.bf16 %v517
        %v555 = vunpack.c.h.s8.bf16 %v517
        %v556 = vunpack.c.l.s8.bf16 %v518
        %v557 = vunpack.c.h.s8.bf16 %v518
        %v558 = vunpack.c.l.s8.bf16 %v519
        %v559 = vunpack.c.h.s8.bf16 %v519
        %v560 = vunpack.c.l.s8.bf16 %v520
        %v561 = vunpack.c.h.s8.bf16 %v520
        %v562 = vunpack.c.l.s8.bf16 %v521
        %v563 = vunpack.c.h.s8.bf16 %v521
        %v564 = vunpack.c.l.s8.bf16 %v522
        %v565 = vunpack.c.h.s8.bf16 %v522
        %v566 = vunpack.c.l.s8.bf16 %v523
        %v567 = vunpack.c.h.s8.bf16 %v523
        %v568 = vunpack.c.l.s8.bf16 %v524
        %v569 = vunpack.c.h.s8.bf16 %v524
        %v570 = vunpack.c.l.s8.bf16 %v525
        %v571 = vunpack.c.h.s8.bf16 %v525
        %v572 = vunpack.c.l.s8.bf16 %v526
        %v573 = vunpack.c.h.s8.bf16 %v526
        %v574 = vunpack.c.l.s8.bf16 %v527
        %v575 = vunpack.c.h.s8.bf16 %v527
        %v576 = vunpack.c.l.s8.bf16 %v528
        %v577 = vunpack.c.h.s8.bf16 %v528
        %v578 = vunpack.c.l.s8.bf16 %v529
        %v579 = vunpack.c.h.s8.bf16 %v529
        %v580 = vunpack.c.l.s8.bf16 %v530
        %v581 = vunpack.c.h.s8.bf16 %v530
        %v582 = vunpack.c.l.s8.bf16 %v531
        %v583 = vunpack.c.h.s8.bf16 %v531
        %v584 = vunpack.c.l.s8.bf16 %v532
        %v585 = vunpack.c.h.s8.bf16 %v532
        %v586 = vunpack.c.l.s8.bf16 %v533
        %v587 = vunpack.c.h.s8.bf16 %v533
        %v588 = vunpack.c.l.s8.bf16 %v534
        %v589 = vunpack.c.h.s8.bf16 %v534
        %v590 = vunpack.c.l.s8.bf16 %v535
        %v591 = vunpack.c.h.s8.bf16 %v535
        %v592 = vunpack.c.l.s8.bf16 %v536
        %v593 = vunpack.c.h.s8.bf16 %v536
        %v594 = vunpack.c.l.s8.bf16 %v537
        %v595 = vunpack.c.h.s8.bf16 %v537
        %v596 = vunpack.c.l.s8.bf16 %v538
        %v597 = vunpack.c.h.s8.bf16 %v538
        %v598 = vunpack.c.l.s8.bf16 %v539
        %v599 = vunpack.c.h.s8.bf16 %v539
        %v600 = vunpack.c.l.s8.bf16 %v540
        %v601 = vunpack.c.h.s8.bf16 %v540
        %v602 = vunpack.c.l.s8.bf16 %v541
        %v603 = vunpack.c.h.s8.bf16 %v541
        %v604 = vunpack.c.l.s8.bf16 %v542
        %v605 = vunpack.c.h.s8.bf16 %v542
        %v606 = vunpack.c.l.s8.bf16 %v543
        %v607 = vunpack.c.h.s8.bf16 %v543
        %v608 = vunpack.c.l.s8.bf16 %v544
        %v609 = vunpack.c.h.s8.bf16 %v544
        %v610 = vunpack.c.l.s8.bf16 %v545
        %v611 = vunpack.c.h.s8.bf16 %v545
        %v612 = vunpack.c.l.s8.bf16 %v546
        %v613 = vunpack.c.h.s8.bf16 %v546
        %v614 = vunpack.c.l.s8.bf16 %v547
        %v615 = vunpack.c.h.s8.bf16 %v547
        %v616 = vunpack.c.l.s8.bf16 %v548
        %v617 = vunpack.c.h.s8.bf16 %v548
        %v618 = vunpack.c.l.s8.bf16 %v549
        %v619 = vunpack.c.h.s8.bf16 %v549
        %v620 = vunpack.c.l.s8.bf16 %v550
        %v621 = vunpack.c.h.s8.bf16 %v550
        %v622 = vunpack.c.l.s8.bf16 %v551
        %v623 = vunpack.c.h.s8.bf16 %v551
        %v624 = vld [vmem:[%s510] sm:$0x1]
        %p625 = scmp.eq.s32.totalorder %s24, 0
        // Predicated region
        $region83: #{_lambda_.5} parent=77 // pred_check
          %p626 = pneg %p625
        $region84: #{_lambda_.5} parent=77 // pred_check_branch
          %628 = sbr.rel (%p626) target = $region86
        $region85: #{_lambda_.5} parent=77 // pred_region
          %v629 = vld [vmem:[%s501] sm:$0xff]
          %v630 = vld [vmem:[%s501 + $0x8] sm:$0xff]
          %v631 = vld [vmem:[%s501 + $0x10] sm:$0xff]
          %v632 = vld [vmem:[%s501 + $0x18] sm:$0xff]
          %v633 = vld [vmem:[%s501 + $0x20] sm:$0xf]
          %v634 = vld [vmem:[%s501 + $0x24] sm:$0xff]
          %v635 = vld [vmem:[%s501 + $0x2c] sm:$0xff]
          %v636 = vld [vmem:[%s501 + $0x34] sm:$0xff]
          %v637 = vld [vmem:[%s501 + $0x3c] sm:$0xff]
          %v638 = vld [vmem:[%s501 + $0x44] sm:$0xf]
          %v639 = vld [vmem:[%s501 + $0x48] sm:$0xff]
          %v640 = vld [vmem:[%s501 + $0x50] sm:$0xff]
          %v641 = vld [vmem:[%s501 + $0x58] sm:$0xff]
          %v642 = vld [vmem:[%s501 + $0x60] sm:$0xff]
          %v643 = vld [vmem:[%s501 + $0x68] sm:$0xf]
          %v644 = vld [vmem:[%s501 + $0x6c] sm:$0xff]
          %v645 = vld [vmem:[%s501 + $0x74] sm:$0xff]
          %v646 = vld [vmem:[%s501 + $0x7c] sm:$0xff]
          %v647 = vld [vmem:[%s501 + $0x84] sm:$0xff]
          %v648 = vld [vmem:[%s501 + $0x8c] sm:$0xf]
          %v649 = vunpack.c.l.bf16 %v629
          %v650 = vunpack.c.h.bf16 %v629
          %v651 = vunpack.c.l.bf16 %v630
          %v652 = vunpack.c.h.bf16 %v630
          %v653 = vunpack.c.l.bf16 %v631
          %v654 = vunpack.c.h.bf16 %v631
          %v655 = vunpack.c.l.bf16 %v632
          %v656 = vunpack.c.h.bf16 %v632
          %v657 = vunpack.c.l.bf16 %v633
          %v658 = vunpack.c.l.bf16 %v634
          %v659 = vunpack.c.h.bf16 %v634
          %v660 = vunpack.c.l.bf16 %v635
          %v661 = vunpack.c.h.bf16 %v635
          %v662 = vunpack.c.l.bf16 %v636
          %v663 = vunpack.c.h.bf16 %v636
          %v664 = vunpack.c.l.bf16 %v637
          %v665 = vunpack.c.h.bf16 %v637
          %v666 = vunpack.c.l.bf16 %v638
          %v667 = vunpack.c.l.bf16 %v639
          %v668 = vunpack.c.h.bf16 %v639
          %v669 = vunpack.c.l.bf16 %v640
          %v670 = vunpack.c.h.bf16 %v640
          %v671 = vunpack.c.l.bf16 %v641
          %v672 = vunpack.c.h.bf16 %v641
          %v673 = vunpack.c.l.bf16 %v642
          %v674 = vunpack.c.h.bf16 %v642
          %v675 = vunpack.c.l.bf16 %v643
          %v676 = vunpack.c.l.bf16 %v644
          %v677 = vunpack.c.h.bf16 %v644
          %v678 = vunpack.c.l.bf16 %v645
          %v679 = vunpack.c.h.bf16 %v645
          %v680 = vunpack.c.l.bf16 %v646
          %v681 = vunpack.c.h.bf16 %v646
          %v682 = vunpack.c.l.bf16 %v647
          %v683 = vunpack.c.h.bf16 %v647
          %v684 = vunpack.c.l.bf16 %v648
          %v685 = vlaneseq
          %v686 = vand.u32 %v685, 127
          %v687 = vadd.s32 %v686, 128
          %v688 = vadd.s32 %v686, 256
          %v689 = vadd.s32 %v686, 384
          %v690 = vadd.s32 %v686, 512
          %v691 = vadd.s32 %v686, 640
          %v692 = vadd.s32 %v686, 768
          %v693 = vadd.s32 %v686, 896
          %v694 = vadd.s32 %v686, 1024
          %vm695 = vcmp.lt.s32.totalorder %v686, 1152
          %vm696 = vcmp.lt.s32.totalorder %v687, 1152
          %vm697 = vcmp.lt.s32.totalorder %v688, 1152
          %vm698 = vcmp.lt.s32.totalorder %v689, 1152
          %vm699 = vcmp.lt.s32.totalorder %v690, 1152
          %vm700 = vcmp.lt.s32.totalorder %v691, 1152
          %vm701 = vcmp.lt.s32.totalorder %v692, 1152
          %vm702 = vcmp.lt.s32.totalorder %v693, 1152
          %vm703 = vcmp.lt.s32.totalorder %v694, 1152
          %v704 = vadd.f32 %v649, %v650
          %v705 = vadd.f32 %v704, %v651
          %v706 = vadd.f32 %v705, %v652
          %v707 = vadd.f32 %v706, %v653
          %v708 = vadd.f32 %v707, %v654
          %v709 = vadd.f32 %v708, %v655
          %v710 = vadd.f32 %v709, %v656
          %v711 = vadd.f32 %v710, %v657
          %712 = vadd.xlane.f32.xlu0 %v711
          %v713 = vpop.xlane.xlu0 %712
          %v714 = vadd.f32 %v658, %v659
          %v715 = vadd.f32 %v714, %v660
          %v716 = vadd.f32 %v715, %v661
          %v717 = vadd.f32 %v716, %v662
          %v718 = vadd.f32 %v717, %v663
          %v719 = vadd.f32 %v718, %v664
          %v720 = vadd.f32 %v719, %v665
          %v721 = vadd.f32 %v720, %v666
          %722 = vadd.xlane.f32.xlu0 %v721
          %v723 = vpop.xlane.xlu0 %722
          %v724 = vadd.f32 %v667, %v668
          %v725 = vadd.f32 %v724, %v669
          %v726 = vadd.f32 %v725, %v670
          %v727 = vadd.f32 %v726, %v671
          %v728 = vadd.f32 %v727, %v672
          %v729 = vadd.f32 %v728, %v673
          %v730 = vadd.f32 %v729, %v674
          %v731 = vadd.f32 %v730, %v675
          %732 = vadd.xlane.f32.xlu0 %v731
          %v733 = vpop.xlane.xlu0 %732
          %v734 = vadd.f32 %v676, %v677
          %v735 = vadd.f32 %v734, %v678
          %v736 = vadd.f32 %v735, %v679
          %v737 = vadd.f32 %v736, %v680
          %v738 = vadd.f32 %v737, %v681
          %v739 = vadd.f32 %v738, %v682
          %v740 = vadd.f32 %v739, %v683
          %v741 = vadd.f32 %v740, %v684
          %742 = vadd.xlane.f32.xlu0 %v741
          %v743 = vpop.xlane.xlu0 %742
          %v744 = vmul.f32 %v713, 0.00086805556
          %v745 = vmul.f32 %v723, 0.00086805556
          %v746 = vmul.f32 %v733, 0.00086805556
          %v747 = vmul.f32 %v743, 0.00086805556
          %v748 = vsub.f32 %v649, %v744
          %v749 = vsub.f32 %v650, %v744
          %v750 = vsub.f32 %v651, %v744
          %v751 = vsub.f32 %v652, %v744
          %v752 = vsub.f32 %v653, %v744
          %v753 = vsub.f32 %v654, %v744
          %v754 = vsub.f32 %v655, %v744
          %v755 = vsub.f32 %v656, %v744
          %v756 = vsub.f32 %v657, %v744
          %v757 = vsub.f32 %v658, %v745
          %v758 = vsub.f32 %v659, %v745
          %v759 = vsub.f32 %v660, %v745
          %v760 = vsub.f32 %v661, %v745
          %v761 = vsub.f32 %v662, %v745
          %v762 = vsub.f32 %v663, %v745
          %v763 = vsub.f32 %v664, %v745
          %v764 = vsub.f32 %v665, %v745
          %v765 = vsub.f32 %v666, %v745
          %v766 = vsub.f32 %v667, %v746
          %v767 = vsub.f32 %v668, %v746
          %v768 = vsub.f32 %v669, %v746
          %v769 = vsub.f32 %v670, %v746
          %v770 = vsub.f32 %v671, %v746
          %v771 = vsub.f32 %v672, %v746
          %v772 = vsub.f32 %v673, %v746
          %v773 = vsub.f32 %v674, %v746
          %v774 = vsub.f32 %v675, %v746
          %v775 = vsub.f32 %v676, %v747
          %v776 = vsub.f32 %v677, %v747
          %v777 = vsub.f32 %v678, %v747
          %v778 = vsub.f32 %v679, %v747
          %v779 = vsub.f32 %v680, %v747
          %v780 = vsub.f32 %v681, %v747
          %v781 = vsub.f32 %v682, %v747
          %v782 = vsub.f32 %v683, %v747
          %v783 = vsub.f32 %v684, %v747
          %v784 = vsel %vm695, %v748, 0.0
          %v785 = vsel %vm696, %v749, 0.0
          %v786 = vsel %vm697, %v750, 0.0
          %v787 = vsel %vm698, %v751, 0.0
          %v788 = vsel %vm699, %v752, 0.0
          %v789 = vsel %vm700, %v753, 0.0
          %v790 = vsel %vm701, %v754, 0.0
          %v791 = vsel %vm702, %v755, 0.0
          %v792 = vsel %vm703, %v756, 0.0
          %v793 = vsel %vm695, %v757, 0.0
          %v794 = vsel %vm696, %v758, 0.0
          %v795 = vsel %vm697, %v759, 0.0
          %v796 = vsel %vm698, %v760, 0.0
          %v797 = vsel %vm699, %v761, 0.0
          %v798 = vsel %vm700, %v762, 0.0
          %v799 = vsel %vm701, %v763, 0.0
          %v800 = vsel %vm702, %v764, 0.0
          %v801 = vsel %vm703, %v765, 0.0
          %v802 = vsel %vm695, %v766, 0.0
          %v803 = vsel %vm696, %v767, 0.0
          %v804 = vsel %vm697, %v768, 0.0
          %v805 = vsel %vm698, %v769, 0.0
          %v806 = vsel %vm699, %v770, 0.0
          %v807 = vsel %vm700, %v771, 0.0
          %v808 = vsel %vm701, %v772, 0.0
          %v809 = vsel %vm702, %v773, 0.0
          %v810 = vsel %vm703, %v774, 0.0
          %v811 = vsel %vm695, %v775, 0.0
          %v812 = vsel %vm696, %v776, 0.0
          %v813 = vsel %vm697, %v777, 0.0
          %v814 = vsel %vm698, %v778, 0.0
          %v815 = vsel %vm699, %v779, 0.0
          %v816 = vsel %vm700, %v780, 0.0
          %v817 = vsel %vm701, %v781, 0.0
          %v818 = vsel %vm702, %v782, 0.0
          %v819 = vsel %vm703, %v783, 0.0
          %v820 = vmul.f32 %v784, %v784
          %v821 = vmul.f32 %v785, %v785
          %v822 = vmul.f32 %v786, %v786
          %v823 = vmul.f32 %v787, %v787
          %v824 = vmul.f32 %v788, %v788
          %v825 = vmul.f32 %v789, %v789
          %v826 = vmul.f32 %v790, %v790
          %v827 = vmul.f32 %v791, %v791
          %v828 = vmul.f32 %v792, %v792
          %v829 = vmul.f32 %v793, %v793
          %v830 = vmul.f32 %v794, %v794
          %v831 = vmul.f32 %v795, %v795
          %v832 = vmul.f32 %v796, %v796
          %v833 = vmul.f32 %v797, %v797
          %v834 = vmul.f32 %v798, %v798
          %v835 = vmul.f32 %v799, %v799
          %v836 = vmul.f32 %v800, %v800
          %v837 = vmul.f32 %v801, %v801
          %v838 = vmul.f32 %v802, %v802
          %v839 = vmul.f32 %v803, %v803
          %v840 = vmul.f32 %v804, %v804
          %v841 = vmul.f32 %v805, %v805
          %v842 = vmul.f32 %v806, %v806
          %v843 = vmul.f32 %v807, %v807
          %v844 = vmul.f32 %v808, %v808
          %v845 = vmul.f32 %v809, %v809
          %v846 = vmul.f32 %v810, %v810
          %v847 = vmul.f32 %v811, %v811
          %v848 = vmul.f32 %v812, %v812
          %v849 = vmul.f32 %v813, %v813
          %v850 = vmul.f32 %v814, %v814
          %v851 = vmul.f32 %v815, %v815
          %v852 = vmul.f32 %v816, %v816
          %v853 = vmul.f32 %v817, %v817
          %v854 = vmul.f32 %v818, %v818
          %v855 = vmul.f32 %v819, %v819
          %v856 = vadd.f32 %v820, %v821
          %v857 = vadd.f32 %v856, %v822
          %v858 = vadd.f32 %v857, %v823
          %v859 = vadd.f32 %v858, %v824
          %v860 = vadd.f32 %v859, %v825
          %v861 = vadd.f32 %v860, %v826
          %v862 = vadd.f32 %v861, %v827
          %v863 = vadd.f32 %v862, %v828
          %864 = vadd.xlane.f32.xlu0 %v863
          %v865 = vpop.xlane.xlu0 %864
          %v866 = vadd.f32 %v829, %v830
          %v867 = vadd.f32 %v866, %v831
          %v868 = vadd.f32 %v867, %v832
          %v869 = vadd.f32 %v868, %v833
          %v870 = vadd.f32 %v869, %v834
          %v871 = vadd.f32 %v870, %v835
          %v872 = vadd.f32 %v871, %v836
          %v873 = vadd.f32 %v872, %v837
          %874 = vadd.xlane.f32.xlu0 %v873
          %v875 = vpop.xlane.xlu0 %874
          %v876 = vadd.f32 %v838, %v839
          %v877 = vadd.f32 %v876, %v840
          %v878 = vadd.f32 %v877, %v841
          %v879 = vadd.f32 %v878, %v842
          %v880 = vadd.f32 %v879, %v843
          %v881 = vadd.f32 %v880, %v844
          %v882 = vadd.f32 %v881, %v845
          %v883 = vadd.f32 %v882, %v846
          %884 = vadd.xlane.f32.xlu0 %v883
          %v885 = vpop.xlane.xlu0 %884
          %v886 = vadd.f32 %v847, %v848
          %v887 = vadd.f32 %v886, %v849
          %v888 = vadd.f32 %v887, %v850
          %v889 = vadd.f32 %v888, %v851
          %v890 = vadd.f32 %v889, %v852
          %v891 = vadd.f32 %v890, %v853
          %v892 = vadd.f32 %v891, %v854
          %v893 = vadd.f32 %v892, %v855
          %894 = vadd.xlane.f32.xlu0 %v893
          %v895 = vpop.xlane.xlu0 %894
          %v896 = vmul.f32 %v865, 0.00086805556
          %v897 = vmul.f32 %v875, 0.00086805556
          %v898 = vmul.f32 %v885, 0.00086805556
          %v899 = vmul.f32 %v895, 0.00086805556
          %v900 = vadd.f32 %v896, 1e-05
          %v901 = vadd.f32 %v897, 1e-05
          %v902 = vadd.f32 %v898, 1e-05
          %v903 = vadd.f32 %v899, 1e-05
          %v904 = vrsqrt.pop %v900
          %v905 = vrsqrt.pop %v901
          %v906 = vrsqrt.pop %v902
          %v907 = vrsqrt.pop %v903
          %v908 = vmul.f32 %v784, %v904
          %v909 = vmul.f32 %v785, %v904
          %v910 = vmul.f32 %v786, %v904
          %v911 = vmul.f32 %v787, %v904
          %v912 = vmul.f32 %v788, %v904
          %v913 = vmul.f32 %v789, %v904
          %v914 = vmul.f32 %v790, %v904
          %v915 = vmul.f32 %v791, %v904
          %v916 = vmul.f32 %v792, %v904
          %v917 = vmul.f32 %v793, %v905
          %v918 = vmul.f32 %v794, %v905
          %v919 = vmul.f32 %v795, %v905
          %v920 = vmul.f32 %v796, %v905
          %v921 = vmul.f32 %v797, %v905
          %v922 = vmul.f32 %v798, %v905
          %v923 = vmul.f32 %v799, %v905
          %v924 = vmul.f32 %v800, %v905
          %v925 = vmul.f32 %v801, %v905
          %v926 = vmul.f32 %v802, %v906
          %v927 = vmul.f32 %v803, %v906
          %v928 = vmul.f32 %v804, %v906
          %v929 = vmul.f32 %v805, %v906
          %v930 = vmul.f32 %v806, %v906
          %v931 = vmul.f32 %v807, %v906
          %v932 = vmul.f32 %v808, %v906
          %v933 = vmul.f32 %v809, %v906
          %v934 = vmul.f32 %v810, %v906
          %v935 = vmul.f32 %v811, %v907
          %v936 = vmul.f32 %v812, %v907
          %v937 = vmul.f32 %v813, %v907
          %v938 = vmul.f32 %v814, %v907
          %v939 = vmul.f32 %v815, %v907
          %v940 = vmul.f32 %v816, %v907
          %v941 = vmul.f32 %v817, %v907
          %v942 = vmul.f32 %v818, %v907
          %v943 = vmul.f32 %v819, %v907
          %v944 = vld [vmem:[%s1] sm:$0xff]
          %v945 = vld [vmem:[%s1 + $0x8] sm:$0x1]
          %v948 = vlaneseq
          %v949 = vshrl.u32 %v948, 7
          %v950 = vsub.s32 0, %v949
          %v951 = vrot.slane %v944, %v950
          %v952 = vlaneseq
          %v953 = vshrl.u32 %v952, 7
          %v954 = vsub.s32 1, %v953
          %v955 = vrot.slane %v944, %v954
          %v956 = vlaneseq
          %v957 = vshrl.u32 %v956, 7
          %v958 = vsub.s32 2, %v957
          %v959 = vrot.slane %v944, %v958
          %v960 = vlaneseq
          %v961 = vshrl.u32 %v960, 7
          %v962 = vsub.s32 3, %v961
          %v963 = vrot.slane %v944, %v962
          %v964 = vlaneseq
          %v965 = vshrl.u32 %v964, 7
          %v966 = vsub.s32 4, %v965
          %v967 = vrot.slane %v944, %v966
          %v968 = vlaneseq
          %v969 = vshrl.u32 %v968, 7
          %v970 = vsub.s32 5, %v969
          %v971 = vrot.slane %v944, %v970
          %v972 = vlaneseq
          %v973 = vshrl.u32 %v972, 7
          %v974 = vsub.s32 6, %v973
          %v975 = vrot.slane %v944, %v974
          %v976 = vlaneseq
          %v977 = vshrl.u32 %v976, 7
          %v978 = vsub.s32 7, %v977
          %v979 = vrot.slane %v944, %v978
          %v980 = vlaneseq
          %v981 = vshrl.u32 %v980, 7
          %v982 = vsub.s32 0, %v981
          %v983 = vrot.slane %v945, %v982
          %v993 = vmul.f32 %v908, %v951
          %v994 = vmul.f32 %v909, %v955
          %v995 = vmul.f32 %v910, %v959
          %v996 = vmul.f32 %v911, %v963
          %v997 = vmul.f32 %v912, %v967
          %v998 = vmul.f32 %v913, %v971
          %v999 = vmul.f32 %v914, %v975
          %v1000 = vmul.f32 %v915, %v979
          %v1001 = vmul.f32 %v916, %v983
          %v1002 = vmul.f32 %v917, %v951
          %v1003 = vmul.f32 %v918, %v955
          %v1004 = vmul.f32 %v919, %v959
          %v1005 = vmul.f32 %v920, %v963
          %v1006 = vmul.f32 %v921, %v967
          %v1007 = vmul.f32 %v922, %v971
          %v1008 = vmul.f32 %v923, %v975
          %v1009 = vmul.f32 %v924, %v979
          %v1010 = vmul.f32 %v925, %v983
          %v1011 = vmul.f32 %v926, %v951
          %v1012 = vmul.f32 %v927, %v955
          %v1013 = vmul.f32 %v928, %v959
          %v1014 = vmul.f32 %v929, %v963
          %v1015 = vmul.f32 %v930, %v967
          %v1016 = vmul.f32 %v931, %v971
          %v1017 = vmul.f32 %v932, %v975
          %v1018 = vmul.f32 %v933, %v979
          %v1019 = vmul.f32 %v934, %v983
          %v1020 = vmul.f32 %v935, %v951
          %v1021 = vmul.f32 %v936, %v955
          %v1022 = vmul.f32 %v937, %v959
          %v1023 = vmul.f32 %v938, %v963
          %v1024 = vmul.f32 %v939, %v967
          %v1025 = vmul.f32 %v940, %v971
          %v1026 = vmul.f32 %v941, %v975
          %v1027 = vmul.f32 %v942, %v979
          %v1028 = vmul.f32 %v943, %v983
          %v1029 = vld [vmem:[%s2] sm:$0xff]
          %v1030 = vld [vmem:[%s2 + $0x8] sm:$0x1]
          %v1033 = vlaneseq
          %v1034 = vshrl.u32 %v1033, 7
          %v1035 = vsub.s32 0, %v1034
          %v1036 = vrot.slane %v1029, %v1035
          %v1037 = vlaneseq
          %v1038 = vshrl.u32 %v1037, 7
          %v1039 = vsub.s32 1, %v1038
          %v1040 = vrot.slane %v1029, %v1039
          %v1041 = vlaneseq
          %v1042 = vshrl.u32 %v1041, 7
          %v1043 = vsub.s32 2, %v1042
          %v1044 = vrot.slane %v1029, %v1043
          %v1045 = vlaneseq
          %v1046 = vshrl.u32 %v1045, 7
          %v1047 = vsub.s32 3, %v1046
          %v1048 = vrot.slane %v1029, %v1047
          %v1049 = vlaneseq
          %v1050 = vshrl.u32 %v1049, 7
          %v1051 = vsub.s32 4, %v1050
          %v1052 = vrot.slane %v1029, %v1051
          %v1053 = vlaneseq
          %v1054 = vshrl.u32 %v1053, 7
          %v1055 = vsub.s32 5, %v1054
          %v1056 = vrot.slane %v1029, %v1055
          %v1057 = vlaneseq
          %v1058 = vshrl.u32 %v1057, 7
          %v1059 = vsub.s32 6, %v1058
          %v1060 = vrot.slane %v1029, %v1059
          %v1061 = vlaneseq
          %v1062 = vshrl.u32 %v1061, 7
          %v1063 = vsub.s32 7, %v1062
          %v1064 = vrot.slane %v1029, %v1063
          %v1065 = vlaneseq
          %v1066 = vshrl.u32 %v1065, 7
          %v1067 = vsub.s32 0, %v1066
          %v1068 = vrot.slane %v1030, %v1067
          %v1078 = vadd.f32 %v993, %v1036
          %v1079 = vadd.f32 %v994, %v1040
          %v1080 = vadd.f32 %v995, %v1044
          %v1081 = vadd.f32 %v996, %v1048
          %v1082 = vadd.f32 %v997, %v1052
          %v1083 = vadd.f32 %v998, %v1056
          %v1084 = vadd.f32 %v999, %v1060
          %v1085 = vadd.f32 %v1000, %v1064
          %v1086 = vadd.f32 %v1001, %v1068
          %v1087 = vadd.f32 %v1002, %v1036
          %v1088 = vadd.f32 %v1003, %v1040
          %v1089 = vadd.f32 %v1004, %v1044
          %v1090 = vadd.f32 %v1005, %v1048
          %v1091 = vadd.f32 %v1006, %v1052
          %v1092 = vadd.f32 %v1007, %v1056
          %v1093 = vadd.f32 %v1008, %v1060
          %v1094 = vadd.f32 %v1009, %v1064
          %v1095 = vadd.f32 %v1010, %v1068
          %v1096 = vadd.f32 %v1011, %v1036
          %v1097 = vadd.f32 %v1012, %v1040
          %v1098 = vadd.f32 %v1013, %v1044
          %v1099 = vadd.f32 %v1014, %v1048
          %v1100 = vadd.f32 %v1015, %v1052
          %v1101 = vadd.f32 %v1016, %v1056
          %v1102 = vadd.f32 %v1017, %v1060
          %v1103 = vadd.f32 %v1018, %v1064
          %v1104 = vadd.f32 %v1019, %v1068
          %v1105 = vadd.f32 %v1020, %v1036
          %v1106 = vadd.f32 %v1021, %v1040
          %v1107 = vadd.f32 %v1022, %v1044
          %v1108 = vadd.f32 %v1023, %v1048
          %v1109 = vadd.f32 %v1024, %v1052
          %v1110 = vadd.f32 %v1025, %v1056
          %v1111 = vadd.f32 %v1026, %v1060
          %v1112 = vadd.f32 %v1027, %v1064
          %v1113 = vadd.f32 %v1028, %v1068
          %v1114 = vmul.f32 %v1078, 1.75
          %v1115 = vmul.f32 %v1079, 1.75
          %v1116 = vmul.f32 %v1080, 1.75
          %v1117 = vmul.f32 %v1081, 1.75
          %v1118 = vmul.f32 %v1082, 1.75
          %v1119 = vmul.f32 %v1083, 1.75
          %v1120 = vmul.f32 %v1084, 1.75
          %v1121 = vmul.f32 %v1085, 1.75
          %v1122 = vmul.f32 %v1086, 1.75
          %v1123 = vmul.f32 %v1087, 1.75
          %v1124 = vmul.f32 %v1088, 1.75
          %v1125 = vmul.f32 %v1089, 1.75
          %v1126 = vmul.f32 %v1090, 1.75
          %v1127 = vmul.f32 %v1091, 1.75
          %v1128 = vmul.f32 %v1092, 1.75
          %v1129 = vmul.f32 %v1093, 1.75
          %v1130 = vmul.f32 %v1094, 1.75
          %v1131 = vmul.f32 %v1095, 1.75
          %v1132 = vmul.f32 %v1096, 1.75
          %v1133 = vmul.f32 %v1097, 1.75
          %v1134 = vmul.f32 %v1098, 1.75
          %v1135 = vmul.f32 %v1099, 1.75
          %v1136 = vmul.f32 %v1100, 1.75
          %v1137 = vmul.f32 %v1101, 1.75
          %v1138 = vmul.f32 %v1102, 1.75
          %v1139 = vmul.f32 %v1103, 1.75
          %v1140 = vmul.f32 %v1104, 1.75
          %v1141 = vmul.f32 %v1105, 1.75
          %v1142 = vmul.f32 %v1106, 1.75
          %v1143 = vmul.f32 %v1107, 1.75
          %v1144 = vmul.f32 %v1108, 1.75
          %v1145 = vmul.f32 %v1109, 1.75
          %v1146 = vmul.f32 %v1110, 1.75
          %v1147 = vmul.f32 %v1111, 1.75
          %v1148 = vmul.f32 %v1112, 1.75
          %v1149 = vmul.f32 %v1113, 1.75
          %1150 = vst [vmem:[#allocation2] sm:$0xff] %v1114
          %1151 = vst [vmem:[#allocation2 + $0x8] sm:$0xff] %v1115
          %1152 = vst [vmem:[#allocation2 + $0x10] sm:$0xff] %v1116
          %1153 = vst [vmem:[#allocation2 + $0x18] sm:$0xff] %v1117
          %1154 = vst [vmem:[#allocation2 + $0x20] sm:$0xff] %v1118
          %1155 = vst [vmem:[#allocation2 + $0x28] sm:$0xff] %v1119
          %1156 = vst [vmem:[#allocation2 + $0x30] sm:$0xff] %v1120
          %1157 = vst [vmem:[#allocation2 + $0x38] sm:$0xff] %v1121
          %1158 = vst [vmem:[#allocation2 + $0x40] sm:$0xff] %v1122
          %1159 = vst [vmem:[#allocation2 + $0x48] sm:$0xff] %v1123
          %1160 = vst [vmem:[#allocation2 + $0x50] sm:$0xff] %v1124
          %1161 = vst [vmem:[#allocation2 + $0x58] sm:$0xff] %v1125
          %1162 = vst [vmem:[#allocation2 + $0x60] sm:$0xff] %v1126
          %1163 = vst [vmem:[#allocation2 + $0x68] sm:$0xff] %v1127
          %1164 = vst [vmem:[#allocation2 + $0x70] sm:$0xff] %v1128
          %1165 = vst [vmem:[#allocation2 + $0x78] sm:$0xff] %v1129
          %1166 = vst [vmem:[#allocation2 + $0x80] sm:$0xff] %v1130
          %1167 = vst [vmem:[#allocation2 + $0x88] sm:$0xff] %v1131
          %1168 = vst [vmem:[#allocation2 + $0x90] sm:$0xff] %v1132
          %1169 = vst [vmem:[#allocation2 + $0x98] sm:$0xff] %v1133
          %1170 = vst [vmem:[#allocation2 + $0xa0] sm:$0xff] %v1134
          %1171 = vst [vmem:[#allocation2 + $0xa8] sm:$0xff] %v1135
          %1172 = vst [vmem:[#allocation2 + $0xb0] sm:$0xff] %v1136
          %1173 = vst [vmem:[#allocation2 + $0xb8] sm:$0xff] %v1137
          %1174 = vst [vmem:[#allocation2 + $0xc0] sm:$0xff] %v1138
          %1175 = vst [vmem:[#allocation2 + $0xc8] sm:$0xff] %v1139
          %1176 = vst [vmem:[#allocation2 + $0xd0] sm:$0xff] %v1140
          %1177 = vst [vmem:[#allocation2 + $0xd8] sm:$0xff] %v1141
          %1178 = vst [vmem:[#allocation2 + $0xe0] sm:$0xff] %v1142
          %1179 = vst [vmem:[#allocation2 + $0xe8] sm:$0xff] %v1143
          %1180 = vst [vmem:[#allocation2 + $0xf0] sm:$0xff] %v1144
          %1181 = vst [vmem:[#allocation2 + $0xf8] sm:$0xff] %v1145
          %1182 = vst [vmem:[#allocation2 + $0x100] sm:$0xff] %v1146
          %1183 = vst [vmem:[#allocation2 + $0x108] sm:$0xff] %v1147
          %1184 = vst [vmem:[#allocation2 + $0x110] sm:$0xff] %v1148
          %1185 = vst [vmem:[#allocation2 + $0x118] sm:$0xff] %v1149
          %v1186 = vxor.u32 %v649, 2147483648
          %v1187 = vxor.u32 %v650, 2147483648
          %v1188 = vxor.u32 %v651, 2147483648
          %v1189 = vxor.u32 %v652, 2147483648
          %v1190 = vxor.u32 %v653, 2147483648
          %v1191 = vxor.u32 %v654, 2147483648
          %v1192 = vxor.u32 %v655, 2147483648
          %v1193 = vxor.u32 %v656, 2147483648
          %v1194 = vxor.u32 %v657, 2147483648
          %v1195 = vxor.u32 %v658, 2147483648
          %v1196 = vxor.u32 %v659, 2147483648
          %v1197 = vxor.u32 %v660, 2147483648
          %v1198 = vxor.u32 %v661, 2147483648
          %v1199 = vxor.u32 %v662, 2147483648
          %v1200 = vxor.u32 %v663, 2147483648
          %v1201 = vxor.u32 %v664, 2147483648
          %v1202 = vxor.u32 %v665, 2147483648
          %v1203 = vxor.u32 %v666, 2147483648
          %v1204 = vxor.u32 %v667, 2147483648
          %v1205 = vxor.u32 %v668, 2147483648
          %v1206 = vxor.u32 %v669, 2147483648
          %v1207 = vxor.u32 %v670, 2147483648
          %v1208 = vxor.u32 %v671, 2147483648
          %v1209 = vxor.u32 %v672, 2147483648
          %v1210 = vxor.u32 %v673, 2147483648
          %v1211 = vxor.u32 %v674, 2147483648
          %v1212 = vxor.u32 %v675, 2147483648
          %v1213 = vxor.u32 %v676, 2147483648
          %v1214 = vxor.u32 %v677, 2147483648
          %v1215 = vxor.u32 %v678, 2147483648
          %v1216 = vxor.u32 %v679, 2147483648
          %v1217 = vxor.u32 %v680, 2147483648
          %v1218 = vxor.u32 %v681, 2147483648
          %v1219 = vxor.u32 %v682, 2147483648
          %v1220 = vxor.u32 %v683, 2147483648
          %v1221 = vxor.u32 %v684, 2147483648
          %v1222 = vmul.f32 %v1186, 1.442695
          %v1223 = vpow.pop %v1222
          %v1224 = vmul.f32 %v1187, 1.442695
          %v1225 = vpow.pop %v1224
          %v1226 = vmul.f32 %v1188, 1.442695
          %v1227 = vpow.pop %v1226
          %v1228 = vmul.f32 %v1189, 1.442695
          %v1229 = vpow.pop %v1228
          %v1230 = vmul.f32 %v1190, 1.442695
          %v1231 = vpow.pop %v1230
          %v1232 = vmul.f32 %v1191, 1.442695
          %v1233 = vpow.pop %v1232
          %v1234 = vmul.f32 %v1192, 1.442695
          %v1235 = vpow.pop %v1234
          %v1236 = vmul.f32 %v1193, 1.442695
          %v1237 = vpow.pop %v1236
          %v1238 = vmul.f32 %v1194, 1.442695
          %v1239 = vpow.pop %v1238
          %v1240 = vmul.f32 %v1195, 1.442695
          %v1241 = vpow.pop %v1240
          %v1242 = vmul.f32 %v1196, 1.442695
          %v1243 = vpow.pop %v1242
          %v1244 = vmul.f32 %v1197, 1.442695
          %v1245 = vpow.pop %v1244
          %v1246 = vmul.f32 %v1198, 1.442695
          %v1247 = vpow.pop %v1246
          %v1248 = vmul.f32 %v1199, 1.442695
          %v1249 = vpow.pop %v1248
          %v1250 = vmul.f32 %v1200, 1.442695
          %v1251 = vpow.pop %v1250
          %v1252 = vmul.f32 %v1201, 1.442695
          %v1253 = vpow.pop %v1252
          %v1254 = vmul.f32 %v1202, 1.442695
          %v1255 = vpow.pop %v1254
          %v1256 = vmul.f32 %v1203, 1.442695
          %v1257 = vpow.pop %v1256
          %v1258 = vmul.f32 %v1204, 1.442695
          %v1259 = vpow.pop %v1258
          %v1260 = vmul.f32 %v1205, 1.442695
          %v1261 = vpow.pop %v1260
          %v1262 = vmul.f32 %v1206, 1.442695
          %v1263 = vpow.pop %v1262
          %v1264 = vmul.f32 %v1207, 1.442695
          %v1265 = vpow.pop %v1264
          %v1266 = vmul.f32 %v1208, 1.442695
          %v1267 = vpow.pop %v1266
          %v1268 = vmul.f32 %v1209, 1.442695
          %v1269 = vpow.pop %v1268
          %v1270 = vmul.f32 %v1210, 1.442695
          %v1271 = vpow.pop %v1270
          %v1272 = vmul.f32 %v1211, 1.442695
          %v1273 = vpow.pop %v1272
          %v1274 = vmul.f32 %v1212, 1.442695
          %v1275 = vpow.pop %v1274
          %v1276 = vmul.f32 %v1213, 1.442695
          %v1277 = vpow.pop %v1276
          %v1278 = vmul.f32 %v1214, 1.442695
          %v1279 = vpow.pop %v1278
          %v1280 = vmul.f32 %v1215, 1.442695
          %v1281 = vpow.pop %v1280
          %v1282 = vmul.f32 %v1216, 1.442695
          %v1283 = vpow.pop %v1282
          %v1284 = vmul.f32 %v1217, 1.442695
          %v1285 = vpow.pop %v1284
          %v1286 = vmul.f32 %v1218, 1.442695
          %v1287 = vpow.pop %v1286
          %v1288 = vmul.f32 %v1219, 1.442695
          %v1289 = vpow.pop %v1288
          %v1290 = vmul.f32 %v1220, 1.442695
          %v1291 = vpow.pop %v1290
          %v1292 = vmul.f32 %v1221, 1.442695
          %v1293 = vpow.pop %v1292
          %v1294 = vadd.f32 %v1223, 1.0
          %v1295 = vadd.f32 %v1225, 1.0
          %v1296 = vadd.f32 %v1227, 1.0
          %v1297 = vadd.f32 %v1229, 1.0
          %v1298 = vadd.f32 %v1231, 1.0
          %v1299 = vadd.f32 %v1233, 1.0
          %v1300 = vadd.f32 %v1235, 1.0
          %v1301 = vadd.f32 %v1237, 1.0
          %v1302 = vadd.f32 %v1239, 1.0
          %v1303 = vadd.f32 %v1241, 1.0
          %v1304 = vadd.f32 %v1243, 1.0
          %v1305 = vadd.f32 %v1245, 1.0
          %v1306 = vadd.f32 %v1247, 1.0
          %v1307 = vadd.f32 %v1249, 1.0
          %v1308 = vadd.f32 %v1251, 1.0
          %v1309 = vadd.f32 %v1253, 1.0
          %v1310 = vadd.f32 %v1255, 1.0
          %v1311 = vadd.f32 %v1257, 1.0
          %v1312 = vadd.f32 %v1259, 1.0
          %v1313 = vadd.f32 %v1261, 1.0
          %v1314 = vadd.f32 %v1263, 1.0
          %v1315 = vadd.f32 %v1265, 1.0
          %v1316 = vadd.f32 %v1267, 1.0
          %v1317 = vadd.f32 %v1269, 1.0
          %v1318 = vadd.f32 %v1271, 1.0
          %v1319 = vadd.f32 %v1273, 1.0
          %v1320 = vadd.f32 %v1275, 1.0
          %v1321 = vadd.f32 %v1277, 1.0
          %v1322 = vadd.f32 %v1279, 1.0
          %v1323 = vadd.f32 %v1281, 1.0
          %v1324 = vadd.f32 %v1283, 1.0
          %v1325 = vadd.f32 %v1285, 1.0
          %v1326 = vadd.f32 %v1287, 1.0
          %v1327 = vadd.f32 %v1289, 1.0
          %v1328 = vadd.f32 %v1291, 1.0
          %v1329 = vadd.f32 %v1293, 1.0
          %v1330 = vrcp.pop %v1294
          %v1331 = vmul.f32 1.0, %v1330
          %v1332 = vrcp.pop %v1295
          %v1333 = vmul.f32 1.0, %v1332
          %v1334 = vrcp.pop %v1296
          %v1335 = vmul.f32 1.0, %v1334
          %v1336 = vrcp.pop %v1297
          %v1337 = vmul.f32 1.0, %v1336
          %v1338 = vrcp.pop %v1298
          %v1339 = vmul.f32 1.0, %v1338
          %v1340 = vrcp.pop %v1299
          %v1341 = vmul.f32 1.0, %v1340
          %v1342 = vrcp.pop %v1300
          %v1343 = vmul.f32 1.0, %v1342
          %v1344 = vrcp.pop %v1301
          %v1345 = vmul.f32 1.0, %v1344
          %v1346 = vrcp.pop %v1302
          %v1347 = vmul.f32 1.0, %v1346
          %v1348 = vrcp.pop %v1303
          %v1349 = vmul.f32 1.0, %v1348
          %v1350 = vrcp.pop %v1304
          %v1351 = vmul.f32 1.0, %v1350
          %v1352 = vrcp.pop %v1305
          %v1353 = vmul.f32 1.0, %v1352
          %v1354 = vrcp.pop %v1306
          %v1355 = vmul.f32 1.0, %v1354
          %v1356 = vrcp.pop %v1307
          %v1357 = vmul.f32 1.0, %v1356
          %v1358 = vrcp.pop %v1308
          %v1359 = vmul.f32 1.0, %v1358
          %v1360 = vrcp.pop %v1309
          %v1361 = vmul.f32 1.0, %v1360
          %v1362 = vrcp.pop %v1310
          %v1363 = vmul.f32 1.0, %v1362
          %v1364 = vrcp.pop %v1311
          %v1365 = vmul.f32 1.0, %v1364
          %v1366 = vrcp.pop %v1312
          %v1367 = vmul.f32 1.0, %v1366
          %v1368 = vrcp.pop %v1313
          %v1369 = vmul.f32 1.0, %v1368
          %v1370 = vrcp.pop %v1314
          %v1371 = vmul.f32 1.0, %v1370
          %v1372 = vrcp.pop %v1315
          %v1373 = vmul.f32 1.0, %v1372
          %v1374 = vrcp.pop %v1316
          %v1375 = vmul.f32 1.0, %v1374
          %v1376 = vrcp.pop %v1317
          %v1377 = vmul.f32 1.0, %v1376
          %v1378 = vrcp.pop %v1318
          %v1379 = vmul.f32 1.0, %v1378
          %v1380 = vrcp.pop %v1319
          %v1381 = vmul.f32 1.0, %v1380
          %v1382 = vrcp.pop %v1320
          %v1383 = vmul.f32 1.0, %v1382
          %v1384 = vrcp.pop %v1321
          %v1385 = vmul.f32 1.0, %v1384
          %v1386 = vrcp.pop %v1322
          %v1387 = vmul.f32 1.0, %v1386
          %v1388 = vrcp.pop %v1323
          %v1389 = vmul.f32 1.0, %v1388
          %v1390 = vrcp.pop %v1324
          %v1391 = vmul.f32 1.0, %v1390
          %v1392 = vrcp.pop %v1325
          %v1393 = vmul.f32 1.0, %v1392
          %v1394 = vrcp.pop %v1326
          %v1395 = vmul.f32 1.0, %v1394
          %v1396 = vrcp.pop %v1327
          %v1397 = vmul.f32 1.0, %v1396
          %v1398 = vrcp.pop %v1328
          %v1399 = vmul.f32 1.0, %v1398
          %v1400 = vrcp.pop %v1329
          %v1401 = vmul.f32 1.0, %v1400
          %v1402 = vmul.f32 %v649, %v1331
          %v1403 = vmul.f32 %v650, %v1333
          %v1404 = vmul.f32 %v651, %v1335
          %v1405 = vmul.f32 %v652, %v1337
          %v1406 = vmul.f32 %v653, %v1339
          %v1407 = vmul.f32 %v654, %v1341
          %v1408 = vmul.f32 %v655, %v1343
          %v1409 = vmul.f32 %v656, %v1345
          %v1410 = vmul.f32 %v657, %v1347
          %v1411 = vmul.f32 %v658, %v1349
          %v1412 = vmul.f32 %v659, %v1351
          %v1413 = vmul.f32 %v660, %v1353
          %v1414 = vmul.f32 %v661, %v1355
          %v1415 = vmul.f32 %v662, %v1357
          %v1416 = vmul.f32 %v663, %v1359
          %v1417 = vmul.f32 %v664, %v1361
          %v1418 = vmul.f32 %v665, %v1363
          %v1419 = vmul.f32 %v666, %v1365
          %v1420 = vmul.f32 %v667, %v1367
          %v1421 = vmul.f32 %v668, %v1369
          %v1422 = vmul.f32 %v669, %v1371
          %v1423 = vmul.f32 %v670, %v1373
          %v1424 = vmul.f32 %v671, %v1375
          %v1425 = vmul.f32 %v672, %v1377
          %v1426 = vmul.f32 %v673, %v1379
          %v1427 = vmul.f32 %v674, %v1381
          %v1428 = vmul.f32 %v675, %v1383
          %v1429 = vmul.f32 %v676, %v1385
          %v1430 = vmul.f32 %v677, %v1387
          %v1431 = vmul.f32 %v678, %v1389
          %v1432 = vmul.f32 %v679, %v1391
          %v1433 = vmul.f32 %v680, %v1393
          %v1434 = vmul.f32 %v681, %v1395
          %v1435 = vmul.f32 %v682, %v1397
          %v1436 = vmul.f32 %v683, %v1399
          %v1437 = vmul.f32 %v684, %v1401
          %v1438 = vpack.c.bf16 %v1411, %v1402
          %v1439 = vpack.c.bf16 %v1412, %v1403
          %v1440 = vpack.c.bf16 %v1413, %v1404
          %v1441 = vpack.c.bf16 %v1414, %v1405
          %v1442 = vpack.c.bf16 %v1415, %v1406
          %v1443 = vpack.c.bf16 %v1416, %v1407
          %v1444 = vpack.c.bf16 %v1417, %v1408
          %v1445 = vpack.c.bf16 %v1418, %v1409
          %v1446 = vpack.c.bf16 %v1419, %v1410
          %v1447 = vpack.c.bf16 %v1429, %v1420
          %v1448 = vpack.c.bf16 %v1430, %v1421
          %v1449 = vpack.c.bf16 %v1431, %v1422
          %v1450 = vpack.c.bf16 %v1432, %v1423
          %v1451 = vpack.c.bf16 %v1433, %v1424
          %v1452 = vpack.c.bf16 %v1434, %v1425
          %v1453 = vpack.c.bf16 %v1435, %v1426
          %v1454 = vpack.c.bf16 %v1436, %v1427
          %v1455 = vpack.c.bf16 %v1437, %v1428
          %1456 = vmatprep.subr.bf16.mxu0 0
          %1457 = vmatpush1.bf16.msra.mxu0 %v552
          %1458 = vmatprep.subr.bf16.mxu0 0
          %1459 = vmatpush1.bf16.msra.mxu0 %v553
          %1460 = vmatprep.subr.bf16.mxu0 0
          %1461 = vmatpush1.bf16.msra.mxu0 %v554
          %1462 = vmatprep.subr.bf16.mxu0 0
          %1463 = vmatpush1.bf16.msra.mxu0 %v555
          %1464 = vmatprep.subr.bf16.mxu0 0
          %1465 = vmatpush1.bf16.msra.mxu0 %v556
          %1466 = vmatprep.subr.bf16.mxu0 0
          %1467 = vmatpush1.bf16.msra.mxu0 %v557
          %1468 = vmatprep.subr.bf16.mxu0 0
          %1469 = vmatpush1.bf16.msra.mxu0 %v558
          %1470 = vmatprep.subr.bf16.mxu0 0
          %1471 = vmatpush1.bf16.msra.mxu0 %v559
          %1472 = vmatprep.subr.bf16.mxu0 0
          %1473 = vmatpush1.bf16.msra.mxu0 %v560
          %1474 = vmatprep.subr.bf16.mxu0 0
          %1475 = vmatpush1.bf16.msra.mxu0 %v561
          %1476 = vmatprep.subr.bf16.mxu0 0
          %1477 = vmatpush1.bf16.msra.mxu0 %v562
          %1478 = vmatprep.subr.bf16.mxu0 0
          %1479 = vmatpush1.bf16.msra.mxu0 %v563
          %1480 = vmatprep.subr.bf16.mxu0 0
          %1481 = vmatpush1.bf16.msra.mxu0 %v564
          %1482 = vmatprep.subr.bf16.mxu0 0
          %1483 = vmatpush1.bf16.msra.mxu0 %v565
          %1484 = vmatprep.subr.bf16.mxu0 0
          %1485 = vmatpush1.bf16.msra.mxu0 %v566
          %1486 = vmatprep.subr.bf16.mxu0 0
          %1487 = vmatpush1.bf16.msra.mxu0 %v567
          %1488 = vmatprep.mubr.bf16.mxu0 %v1439
          %1489 = vmatmul.mubr.bf16.gmra.mrb[0].mxu0 %v1438
          %v1490 = vpop.f32.mrb[0].mxu0
          %v1491 = vadd.f32 0.0, %v1490
          %v1492 = vpop.f32.mrb[0].mxu0
          %v1493 = vpop.f32.mrb[0].mxu0
          %v1494 = vadd.f32 0.0, %v1493
          %v1495 = vpop.f32.mrb[0].mxu0
          %1496 = vmatprep.mubr.bf16.mxu0 %v1448
          %1497 = vmatmul.mubr.bf16.gmra.mrb[0].mxu0 %v1447
          %v1498 = vpop.f32.mrb[0].mxu0
          %v1499 = vadd.f32 0.0, %v1498
          %v1500 = vpop.f32.mrb[0].mxu0
          %v1501 = vpop.f32.mrb[0].mxu0
          %v1502 = vadd.f32 0.0, %v1501
          %v1503 = vpop.f32.mrb[0].mxu0
          %1504 = vdwg.mxu0
          %1505 = vmatprep.subr.bf16.mxu0 0
          %1506 = vmatpush1.bf16.msra.mxu0 %v568
          %1507 = vmatprep.subr.bf16.mxu0 0
          %1508 = vmatpush1.bf16.msra.mxu0 %v569
          %1509 = vmatprep.subr.bf16.mxu0 0
          %1510 = vmatpush1.bf16.msra.mxu0 %v570
          %1511 = vmatprep.subr.bf16.mxu0 0
          %1512 = vmatpush1.bf16.msra.mxu0 %v571
          %1513 = vmatprep.subr.bf16.mxu0 0
          %1514 = vmatpush1.bf16.msra.mxu0 %v572
          %1515 = vmatprep.subr.bf16.mxu0 0
          %1516 = vmatpush1.bf16.msra.mxu0 %v573
          %1517 = vmatprep.subr.bf16.mxu0 0
          %1518 = vmatpush1.bf16.msra.mxu0 %v574
          %1519 = vmatprep.subr.bf16.mxu0 0
          %1520 = vmatpush1.bf16.msra.mxu0 %v575
          %1521 = vmatprep.subr.bf16.mxu0 0
          %1522 = vmatpush1.bf16.msra.mxu0 %v576
          %1523 = vmatprep.subr.bf16.mxu0 0
          %1524 = vmatpush1.bf16.msra.mxu0 %v577
          %1525 = vmatprep.subr.bf16.mxu0 0
          %1526 = vmatpush1.bf16.msra.mxu0 %v578
          %1527 = vmatprep.subr.bf16.mxu0 0
          %1528 = vmatpush1.bf16.msra.mxu0 %v579
          %1529 = vmatprep.subr.bf16.mxu0 0
          %1530 = vmatpush1.bf16.msra.mxu0 %v580
          %1531 = vmatprep.subr.bf16.mxu0 0
          %1532 = vmatpush1.bf16.msra.mxu0 %v581
          %1533 = vmatprep.subr.bf16.mxu0 0
          %1534 = vmatpush1.bf16.msra.mxu0 %v582
          %1535 = vmatprep.subr.bf16.mxu0 0
          %1536 = vmatpush1.bf16.msra.mxu0 %v583
          %1537 = vmatprep.mubr.bf16.mxu0 %v1441
          %1538 = vmatmul.mubr.bf16.gmra.mrb[0].mxu0 %v1440
          %v1539 = vpop.f32.mrb[0].mxu0
          %v1540 = vadd.f32 %v1491, %v1539
          %v1541 = vpop.f32.mrb[0].mxu0
          %v1542 = vpop.f32.mrb[0].mxu0
          %v1543 = vadd.f32 %v1494, %v1542
          %v1544 = vpop.f32.mrb[0].mxu0
          %1545 = vmatprep.mubr.bf16.mxu0 %v1450
          %1546 = vmatmul.mubr.bf16.gmra.mrb[0].mxu0 %v1449
          %v1547 = vpop.f32.mrb[0].mxu0
          %v1548 = vadd.f32 %v1499, %v1547
          %v1549 = vpop.f32.mrb[0].mxu0
          %v1550 = vpop.f32.mrb[0].mxu0
          %v1551 = vadd.f32 %v1502, %v1550
          %v1552 = vpop.f32.mrb[0].mxu0
          %1553 = vdwg.mxu0
          %1554 = vmatprep.subr.bf16.mxu0 0
          %1555 = vmatpush1.bf16.msra.mxu0 %v584
          %1556 = vmatprep.subr.bf16.mxu0 0
          %1557 = vmatpush1.bf16.msra.mxu0 %v585
          %1558 = vmatprep.subr.bf16.mxu0 0
          %1559 = vmatpush1.bf16.msra.mxu0 %v586
          %1560 = vmatprep.subr.bf16.mxu0 0
          %1561 = vmatpush1.bf16.msra.mxu0 %v587
          %1562 = vmatprep.subr.bf16.mxu0 0
          %1563 = vmatpush1.bf16.msra.mxu0 %v588
          %1564 = vmatprep.subr.bf16.mxu0 0
          %1565 = vmatpush1.bf16.msra.mxu0 %v589
          %1566 = vmatprep.subr.bf16.mxu0 0
          %1567 = vmatpush1.bf16.msra.mxu0 %v590
          %1568 = vmatprep.subr.bf16.mxu0 0
          %1569 = vmatpush1.bf16.msra.mxu0 %v591
          %1570 = vmatprep.subr.bf16.mxu0 0
          %1571 = vmatpush1.bf16.msra.mxu0 %v592
          %1572 = vmatprep.subr.bf16.mxu0 0
          %1573 = vmatpush1.bf16.msra.mxu0 %v593
          %1574 = vmatprep.subr.bf16.mxu0 0
          %1575 = vmatpush1.bf16.msra.mxu0 %v594
          %1576 = vmatprep.subr.bf16.mxu0 0
          %1577 = vmatpush1.bf16.msra.mxu0 %v595
          %1578 = vmatprep.subr.bf16.mxu0 0
          %1579 = vmatpush1.bf16.msra.mxu0 %v596
          %1580 = vmatprep.subr.bf16.mxu0 0
          %1581 = vmatpush1.bf16.msra.mxu0 %v597
          %1582 = vmatprep.subr.bf16.mxu0 0
          %1583 = vmatpush1.bf16.msra.mxu0 %v598
          %1584 = vmatprep.subr.bf16.mxu0 0
          %1585 = vmatpush1.bf16.msra.mxu0 %v599
          %1586 = vmatprep.mubr.bf16.mxu0 %v1443
          %1587 = vmatmul.mubr.bf16.gmra.mrb[0].mxu0 %v1442
          %v1588 = vpop.f32.mrb[0].mxu0
          %v1589 = vadd.f32 %v1540, %v1588
          %v1590 = vpop.f32.mrb[0].mxu0
          %v1591 = vpop.f32.mrb[0].mxu0
          %v1592 = vadd.f32 %v1543, %v1591
          %v1593 = vpop.f32.mrb[0].mxu0
          %1594 = vmatprep.mubr.bf16.mxu0 %v1452
          %1595 = vmatmul.mubr.bf16.gmra.mrb[0].mxu0 %v1451
          %v1596 = vpop.f32.mrb[0].mxu0
          %v1597 = vadd.f32 %v1548, %v1596
          %v1598 = vpop.f32.mrb[0].mxu0
          %v1599 = vpop.f32.mrb[0].mxu0
          %v1600 = vadd.f32 %v1551, %v1599
          %v1601 = vpop.f32.mrb[0].mxu0
          %1602 = vdwg.mxu0
          %1603 = vmatprep.subr.bf16.mxu0 0
          %1604 = vmatpush1.bf16.msra.mxu0 %v600
          %1605 = vmatprep.subr.bf16.mxu0 0
          %1606 = vmatpush1.bf16.msra.mxu0 %v601
          %1607 = vmatprep.subr.bf16.mxu0 0
          %1608 = vmatpush1.bf16.msra.mxu0 %v602
          %1609 = vmatprep.subr.bf16.mxu0 0
          %1610 = vmatpush1.bf16.msra.mxu0 %v603
          %1611 = vmatprep.subr.bf16.mxu0 0
          %1612 = vmatpush1.bf16.msra.mxu0 %v604
          %1613 = vmatprep.subr.bf16.mxu0 0
          %1614 = vmatpush1.bf16.msra.mxu0 %v605
          %1615 = vmatprep.subr.bf16.mxu0 0
          %1616 = vmatpush1.bf16.msra.mxu0 %v606
          %1617 = vmatprep.subr.bf16.mxu0 0
          %1618 = vmatpush1.bf16.msra.mxu0 %v607
          %1619 = vmatprep.subr.bf16.mxu0 0
          %1620 = vmatpush1.bf16.msra.mxu0 %v608
          %1621 = vmatprep.subr.bf16.mxu0 0
          %1622 = vmatpush1.bf16.msra.mxu0 %v609
          %1623 = vmatprep.subr.bf16.mxu0 0
          %1624 = vmatpush1.bf16.msra.mxu0 %v610
          %1625 = vmatprep.subr.bf16.mxu0 0
          %1626 = vmatpush1.bf16.msra.mxu0 %v611
          %1627 = vmatprep.subr.bf16.mxu0 0
          %1628 = vmatpush1.bf16.msra.mxu0 %v612
          %1629 = vmatprep.subr.bf16.mxu0 0
          %1630 = vmatpush1.bf16.msra.mxu0 %v613
          %1631 = vmatprep.subr.bf16.mxu0 0
          %1632 = vmatpush1.bf16.msra.mxu0 %v614
          %1633 = vmatprep.subr.bf16.mxu0 0
          %1634 = vmatpush1.bf16.msra.mxu0 %v615
          %1635 = vmatprep.mubr.bf16.mxu0 %v1445
          %1636 = vmatmul.mubr.bf16.gmra.mrb[0].mxu0 %v1444
          %v1637 = vpop.f32.mrb[0].mxu0
          %v1638 = vadd.f32 %v1589, %v1637
          %v1639 = vpop.f32.mrb[0].mxu0
          %v1640 = vpop.f32.mrb[0].mxu0
          %v1641 = vadd.f32 %v1592, %v1640
          %v1642 = vpop.f32.mrb[0].mxu0
          %1643 = vmatprep.mubr.bf16.mxu0 %v1454
          %1644 = vmatmul.mubr.bf16.gmra.mrb[0].mxu0 %v1453
          %v1645 = vpop.f32.mrb[0].mxu0
          %v1646 = vadd.f32 %v1597, %v1645
          %v1647 = vpop.f32.mrb[0].mxu0
          %v1648 = vpop.f32.mrb[0].mxu0
          %v1649 = vadd.f32 %v1600, %v1648
          %v1650 = vpop.f32.mrb[0].mxu0
          %1651 = vdwg.mxu0
          %1652 = vmatprep.subr.bf16.mxu0 0
          %1653 = vmatpush1.bf16.msra.mxu0 %v616
          %1654 = vmatprep.subr.bf16.mxu0 0
          %1655 = vmatpush1.bf16.msra.mxu0 %v617
          %1656 = vmatprep.subr.bf16.mxu0 0
          %1657 = vmatpush1.bf16.msra.mxu0 %v618
          %1658 = vmatprep.subr.bf16.mxu0 0
          %1659 = vmatpush1.bf16.msra.mxu0 %v619
          %1660 = vmatprep.subr.bf16.mxu0 0
          %1661 = vmatpush1.bf16.msra.mxu0 %v620
          %1662 = vmatprep.subr.bf16.mxu0 0
          %1663 = vmatpush1.bf16.msra.mxu0 %v621
          %1664 = vmatprep.subr.bf16.mxu0 0
          %1665 = vmatpush1.bf16.msra.mxu0 %v622
          %1666 = vmatprep.subr.bf16.mxu0 0
          %1667 = vmatpush1.bf16.msra.mxu0 %v623
          %1668 = vmatprep.subr.bf16.mxu0 0
          %1669 = vmatpush1.bf16.msra.mxu0 0
          %1670 = vmatprep.subr.bf16.mxu0 0
          %1671 = vmatpush1.bf16.msra.mxu0 0
          %1672 = vmatprep.subr.bf16.mxu0 0
          %1673 = vmatpush1.bf16.msra.mxu0 0
          %1674 = vmatprep.subr.bf16.mxu0 0
          %1675 = vmatpush1.bf16.msra.mxu0 0
          %1676 = vmatprep.subr.bf16.mxu0 0
          %1677 = vmatpush1.bf16.msra.mxu0 0
          %1678 = vmatprep.subr.bf16.mxu0 0
          %1679 = vmatpush1.bf16.msra.mxu0 0
          %1680 = vmatprep.subr.bf16.mxu0 0
          %1681 = vmatpush1.bf16.msra.mxu0 0
          %1682 = vmatprep.subr.bf16.mxu0 0
          %1683 = vmatpush1.bf16.msra.mxu0 0
          %1684 = vmatprep.mubr.bf16.mxu0 0
          %1685 = vmatmul.mubr.bf16.gmra.mrb[0].mxu0 %v1446
          %v1686 = vpop.f32.mrb[0].mxu0
          %v1687 = vadd.f32 %v1638, %v1686
          %v1688 = vpop.f32.mrb[0].mxu0
          %v1689 = vpop.f32.mrb[0].mxu0
          %v1690 = vadd.f32 %v1641, %v1689
          %v1691 = vpop.f32.mrb[0].mxu0
          %1692 = vmatprep.mubr.bf16.mxu0 0
          %1693 = vmatmul.mubr.bf16.gmra.mrb[0].mxu0 %v1455
          %v1694 = vpop.f32.mrb[0].mxu0
          %v1695 = vadd.f32 %v1646, %v1694
          %v1696 = vpop.f32.mrb[0].mxu0
          %v1697 = vpop.f32.mrb[0].mxu0
          %v1698 = vadd.f32 %v1649, %v1697
          %v1699 = vpop.f32.mrb[0].mxu0
          %1700 = vdwg.mxu0
          %v1702 = vlaneseq
          %v1703 = vshrl.u32 %v1702, 7
          %v1704 = vsub.s32 0, %v1703
          %v1705 = vrot.slane %v624, %v1704
          %v1707 = vmul.f32 %v1687, %v1705
          %v1708 = vmul.f32 %v1690, %v1705
          %v1709 = vmul.f32 %v1695, %v1705
          %v1710 = vmul.f32 %v1698, %v1705
          %1711 = vst [vmem:[#allocation3] sm:$0xff] %v1707
          %1712 = vst [vmem:[#allocation3 + $0x8] sm:$0xff] %v1708
          %1713 = vst [vmem:[#allocation3 + $0x10] sm:$0xff] %v1709
          %1714 = vst [vmem:[#allocation3 + $0x18] sm:$0xff] %v1710
        $region86: #{_lambda_.5} parent=77 // pred_fallthru
          _
        %p1715 = scmp.gt.s32.totalorder %s24, 0
        // Predicated region
        $region87: #{_lambda_.5} parent=77 // pred_check
          %p1716 = pneg %p1715
        $region88: #{_lambda_.5} parent=77 // pred_check_branch
          %1718 = sbr.rel (%p1716) target = $region90
        $region89: #{_lambda_.5} parent=77 // pred_region
          %s1719 = ssub.s32 %s24, 1
          %s1720 = scvt.s32.f32 %s1719
          %s1721 = sadd.f32 %s1720, -3.5
          %v1722 = vld [vmem:[#allocation2] sm:$0xff]
          %v1723 = vld [vmem:[#allocation2 + $0x8] sm:$0xff]
          %v1724 = vld [vmem:[#allocation2 + $0x10] sm:$0xff]
          %v1725 = vld [vmem:[#allocation2 + $0x18] sm:$0xff]
          %v1726 = vld [vmem:[#allocation2 + $0x20] sm:$0xff]
          %v1727 = vld [vmem:[#allocation2 + $0x28] sm:$0xff]
          %v1728 = vld [vmem:[#allocation2 + $0x30] sm:$0xff]
          %v1729 = vld [vmem:[#allocation2 + $0x38] sm:$0xff]
          %v1730 = vld [vmem:[#allocation2 + $0x40] sm:$0xff]
          %v1731 = vld [vmem:[#allocation2 + $0x48] sm:$0xff]
          %v1732 = vld [vmem:[#allocation2 + $0x50] sm:$0xff]
          %v1733 = vld [vmem:[#allocation2 + $0x58] sm:$0xff]
          %v1734 = vld [vmem:[#allocation2 + $0x60] sm:$0xff]
          %v1735 = vld [vmem:[#allocation2 + $0x68] sm:$0xff]
          %v1736 = vld [vmem:[#allocation2 + $0x70] sm:$0xff]
          %v1737 = vld [vmem:[#allocation2 + $0x78] sm:$0xff]
          %v1738 = vld [vmem:[#allocation2 + $0x80] sm:$0xff]
          %v1739 = vld [vmem:[#allocation2 + $0x88] sm:$0xff]
          %v1740 = vld [vmem:[#allocation2 + $0x90] sm:$0xff]
          %v1741 = vld [vmem:[#allocation2 + $0x98] sm:$0xff]
          %v1742 = vld [vmem:[#allocation2 + $0xa0] sm:$0xff]
          %v1743 = vld [vmem:[#allocation2 + $0xa8] sm:$0xff]
          %v1744 = vld [vmem:[#allocation2 + $0xb0] sm:$0xff]
          %v1745 = vld [vmem:[#allocation2 + $0xb8] sm:$0xff]
          %v1746 = vld [vmem:[#allocation2 + $0xc0] sm:$0xff]
          %v1747 = vld [vmem:[#allocation2 + $0xc8] sm:$0xff]
          %v1748 = vld [vmem:[#allocation2 + $0xd0] sm:$0xff]
          %v1749 = vld [vmem:[#allocation2 + $0xd8] sm:$0xff]
          %v1750 = vld [vmem:[#allocation2 + $0xe0] sm:$0xff]
          %v1751 = vld [vmem:[#allocation2 + $0xe8] sm:$0xff]
          %v1752 = vld [vmem:[#allocation2 + $0xf0] sm:$0xff]
          %v1753 = vld [vmem:[#allocation2 + $0xf8] sm:$0xff]
          %v1754 = vld [vmem:[#allocation2 + $0x100] sm:$0xff]
          %v1755 = vld [vmem:[#allocation2 + $0x108] sm:$0xff]
          %v1756 = vld [vmem:[#allocation2 + $0x110] sm:$0xff]
          %v1757 = vld [vmem:[#allocation2 + $0x118] sm:$0xff]
          %v1758 = vstv %s1721
          %v1759 = vsub.f32 %v1722, %v1758
          %v1760 = vsub.f32 %v1723, %v1758
          %v1761 = vsub.f32 %v1724, %v1758
          %v1762 = vsub.f32 %v1725, %v1758
          %v1763 = vsub.f32 %v1726, %v1758
          %v1764 = vsub.f32 %v1727, %v1758
          %v1765 = vsub.f32 %v1728, %v1758
          %v1766 = vsub.f32 %v1729, %v1758
          %v1767 = vsub.f32 %v1730, %v1758
          %v1768 = vsub.f32 %v1731, %v1758
          %v1769 = vsub.f32 %v1732, %v1758
          %v1770 = vsub.f32 %v1733, %v1758
          %v1771 = vsub.f32 %v1734, %v1758
          %v1772 = vsub.f32 %v1735, %v1758
          %v1773 = vsub.f32 %v1736, %v1758
          %v1774 = vsub.f32 %v1737, %v1758
          %v1775 = vsub.f32 %v1738, %v1758
          %v1776 = vsub.f32 %v1739, %v1758
          %v1777 = vsub.f32 %v1740, %v1758
          %v1778 = vsub.f32 %v1741, %v1758
          %v1779 = vsub.f32 %v1742, %v1758
          %v1780 = vsub.f32 %v1743, %v1758
          %v1781 = vsub.f32 %v1744, %v1758
          %v1782 = vsub.f32 %v1745, %v1758
          %v1783 = vsub.f32 %v1746, %v1758
          %v1784 = vsub.f32 %v1747, %v1758
          %v1785 = vsub.f32 %v1748, %v1758
          %v1786 = vsub.f32 %v1749, %v1758
          %v1787 = vsub.f32 %v1750, %v1758
          %v1788 = vsub.f32 %v1751, %v1758
          %v1789 = vsub.f32 %v1752, %v1758
          %v1790 = vsub.f32 %v1753, %v1758
          %v1791 = vsub.f32 %v1754, %v1758
          %v1792 = vsub.f32 %v1755, %v1758
          %v1793 = vsub.f32 %v1756, %v1758
          %v1794 = vsub.f32 %v1757, %v1758
          %v1795 = vmul.f32 %v1759, %v1759
          %v1796 = vmul.f32 %v1760, %v1760
          %v1797 = vmul.f32 %v1761, %v1761
          %v1798 = vmul.f32 %v1762, %v1762
          %v1799 = vmul.f32 %v1763, %v1763
          %v1800 = vmul.f32 %v1764, %v1764
          %v1801 = vmul.f32 %v1765, %v1765
          %v1802 = vmul.f32 %v1766, %v1766
          %v1803 = vmul.f32 %v1767, %v1767
          %v1804 = vmul.f32 %v1768, %v1768
          %v1805 = vmul.f32 %v1769, %v1769
          %v1806 = vmul.f32 %v1770, %v1770
          %v1807 = vmul.f32 %v1771, %v1771
          %v1808 = vmul.f32 %v1772, %v1772
          %v1809 = vmul.f32 %v1773, %v1773
          %v1810 = vmul.f32 %v1774, %v1774
          %v1811 = vmul.f32 %v1775, %v1775
          %v1812 = vmul.f32 %v1776, %v1776
          %v1813 = vmul.f32 %v1777, %v1777
          %v1814 = vmul.f32 %v1778, %v1778
          %v1815 = vmul.f32 %v1779, %v1779
          %v1816 = vmul.f32 %v1780, %v1780
          %v1817 = vmul.f32 %v1781, %v1781
          %v1818 = vmul.f32 %v1782, %v1782
          %v1819 = vmul.f32 %v1783, %v1783
          %v1820 = vmul.f32 %v1784, %v1784
          %v1821 = vmul.f32 %v1785, %v1785
          %v1822 = vmul.f32 %v1786, %v1786
          %v1823 = vmul.f32 %v1787, %v1787
          %v1824 = vmul.f32 %v1788, %v1788
          %v1825 = vmul.f32 %v1789, %v1789
          %v1826 = vmul.f32 %v1790, %v1790
          %v1827 = vmul.f32 %v1791, %v1791
          %v1828 = vmul.f32 %v1792, %v1792
          %v1829 = vmul.f32 %v1793, %v1793
          %v1830 = vmul.f32 %v1794, %v1794
          %v1831 = vsub.f32 0.0, %v1795
          %v1832 = vsub.f32 0.0, %v1796
          %v1833 = vsub.f32 0.0, %v1797
          %v1834 = vsub.f32 0.0, %v1798
          %v1835 = vsub.f32 0.0, %v1799
          %v1836 = vsub.f32 0.0, %v1800
          %v1837 = vsub.f32 0.0, %v1801
          %v1838 = vsub.f32 0.0, %v1802
          %v1839 = vsub.f32 0.0, %v1803
          %v1840 = vsub.f32 0.0, %v1804
          %v1841 = vsub.f32 0.0, %v1805
          %v1842 = vsub.f32 0.0, %v1806
          %v1843 = vsub.f32 0.0, %v1807
          %v1844 = vsub.f32 0.0, %v1808
          %v1845 = vsub.f32 0.0, %v1809
          %v1846 = vsub.f32 0.0, %v1810
          %v1847 = vsub.f32 0.0, %v1811
          %v1848 = vsub.f32 0.0, %v1812
          %v1849 = vsub.f32 0.0, %v1813
          %v1850 = vsub.f32 0.0, %v1814
          %v1851 = vsub.f32 0.0, %v1815
          %v1852 = vsub.f32 0.0, %v1816
          %v1853 = vsub.f32 0.0, %v1817
          %v1854 = vsub.f32 0.0, %v1818
          %v1855 = vsub.f32 0.0, %v1819
          %v1856 = vsub.f32 0.0, %v1820
          %v1857 = vsub.f32 0.0, %v1821
          %v1858 = vsub.f32 0.0, %v1822
          %v1859 = vsub.f32 0.0, %v1823
          %v1860 = vsub.f32 0.0, %v1824
          %v1861 = vsub.f32 0.0, %v1825
          %v1862 = vsub.f32 0.0, %v1826
          %v1863 = vsub.f32 0.0, %v1827
          %v1864 = vsub.f32 0.0, %v1828
          %v1865 = vsub.f32 0.0, %v1829
          %v1866 = vsub.f32 0.0, %v1830
          %v1867 = vmul.f32 %v1831, 1.442695
          %v1868 = vpow.pop %v1867
          %v1869 = vmul.f32 %v1832, 1.442695
          %v1870 = vpow.pop %v1869
          %v1871 = vmul.f32 %v1833, 1.442695
          %v1872 = vpow.pop %v1871
          %v1873 = vmul.f32 %v1834, 1.442695
          %v1874 = vpow.pop %v1873
          %v1875 = vmul.f32 %v1835, 1.442695
          %v1876 = vpow.pop %v1875
          %v1877 = vmul.f32 %v1836, 1.442695
          %v1878 = vpow.pop %v1877
          %v1879 = vmul.f32 %v1837, 1.442695
          %v1880 = vpow.pop %v1879
          %v1881 = vmul.f32 %v1838, 1.442695
          %v1882 = vpow.pop %v1881
          %v1883 = vmul.f32 %v1839, 1.442695
          %v1884 = vpow.pop %v1883
          %v1885 = vmul.f32 %v1840, 1.442695
          %v1886 = vpow.pop %v1885
          %v1887 = vmul.f32 %v1841, 1.442695
          %v1888 = vpow.pop %v1887
          %v1889 = vmul.f32 %v1842, 1.442695
          %v1890 = vpow.pop %v1889
          %v1891 = vmul.f32 %v1843, 1.442695
          %v1892 = vpow.pop %v1891
          %v1893 = vmul.f32 %v1844, 1.442695
          %v1894 = vpow.pop %v1893
          %v1895 = vmul.f32 %v1845, 1.442695
          %v1896 = vpow.pop %v1895
          %v1897 = vmul.f32 %v1846, 1.442695
          %v1898 = vpow.pop %v1897
          %v1899 = vmul.f32 %v1847, 1.442695
          %v1900 = vpow.pop %v1899
          %v1901 = vmul.f32 %v1848, 1.442695
          %v1902 = vpow.pop %v1901
          %v1903 = vmul.f32 %v1849, 1.442695
          %v1904 = vpow.pop %v1903
          %v1905 = vmul.f32 %v1850, 1.442695
          %v1906 = vpow.pop %v1905
          %v1907 = vmul.f32 %v1851, 1.442695
          %v1908 = vpow.pop %v1907
          %v1909 = vmul.f32 %v1852, 1.442695
          %v1910 = vpow.pop %v1909
          %v1911 = vmul.f32 %v1853, 1.442695
          %v1912 = vpow.pop %v1911
          %v1913 = vmul.f32 %v1854, 1.442695
          %v1914 = vpow.pop %v1913
          %v1915 = vmul.f32 %v1855, 1.442695
          %v1916 = vpow.pop %v1915
          %v1917 = vmul.f32 %v1856, 1.442695
          %v1918 = vpow.pop %v1917
          %v1919 = vmul.f32 %v1857, 1.442695
          %v1920 = vpow.pop %v1919
          %v1921 = vmul.f32 %v1858, 1.442695
          %v1922 = vpow.pop %v1921
          %v1923 = vmul.f32 %v1859, 1.442695
          %v1924 = vpow.pop %v1923
          %v1925 = vmul.f32 %v1860, 1.442695
          %v1926 = vpow.pop %v1925
          %v1927 = vmul.f32 %v1861, 1.442695
          %v1928 = vpow.pop %v1927
          %v1929 = vmul.f32 %v1862, 1.442695
          %v1930 = vpow.pop %v1929
          %v1931 = vmul.f32 %v1863, 1.442695
          %v1932 = vpow.pop %v1931
          %v1933 = vmul.f32 %v1864, 1.442695
          %v1934 = vpow.pop %v1933
          %v1935 = vmul.f32 %v1865, 1.442695
          %v1936 = vpow.pop %v1935
          %v1937 = vmul.f32 %v1866, 1.442695
          %v1938 = vpow.pop %v1937
          %v1939 = vpack.c.bf16 %v1886, %v1868
          %v1940 = vpack.c.bf16 %v1888, %v1870
          %v1941 = vpack.c.bf16 %v1890, %v1872
          %v1942 = vpack.c.bf16 %v1892, %v1874
          %v1943 = vpack.c.bf16 %v1894, %v1876
          %v1944 = vpack.c.bf16 %v1896, %v1878
          %v1945 = vpack.c.bf16 %v1898, %v1880
          %v1946 = vpack.c.bf16 %v1900, %v1882
          %v1947 = vpack.c.bf16 %v1902, %v1884
          %v1948 = vpack.c.bf16 %v1922, %v1904
          %v1949 = vpack.c.bf16 %v1924, %v1906
          %v1950 = vpack.c.bf16 %v1926, %v1908
          %v1951 = vpack.c.bf16 %v1928, %v1910
          %v1952 = vpack.c.bf16 %v1930, %v1912
          %v1953 = vpack.c.bf16 %v1932, %v1914
          %v1954 = vpack.c.bf16 %v1934, %v1916
          %v1955 = vpack.c.bf16 %v1936, %v1918
          %v1956 = vpack.c.bf16 %v1938, %v1920
          %v1957 = vld [vmem:[#allocation3] sm:$0xff]
          %v1958 = vld [vmem:[#allocation3 + $0x8] sm:$0xff]
          %v1959 = vld [vmem:[#allocation3 + $0x10] sm:$0xff]
          %v1960 = vld [vmem:[#allocation3 + $0x18] sm:$0xff]
          %1961 = vmatprep.subr.bf16.mxu0 0
          %1962 = vmatpush1.bf16.msra.mxu0 %v552
          %1963 = vmatprep.subr.bf16.mxu0 0
          %1964 = vmatpush1.bf16.msra.mxu0 %v553
          %1965 = vmatprep.subr.bf16.mxu0 0
          %1966 = vmatpush1.bf16.msra.mxu0 %v554
          %1967 = vmatprep.subr.bf16.mxu0 0
          %1968 = vmatpush1.bf16.msra.mxu0 %v555
          %1969 = vmatprep.subr.bf16.mxu0 0
          %1970 = vmatpush1.bf16.msra.mxu0 %v556
          %1971 = vmatprep.subr.bf16.mxu0 0
          %1972 = vmatpush1.bf16.msra.mxu0 %v557
          %1973 = vmatprep.subr.bf16.mxu0 0
          %1974 = vmatpush1.bf16.msra.mxu0 %v558
          %1975 = vmatprep.subr.bf16.mxu0 0
          %1976 = vmatpush1.bf16.msra.mxu0 %v559
          %1977 = vmatprep.subr.bf16.mxu0 0
          %1978 = vmatpush1.bf16.msra.mxu0 %v560
          %1979 = vmatprep.subr.bf16.mxu0 0
          %1980 = vmatpush1.bf16.msra.mxu0 %v561
          %1981 = vmatprep.subr.bf16.mxu0 0
          %1982 = vmatpush1.bf16.msra.mxu0 %v562
          %1983 = vmatprep.subr.bf16.mxu0 0
          %1984 = vmatpush1.bf16.msra.mxu0 %v563
          %1985 = vmatprep.subr.bf16.mxu0 0
          %1986 = vmatpush1.bf16.msra.mxu0 %v564
          %1987 = vmatprep.subr.bf16.mxu0 0
          %1988 = vmatpush1.bf16.msra.mxu0 %v565
          %1989 = vmatprep.subr.bf16.mxu0 0
          %1990 = vmatpush1.bf16.msra.mxu0 %v566
          %1991 = vmatprep.subr.bf16.mxu0 0
          %1992 = vmatpush1.bf16.msra.mxu0 %v567
          %1993 = vmatprep.mubr.bf16.mxu0 %v1940
          %1994 = vmatmul.mubr.bf16.gmra.mrb[0].mxu0 %v1939
          %v1995 = vpop.f32.mrb[0].mxu0
          %v1996 = vadd.f32 0.0, %v1995
          %v1997 = vpop.f32.mrb[0].mxu0
          %v1998 = vpop.f32.mrb[0].mxu0
          %v1999 = vadd.f32 0.0, %v1998
          %v2000 = vpop.f32.mrb[0].mxu0
          %2001 = vmatprep.mubr.bf16.mxu0 %v1949
          %2002 = vmatmul.mubr.bf16.gmra.mrb[0].mxu0 %v1948
          %v2003 = vpop.f32.mrb[0].mxu0
          %v2004 = vadd.f32 0.0, %v2003
          %v2005 = vpop.f32.mrb[0].mxu0
          %v2006 = vpop.f32.mrb[0].mxu0
          %v2007 = vadd.f32 0.0, %v2006
          %v2008 = vpop.f32.mrb[0].mxu0
          %2009 = vdwg.mxu0
          %2010 = vmatprep.subr.bf16.mxu0 0
          %2011 = vmatpush1.bf16.msra.mxu0 %v568
          %2012 = vmatprep.subr.bf16.mxu0 0
          %2013 = vmatpush1.bf16.msra.mxu0 %v569
          %2014 = vmatprep.subr.bf16.mxu0 0
          %2015 = vmatpush1.bf16.msra.mxu0 %v570
          %2016 = vmatprep.subr.bf16.mxu0 0
          %2017 = vmatpush1.bf16.msra.mxu0 %v571
          %2018 = vmatprep.subr.bf16.mxu0 0
          %2019 = vmatpush1.bf16.msra.mxu0 %v572
          %2020 = vmatprep.subr.bf16.mxu0 0
          %2021 = vmatpush1.bf16.msra.mxu0 %v573
          %2022 = vmatprep.subr.bf16.mxu0 0
          %2023 = vmatpush1.bf16.msra.mxu0 %v574
          %2024 = vmatprep.subr.bf16.mxu0 0
          %2025 = vmatpush1.bf16.msra.mxu0 %v575
          %2026 = vmatprep.subr.bf16.mxu0 0
          %2027 = vmatpush1.bf16.msra.mxu0 %v576
          %2028 = vmatprep.subr.bf16.mxu0 0
          %2029 = vmatpush1.bf16.msra.mxu0 %v577
          %2030 = vmatprep.subr.bf16.mxu0 0
          %2031 = vmatpush1.bf16.msra.mxu0 %v578
          %2032 = vmatprep.subr.bf16.mxu0 0
          %2033 = vmatpush1.bf16.msra.mxu0 %v579
          %2034 = vmatprep.subr.bf16.mxu0 0
          %2035 = vmatpush1.bf16.msra.mxu0 %v580
          %2036 = vmatprep.subr.bf16.mxu0 0
          %2037 = vmatpush1.bf16.msra.mxu0 %v581
          %2038 = vmatprep.subr.bf16.mxu0 0
          %2039 = vmatpush1.bf16.msra.mxu0 %v582
          %2040 = vmatprep.subr.bf16.mxu0 0
          %2041 = vmatpush1.bf16.msra.mxu0 %v583
          %2042 = vmatprep.mubr.bf16.mxu0 %v1942
          %2043 = vmatmul.mubr.bf16.gmra.mrb[0].mxu0 %v1941
          %v2044 = vpop.f32.mrb[0].mxu0
          %v2045 = vadd.f32 %v1996, %v2044
          %v2046 = vpop.f32.mrb[0].mxu0
          %v2047 = vpop.f32.mrb[0].mxu0
          %v2048 = vadd.f32 %v1999, %v2047
          %v2049 = vpop.f32.mrb[0].mxu0
          %2050 = vmatprep.mubr.bf16.mxu0 %v1951
          %2051 = vmatmul.mubr.bf16.gmra.mrb[0].mxu0 %v1950
          %v2052 = vpop.f32.mrb[0].mxu0
          %v2053 = vadd.f32 %v2004, %v2052
          %v2054 = vpop.f32.mrb[0].mxu0
          %v2055 = vpop.f32.mrb[0].mxu0
          %v2056 = vadd.f32 %v2007, %v2055
          %v2057 = vpop.f32.mrb[0].mxu0
          %2058 = vdwg.mxu0
          %2059 = vmatprep.subr.bf16.mxu0 0
          %2060 = vmatpush1.bf16.msra.mxu0 %v584
          %2061 = vmatprep.subr.bf16.mxu0 0
          %2062 = vmatpush1.bf16.msra.mxu0 %v585
          %2063 = vmatprep.subr.bf16.mxu0 0
          %2064 = vmatpush1.bf16.msra.mxu0 %v586
          %2065 = vmatprep.subr.bf16.mxu0 0
          %2066 = vmatpush1.bf16.msra.mxu0 %v587
          %2067 = vmatprep.subr.bf16.mxu0 0
          %2068 = vmatpush1.bf16.msra.mxu0 %v588
          %2069 = vmatprep.subr.bf16.mxu0 0
          %2070 = vmatpush1.bf16.msra.mxu0 %v589
          %2071 = vmatprep.subr.bf16.mxu0 0
          %2072 = vmatpush1.bf16.msra.mxu0 %v590
          %2073 = vmatprep.subr.bf16.mxu0 0
          %2074 = vmatpush1.bf16.msra.mxu0 %v591
          %2075 = vmatprep.subr.bf16.mxu0 0
          %2076 = vmatpush1.bf16.msra.mxu0 %v592
          %2077 = vmatprep.subr.bf16.mxu0 0
          %2078 = vmatpush1.bf16.msra.mxu0 %v593
          %2079 = vmatprep.subr.bf16.mxu0 0
          %2080 = vmatpush1.bf16.msra.mxu0 %v594
          %2081 = vmatprep.subr.bf16.mxu0 0
          %2082 = vmatpush1.bf16.msra.mxu0 %v595
          %2083 = vmatprep.subr.bf16.mxu0 0
          %2084 = vmatpush1.bf16.msra.mxu0 %v596
          %2085 = vmatprep.subr.bf16.mxu0 0
          %2086 = vmatpush1.bf16.msra.mxu0 %v597
          %2087 = vmatprep.subr.bf16.mxu0 0
          %2088 = vmatpush1.bf16.msra.mxu0 %v598
          %2089 = vmatprep.subr.bf16.mxu0 0
          %2090 = vmatpush1.bf16.msra.mxu0 %v599
          %2091 = vmatprep.mubr.bf16.mxu0 %v1944
          %2092 = vmatmul.mubr.bf16.gmra.mrb[0].mxu0 %v1943
          %v2093 = vpop.f32.mrb[0].mxu0
          %v2094 = vadd.f32 %v2045, %v2093
          %v2095 = vpop.f32.mrb[0].mxu0
          %v2096 = vpop.f32.mrb[0].mxu0
          %v2097 = vadd.f32 %v2048, %v2096
          %v2098 = vpop.f32.mrb[0].mxu0
          %2099 = vmatprep.mubr.bf16.mxu0 %v1953
          %2100 = vmatmul.mubr.bf16.gmra.mrb[0].mxu0 %v1952
          %v2101 = vpop.f32.mrb[0].mxu0
          %v2102 = vadd.f32 %v2053, %v2101
          %v2103 = vpop.f32.mrb[0].mxu0
          %v2104 = vpop.f32.mrb[0].mxu0
          %v2105 = vadd.f32 %v2056, %v2104
          %v2106 = vpop.f32.mrb[0].mxu0
          %2107 = vdwg.mxu0
          %2108 = vmatprep.subr.bf16.mxu0 0
          %2109 = vmatpush1.bf16.msra.mxu0 %v600
          %2110 = vmatprep.subr.bf16.mxu0 0
          %2111 = vmatpush1.bf16.msra.mxu0 %v601
          %2112 = vmatprep.subr.bf16.mxu0 0
          %2113 = vmatpush1.bf16.msra.mxu0 %v602
          %2114 = vmatprep.subr.bf16.mxu0 0
          %2115 = vmatpush1.bf16.msra.mxu0 %v603
          %2116 = vmatprep.subr.bf16.mxu0 0
          %2117 = vmatpush1.bf16.msra.mxu0 %v604
          %2118 = vmatprep.subr.bf16.mxu0 0
          %2119 = vmatpush1.bf16.msra.mxu0 %v605
          %2120 = vmatprep.subr.bf16.mxu0 0
          %2121 = vmatpush1.bf16.msra.mxu0 %v606
          %2122 = vmatprep.subr.bf16.mxu0 0
          %2123 = vmatpush1.bf16.msra.mxu0 %v607
          %2124 = vmatprep.subr.bf16.mxu0 0
          %2125 = vmatpush1.bf16.msra.mxu0 %v608
          %2126 = vmatprep.subr.bf16.mxu0 0
          %2127 = vmatpush1.bf16.msra.mxu0 %v609
          %2128 = vmatprep.subr.bf16.mxu0 0
          %2129 = vmatpush1.bf16.msra.mxu0 %v610
          %2130 = vmatprep.subr.bf16.mxu0 0
          %2131 = vmatpush1.bf16.msra.mxu0 %v611
          %2132 = vmatprep.subr.bf16.mxu0 0
          %2133 = vmatpush1.bf16.msra.mxu0 %v612
          %2134 = vmatprep.subr.bf16.mxu0 0
          %2135 = vmatpush1.bf16.msra.mxu0 %v613
          %2136 = vmatprep.subr.bf16.mxu0 0
          %2137 = vmatpush1.bf16.msra.mxu0 %v614
          %2138 = vmatprep.subr.bf16.mxu0 0
          %2139 = vmatpush1.bf16.msra.mxu0 %v615
          %2140 = vmatprep.mubr.bf16.mxu0 %v1946
          %2141 = vmatmul.mubr.bf16.gmra.mrb[0].mxu0 %v1945
          %v2142 = vpop.f32.mrb[0].mxu0
          %v2143 = vadd.f32 %v2094, %v2142
          %v2144 = vpop.f32.mrb[0].mxu0
          %v2145 = vpop.f32.mrb[0].mxu0
          %v2146 = vadd.f32 %v2097, %v2145
          %v2147 = vpop.f32.mrb[0].mxu0
          %2148 = vmatprep.mubr.bf16.mxu0 %v1955
          %2149 = vmatmul.mubr.bf16.gmra.mrb[0].mxu0 %v1954
          %v2150 = vpop.f32.mrb[0].mxu0
          %v2151 = vadd.f32 %v2102, %v2150
          %v2152 = vpop.f32.mrb[0].mxu0
          %v2153 = vpop.f32.mrb[0].mxu0
          %v2154 = vadd.f32 %v2105, %v2153
          %v2155 = vpop.f32.mrb[0].mxu0
          %2156 = vdwg.mxu0
          %2157 = vmatprep.subr.bf16.mxu0 0
          %2158 = vmatpush1.bf16.msra.mxu0 %v616
          %2159 = vmatprep.subr.bf16.mxu0 0
          %2160 = vmatpush1.bf16.msra.mxu0 %v617
          %2161 = vmatprep.subr.bf16.mxu0 0
          %2162 = vmatpush1.bf16.msra.mxu0 %v618
          %2163 = vmatprep.subr.bf16.mxu0 0
          %2164 = vmatpush1.bf16.msra.mxu0 %v619
          %2165 = vmatprep.subr.bf16.mxu0 0
          %2166 = vmatpush1.bf16.msra.mxu0 %v620
          %2167 = vmatprep.subr.bf16.mxu0 0
          %2168 = vmatpush1.bf16.msra.mxu0 %v621
          %2169 = vmatprep.subr.bf16.mxu0 0
          %2170 = vmatpush1.bf16.msra.mxu0 %v622
          %2171 = vmatprep.subr.bf16.mxu0 0
          %2172 = vmatpush1.bf16.msra.mxu0 %v623
          %2173 = vmatprep.subr.bf16.mxu0 0
          %2174 = vmatpush1.bf16.msra.mxu0 0
          %2175 = vmatprep.subr.bf16.mxu0 0
          %2176 = vmatpush1.bf16.msra.mxu0 0
          %2177 = vmatprep.subr.bf16.mxu0 0
          %2178 = vmatpush1.bf16.msra.mxu0 0
          %2179 = vmatprep.subr.bf16.mxu0 0
          %2180 = vmatpush1.bf16.msra.mxu0 0
          %2181 = vmatprep.subr.bf16.mxu0 0
          %2182 = vmatpush1.bf16.msra.mxu0 0
          %2183 = vmatprep.subr.bf16.mxu0 0
          %2184 = vmatpush1.bf16.msra.mxu0 0
          %2185 = vmatprep.subr.bf16.mxu0 0
          %2186 = vmatpush1.bf16.msra.mxu0 0
          %2187 = vmatprep.subr.bf16.mxu0 0
          %2188 = vmatpush1.bf16.msra.mxu0 0
          %2189 = vmatprep.mubr.bf16.mxu0 0
          %2190 = vmatmul.mubr.bf16.gmra.mrb[0].mxu0 %v1947
          %v2191 = vpop.f32.mrb[0].mxu0
          %v2192 = vadd.f32 %v2143, %v2191
          %v2193 = vpop.f32.mrb[0].mxu0
          %v2194 = vpop.f32.mrb[0].mxu0
          %v2195 = vadd.f32 %v2146, %v2194
          %v2196 = vpop.f32.mrb[0].mxu0
          %2197 = vmatprep.mubr.bf16.mxu0 0
          %2198 = vmatmul.mubr.bf16.gmra.mrb[0].mxu0 %v1956
          %v2199 = vpop.f32.mrb[0].mxu0
          %v2200 = vadd.f32 %v2151, %v2199
          %v2201 = vpop.f32.mrb[0].mxu0
          %v2202 = vpop.f32.mrb[0].mxu0
          %v2203 = vadd.f32 %v2154, %v2202
          %v2204 = vpop.f32.mrb[0].mxu0
          %2205 = vdwg.mxu0
          %v2207 = vlaneseq
          %v2208 = vshrl.u32 %v2207, 7
          %v2209 = vsub.s32 0, %v2208
          %v2210 = vrot.slane %v624, %v2209
          %v2212 = vmul.f32 %v2192, %v2210
          %v2213 = vmul.f32 %v2195, %v2210
          %v2214 = vmul.f32 %v2200, %v2210
          %v2215 = vmul.f32 %v2203, %v2210
          %v2216 = vadd.f32 %v1957, %v2212
          %v2217 = vadd.f32 %v1958, %v2213
          %v2218 = vadd.f32 %v1959, %v2214
          %v2219 = vadd.f32 %v1960, %v2215
          %2220 = vst [vmem:[#allocation3] sm:$0xff] %v2216
          %2221 = vst [vmem:[#allocation3 + $0x8] sm:$0xff] %v2217
          %2222 = vst [vmem:[#allocation3 + $0x10] sm:$0xff] %v2218
          %2223 = vst [vmem:[#allocation3 + $0x18] sm:$0xff] %v2219
        $region90: #{_lambda_.5} parent=77 // pred_fallthru
          _
        %p2224 = scmp.eq.s32.totalorder %s24, 8
        // Predicated region
        $region91: #{_lambda_.5} parent=77 // pred_check
          %p2225 = pneg %p2224
        $region92: #{_lambda_.5} parent=77 // pred_check_branch
          %2227 = sbr.rel (%p2225) target = $region94
        $region93: #{_lambda_.5} parent=77 // pred_region
          %v2228 = vld [vmem:[#allocation3] sm:$0xff]
          %v2229 = vld [vmem:[#allocation3 + $0x8] sm:$0xff]
          %v2230 = vld [vmem:[#allocation3 + $0x10] sm:$0xff]
          %v2231 = vld [vmem:[#allocation3 + $0x18] sm:$0xff]
          %v2232 = vld [vmem:[%s513] sm:$0x1]
          %v2234 = vlaneseq
          %v2235 = vshrl.u32 %v2234, 7
          %v2236 = vsub.s32 0, %v2235
          %v2237 = vrot.slane %v2232, %v2236
          %v2239 = vadd.f32 %v2228, %v2237
          %v2240 = vadd.f32 %v2229, %v2237
          %v2241 = vadd.f32 %v2230, %v2237
          %v2242 = vadd.f32 %v2231, %v2237
          %v2243 = vmax.f32 %v2239, 0.0
          %v2244 = vmax.f32 %v2240, 0.0
          %v2245 = vmax.f32 %v2241, 0.0
          %v2246 = vmax.f32 %v2242, 0.0
          %v2247 = vpack.c.bf16 %v2244, %v2243
          %v2248 = vpack.c.bf16 %v2246, %v2245
          %v2251 = vunpack.c.l.b16 %v2247
          %v2252 = vunpack.c.h.b16 %v2247
          %v2253 = vunpack.c.l.b16 %v2248
          %v2254 = vunpack.c.h.b16 %v2248
          %v2255 = vpack.c.b16 %v2251, %v2251
          %v2256 = vpack.c.b16 %v2252, %v2252
          %v2257 = vpack.c.b16 %v2253, %v2253
          %v2258 = vpack.c.b16 %v2254, %v2254
          %2263 = vst [vmem:[%s495] sm:$0xf] %v2255
          %2264 = vst [vmem:[%s495 + $0x4] sm:$0xf] %v2256
          %2265 = vst [vmem:[%s495 + $0x8] sm:$0xf] %v2257
          %2266 = vst [vmem:[%s495 + $0xc] sm:$0xf] %v2258
        $region94: #{_lambda_.5} parent=77 // pred_fallthru
          _
        %s2267 = sand.u32 %s196, 1
        %s2268 = sand.u32 %s196, 1
        %s2269 = smul.addr %s2268, 16
        %s2270 = scalar_lea.vmem [#allocation5], %s2269
        // Predicated region
        $region95: #{_lambda_.5} parent=77 // pred_check
          %p2271 = pneg %p206
        $region96: #{_lambda_.5} parent=77 // pred_check_branch
          %2273 = sbr.rel (%p2271) target = $region98
        $region97: #{_lambda_.5} parent=77 // pred_region
          %s2274 = smul.u32 4, %s23
          %s2275 = smul.addr %s2274, 2
          %s2276 = sadd.s32 %s22, %s2275
          %s2277 = smul.addr %s2276, 4
          %s2278 = scalar_lea.vmem %s6, %s2277
          // Predicated region
          $region99: #{_lambda_.5} parent=97 // pred_check
            _
          $region100: #{_lambda_.5} parent=97 // pred_check_branch
            %2280 = sbr.rel (0) target = $region102
          $region101: #{_lambda_.5} parent=97 // pred_region
            // Predicated region
            $region103: #{_lambda_.5} parent=101 // pred_check
              _
            $region104: #{_lambda_.5} parent=101 // pred_check_branch
              %2282 = sbr.rel target = $region106
            $region105: #{_lambda_.5} parent=101 // pred_region
              // Predicated region
              $region118: #{_lambda_.5} parent=105 // pred_check
                _
              $region119: #{_lambda_.5} parent=105 // pred_check_branch
                %2303 = sbr.rel (0) target = $region121
              $region120: #{_lambda_.5} parent=105 // pred_region
                loop: start=0, step=1, limit=1
                $region122: #{_lambda_.5} parent=120 // loop_pre_header
                  _
                $region123: #{_lambda_.5} parent=120 // loop_header
                  %s2305 = sphi 0, %s2309
                  %p2306 = scmp.ge.s32.totalorder %s2305, 1
                  %s2310 = sphi %s2270, %s2270
                  %s2311 = sphi %s2278, %s2278
                $region124: #{_lambda_.5} parent=120 // loop_header_branch
                  %2308 = sbr.rel (%p2306) target = $region128
                $region125: #{_lambda_.5} parent=120 // loop_body
                  _
                $region126: #{_lambda_.5} parent=120 // loop_footer
                  %s2309 = sadd.s32 1, %s2305
                $region127: #{_lambda_.5} parent=120 // loop_footer_branch
                  %2304 = sbr.rel target = $region123
                $region128: #{_lambda_.5} parent=120 // loop_exit
                  _
                loop: start=0, step=1, limit=1
                $region129: #{_lambda_.5} parent=120 // loop_pre_header
                  _
                $region130: #{_lambda_.5} parent=120 // loop_header
                  %s2314 = sphi 0, %s2318
                  %p2315 = scmp.ge.s32.totalorder %s2314, 1
                  %s2319 = sphi %s2270, %s2270
                  %s2320 = sphi %s2278, %s2278
                $region131: #{_lambda_.5} parent=120 // loop_header_branch
                  %2317 = sbr.rel (%p2315) target = $region135
                $region132: #{_lambda_.5} parent=120 // loop_body
                  %v2321 = vld [vmem:[%s2319] sm:$0xf]
                  %2322 = vst [vmem:[%s2320] sm:$0xf] %v2321
                  %v2323 = vld [vmem:[%s2319 + $0x4] sm:$0xf]
                  %2324 = vst [vmem:[%s2320 + $0x8] sm:$0xf] %v2323
                  %v2325 = vld [vmem:[%s2319 + $0x8] sm:$0xf]
                  %2326 = vst [vmem:[%s2320 + $0x10] sm:$0xf] %v2325
                  %v2327 = vld [vmem:[%s2319 + $0xc] sm:$0xf]
                  %2328 = vst [vmem:[%s2320 + $0x18] sm:$0xf] %v2327
                $region133: #{_lambda_.5} parent=120 // loop_footer
                  %s2318 = sadd.s32 1, %s2314
                $region134: #{_lambda_.5} parent=120 // loop_footer_branch
                  %2313 = sbr.rel target = $region130
                $region135: #{_lambda_.5} parent=120 // loop_exit
                  _
              $region121: #{_lambda_.5} parent=105 // pred_fallthru
                _
            $region106: #{_lambda_.5} parent=101 // pred_fallthru
              _
            // Predicated region
            $region107: #{_lambda_.5} parent=101 // pred_check
              _
            $region108: #{_lambda_.5} parent=101 // pred_check_branch
              %2284 = sbr.rel (0) target = $region110
            $region109: #{_lambda_.5} parent=101 // pred_region
              loop: start=0, step=1, limit=1
              $region111: #{_lambda_.5} parent=109 // loop_pre_header
                _
              $region112: #{_lambda_.5} parent=109 // loop_header
                %s2287 = sphi 0, %s2291
                %p2288 = scmp.ge.s32.totalorder %s2287, 1
                %s2292 = sphi %s2270, %s2270
                %s2293 = sphi %s2278, %s2278
              $region113: #{_lambda_.5} parent=109 // loop_header_branch
                %2290 = sbr.rel (%p2288) target = $region117
              $region114: #{_lambda_.5} parent=109 // loop_body
                %v2294 = vld [vmem:[%s2292] sm:$0xf]
                %2295 = vst [vmem:[%s2293] sm:$0xf] %v2294
                %v2296 = vld [vmem:[%s2292 + $0x4] sm:$0xf]
                %2297 = vst [vmem:[%s2293 + $0x8] sm:$0xf] %v2296
                %v2298 = vld [vmem:[%s2292 + $0x8] sm:$0xf]
                %2299 = vst [vmem:[%s2293 + $0x10] sm:$0xf] %v2298
                %v2300 = vld [vmem:[%s2292 + $0xc] sm:$0xf]
                %2301 = vst [vmem:[%s2293 + $0x18] sm:$0xf] %v2300
              $region115: #{_lambda_.5} parent=109 // loop_footer
                %s2291 = sadd.s32 1, %s2287
              $region116: #{_lambda_.5} parent=109 // loop_footer_branch
                %2286 = sbr.rel target = $region112
              $region117: #{_lambda_.5} parent=109 // loop_exit
                _
            $region110: #{_lambda_.5} parent=101 // pred_fallthru
              _
          $region102: #{_lambda_.5} parent=97 // pred_fallthru
            _
          %2329 = vnop
        $region98: #{_lambda_.5} parent=77 // pred_fallthru
          _
      $region78: #{_lambda_.5} parent=5 // pred_fallthru
        _
      %p2330 = scmp.le.s32.totalorder 2, %s12
      // Predicated region
      $region136: #{_lambda_.5} parent=5 // pred_check
        %p2331 = pneg %p2330
      $region137: #{_lambda_.5} parent=5 // pred_check_branch
        %2333 = sbr.rel (%p2331) target = $region139
      $region138: #{_lambda_.5} parent=5 // pred_region
        %s2334 = ssub.s32 %s12, 2
        // Predicated region
        $region140: #{_lambda_.5} parent=138 // pred_check
          %p2335 = pneg %p212
        $region141: #{_lambda_.5} parent=138 // pred_check_branch
          %2337 = sbr.rel (%p2335) target = $region143
        $region142: #{_lambda_.5} parent=138 // pred_region
          %s2338 = sand.u32 %s197, 1
          %s2339 = sand.u32 %s197, 1
          %s2340 = smul.addr %s2339, 16
          %s2341 = scalar_lea.vmem [#allocation5], %s2340
        $region143: #{_lambda_.5} parent=138 // pred_fallthru
          _
      $region139: #{_lambda_.5} parent=5 // pred_fallthru
        _
    $region6: #{_lambda_.5} parent=1 // loop_footer
      %s16 = sadd.s32 1, %s12
    $region7: #{_lambda_.5} parent=1 // loop_footer_branch
      %11 = sbr.rel target = $region3
    $region8: #{_lambda_.5} parent=1 // loop_exit
      _

</llo_original>
